<compile_context>
chip_gen: v7x
topology: tpu7x:2x2x1
jax: 0.10.0
libtpu: 0.0.40
codegen_flags: <defaults>
</compile_context>

<pallas_src>
import functools

import jax
import jax.numpy as jnp
from jax import lax
from jax.experimental import pallas as pl
from jax.experimental.pallas import tpu as pltpu

P = 6            # number of PCB parts
C = 2048         # backbone output channels
K = 256          # 1x1 conv output channels
BN_EPS = 1e-5
NORM_EPS = 1e-12                     # F.normalize default eps
_VMEM_LIMIT = 32 * 1024 * 1024       # safe on v5e/v6e (128 MiB phys) and v7x (64 MiB phys)
_BLOCK_BUDGET = 24 * 1024 * 1024     # budget for double-buffered blocks (v7x-safe)


def fold_params(conv_w, conv_b, bn_gamma, bn_beta, bn_rmean, bn_rvar):
    """Fold eval-BatchNorm into the per-part 1x1 conv ONCE at model-load time.

    Returns:
      w_fold: [P, C, K] bf16   conv_w * bn_scale          (the only large weight DMA)
      s_fold: [P, 1, K] f32    conv_b * bn_scale + bn_shift
    The 1/(h*W) pool divisor is NOT folded here so the folded params are independent
    of the input spatial size; it is applied in-kernel to the small pooled tensor.
    """
    bn_scale = bn_gamma / jnp.sqrt(bn_rvar + BN_EPS)              # [P, 1, K]
    bn_shift = bn_beta - bn_rmean * bn_scale
    w_fold = (conv_w * bn_scale).astype(jnp.bfloat16)             # [P, C, K]
    s_fold = (conv_b * bn_scale + bn_shift).astype(jnp.float32)   # [P, 1, K]
    return w_fold, s_fold


def _all_parts_kernel(x_ref, w_ref, s_ref, o_ref, *, hw):
    """Small-batch fast path: one grid step, all P parts unrolled.

    x_ref : [N, P*hw, C] bf16   whole (flattened NHWC) feature map
    w_ref : [P, C, K]    bf16   folded weights (all parts, 6 MiB)
    s_ref : [P, 1, K]    f32    folded shifts
    o_ref : [N, P*K]     f32    concatenated normalized part features
    """
    inv_hw = 1.0 / hw
    for p in range(P):                                   # static unroll, P = 6
        stripe = x_ref[:, p * hw:(p + 1) * hw, :]        # [N, hw, C] bf16
        pooled = jnp.sum(stripe, axis=1, dtype=jnp.float32) * inv_hw     # [N, C]
        z = jnp.dot(pooled.astype(jnp.bfloat16), w_ref[p],
                    preferred_element_type=jnp.float32)                  # [N, K] on MXU
        z = z + s_ref[p]                                 # conv bias + eval BN (folded)
        z = jnp.maximum(z, 0.0)                          # ReLU
        sumsq = jnp.sum(z * z, axis=1, keepdims=True)
        inv = lax.rsqrt(jnp.maximum(sumsq, NORM_EPS * NORM_EPS))         # EUP
        o_ref[:, p * K:(p + 1) * K] = (z * (inv * 10.0)).astype(o_ref.dtype)


def _part_kernel(x_ref, w_ref, s_ref, o_ref, *, hw):
    """Tiled path: one grid step == one (part, N-tile) block.

    x_ref : [Nt, hw, C] bf16   one part-stripe of one batch tile
    w_ref : [C, K]      bf16   this part's folded weight (reused across inner N steps)
    s_ref : [1, K]      f32    this part's folded shift
    o_ref : [Nt, K]     f32    this part's 256-wide output slice for this batch tile
    """
    pooled = jnp.sum(x_ref[...], axis=1, dtype=jnp.float32) * (1.0 / hw)     # [Nt, C]
    z = jnp.dot(pooled.astype(jnp.bfloat16), w_ref[...],
                preferred_element_type=jnp.float32)                          # [Nt, K]
    z = z + s_ref[...]
    z = jnp.maximum(z, 0.0)
    sumsq = jnp.sum(z * z, axis=1, keepdims=True)
    inv = lax.rsqrt(jnp.maximum(sumsq, NORM_EPS * NORM_EPS))
    o_ref[...] = (z * (inv * 10.0)).astype(o_ref.dtype)


def _pick_n_tile(N, hw):
    """Largest multiple-of-8 divisor of N whose double-buffered blocks fit the budget."""
    w_blk = C * K * 2
    best = min(N, 8)
    for t in range(8, N + 1, 8):
        if N % t:
            continue
        if 2 * (t * hw * C * 2 + w_blk) + 2 * t * K * 4 <= _BLOCK_BUDGET:
            best = t
    return best


def feature_extractor(x_nhwc, w_fold, s_fold, *, n_tile=None):
    """x_nhwc: [N, H, W, C] bf16 backbone feature map (NHWC: lane-dense channels).
    Returns [N, P*K] f32 features (concat of 6 normalized*10 256-d part vectors)."""
    N, H, W, Cc = x_nhwc.shape
    assert Cc == C and H % P == 0
    h = H // P
    hw = h * W
    # bf16 packs 16 rows per sublane group: keep every stripe a dense packed tile.
    assert hw % 16 == 0, "h*W must be a multiple of 16 for a dense bf16 VMEM tile"
    x_flat = x_nhwc.reshape(N, H * W, C)        # contiguous reshape: no relayout, no copy

    x_bytes = N * H * W * C * 2
    w_bytes = P * C * K * 2
    small_batch = (N <= 8) and (2 * (x_bytes + w_bytes) + N * P * K * 4 <= _BLOCK_BUDGET)

    if small_batch:
        # One grid step: all 6 folded weights (6 MiB bf16) + the whole map fit VMEM.
        # Removes 5 grid steps of fixed overhead (toy sizes are latency-bound).
        return pl.pallas_call(
            functools.partial(_all_parts_kernel, hw=hw),
            out_shape=jax.ShapeDtypeStruct((N, P * K), jnp.float32),
            grid_spec=pltpu.PrefetchScalarGridSpec(
                num_scalar_prefetch=0,
                grid=(1,),
                in_specs=[
                    pl.BlockSpec((N, H * W, C), lambda i: (0, 0, 0)),
                    pl.BlockSpec((P, C, K), lambda i: (0, 0, 0)),
                    pl.BlockSpec((P, 1, K), lambda i: (0, 0, 0)),
                ],
                out_specs=pl.BlockSpec((N, P * K), lambda i: (0, 0)),
            ),
            compiler_params=pltpu.CompilerParams(
                dimension_semantics=("arbitrary",),
                vmem_limit_bytes=_VMEM_LIMIT),
        )(x_flat, w_fold, s_fold)

    # Tiled path: part axis OUTER, N-tile axis INNER -> the per-part weight's block
    # index is constant across consecutive inner steps, so Pallas skips its re-DMA
    # (weights fetched P times total instead of P * n_tiles).
    if n_tile is None:
        n_tile = _pick_n_tile(N, hw)
    assert N % n_tile == 0 and (n_tile % 8 == 0 or n_tile == N)
    n_tiles = N // n_tile

    return pl.pallas_call(
        functools.partial(_part_kernel, hw=hw),
        out_shape=jax.ShapeDtypeStruct((N, P * K), jnp.float32),
        grid_spec=pltpu.PrefetchScalarGridSpec(
            num_scalar_prefetch=0,
            grid=(P, n_tiles),
            in_specs=[
                pl.BlockSpec((n_tile, hw, C), lambda p, n: (n, p, 0)),
                pl.BlockSpec((pl.Squeezed(), C, K), lambda p, n: (p, 0, 0)),
                pl.BlockSpec((pl.Squeezed(), 1, K), lambda p, n: (p, 0, 0)),
            ],
            out_specs=pl.BlockSpec((n_tile, K), lambda p, n: (n, p)),
        ),
        compiler_params=pltpu.CompilerParams(
            # Disjoint output blocks on both axes (no accumulator) -> both axes can be
            # sharded across the two v7x TensorCores; no-op on single-TC v5e/v6e.
            dimension_semantics=("parallel", "parallel"),
            vmem_limit_bytes=_VMEM_LIMIT),
    )(x_flat, w_fold, s_fold)


def reference(x_nchw, conv_w, conv_b, bn_gamma, bn_beta, bn_rmean, bn_rvar):
    """Pure-JAX f32 reference mirroring the PyTorch forward (NCHW semantics)."""
    N, Cc, H, W = x_nchw.shape
    h = H // P
    bn_scale = bn_gamma / jnp.sqrt(bn_rvar + BN_EPS)
    bn_shift = bn_beta - bn_rmean * bn_scale
    ys = []
    for i in range(P):
        part = x_nchw[:, :, i * h:(i + 1) * h, :]
        pooled = jnp.mean(part, axis=(2, 3))                     # adaptive_avg_pool2d(.,(1,1))
        z = pooled @ conv_w[i] + conv_b[i, 0]                    # 1x1 conv
        z = z * bn_scale[i, 0] + bn_shift[i, 0]                  # eval BatchNorm
        z = jnp.maximum(z, 0.0)                                  # ReLU
        nrm = jnp.sqrt(jnp.sum(z * z, axis=1, keepdims=True))
        z = z / jnp.maximum(nrm, NORM_EPS) * 10.0                # F.normalize * 10
        ys.append(z)
    return jnp.concatenate(ys, axis=1)


if __name__ == "__main__":
    key = jax.random.PRNGKey(0)
    keys = jax.random.split(key, 8)

    # TODO(synk): the pretrained ResNet-50 backbone (self.resnet) and torch.load(state_path)
    # have no Pallas equivalent; the kernel starts from the backbone's output feature map,
    # which a real pipeline would emit directly in NHWC bf16 (no transpose/cast needed here).
    H, W = 12, 8                                 # small spatial: h = 2, hw = 16 per part

    # Raw per-part parameters: Conv2d(2048, 256, 1) + BatchNorm2d(256) in eval mode.
    conv_w = jax.random.normal(keys[0], (P, C, K), jnp.float32) * 0.02
    conv_b = jax.random.normal(keys[1], (P, 1, K), jnp.float32) * 0.01
    bn_gamma = 1.0 + 0.1 * jax.random.normal(keys[2], (P, 1, K), jnp.float32)
    bn_beta = 0.05 * jax.random.normal(keys[3], (P, 1, K), jnp.float32)
    bn_rmean = 0.1 * jax.random.normal(keys[4], (P, 1, K), jnp.float32)
    bn_rvar = 0.5 + 0.5 * jnp.abs(jax.random.normal(keys[5], (P, 1, K), jnp.float32))

    # Fold BN / bias ONCE (model-load time), not per call.
    w_fold, s_fold = fold_params(conv_w, conv_b, bn_gamma, bn_beta, bn_rmean, bn_rvar)
    (w_fold, s_fold) = jax.block_until_ready((w_fold, s_fold))

    ok = True
    for N, n_tile in ((2, None), (16, 8)):       # fast path, then tiled path
        x_nhwc_f32 = jax.random.normal(keys[6], (N, H, W, C), jnp.float32)
        x_nhwc = x_nhwc_f32.astype(jnp.bfloat16)            # backbone output: NHWC bf16
        out = feature_extractor(x_nhwc, w_fold, s_fold, n_tile=n_tile)
        out = jax.block_until_ready(out)

        x_nchw = jnp.transpose(x_nhwc_f32, (0, 3, 1, 2))    # reference uses PyTorch NCHW
        ref = reference(x_nchw, conv_w, conv_b, bn_gamma, bn_beta, bn_rmean, bn_rvar)
        ok = ok and (out.shape == (N, P * K))
        ok = ok and bool(jnp.allclose(out, ref, rtol=2e-2, atol=2e-2))

    assert ok, "mismatch vs JAX reference"
    print("KERNEL_OK")
</pallas_src>

<mosaic_0001>
module attributes {stable_mosaic.version = 11 : i64} {
  func.func @_all_parts_kernel(%arg0: i32, %arg1: memref<2x96x2048xbf16, #tpu.memory_space<vmem>>, %arg2: memref<6x2048x256xbf16, #tpu.memory_space<vmem>>, %arg3: memref<6x1x256xf32, #tpu.memory_space<vmem>>, %arg4: memref<2x1536xf32, #tpu.memory_space<vmem>>) attributes {dimension_semantics = [#tpu.dimension_semantics<arbitrary>], iteration_bounds = array<i64: 1>, scalar_prefetch = 0 : i64, scratch_operands = 0 : i64, tpu.core_type = #tpu.core_type<tc>, window_params = [{pipeline_mode = #tpu.pipeline_mode<synchronous>, transform_indices = @transform_0, window_bounds = array<i64: 2, 96, 2048>}, {pipeline_mode = #tpu.pipeline_mode<synchronous>, transform_indices = @transform_1, window_bounds = array<i64: 6, 2048, 256>}, {pipeline_mode = #tpu.pipeline_mode<synchronous>, transform_indices = @transform_2, window_bounds = array<i64: 6, 1, 256>}, {pipeline_mode = #tpu.pipeline_mode<synchronous>, transform_indices = @transform_3, window_bounds = array<i64: 2, 1536>}]} {
    %c0 = arith.constant 0 : index
    %c0_0 = arith.constant 0 : index
    %c0_1 = arith.constant 0 : index
    %0 = vector.load %arg1[%c0, %c0_0, %c0_1] : memref<2x96x2048xbf16, #tpu.memory_space<vmem>>, vector<2x16x2048xbf16>
    %1 = arith.extf %0 : vector<2x16x2048xbf16> to vector<2x16x2048xf32>
    %cst = arith.constant dense<0.000000e+00> : vector<2x2048xf32>
    %2 = vector.multi_reduction <add>, %1, %cst [1] : vector<2x16x2048xf32> to vector<2x2048xf32>
    %cst_2 = arith.constant 6.250000e-02 : f32
    %3 = vector.broadcast %cst_2 : f32 to vector<2x2048xf32>
    %4 = arith.mulf %2, %3 : vector<2x2048xf32>
    %5 = arith.truncf %4 : vector<2x2048xf32> to vector<2x2048xbf16>
    %c0_3 = arith.constant 0 : index
    %c0_4 = arith.constant 0 : index
    %c0_5 = arith.constant 0 : index
    %6 = vector.load %arg2[%c0_3, %c0_4, %c0_5] : memref<6x2048x256xbf16, #tpu.memory_space<vmem>>, vector<1x2048x256xbf16>
    %7 = vector.shape_cast %6 : vector<1x2048x256xbf16> to vector<2048x256xbf16>
    %cst_6 = arith.constant dense<0.000000e+00> : vector<2x256xf32>
    %8 = tpu.matmul %5, %7, %cst_6 {dimension_numbers = #tpu.dot_dimension_numbers<[1], [0], [0], [1], [0, 0, 1, 1], [], []>} : vector<2x2048xbf16>, vector<2048x256xbf16>, vector<2x256xf32> -> vector<2x256xf32>
    %c0_7 = arith.constant 0 : index
    %c0_8 = arith.constant 0 : index
    %c0_9 = arith.constant 0 : index
    %9 = vector.load %arg3[%c0_7, %c0_8, %c0_9] : memref<6x1x256xf32, #tpu.memory_space<vmem>>, vector<1x1x256xf32>
    %10 = vector.shape_cast %9 : vector<1x1x256xf32> to vector<1x256xf32>
    %11 = vector.broadcast %10 : vector<1x256xf32> to vector<2x256xf32>
    %12 = arith.addf %8, %11 : vector<2x256xf32>
    %cst_10 = arith.constant 0.000000e+00 : f32
    %13 = vector.broadcast %cst_10 : f32 to vector<2x256xf32>
    %14 = arith.maximumf %12, %13 : vector<2x256xf32>
    %15 = arith.mulf %14, %14 : vector<2x256xf32>
    %cst_11 = arith.constant dense<0.000000e+00> : vector<2xf32>
    %16 = vector.multi_reduction <add>, %15, %cst_11 [1] : vector<2x256xf32> to vector<2xf32>
    %17 = vector.shape_cast %16 : vector<2xf32> to vector<2x1xf32>
    %cst_12 = arith.constant 1.000000e-24 : f32
    %18 = vector.broadcast %cst_12 : f32 to vector<2x1xf32>
    %19 = arith.maximumf %17, %18 : vector<2x1xf32>
    %20 = math.rsqrt %19 : vector<2x1xf32>
    %cst_13 = arith.constant 1.000000e+01 : f32
    %21 = vector.broadcast %cst_13 : f32 to vector<2x1xf32>
    %22 = arith.mulf %20, %21 : vector<2x1xf32>
    %23 = vector.broadcast %22 : vector<2x1xf32> to vector<2x256xf32>
    %24 = arith.mulf %14, %23 : vector<2x256xf32>
    %c0_14 = arith.constant 0 : index
    %c0_15 = arith.constant 0 : index
    %25 = vector.load %arg4[%c0_14, %c0_15] : memref<2x1536xf32, #tpu.memory_space<vmem>>, vector<2x256xf32>
    tpu.vector_store %arg4[%c0_14, %c0_15], %24 {strides = array<i32>} : memref<2x1536xf32, #tpu.memory_space<vmem>>, vector<2x256xf32>,
    %c0_16 = arith.constant 0 : index
    %c16 = arith.constant 16 : index
    %c0_17 = arith.constant 0 : index
    %26 = vector.load %arg1[%c0_16, %c16, %c0_17] : memref<2x96x2048xbf16, #tpu.memory_space<vmem>>, vector<2x16x2048xbf16>
    %27 = arith.extf %26 : vector<2x16x2048xbf16> to vector<2x16x2048xf32>
    %cst_18 = arith.constant dense<0.000000e+00> : vector<2x2048xf32>
    %28 = vector.multi_reduction <add>, %27, %cst_18 [1] : vector<2x16x2048xf32> to vector<2x2048xf32>
    %cst_19 = arith.constant 6.250000e-02 : f32
    %29 = vector.broadcast %cst_19 : f32 to vector<2x2048xf32>
    %30 = arith.mulf %28, %29 : vector<2x2048xf32>
    %31 = arith.truncf %30 : vector<2x2048xf32> to vector<2x2048xbf16>
    %c1 = arith.constant 1 : index
    %c0_20 = arith.constant 0 : index
    %c0_21 = arith.constant 0 : index
    %32 = vector.load %arg2[%c1, %c0_20, %c0_21] : memref<6x2048x256xbf16, #tpu.memory_space<vmem>>, vector<1x2048x256xbf16>
    %33 = vector.shape_cast %32 : vector<1x2048x256xbf16> to vector<2048x256xbf16>
    %cst_22 = arith.constant dense<0.000000e+00> : vector<2x256xf32>
    %34 = tpu.matmul %31, %33, %cst_22 {dimension_numbers = #tpu.dot_dimension_numbers<[1], [0], [0], [1], [0, 0, 1, 1], [], []>} : vector<2x2048xbf16>, vector<2048x256xbf16>, vector<2x256xf32> -> vector<2x256xf32>
    %c1_23 = arith.constant 1 : index
    %c0_24 = arith.constant 0 : index
    %c0_25 = arith.constant 0 : index
    %35 = vector.load %arg3[%c1_23, %c0_24, %c0_25] : memref<6x1x256xf32, #tpu.memory_space<vmem>>, vector<1x1x256xf32>
    %36 = vector.shape_cast %35 : vector<1x1x256xf32> to vector<1x256xf32>
    %37 = vector.broadcast %36 : vector<1x256xf32> to vector<2x256xf32>
    %38 = arith.addf %34, %37 : vector<2x256xf32>
    %cst_26 = arith.constant 0.000000e+00 : f32
    %39 = vector.broadcast %cst_26 : f32 to vector<2x256xf32>
    %40 = arith.maximumf %38, %39 : vector<2x256xf32>
    %41 = arith.mulf %40, %40 : vector<2x256xf32>
    %cst_27 = arith.constant dense<0.000000e+00> : vector<2xf32>
    %42 = vector.multi_reduction <add>, %41, %cst_27 [1] : vector<2x256xf32> to vector<2xf32>
    %43 = vector.shape_cast %42 : vector<2xf32> to vector<2x1xf32>
    %cst_28 = arith.constant 1.000000e-24 : f32
    %44 = vector.broadcast %cst_28 : f32 to vector<2x1xf32>
    %45 = arith.maximumf %43, %44 : vector<2x1xf32>
    %46 = math.rsqrt %45 : vector<2x1xf32>
    %cst_29 = arith.constant 1.000000e+01 : f32
    %47 = vector.broadcast %cst_29 : f32 to vector<2x1xf32>
    %48 = arith.mulf %46, %47 : vector<2x1xf32>
    %49 = vector.broadcast %48 : vector<2x1xf32> to vector<2x256xf32>
    %50 = arith.mulf %40, %49 : vector<2x256xf32>
    %c0_30 = arith.constant 0 : index
    %c256 = arith.constant 256 : index
    %51 = vector.load %arg4[%c0_30, %c256] : memref<2x1536xf32, #tpu.memory_space<vmem>>, vector<2x256xf32>
    tpu.vector_store %arg4[%c0_30, %c256], %50 {strides = array<i32>} : memref<2x1536xf32, #tpu.memory_space<vmem>>, vector<2x256xf32>,
    %c0_31 = arith.constant 0 : index
    %c32 = arith.constant 32 : index
    %c0_32 = arith.constant 0 : index
    %52 = vector.load %arg1[%c0_31, %c32, %c0_32] : memref<2x96x2048xbf16, #tpu.memory_space<vmem>>, vector<2x16x2048xbf16>
    %53 = arith.extf %52 : vector<2x16x2048xbf16> to vector<2x16x2048xf32>
    %cst_33 = arith.constant dense<0.000000e+00> : vector<2x2048xf32>
    %54 = vector.multi_reduction <add>, %53, %cst_33 [1] : vector<2x16x2048xf32> to vector<2x2048xf32>
    %cst_34 = arith.constant 6.250000e-02 : f32
    %55 = vector.broadcast %cst_34 : f32 to vector<2x2048xf32>
    %56 = arith.mulf %54, %55 : vector<2x2048xf32>
    %57 = arith.truncf %56 : vector<2x2048xf32> to vector<2x2048xbf16>
    %c2 = arith.constant 2 : index
    %c0_35 = arith.constant 0 : index
    %c0_36 = arith.constant 0 : index
    %58 = vector.load %arg2[%c2, %c0_35, %c0_36] : memref<6x2048x256xbf16, #tpu.memory_space<vmem>>, vector<1x2048x256xbf16>
    %59 = vector.shape_cast %58 : vector<1x2048x256xbf16> to vector<2048x256xbf16>
    %cst_37 = arith.constant dense<0.000000e+00> : vector<2x256xf32>
    %60 = tpu.matmul %57, %59, %cst_37 {dimension_numbers = #tpu.dot_dimension_numbers<[1], [0], [0], [1], [0, 0, 1, 1], [], []>} : vector<2x2048xbf16>, vector<2048x256xbf16>, vector<2x256xf32> -> vector<2x256xf32>
    %c2_38 = arith.constant 2 : index
    %c0_39 = arith.constant 0 : index
    %c0_40 = arith.constant 0 : index
    %61 = vector.load %arg3[%c2_38, %c0_39, %c0_40] : memref<6x1x256xf32, #tpu.memory_space<vmem>>, vector<1x1x256xf32>
    %62 = vector.shape_cast %61 : vector<1x1x256xf32> to vector<1x256xf32>
    %63 = vector.broadcast %62 : vector<1x256xf32> to vector<2x256xf32>
    %64 = arith.addf %60, %63 : vector<2x256xf32>
    %cst_41 = arith.constant 0.000000e+00 : f32
    %65 = vector.broadcast %cst_41 : f32 to vector<2x256xf32>
    %66 = arith.maximumf %64, %65 : vector<2x256xf32>
    %67 = arith.mulf %66, %66 : vector<2x256xf32>
    %cst_42 = arith.constant dense<0.000000e+00> : vector<2xf32>
    %68 = vector.multi_reduction <add>, %67, %cst_42 [1] : vector<2x256xf32> to vector<2xf32>
    %69 = vector.shape_cast %68 : vector<2xf32> to vector<2x1xf32>
    %cst_43 = arith.constant 1.000000e-24 : f32
    %70 = vector.broadcast %cst_43 : f32 to vector<2x1xf32>
    %71 = arith.maximumf %69, %70 : vector<2x1xf32>
    %72 = math.rsqrt %71 : vector<2x1xf32>
    %cst_44 = arith.constant 1.000000e+01 : f32
    %73 = vector.broadcast %cst_44 : f32 to vector<2x1xf32>
    %74 = arith.mulf %72, %73 : vector<2x1xf32>
    %75 = vector.broadcast %74 : vector<2x1xf32> to vector<2x256xf32>
    %76 = arith.mulf %66, %75 : vector<2x256xf32>
    %c0_45 = arith.constant 0 : index
    %c512 = arith.constant 512 : index
    %77 = vector.load %arg4[%c0_45, %c512] : memref<2x1536xf32, #tpu.memory_space<vmem>>, vector<2x256xf32>
    tpu.vector_store %arg4[%c0_45, %c512], %76 {strides = array<i32>} : memref<2x1536xf32, #tpu.memory_space<vmem>>, vector<2x256xf32>,
    %c0_46 = arith.constant 0 : index
    %c48 = arith.constant 48 : index
    %c0_47 = arith.constant 0 : index
    %78 = vector.load %arg1[%c0_46, %c48, %c0_47] : memref<2x96x2048xbf16, #tpu.memory_space<vmem>>, vector<2x16x2048xbf16>
    %79 = arith.extf %78 : vector<2x16x2048xbf16> to vector<2x16x2048xf32>
    %cst_48 = arith.constant dense<0.000000e+00> : vector<2x2048xf32>
    %80 = vector.multi_reduction <add>, %79, %cst_48 [1] : vector<2x16x2048xf32> to vector<2x2048xf32>
    %cst_49 = arith.constant 6.250000e-02 : f32
    %81 = vector.broadcast %cst_49 : f32 to vector<2x2048xf32>
    %82 = arith.mulf %80, %81 : vector<2x2048xf32>
    %83 = arith.truncf %82 : vector<2x2048xf32> to vector<2x2048xbf16>
    %c3 = arith.constant 3 : index
    %c0_50 = arith.constant 0 : index
    %c0_51 = arith.constant 0 : index
    %84 = vector.load %arg2[%c3, %c0_50, %c0_51] : memref<6x2048x256xbf16, #tpu.memory_space<vmem>>, vector<1x2048x256xbf16>
    %85 = vector.shape_cast %84 : vector<1x2048x256xbf16> to vector<2048x256xbf16>
    %cst_52 = arith.constant dense<0.000000e+00> : vector<2x256xf32>
    %86 = tpu.matmul %83, %85, %cst_52 {dimension_numbers = #tpu.dot_dimension_numbers<[1], [0], [0], [1], [0, 0, 1, 1], [], []>} : vector<2x2048xbf16>, vector<2048x256xbf16>, vector<2x256xf32> -> vector<2x256xf32>
    %c3_53 = arith.constant 3 : index
    %c0_54 = arith.constant 0 : index
    %c0_55 = arith.constant 0 : index
    %87 = vector.load %arg3[%c3_53, %c0_54, %c0_55] : memref<6x1x256xf32, #tpu.memory_space<vmem>>, vector<1x1x256xf32>
    %88 = vector.shape_cast %87 : vector<1x1x256xf32> to vector<1x256xf32>
    %89 = vector.broadcast %88 : vector<1x256xf32> to vector<2x256xf32>
    %90 = arith.addf %86, %89 : vector<2x256xf32>
    %cst_56 = arith.constant 0.000000e+00 : f32
    %91 = vector.broadcast %cst_56 : f32 to vector<2x256xf32>
    %92 = arith.maximumf %90, %91 : vector<2x256xf32>
    %93 = arith.mulf %92, %92 : vector<2x256xf32>
    %cst_57 = arith.constant dense<0.000000e+00> : vector<2xf32>
    %94 = vector.multi_reduction <add>, %93, %cst_57 [1] : vector<2x256xf32> to vector<2xf32>
    %95 = vector.shape_cast %94 : vector<2xf32> to vector<2x1xf32>
    %cst_58 = arith.constant 1.000000e-24 : f32
    %96 = vector.broadcast %cst_58 : f32 to vector<2x1xf32>
    %97 = arith.maximumf %95, %96 : vector<2x1xf32>
    %98 = math.rsqrt %97 : vector<2x1xf32>
    %cst_59 = arith.constant 1.000000e+01 : f32
    %99 = vector.broadcast %cst_59 : f32 to vector<2x1xf32>
    %100 = arith.mulf %98, %99 : vector<2x1xf32>
    %101 = vector.broadcast %100 : vector<2x1xf32> to vector<2x256xf32>
    %102 = arith.mulf %92, %101 : vector<2x256xf32>
    %c0_60 = arith.constant 0 : index
    %c768 = arith.constant 768 : index
    %103 = vector.load %arg4[%c0_60, %c768] : memref<2x1536xf32, #tpu.memory_space<vmem>>, vector<2x256xf32>
    tpu.vector_store %arg4[%c0_60, %c768], %102 {strides = array<i32>} : memref<2x1536xf32, #tpu.memory_space<vmem>>, vector<2x256xf32>,
    %c0_61 = arith.constant 0 : index
    %c64 = arith.constant 64 : index
    %c0_62 = arith.constant 0 : index
    %104 = vector.load %arg1[%c0_61, %c64, %c0_62] : memref<2x96x2048xbf16, #tpu.memory_space<vmem>>, vector<2x16x2048xbf16>
    %105 = arith.extf %104 : vector<2x16x2048xbf16> to vector<2x16x2048xf32>
    %cst_63 = arith.constant dense<0.000000e+00> : vector<2x2048xf32>
    %106 = vector.multi_reduction <add>, %105, %cst_63 [1] : vector<2x16x2048xf32> to vector<2x2048xf32>
    %cst_64 = arith.constant 6.250000e-02 : f32
    %107 = vector.broadcast %cst_64 : f32 to vector<2x2048xf32>
    %108 = arith.mulf %106, %107 : vector<2x2048xf32>
    %109 = arith.truncf %108 : vector<2x2048xf32> to vector<2x2048xbf16>
    %c4 = arith.constant 4 : index
    %c0_65 = arith.constant 0 : index
    %c0_66 = arith.constant 0 : index
    %110 = vector.load %arg2[%c4, %c0_65, %c0_66] : memref<6x2048x256xbf16, #tpu.memory_space<vmem>>, vector<1x2048x256xbf16>
    %111 = vector.shape_cast %110 : vector<1x2048x256xbf16> to vector<2048x256xbf16>
    %cst_67 = arith.constant dense<0.000000e+00> : vector<2x256xf32>
    %112 = tpu.matmul %109, %111, %cst_67 {dimension_numbers = #tpu.dot_dimension_numbers<[1], [0], [0], [1], [0, 0, 1, 1], [], []>} : vector<2x2048xbf16>, vector<2048x256xbf16>, vector<2x256xf32> -> vector<2x256xf32>
    %c4_68 = arith.constant 4 : index
    %c0_69 = arith.constant 0 : index
    %c0_70 = arith.constant 0 : index
    %113 = vector.load %arg3[%c4_68, %c0_69, %c0_70] : memref<6x1x256xf32, #tpu.memory_space<vmem>>, vector<1x1x256xf32>
    %114 = vector.shape_cast %113 : vector<1x1x256xf32> to vector<1x256xf32>
    %115 = vector.broadcast %114 : vector<1x256xf32> to vector<2x256xf32>
    %116 = arith.addf %112, %115 : vector<2x256xf32>
    %cst_71 = arith.constant 0.000000e+00 : f32
    %117 = vector.broadcast %cst_71 : f32 to vector<2x256xf32>
    %118 = arith.maximumf %116, %117 : vector<2x256xf32>
    %119 = arith.mulf %118, %118 : vector<2x256xf32>
    %cst_72 = arith.constant dense<0.000000e+00> : vector<2xf32>
    %120 = vector.multi_reduction <add>, %119, %cst_72 [1] : vector<2x256xf32> to vector<2xf32>
    %121 = vector.shape_cast %120 : vector<2xf32> to vector<2x1xf32>
    %cst_73 = arith.constant 1.000000e-24 : f32
    %122 = vector.broadcast %cst_73 : f32 to vector<2x1xf32>
    %123 = arith.maximumf %121, %122 : vector<2x1xf32>
    %124 = math.rsqrt %123 : vector<2x1xf32>
    %cst_74 = arith.constant 1.000000e+01 : f32
    %125 = vector.broadcast %cst_74 : f32 to vector<2x1xf32>
    %126 = arith.mulf %124, %125 : vector<2x1xf32>
    %127 = vector.broadcast %126 : vector<2x1xf32> to vector<2x256xf32>
    %128 = arith.mulf %118, %127 : vector<2x256xf32>
    %c0_75 = arith.constant 0 : index
    %c1024 = arith.constant 1024 : index
    %129 = vector.load %arg4[%c0_75, %c1024] : memref<2x1536xf32, #tpu.memory_space<vmem>>, vector<2x256xf32>
    tpu.vector_store %arg4[%c0_75, %c1024], %128 {strides = array<i32>} : memref<2x1536xf32, #tpu.memory_space<vmem>>, vector<2x256xf32>,
    %c0_76 = arith.constant 0 : index
    %c80 = arith.constant 80 : index
    %c0_77 = arith.constant 0 : index
    %130 = vector.load %arg1[%c0_76, %c80, %c0_77] : memref<2x96x2048xbf16, #tpu.memory_space<vmem>>, vector<2x16x2048xbf16>
    %131 = arith.extf %130 : vector<2x16x2048xbf16> to vector<2x16x2048xf32>
    %cst_78 = arith.constant dense<0.000000e+00> : vector<2x2048xf32>
    %132 = vector.multi_reduction <add>, %131, %cst_78 [1] : vector<2x16x2048xf32> to vector<2x2048xf32>
    %cst_79 = arith.constant 6.250000e-02 : f32
    %133 = vector.broadcast %cst_79 : f32 to vector<2x2048xf32>
    %134 = arith.mulf %132, %133 : vector<2x2048xf32>
    %135 = arith.truncf %134 : vector<2x2048xf32> to vector<2x2048xbf16>
    %c5 = arith.constant 5 : index
    %c0_80 = arith.constant 0 : index
    %c0_81 = arith.constant 0 : index
    %136 = vector.load %arg2[%c5, %c0_80, %c0_81] : memref<6x2048x256xbf16, #tpu.memory_space<vmem>>, vector<1x2048x256xbf16>
    %137 = vector.shape_cast %136 : vector<1x2048x256xbf16> to vector<2048x256xbf16>
    %cst_82 = arith.constant dense<0.000000e+00> : vector<2x256xf32>
    %138 = tpu.matmul %135, %137, %cst_82 {dimension_numbers = #tpu.dot_dimension_numbers<[1], [0], [0], [1], [0, 0, 1, 1], [], []>} : vector<2x2048xbf16>, vector<2048x256xbf16>, vector<2x256xf32> -> vector<2x256xf32>
    %c5_83 = arith.constant 5 : index
    %c0_84 = arith.constant 0 : index
    %c0_85 = arith.constant 0 : index
    %139 = vector.load %arg3[%c5_83, %c0_84, %c0_85] : memref<6x1x256xf32, #tpu.memory_space<vmem>>, vector<1x1x256xf32>
    %140 = vector.shape_cast %139 : vector<1x1x256xf32> to vector<1x256xf32>
    %141 = vector.broadcast %140 : vector<1x256xf32> to vector<2x256xf32>
    %142 = arith.addf %138, %141 : vector<2x256xf32>
    %cst_86 = arith.constant 0.000000e+00 : f32
    %143 = vector.broadcast %cst_86 : f32 to vector<2x256xf32>
    %144 = arith.maximumf %142, %143 : vector<2x256xf32>
    %145 = arith.mulf %144, %144 : vector<2x256xf32>
    %cst_87 = arith.constant dense<0.000000e+00> : vector<2xf32>
    %146 = vector.multi_reduction <add>, %145, %cst_87 [1] : vector<2x256xf32> to vector<2xf32>
    %147 = vector.shape_cast %146 : vector<2xf32> to vector<2x1xf32>
    %cst_88 = arith.constant 1.000000e-24 : f32
    %148 = vector.broadcast %cst_88 : f32 to vector<2x1xf32>
    %149 = arith.maximumf %147, %148 : vector<2x1xf32>
    %150 = math.rsqrt %149 : vector<2x1xf32>
    %cst_89 = arith.constant 1.000000e+01 : f32
    %151 = vector.broadcast %cst_89 : f32 to vector<2x1xf32>
    %152 = arith.mulf %150, %151 : vector<2x1xf32>
    %153 = vector.broadcast %152 : vector<2x1xf32> to vector<2x256xf32>
    %154 = arith.mulf %144, %153 : vector<2x256xf32>
    %c0_90 = arith.constant 0 : index
    %c1280 = arith.constant 1280 : index
    %155 = vector.load %arg4[%c0_90, %c1280] : memref<2x1536xf32, #tpu.memory_space<vmem>>, vector<2x256xf32>
    tpu.vector_store %arg4[%c0_90, %c1280], %154 {strides = array<i32>} : memref<2x1536xf32, #tpu.memory_space<vmem>>, vector<2x256xf32>,
    return
  }
  func.func @transform_0(%arg0: i32) -> (i32, i32, i32) {
    %c0_i32 = arith.constant 0 : i32
    %c0_i32_0 = arith.constant 0 : i32
    %c0_i32_1 = arith.constant 0 : i32
    %c0_i32_2 = arith.constant 0 : i32
    return %c0_i32, %c0_i32_0, %c0_i32_1 : i32, i32, i32
  }
  func.func @transform_1(%arg0: i32) -> (i32, i32, i32) {
    %c0_i32 = arith.constant 0 : i32
    %c0_i32_0 = arith.constant 0 : i32
    %c0_i32_1 = arith.constant 0 : i32
    %c0_i32_2 = arith.constant 0 : i32
    return %c0_i32, %c0_i32_0, %c0_i32_1 : i32, i32, i32
  }
  func.func @transform_2(%arg0: i32) -> (i32, i32, i32) {
    %c0_i32 = arith.constant 0 : i32
    %c0_i32_0 = arith.constant 0 : i32
    %c0_i32_1 = arith.constant 0 : i32
    %c0_i32_2 = arith.constant 0 : i32
    return %c0_i32, %c0_i32_0, %c0_i32_1 : i32, i32, i32
  }
  func.func @transform_3(%arg0: i32) -> (i32, i32) {
    %c0_i32 = arith.constant 0 : i32
    %c0_i32_0 = arith.constant 0 : i32
    %c0_i32_1 = arith.constant 0 : i32
    return %c0_i32, %c0_i32_0 : i32, i32
  }
}

</mosaic_0001>

<llo_original>
// kernel: tpu_custom_call.1
$region0: #{tpu_custom_call.1}
  #allocation0 [shape = 'u32[]', space=smem, size = 0x4, offset = 0x4, fixed_abs, tag = 'smem constant byte address 0x4 - core index']
  #allocation1 [shape = 'u32[144,128]{1,0:T(1,128)}', space=vmem, size = 0x12000, scoped, tag = 'internal scratch']
  %s0 = inlined_call_operand.hbm [shape: bf16[2,96,2048], index: 0, kind: input, shape index: {}]
  %s1 = inlined_call_operand.hbm [shape: bf16[6,2048,256], index: 1, kind: input, shape index: {}]
  %s2 = inlined_call_operand.hbm [shape: f32[6,1,256], index: 2, kind: input, shape index: {}]
  %s3 = inlined_call_operand.hbm [shape: f32[2,1536], index: 3, kind: output, shape index: {}]
  %s4 = sld [smem:[#allocation0]]
  $region34: #{tpu_custom_call.1} parent=0
    _
  %s6 = ssub.s32 1, %s4
  %s7 = scalar_select 0, %s6, %s4
  $region1: #{tpu_custom_call.1} parent=0
    #allocation2 [shape = 'u8[786432]{0}', space=vmem, size = 0xc0000, scoped, tag = 'input window, operand 0, single buffered']
    #allocation3 [shape = 's32[1]{0}', space=sflag, size = 0x4, scoped, tag = 'scoped memory for tpu_custom_call.1']
    #allocation4 [shape = 's32[1]{0}', space=sflag, size = 0x4, scoped, tag = 'scoped memory for tpu_custom_call.1']
    #allocation5 [shape = 'u8[6291456]{0}', space=vmem, size = 0x600000, scoped, tag = 'input window, operand 1, single buffered']
    #allocation6 [shape = 's32[1]{0}', space=sflag, size = 0x4, scoped, tag = 'scoped memory for tpu_custom_call.1']
    #allocation7 [shape = 'u8[6144]{0}', space=vmem, size = 0x1800, scoped, tag = 'input window, operand 2, single buffered']
    #allocation8 [shape = 'u8[12288]{0}', space=vmem, size = 0x3000, scoped, tag = 'output window, operand 0, single buffered']
    %8 = vsyncpa [#allocation3], 0
    %9 = vsyncpa [#allocation6], 0
    %10 = vsyncpa [#allocation4], 0
    // Predicated region
    $region2: #{tpu_custom_call.1} parent=1 // pred_check
      _
    $region3: #{tpu_custom_call.1} parent=1 // pred_check_branch
      %12 = sbr.rel (0) target = $region5
    $region4: #{tpu_custom_call.1} parent=1 // pred_region
      %s14 = ssub.s32 24576, 24576
      %15 = vsyncadd [#allocation3], %s14
      %s16 = sshll.u32 [#allocation2], 4
      %s17 = int_to_ptr.vmem [resolvable:$true] %s16
      %22 = dma.hbm_to_vmem [thread:$0]  %s0, 24576, %s17, [#allocation3], 1024, 1024, 64
    $region5: #{tpu_custom_call.1} parent=1 // pred_fallthru
      _
    // Predicated region
    $region6: #{tpu_custom_call.1} parent=1 // pred_check
      _
    $region7: #{tpu_custom_call.1} parent=1 // pred_check_branch
      %24 = sbr.rel (0) target = $region9
    $region8: #{tpu_custom_call.1} parent=1 // pred_region
      %s26 = ssub.s32 196608, 196608
      %27 = vsyncadd [#allocation6], %s26
      %s28 = sshll.u32 [#allocation5], 4
      %s29 = int_to_ptr.vmem [resolvable:$true] %s28
      %34 = dma.hbm_to_vmem [thread:$0]  %s1, 196608, %s29, [#allocation6], 128, 128, 8
    $region9: #{tpu_custom_call.1} parent=1 // pred_fallthru
      _
    // Predicated region
    $region10: #{tpu_custom_call.1} parent=1 // pred_check
      _
    $region11: #{tpu_custom_call.1} parent=1 // pred_check_branch
      %36 = sbr.rel (0) target = $region13
    $region12: #{tpu_custom_call.1} parent=1 // pred_region
      %s38 = ssub.s32 192, 192
      %39 = vsyncadd [#allocation6], %s38
      %s40 = sshll.u32 [#allocation7], 4
      %s41 = int_to_ptr.vmem [resolvable:$true] %s40
      %46 = dma.hbm_to_vmem [thread:$0]  %s2, 192, %s41, [#allocation6], 32, 32, 2
    $region13: #{tpu_custom_call.1} parent=1 // pred_fallthru
      _
    // Predicated region
    $region14: #{tpu_custom_call.1} parent=1 // pred_check
      _
    $region15: #{tpu_custom_call.1} parent=1 // pred_check_branch
      %48 = sbr.rel (0) target = $region17
    $region16: #{tpu_custom_call.1} parent=1 // pred_region
      %49 = dma.done [#allocation3], 24576
    $region17: #{tpu_custom_call.1} parent=1 // pred_fallthru
      _
    // Predicated region
    $region18: #{tpu_custom_call.1} parent=1 // pred_check
      _
    $region19: #{tpu_custom_call.1} parent=1 // pred_check_branch
      %51 = sbr.rel (0) target = $region21
    $region20: #{tpu_custom_call.1} parent=1 // pred_region
      %52 = dma.done [#allocation6], 196608
    $region21: #{tpu_custom_call.1} parent=1 // pred_fallthru
      _
    // Predicated region
    $region22: #{tpu_custom_call.1} parent=1 // pred_check
      _
    $region23: #{tpu_custom_call.1} parent=1 // pred_check_branch
      %54 = sbr.rel (0) target = $region25
    $region24: #{tpu_custom_call.1} parent=1 // pred_region
      %55 = dma.done [#allocation6], 192
    $region25: #{tpu_custom_call.1} parent=1 // pred_fallthru
      _
    %v56 = vld [vmem:[#allocation2] sm:$0xff]
    %v57 = vld [vmem:[#allocation2 + $0x8] sm:$0xff]
    %v58 = vld [vmem:[#allocation2 + $0x10] sm:$0xff]
    %v59 = vld [vmem:[#allocation2 + $0x18] sm:$0xff]
    %v60 = vld [vmem:[#allocation2 + $0x20] sm:$0xff]
    %v61 = vld [vmem:[#allocation2 + $0x28] sm:$0xff]
    %v62 = vld [vmem:[#allocation2 + $0x30] sm:$0xff]
    %v63 = vld [vmem:[#allocation2 + $0x38] sm:$0xff]
    %v64 = vld [vmem:[#allocation2 + $0x40] sm:$0xff]
    %v65 = vld [vmem:[#allocation2 + $0x48] sm:$0xff]
    %v66 = vld [vmem:[#allocation2 + $0x50] sm:$0xff]
    %v67 = vld [vmem:[#allocation2 + $0x58] sm:$0xff]
    %v68 = vld [vmem:[#allocation2 + $0x60] sm:$0xff]
    %v69 = vld [vmem:[#allocation2 + $0x68] sm:$0xff]
    %v70 = vld [vmem:[#allocation2 + $0x70] sm:$0xff]
    %v71 = vld [vmem:[#allocation2 + $0x78] sm:$0xff]
    %v72 = vld [vmem:[#allocation2 + $0x300] sm:$0xff]
    %v73 = vld [vmem:[#allocation2 + $0x308] sm:$0xff]
    %v74 = vld [vmem:[#allocation2 + $0x310] sm:$0xff]
    %v75 = vld [vmem:[#allocation2 + $0x318] sm:$0xff]
    %v76 = vld [vmem:[#allocation2 + $0x320] sm:$0xff]
    %v77 = vld [vmem:[#allocation2 + $0x328] sm:$0xff]
    %v78 = vld [vmem:[#allocation2 + $0x330] sm:$0xff]
    %v79 = vld [vmem:[#allocation2 + $0x338] sm:$0xff]
    %v80 = vld [vmem:[#allocation2 + $0x340] sm:$0xff]
    %v81 = vld [vmem:[#allocation2 + $0x348] sm:$0xff]
    %v82 = vld [vmem:[#allocation2 + $0x350] sm:$0xff]
    %v83 = vld [vmem:[#allocation2 + $0x358] sm:$0xff]
    %v84 = vld [vmem:[#allocation2 + $0x360] sm:$0xff]
    %v85 = vld [vmem:[#allocation2 + $0x368] sm:$0xff]
    %v86 = vld [vmem:[#allocation2 + $0x370] sm:$0xff]
    %v87 = vld [vmem:[#allocation2 + $0x378] sm:$0xff]
    %v88 = vunpack.c.l.bf16 %v56
    %v89 = vunpack.c.h.bf16 %v56
    %v90 = vunpack.c.l.bf16 %v57
    %v91 = vunpack.c.h.bf16 %v57
    %v92 = vunpack.c.l.bf16 %v58
    %v93 = vunpack.c.h.bf16 %v58
    %v94 = vunpack.c.l.bf16 %v59
    %v95 = vunpack.c.h.bf16 %v59
    %v96 = vunpack.c.l.bf16 %v60
    %v97 = vunpack.c.h.bf16 %v60
    %v98 = vunpack.c.l.bf16 %v61
    %v99 = vunpack.c.h.bf16 %v61
    %v100 = vunpack.c.l.bf16 %v62
    %v101 = vunpack.c.h.bf16 %v62
    %v102 = vunpack.c.l.bf16 %v63
    %v103 = vunpack.c.h.bf16 %v63
    %v104 = vunpack.c.l.bf16 %v64
    %v105 = vunpack.c.h.bf16 %v64
    %v106 = vunpack.c.l.bf16 %v65
    %v107 = vunpack.c.h.bf16 %v65
    %v108 = vunpack.c.l.bf16 %v66
    %v109 = vunpack.c.h.bf16 %v66
    %v110 = vunpack.c.l.bf16 %v67
    %v111 = vunpack.c.h.bf16 %v67
    %v112 = vunpack.c.l.bf16 %v68
    %v113 = vunpack.c.h.bf16 %v68
    %v114 = vunpack.c.l.bf16 %v69
    %v115 = vunpack.c.h.bf16 %v69
    %v116 = vunpack.c.l.bf16 %v70
    %v117 = vunpack.c.h.bf16 %v70
    %v118 = vunpack.c.l.bf16 %v71
    %v119 = vunpack.c.h.bf16 %v71
    %v120 = vunpack.c.l.bf16 %v72
    %v121 = vunpack.c.h.bf16 %v72
    %v122 = vunpack.c.l.bf16 %v73
    %v123 = vunpack.c.h.bf16 %v73
    %v124 = vunpack.c.l.bf16 %v74
    %v125 = vunpack.c.h.bf16 %v74
    %v126 = vunpack.c.l.bf16 %v75
    %v127 = vunpack.c.h.bf16 %v75
    %v128 = vunpack.c.l.bf16 %v76
    %v129 = vunpack.c.h.bf16 %v76
    %v130 = vunpack.c.l.bf16 %v77
    %v131 = vunpack.c.h.bf16 %v77
    %v132 = vunpack.c.l.bf16 %v78
    %v133 = vunpack.c.h.bf16 %v78
    %v134 = vunpack.c.l.bf16 %v79
    %v135 = vunpack.c.h.bf16 %v79
    %v136 = vunpack.c.l.bf16 %v80
    %v137 = vunpack.c.h.bf16 %v80
    %v138 = vunpack.c.l.bf16 %v81
    %v139 = vunpack.c.h.bf16 %v81
    %v140 = vunpack.c.l.bf16 %v82
    %v141 = vunpack.c.h.bf16 %v82
    %v142 = vunpack.c.l.bf16 %v83
    %v143 = vunpack.c.h.bf16 %v83
    %v144 = vunpack.c.l.bf16 %v84
    %v145 = vunpack.c.h.bf16 %v84
    %v146 = vunpack.c.l.bf16 %v85
    %v147 = vunpack.c.h.bf16 %v85
    %v148 = vunpack.c.l.bf16 %v86
    %v149 = vunpack.c.h.bf16 %v86
    %v150 = vunpack.c.l.bf16 %v87
    %v151 = vunpack.c.h.bf16 %v87
    %v152 = vadd.f32 %v88, %v104
    %v153 = vrot.slane %v152, 4
    %v154 = vadd.f32 %v152, %v153
    %v155 = vrot.slane %v154, 2
    %v156 = vadd.f32 %v154, %v155
    %v157 = vrot.slane %v156, 1
    %v158 = vadd.f32 %v156, %v157
    %v159 = vadd.f32 %v89, %v105
    %v160 = vrot.slane %v159, 4
    %v161 = vadd.f32 %v159, %v160
    %v162 = vrot.slane %v161, 2
    %v163 = vadd.f32 %v161, %v162
    %v164 = vrot.slane %v163, 1
    %v165 = vadd.f32 %v163, %v164
    %v166 = vadd.f32 %v90, %v106
    %v167 = vrot.slane %v166, 4
    %v168 = vadd.f32 %v166, %v167
    %v169 = vrot.slane %v168, 2
    %v170 = vadd.f32 %v168, %v169
    %v171 = vrot.slane %v170, 1
    %v172 = vadd.f32 %v170, %v171
    %v173 = vadd.f32 %v91, %v107
    %v174 = vrot.slane %v173, 4
    %v175 = vadd.f32 %v173, %v174
    %v176 = vrot.slane %v175, 2
    %v177 = vadd.f32 %v175, %v176
    %v178 = vrot.slane %v177, 1
    %v179 = vadd.f32 %v177, %v178
    %v180 = vadd.f32 %v92, %v108
    %v181 = vrot.slane %v180, 4
    %v182 = vadd.f32 %v180, %v181
    %v183 = vrot.slane %v182, 2
    %v184 = vadd.f32 %v182, %v183
    %v185 = vrot.slane %v184, 1
    %v186 = vadd.f32 %v184, %v185
    %v187 = vadd.f32 %v93, %v109
    %v188 = vrot.slane %v187, 4
    %v189 = vadd.f32 %v187, %v188
    %v190 = vrot.slane %v189, 2
    %v191 = vadd.f32 %v189, %v190
    %v192 = vrot.slane %v191, 1
    %v193 = vadd.f32 %v191, %v192
    %v194 = vadd.f32 %v94, %v110
    %v195 = vrot.slane %v194, 4
    %v196 = vadd.f32 %v194, %v195
    %v197 = vrot.slane %v196, 2
    %v198 = vadd.f32 %v196, %v197
    %v199 = vrot.slane %v198, 1
    %v200 = vadd.f32 %v198, %v199
    %v201 = vadd.f32 %v95, %v111
    %v202 = vrot.slane %v201, 4
    %v203 = vadd.f32 %v201, %v202
    %v204 = vrot.slane %v203, 2
    %v205 = vadd.f32 %v203, %v204
    %v206 = vrot.slane %v205, 1
    %v207 = vadd.f32 %v205, %v206
    %v208 = vadd.f32 %v96, %v112
    %v209 = vrot.slane %v208, 4
    %v210 = vadd.f32 %v208, %v209
    %v211 = vrot.slane %v210, 2
    %v212 = vadd.f32 %v210, %v211
    %v213 = vrot.slane %v212, 1
    %v214 = vadd.f32 %v212, %v213
    %v215 = vadd.f32 %v97, %v113
    %v216 = vrot.slane %v215, 4
    %v217 = vadd.f32 %v215, %v216
    %v218 = vrot.slane %v217, 2
    %v219 = vadd.f32 %v217, %v218
    %v220 = vrot.slane %v219, 1
    %v221 = vadd.f32 %v219, %v220
    %v222 = vadd.f32 %v98, %v114
    %v223 = vrot.slane %v222, 4
    %v224 = vadd.f32 %v222, %v223
    %v225 = vrot.slane %v224, 2
    %v226 = vadd.f32 %v224, %v225
    %v227 = vrot.slane %v226, 1
    %v228 = vadd.f32 %v226, %v227
    %v229 = vadd.f32 %v99, %v115
    %v230 = vrot.slane %v229, 4
    %v231 = vadd.f32 %v229, %v230
    %v232 = vrot.slane %v231, 2
    %v233 = vadd.f32 %v231, %v232
    %v234 = vrot.slane %v233, 1
    %v235 = vadd.f32 %v233, %v234
    %v236 = vadd.f32 %v100, %v116
    %v237 = vrot.slane %v236, 4
    %v238 = vadd.f32 %v236, %v237
    %v239 = vrot.slane %v238, 2
    %v240 = vadd.f32 %v238, %v239
    %v241 = vrot.slane %v240, 1
    %v242 = vadd.f32 %v240, %v241
    %v243 = vadd.f32 %v101, %v117
    %v244 = vrot.slane %v243, 4
    %v245 = vadd.f32 %v243, %v244
    %v246 = vrot.slane %v245, 2
    %v247 = vadd.f32 %v245, %v246
    %v248 = vrot.slane %v247, 1
    %v249 = vadd.f32 %v247, %v248
    %v250 = vadd.f32 %v102, %v118
    %v251 = vrot.slane %v250, 4
    %v252 = vadd.f32 %v250, %v251
    %v253 = vrot.slane %v252, 2
    %v254 = vadd.f32 %v252, %v253
    %v255 = vrot.slane %v254, 1
    %v256 = vadd.f32 %v254, %v255
    %v257 = vadd.f32 %v103, %v119
    %v258 = vrot.slane %v257, 4
    %v259 = vadd.f32 %v257, %v258
    %v260 = vrot.slane %v259, 2
    %v261 = vadd.f32 %v259, %v260
    %v262 = vrot.slane %v261, 1
    %v263 = vadd.f32 %v261, %v262
    %v264 = vadd.f32 %v120, %v136
    %v265 = vrot.slane %v264, 4
    %v266 = vadd.f32 %v264, %v265
    %v267 = vrot.slane %v266, 2
    %v268 = vadd.f32 %v266, %v267
    %v269 = vrot.slane %v268, 1
    %v270 = vadd.f32 %v268, %v269
    %v271 = vadd.f32 %v121, %v137
    %v272 = vrot.slane %v271, 4
    %v273 = vadd.f32 %v271, %v272
    %v274 = vrot.slane %v273, 2
    %v275 = vadd.f32 %v273, %v274
    %v276 = vrot.slane %v275, 1
    %v277 = vadd.f32 %v275, %v276
    %v278 = vadd.f32 %v122, %v138
    %v279 = vrot.slane %v278, 4
    %v280 = vadd.f32 %v278, %v279
    %v281 = vrot.slane %v280, 2
    %v282 = vadd.f32 %v280, %v281
    %v283 = vrot.slane %v282, 1
    %v284 = vadd.f32 %v282, %v283
    %v285 = vadd.f32 %v123, %v139
    %v286 = vrot.slane %v285, 4
    %v287 = vadd.f32 %v285, %v286
    %v288 = vrot.slane %v287, 2
    %v289 = vadd.f32 %v287, %v288
    %v290 = vrot.slane %v289, 1
    %v291 = vadd.f32 %v289, %v290
    %v292 = vadd.f32 %v124, %v140
    %v293 = vrot.slane %v292, 4
    %v294 = vadd.f32 %v292, %v293
    %v295 = vrot.slane %v294, 2
    %v296 = vadd.f32 %v294, %v295
    %v297 = vrot.slane %v296, 1
    %v298 = vadd.f32 %v296, %v297
    %v299 = vadd.f32 %v125, %v141
    %v300 = vrot.slane %v299, 4
    %v301 = vadd.f32 %v299, %v300
    %v302 = vrot.slane %v301, 2
    %v303 = vadd.f32 %v301, %v302
    %v304 = vrot.slane %v303, 1
    %v305 = vadd.f32 %v303, %v304
    %v306 = vadd.f32 %v126, %v142
    %v307 = vrot.slane %v306, 4
    %v308 = vadd.f32 %v306, %v307
    %v309 = vrot.slane %v308, 2
    %v310 = vadd.f32 %v308, %v309
    %v311 = vrot.slane %v310, 1
    %v312 = vadd.f32 %v310, %v311
    %v313 = vadd.f32 %v127, %v143
    %v314 = vrot.slane %v313, 4
    %v315 = vadd.f32 %v313, %v314
    %v316 = vrot.slane %v315, 2
    %v317 = vadd.f32 %v315, %v316
    %v318 = vrot.slane %v317, 1
    %v319 = vadd.f32 %v317, %v318
    %v320 = vadd.f32 %v128, %v144
    %v321 = vrot.slane %v320, 4
    %v322 = vadd.f32 %v320, %v321
    %v323 = vrot.slane %v322, 2
    %v324 = vadd.f32 %v322, %v323
    %v325 = vrot.slane %v324, 1
    %v326 = vadd.f32 %v324, %v325
    %v327 = vadd.f32 %v129, %v145
    %v328 = vrot.slane %v327, 4
    %v329 = vadd.f32 %v327, %v328
    %v330 = vrot.slane %v329, 2
    %v331 = vadd.f32 %v329, %v330
    %v332 = vrot.slane %v331, 1
    %v333 = vadd.f32 %v331, %v332
    %v334 = vadd.f32 %v130, %v146
    %v335 = vrot.slane %v334, 4
    %v336 = vadd.f32 %v334, %v335
    %v337 = vrot.slane %v336, 2
    %v338 = vadd.f32 %v336, %v337
    %v339 = vrot.slane %v338, 1
    %v340 = vadd.f32 %v338, %v339
    %v341 = vadd.f32 %v131, %v147
    %v342 = vrot.slane %v341, 4
    %v343 = vadd.f32 %v341, %v342
    %v344 = vrot.slane %v343, 2
    %v345 = vadd.f32 %v343, %v344
    %v346 = vrot.slane %v345, 1
    %v347 = vadd.f32 %v345, %v346
    %v348 = vadd.f32 %v132, %v148
    %v349 = vrot.slane %v348, 4
    %v350 = vadd.f32 %v348, %v349
    %v351 = vrot.slane %v350, 2
    %v352 = vadd.f32 %v350, %v351
    %v353 = vrot.slane %v352, 1
    %v354 = vadd.f32 %v352, %v353
    %v355 = vadd.f32 %v133, %v149
    %v356 = vrot.slane %v355, 4
    %v357 = vadd.f32 %v355, %v356
    %v358 = vrot.slane %v357, 2
    %v359 = vadd.f32 %v357, %v358
    %v360 = vrot.slane %v359, 1
    %v361 = vadd.f32 %v359, %v360
    %v362 = vadd.f32 %v134, %v150
    %v363 = vrot.slane %v362, 4
    %v364 = vadd.f32 %v362, %v363
    %v365 = vrot.slane %v364, 2
    %v366 = vadd.f32 %v364, %v365
    %v367 = vrot.slane %v366, 1
    %v368 = vadd.f32 %v366, %v367
    %v369 = vadd.f32 %v135, %v151
    %v370 = vrot.slane %v369, 4
    %v371 = vadd.f32 %v369, %v370
    %v372 = vrot.slane %v371, 2
    %v373 = vadd.f32 %v371, %v372
    %v374 = vrot.slane %v373, 1
    %v375 = vadd.f32 %v373, %v374
    %v376 = vmul.f32 %v158, 0.0625
    %v377 = vmul.f32 %v165, 0.0625
    %v378 = vmul.f32 %v172, 0.0625
    %v379 = vmul.f32 %v179, 0.0625
    %v380 = vmul.f32 %v186, 0.0625
    %v381 = vmul.f32 %v193, 0.0625
    %v382 = vmul.f32 %v200, 0.0625
    %v383 = vmul.f32 %v207, 0.0625
    %v384 = vmul.f32 %v214, 0.0625
    %v385 = vmul.f32 %v221, 0.0625
    %v386 = vmul.f32 %v228, 0.0625
    %v387 = vmul.f32 %v235, 0.0625
    %v388 = vmul.f32 %v242, 0.0625
    %v389 = vmul.f32 %v249, 0.0625
    %v390 = vmul.f32 %v256, 0.0625
    %v391 = vmul.f32 %v263, 0.0625
    %v392 = vmul.f32 %v270, 0.0625
    %v393 = vmul.f32 %v277, 0.0625
    %v394 = vmul.f32 %v284, 0.0625
    %v395 = vmul.f32 %v291, 0.0625
    %v396 = vmul.f32 %v298, 0.0625
    %v397 = vmul.f32 %v305, 0.0625
    %v398 = vmul.f32 %v312, 0.0625
    %v399 = vmul.f32 %v319, 0.0625
    %v400 = vmul.f32 %v326, 0.0625
    %v401 = vmul.f32 %v333, 0.0625
    %v402 = vmul.f32 %v340, 0.0625
    %v403 = vmul.f32 %v347, 0.0625
    %v404 = vmul.f32 %v354, 0.0625
    %v405 = vmul.f32 %v361, 0.0625
    %v406 = vmul.f32 %v368, 0.0625
    %v407 = vmul.f32 %v375, 0.0625
    %v408 = vpack.c.bf16 %v376, %v376
    %v409 = vpack.c.bf16 %v377, %v377
    %v410 = vpack.c.bf16 %v378, %v378
    %v411 = vpack.c.bf16 %v379, %v379
    %v412 = vpack.c.bf16 %v380, %v380
    %v413 = vpack.c.bf16 %v381, %v381
    %v414 = vpack.c.bf16 %v382, %v382
    %v415 = vpack.c.bf16 %v383, %v383
    %v416 = vpack.c.bf16 %v384, %v384
    %v417 = vpack.c.bf16 %v385, %v385
    %v418 = vpack.c.bf16 %v386, %v386
    %v419 = vpack.c.bf16 %v387, %v387
    %v420 = vpack.c.bf16 %v388, %v388
    %v421 = vpack.c.bf16 %v389, %v389
    %v422 = vpack.c.bf16 %v390, %v390
    %v423 = vpack.c.bf16 %v391, %v391
    %v424 = vpack.c.bf16 %v392, %v392
    %v425 = vpack.c.bf16 %v393, %v393
    %v426 = vpack.c.bf16 %v394, %v394
    %v427 = vpack.c.bf16 %v395, %v395
    %v428 = vpack.c.bf16 %v396, %v396
    %v429 = vpack.c.bf16 %v397, %v397
    %v430 = vpack.c.bf16 %v398, %v398
    %v431 = vpack.c.bf16 %v399, %v399
    %v432 = vpack.c.bf16 %v400, %v400
    %v433 = vpack.c.bf16 %v401, %v401
    %v434 = vpack.c.bf16 %v402, %v402
    %v435 = vpack.c.bf16 %v403, %v403
    %v436 = vpack.c.bf16 %v404, %v404
    %v437 = vpack.c.bf16 %v405, %v405
    %v438 = vpack.c.bf16 %v406, %v406
    %v439 = vpack.c.bf16 %v407, %v407
    %v440 = vld [vmem:[#allocation5] sm:$0xff]
    %v441 = vld [vmem:[#allocation5 + $0x8] sm:$0xff]
    %v442 = vld [vmem:[#allocation5 + $0x10] sm:$0xff]
    %v443 = vld [vmem:[#allocation5 + $0x18] sm:$0xff]
    %v444 = vld [vmem:[#allocation5 + $0x20] sm:$0xff]
    %v445 = vld [vmem:[#allocation5 + $0x28] sm:$0xff]
    %v446 = vld [vmem:[#allocation5 + $0x30] sm:$0xff]
    %v447 = vld [vmem:[#allocation5 + $0x38] sm:$0xff]
    %v448 = vld [vmem:[#allocation5 + $0x40] sm:$0xff]
    %v449 = vld [vmem:[#allocation5 + $0x48] sm:$0xff]
    %v450 = vld [vmem:[#allocation5 + $0x50] sm:$0xff]
    %v451 = vld [vmem:[#allocation5 + $0x58] sm:$0xff]
    %v452 = vld [vmem:[#allocation5 + $0x60] sm:$0xff]
    %v453 = vld [vmem:[#allocation5 + $0x68] sm:$0xff]
    %v454 = vld [vmem:[#allocation5 + $0x70] sm:$0xff]
    %v455 = vld [vmem:[#allocation5 + $0x78] sm:$0xff]
    %v456 = vld [vmem:[#allocation5 + $0x80] sm:$0xff]
    %v457 = vld [vmem:[#allocation5 + $0x88] sm:$0xff]
    %v458 = vld [vmem:[#allocation5 + $0x90] sm:$0xff]
    %v459 = vld [vmem:[#allocation5 + $0x98] sm:$0xff]
    %v460 = vld [vmem:[#allocation5 + $0xa0] sm:$0xff]
    %v461 = vld [vmem:[#allocation5 + $0xa8] sm:$0xff]
    %v462 = vld [vmem:[#allocation5 + $0xb0] sm:$0xff]
    %v463 = vld [vmem:[#allocation5 + $0xb8] sm:$0xff]
    %v464 = vld [vmem:[#allocation5 + $0xc0] sm:$0xff]
    %v465 = vld [vmem:[#allocation5 + $0xc8] sm:$0xff]
    %v466 = vld [vmem:[#allocation5 + $0xd0] sm:$0xff]
    %v467 = vld [vmem:[#allocation5 + $0xd8] sm:$0xff]
    %v468 = vld [vmem:[#allocation5 + $0xe0] sm:$0xff]
    %v469 = vld [vmem:[#allocation5 + $0xe8] sm:$0xff]
    %v470 = vld [vmem:[#allocation5 + $0xf0] sm:$0xff]
    %v471 = vld [vmem:[#allocation5 + $0xf8] sm:$0xff]
    %v472 = vld [vmem:[#allocation5 + $0x100] sm:$0xff]
    %v473 = vld [vmem:[#allocation5 + $0x108] sm:$0xff]
    %v474 = vld [vmem:[#allocation5 + $0x110] sm:$0xff]
    %v475 = vld [vmem:[#allocation5 + $0x118] sm:$0xff]
    %v476 = vld [vmem:[#allocation5 + $0x120] sm:$0xff]
    %v477 = vld [vmem:[#allocation5 + $0x128] sm:$0xff]
    %v478 = vld [vmem:[#allocation5 + $0x130] sm:$0xff]
    %v479 = vld [vmem:[#allocation5 + $0x138] sm:$0xff]
    %v480 = vld [vmem:[#allocation5 + $0x140] sm:$0xff]
    %v481 = vld [vmem:[#allocation5 + $0x148] sm:$0xff]
    %v482 = vld [vmem:[#allocation5 + $0x150] sm:$0xff]
    %v483 = vld [vmem:[#allocation5 + $0x158] sm:$0xff]
    %v484 = vld [vmem:[#allocation5 + $0x160] sm:$0xff]
    %v485 = vld [vmem:[#allocation5 + $0x168] sm:$0xff]
    %v486 = vld [vmem:[#allocation5 + $0x170] sm:$0xff]
    %v487 = vld [vmem:[#allocation5 + $0x178] sm:$0xff]
    %v488 = vld [vmem:[#allocation5 + $0x180] sm:$0xff]
    %v489 = vld [vmem:[#allocation5 + $0x188] sm:$0xff]
    %v490 = vld [vmem:[#allocation5 + $0x190] sm:$0xff]
    %v491 = vld [vmem:[#allocation5 + $0x198] sm:$0xff]
    %v492 = vld [vmem:[#allocation5 + $0x1a0] sm:$0xff]
    %v493 = vld [vmem:[#allocation5 + $0x1a8] sm:$0xff]
    %v494 = vld [vmem:[#allocation5 + $0x1b0] sm:$0xff]
    %v495 = vld [vmem:[#allocation5 + $0x1b8] sm:$0xff]
    %v496 = vld [vmem:[#allocation5 + $0x1c0] sm:$0xff]
    %v497 = vld [vmem:[#allocation5 + $0x1c8] sm:$0xff]
    %v498 = vld [vmem:[#allocation5 + $0x1d0] sm:$0xff]
    %v499 = vld [vmem:[#allocation5 + $0x1d8] sm:$0xff]
    %v500 = vld [vmem:[#allocation5 + $0x1e0] sm:$0xff]
    %v501 = vld [vmem:[#allocation5 + $0x1e8] sm:$0xff]
    %v502 = vld [vmem:[#allocation5 + $0x1f0] sm:$0xff]
    %v503 = vld [vmem:[#allocation5 + $0x1f8] sm:$0xff]
    %v504 = vld [vmem:[#allocation5 + $0x200] sm:$0xff]
    %v505 = vld [vmem:[#allocation5 + $0x208] sm:$0xff]
    %v506 = vld [vmem:[#allocation5 + $0x210] sm:$0xff]
    %v507 = vld [vmem:[#allocation5 + $0x218] sm:$0xff]
    %v508 = vld [vmem:[#allocation5 + $0x220] sm:$0xff]
    %v509 = vld [vmem:[#allocation5 + $0x228] sm:$0xff]
    %v510 = vld [vmem:[#allocation5 + $0x230] sm:$0xff]
    %v511 = vld [vmem:[#allocation5 + $0x238] sm:$0xff]
    %v512 = vld [vmem:[#allocation5 + $0x240] sm:$0xff]
    %v513 = vld [vmem:[#allocation5 + $0x248] sm:$0xff]
    %v514 = vld [vmem:[#allocation5 + $0x250] sm:$0xff]
    %v515 = vld [vmem:[#allocation5 + $0x258] sm:$0xff]
    %v516 = vld [vmem:[#allocation5 + $0x260] sm:$0xff]
    %v517 = vld [vmem:[#allocation5 + $0x268] sm:$0xff]
    %v518 = vld [vmem:[#allocation5 + $0x270] sm:$0xff]
    %v519 = vld [vmem:[#allocation5 + $0x278] sm:$0xff]
    %v520 = vld [vmem:[#allocation5 + $0x280] sm:$0xff]
    %v521 = vld [vmem:[#allocation5 + $0x288] sm:$0xff]
    %v522 = vld [vmem:[#allocation5 + $0x290] sm:$0xff]
    %v523 = vld [vmem:[#allocation5 + $0x298] sm:$0xff]
    %v524 = vld [vmem:[#allocation5 + $0x2a0] sm:$0xff]
    %v525 = vld [vmem:[#allocation5 + $0x2a8] sm:$0xff]
    %v526 = vld [vmem:[#allocation5 + $0x2b0] sm:$0xff]
    %v527 = vld [vmem:[#allocation5 + $0x2b8] sm:$0xff]
    %v528 = vld [vmem:[#allocation5 + $0x2c0] sm:$0xff]
    %v529 = vld [vmem:[#allocation5 + $0x2c8] sm:$0xff]
    %v530 = vld [vmem:[#allocation5 + $0x2d0] sm:$0xff]
    %v531 = vld [vmem:[#allocation5 + $0x2d8] sm:$0xff]
    %v532 = vld [vmem:[#allocation5 + $0x2e0] sm:$0xff]
    %v533 = vld [vmem:[#allocation5 + $0x2e8] sm:$0xff]
    %v534 = vld [vmem:[#allocation5 + $0x2f0] sm:$0xff]
    %v535 = vld [vmem:[#allocation5 + $0x2f8] sm:$0xff]
    %v536 = vld [vmem:[#allocation5 + $0x300] sm:$0xff]
    %v537 = vld [vmem:[#allocation5 + $0x308] sm:$0xff]
    %v538 = vld [vmem:[#allocation5 + $0x310] sm:$0xff]
    %v539 = vld [vmem:[#allocation5 + $0x318] sm:$0xff]
    %v540 = vld [vmem:[#allocation5 + $0x320] sm:$0xff]
    %v541 = vld [vmem:[#allocation5 + $0x328] sm:$0xff]
    %v542 = vld [vmem:[#allocation5 + $0x330] sm:$0xff]
    %v543 = vld [vmem:[#allocation5 + $0x338] sm:$0xff]
    %v544 = vld [vmem:[#allocation5 + $0x340] sm:$0xff]
    %v545 = vld [vmem:[#allocation5 + $0x348] sm:$0xff]
    %v546 = vld [vmem:[#allocation5 + $0x350] sm:$0xff]
    %v547 = vld [vmem:[#allocation5 + $0x358] sm:$0xff]
    %v548 = vld [vmem:[#allocation5 + $0x360] sm:$0xff]
    %v549 = vld [vmem:[#allocation5 + $0x368] sm:$0xff]
    %v550 = vld [vmem:[#allocation5 + $0x370] sm:$0xff]
    %v551 = vld [vmem:[#allocation5 + $0x378] sm:$0xff]
    %v552 = vld [vmem:[#allocation5 + $0x380] sm:$0xff]
    %v553 = vld [vmem:[#allocation5 + $0x388] sm:$0xff]
    %v554 = vld [vmem:[#allocation5 + $0x390] sm:$0xff]
    %v555 = vld [vmem:[#allocation5 + $0x398] sm:$0xff]
    %v556 = vld [vmem:[#allocation5 + $0x3a0] sm:$0xff]
    %v557 = vld [vmem:[#allocation5 + $0x3a8] sm:$0xff]
    %v558 = vld [vmem:[#allocation5 + $0x3b0] sm:$0xff]
    %v559 = vld [vmem:[#allocation5 + $0x3b8] sm:$0xff]
    %v560 = vld [vmem:[#allocation5 + $0x3c0] sm:$0xff]
    %v561 = vld [vmem:[#allocation5 + $0x3c8] sm:$0xff]
    %v562 = vld [vmem:[#allocation5 + $0x3d0] sm:$0xff]
    %v563 = vld [vmem:[#allocation5 + $0x3d8] sm:$0xff]
    %v564 = vld [vmem:[#allocation5 + $0x3e0] sm:$0xff]
    %v565 = vld [vmem:[#allocation5 + $0x3e8] sm:$0xff]
    %v566 = vld [vmem:[#allocation5 + $0x3f0] sm:$0xff]
    %v567 = vld [vmem:[#allocation5 + $0x3f8] sm:$0xff]
    %v568 = vld [vmem:[#allocation5 + $0x400] sm:$0xff]
    %v569 = vld [vmem:[#allocation5 + $0x408] sm:$0xff]
    %v570 = vld [vmem:[#allocation5 + $0x410] sm:$0xff]
    %v571 = vld [vmem:[#allocation5 + $0x418] sm:$0xff]
    %v572 = vld [vmem:[#allocation5 + $0x420] sm:$0xff]
    %v573 = vld [vmem:[#allocation5 + $0x428] sm:$0xff]
    %v574 = vld [vmem:[#allocation5 + $0x430] sm:$0xff]
    %v575 = vld [vmem:[#allocation5 + $0x438] sm:$0xff]
    %v576 = vld [vmem:[#allocation5 + $0x440] sm:$0xff]
    %v577 = vld [vmem:[#allocation5 + $0x448] sm:$0xff]
    %v578 = vld [vmem:[#allocation5 + $0x450] sm:$0xff]
    %v579 = vld [vmem:[#allocation5 + $0x458] sm:$0xff]
    %v580 = vld [vmem:[#allocation5 + $0x460] sm:$0xff]
    %v581 = vld [vmem:[#allocation5 + $0x468] sm:$0xff]
    %v582 = vld [vmem:[#allocation5 + $0x470] sm:$0xff]
    %v583 = vld [vmem:[#allocation5 + $0x478] sm:$0xff]
    %v584 = vld [vmem:[#allocation5 + $0x480] sm:$0xff]
    %v585 = vld [vmem:[#allocation5 + $0x488] sm:$0xff]
    %v586 = vld [vmem:[#allocation5 + $0x490] sm:$0xff]
    %v587 = vld [vmem:[#allocation5 + $0x498] sm:$0xff]
    %v588 = vld [vmem:[#allocation5 + $0x4a0] sm:$0xff]
    %v589 = vld [vmem:[#allocation5 + $0x4a8] sm:$0xff]
    %v590 = vld [vmem:[#allocation5 + $0x4b0] sm:$0xff]
    %v591 = vld [vmem:[#allocation5 + $0x4b8] sm:$0xff]
    %v592 = vld [vmem:[#allocation5 + $0x4c0] sm:$0xff]
    %v593 = vld [vmem:[#allocation5 + $0x4c8] sm:$0xff]
    %v594 = vld [vmem:[#allocation5 + $0x4d0] sm:$0xff]
    %v595 = vld [vmem:[#allocation5 + $0x4d8] sm:$0xff]
    %v596 = vld [vmem:[#allocation5 + $0x4e0] sm:$0xff]
    %v597 = vld [vmem:[#allocation5 + $0x4e8] sm:$0xff]
    %v598 = vld [vmem:[#allocation5 + $0x4f0] sm:$0xff]
    %v599 = vld [vmem:[#allocation5 + $0x4f8] sm:$0xff]
    %v600 = vld [vmem:[#allocation5 + $0x500] sm:$0xff]
    %v601 = vld [vmem:[#allocation5 + $0x508] sm:$0xff]
    %v602 = vld [vmem:[#allocation5 + $0x510] sm:$0xff]
    %v603 = vld [vmem:[#allocation5 + $0x518] sm:$0xff]
    %v604 = vld [vmem:[#allocation5 + $0x520] sm:$0xff]
    %v605 = vld [vmem:[#allocation5 + $0x528] sm:$0xff]
    %v606 = vld [vmem:[#allocation5 + $0x530] sm:$0xff]
    %v607 = vld [vmem:[#allocation5 + $0x538] sm:$0xff]
    %v608 = vld [vmem:[#allocation5 + $0x540] sm:$0xff]
    %v609 = vld [vmem:[#allocation5 + $0x548] sm:$0xff]
    %v610 = vld [vmem:[#allocation5 + $0x550] sm:$0xff]
    %v611 = vld [vmem:[#allocation5 + $0x558] sm:$0xff]
    %v612 = vld [vmem:[#allocation5 + $0x560] sm:$0xff]
    %v613 = vld [vmem:[#allocation5 + $0x568] sm:$0xff]
    %v614 = vld [vmem:[#allocation5 + $0x570] sm:$0xff]
    %v615 = vld [vmem:[#allocation5 + $0x578] sm:$0xff]
    %v616 = vld [vmem:[#allocation5 + $0x580] sm:$0xff]
    %v617 = vld [vmem:[#allocation5 + $0x588] sm:$0xff]
    %v618 = vld [vmem:[#allocation5 + $0x590] sm:$0xff]
    %v619 = vld [vmem:[#allocation5 + $0x598] sm:$0xff]
    %v620 = vld [vmem:[#allocation5 + $0x5a0] sm:$0xff]
    %v621 = vld [vmem:[#allocation5 + $0x5a8] sm:$0xff]
    %v622 = vld [vmem:[#allocation5 + $0x5b0] sm:$0xff]
    %v623 = vld [vmem:[#allocation5 + $0x5b8] sm:$0xff]
    %v624 = vld [vmem:[#allocation5 + $0x5c0] sm:$0xff]
    %v625 = vld [vmem:[#allocation5 + $0x5c8] sm:$0xff]
    %v626 = vld [vmem:[#allocation5 + $0x5d0] sm:$0xff]
    %v627 = vld [vmem:[#allocation5 + $0x5d8] sm:$0xff]
    %v628 = vld [vmem:[#allocation5 + $0x5e0] sm:$0xff]
    %v629 = vld [vmem:[#allocation5 + $0x5e8] sm:$0xff]
    %v630 = vld [vmem:[#allocation5 + $0x5f0] sm:$0xff]
    %v631 = vld [vmem:[#allocation5 + $0x5f8] sm:$0xff]
    %v632 = vld [vmem:[#allocation5 + $0x600] sm:$0xff]
    %v633 = vld [vmem:[#allocation5 + $0x608] sm:$0xff]
    %v634 = vld [vmem:[#allocation5 + $0x610] sm:$0xff]
    %v635 = vld [vmem:[#allocation5 + $0x618] sm:$0xff]
    %v636 = vld [vmem:[#allocation5 + $0x620] sm:$0xff]
    %v637 = vld [vmem:[#allocation5 + $0x628] sm:$0xff]
    %v638 = vld [vmem:[#allocation5 + $0x630] sm:$0xff]
    %v639 = vld [vmem:[#allocation5 + $0x638] sm:$0xff]
    %v640 = vld [vmem:[#allocation5 + $0x640] sm:$0xff]
    %v641 = vld [vmem:[#allocation5 + $0x648] sm:$0xff]
    %v642 = vld [vmem:[#allocation5 + $0x650] sm:$0xff]
    %v643 = vld [vmem:[#allocation5 + $0x658] sm:$0xff]
    %v644 = vld [vmem:[#allocation5 + $0x660] sm:$0xff]
    %v645 = vld [vmem:[#allocation5 + $0x668] sm:$0xff]
    %v646 = vld [vmem:[#allocation5 + $0x670] sm:$0xff]
    %v647 = vld [vmem:[#allocation5 + $0x678] sm:$0xff]
    %v648 = vld [vmem:[#allocation5 + $0x680] sm:$0xff]
    %v649 = vld [vmem:[#allocation5 + $0x688] sm:$0xff]
    %v650 = vld [vmem:[#allocation5 + $0x690] sm:$0xff]
    %v651 = vld [vmem:[#allocation5 + $0x698] sm:$0xff]
    %v652 = vld [vmem:[#allocation5 + $0x6a0] sm:$0xff]
    %v653 = vld [vmem:[#allocation5 + $0x6a8] sm:$0xff]
    %v654 = vld [vmem:[#allocation5 + $0x6b0] sm:$0xff]
    %v655 = vld [vmem:[#allocation5 + $0x6b8] sm:$0xff]
    %v656 = vld [vmem:[#allocation5 + $0x6c0] sm:$0xff]
    %v657 = vld [vmem:[#allocation5 + $0x6c8] sm:$0xff]
    %v658 = vld [vmem:[#allocation5 + $0x6d0] sm:$0xff]
    %v659 = vld [vmem:[#allocation5 + $0x6d8] sm:$0xff]
    %v660 = vld [vmem:[#allocation5 + $0x6e0] sm:$0xff]
    %v661 = vld [vmem:[#allocation5 + $0x6e8] sm:$0xff]
    %v662 = vld [vmem:[#allocation5 + $0x6f0] sm:$0xff]
    %v663 = vld [vmem:[#allocation5 + $0x6f8] sm:$0xff]
    %v664 = vld [vmem:[#allocation5 + $0x700] sm:$0xff]
    %v665 = vld [vmem:[#allocation5 + $0x708] sm:$0xff]
    %v666 = vld [vmem:[#allocation5 + $0x710] sm:$0xff]
    %v667 = vld [vmem:[#allocation5 + $0x718] sm:$0xff]
    %v668 = vld [vmem:[#allocation5 + $0x720] sm:$0xff]
    %v669 = vld [vmem:[#allocation5 + $0x728] sm:$0xff]
    %v670 = vld [vmem:[#allocation5 + $0x730] sm:$0xff]
    %v671 = vld [vmem:[#allocation5 + $0x738] sm:$0xff]
    %v672 = vld [vmem:[#allocation5 + $0x740] sm:$0xff]
    %v673 = vld [vmem:[#allocation5 + $0x748] sm:$0xff]
    %v674 = vld [vmem:[#allocation5 + $0x750] sm:$0xff]
    %v675 = vld [vmem:[#allocation5 + $0x758] sm:$0xff]
    %v676 = vld [vmem:[#allocation5 + $0x760] sm:$0xff]
    %v677 = vld [vmem:[#allocation5 + $0x768] sm:$0xff]
    %v678 = vld [vmem:[#allocation5 + $0x770] sm:$0xff]
    %v679 = vld [vmem:[#allocation5 + $0x778] sm:$0xff]
    %v680 = vld [vmem:[#allocation5 + $0x780] sm:$0xff]
    %v681 = vld [vmem:[#allocation5 + $0x788] sm:$0xff]
    %v682 = vld [vmem:[#allocation5 + $0x790] sm:$0xff]
    %v683 = vld [vmem:[#allocation5 + $0x798] sm:$0xff]
    %v684 = vld [vmem:[#allocation5 + $0x7a0] sm:$0xff]
    %v685 = vld [vmem:[#allocation5 + $0x7a8] sm:$0xff]
    %v686 = vld [vmem:[#allocation5 + $0x7b0] sm:$0xff]
    %v687 = vld [vmem:[#allocation5 + $0x7b8] sm:$0xff]
    %v688 = vld [vmem:[#allocation5 + $0x7c0] sm:$0xff]
    %v689 = vld [vmem:[#allocation5 + $0x7c8] sm:$0xff]
    %v690 = vld [vmem:[#allocation5 + $0x7d0] sm:$0xff]
    %v691 = vld [vmem:[#allocation5 + $0x7d8] sm:$0xff]
    %v692 = vld [vmem:[#allocation5 + $0x7e0] sm:$0xff]
    %v693 = vld [vmem:[#allocation5 + $0x7e8] sm:$0xff]
    %v694 = vld [vmem:[#allocation5 + $0x7f0] sm:$0xff]
    %v695 = vld [vmem:[#allocation5 + $0x7f8] sm:$0xff]
    %v696 = vld [vmem:[#allocation7] sm:$0x3]
    %v698 = vlaneseq
    %v699 = vshrl.u32 %v698, 7
    %v700 = vsub.s32 0, %v699
    %v701 = vrot.slane %v696, %v700
    %v702 = vlaneseq
    %v703 = vshrl.u32 %v702, 7
    %v704 = vsub.s32 1, %v703
    %v705 = vrot.slane %v696, %v704
    %v740 = vunpack.c.l.b16 %v408
    %v741 = vunpack.c.l.b16 %v409
    %v742 = vunpack.c.l.b16 %v410
    %v743 = vunpack.c.l.b16 %v411
    %v744 = vunpack.c.l.b16 %v412
    %v745 = vunpack.c.l.b16 %v413
    %v746 = vunpack.c.l.b16 %v414
    %v747 = vunpack.c.l.b16 %v415
    %v748 = vunpack.c.l.b16 %v416
    %v749 = vunpack.c.l.b16 %v417
    %v750 = vunpack.c.l.b16 %v418
    %v751 = vunpack.c.l.b16 %v419
    %v752 = vunpack.c.l.b16 %v420
    %v753 = vunpack.c.l.b16 %v421
    %v754 = vunpack.c.l.b16 %v422
    %v755 = vunpack.c.l.b16 %v423
    %v756 = vunpack.c.l.b16 %v424
    %v757 = vunpack.c.l.b16 %v425
    %v758 = vunpack.c.l.b16 %v426
    %v759 = vunpack.c.l.b16 %v427
    %v760 = vunpack.c.l.b16 %v428
    %v761 = vunpack.c.l.b16 %v429
    %v762 = vunpack.c.l.b16 %v430
    %v763 = vunpack.c.l.b16 %v431
    %v764 = vunpack.c.l.b16 %v432
    %v765 = vunpack.c.l.b16 %v433
    %v766 = vunpack.c.l.b16 %v434
    %v767 = vunpack.c.l.b16 %v435
    %v768 = vunpack.c.l.b16 %v436
    %v769 = vunpack.c.l.b16 %v437
    %v770 = vunpack.c.l.b16 %v438
    %v771 = vunpack.c.l.b16 %v439
    %vm772 = vcmask 1041409
    %v773 = vsel %vm772, %v756, %v740
    %v774 = vsel %vm772, %v757, %v741
    %v775 = vsel %vm772, %v758, %v742
    %v776 = vsel %vm772, %v759, %v743
    %v777 = vsel %vm772, %v760, %v744
    %v778 = vsel %vm772, %v761, %v745
    %v779 = vsel %vm772, %v762, %v746
    %v780 = vsel %vm772, %v763, %v747
    %v781 = vsel %vm772, %v764, %v748
    %v782 = vsel %vm772, %v765, %v749
    %v783 = vsel %vm772, %v766, %v750
    %v784 = vsel %vm772, %v767, %v751
    %v785 = vsel %vm772, %v768, %v752
    %v786 = vsel %vm772, %v769, %v753
    %v787 = vsel %vm772, %v770, %v754
    %v788 = vsel %vm772, %v771, %v755
    %v789 = vpack.c.b16 %v773, %v773
    %v790 = vpack.c.b16 %v774, %v774
    %v791 = vpack.c.b16 %v775, %v775
    %v792 = vpack.c.b16 %v776, %v776
    %v793 = vpack.c.b16 %v777, %v777
    %v794 = vpack.c.b16 %v778, %v778
    %v795 = vpack.c.b16 %v779, %v779
    %v796 = vpack.c.b16 %v780, %v780
    %v797 = vpack.c.b16 %v781, %v781
    %v798 = vpack.c.b16 %v782, %v782
    %v799 = vpack.c.b16 %v783, %v783
    %v800 = vpack.c.b16 %v784, %v784
    %v801 = vpack.c.b16 %v785, %v785
    %v802 = vpack.c.b16 %v786, %v786
    %v803 = vpack.c.b16 %v787, %v787
    %v804 = vpack.c.b16 %v788, %v788
    %v1077 = vunpack.c.l.b16 %v440
    %v1078 = vunpack.c.h.b16 %v440
    %v1079 = vunpack.c.l.b16 %v441
    %v1080 = vunpack.c.h.b16 %v441
    %v1081 = vunpack.c.l.b16 %v442
    %v1082 = vunpack.c.h.b16 %v442
    %v1083 = vunpack.c.l.b16 %v443
    %v1084 = vunpack.c.h.b16 %v443
    %v1085 = vunpack.c.l.b16 %v444
    %v1086 = vunpack.c.h.b16 %v444
    %v1087 = vunpack.c.l.b16 %v445
    %v1088 = vunpack.c.h.b16 %v445
    %v1089 = vunpack.c.l.b16 %v446
    %v1090 = vunpack.c.h.b16 %v446
    %v1091 = vunpack.c.l.b16 %v447
    %v1092 = vunpack.c.h.b16 %v447
    %v1093 = vunpack.c.l.b16 %v448
    %v1094 = vunpack.c.h.b16 %v448
    %v1095 = vunpack.c.l.b16 %v449
    %v1096 = vunpack.c.h.b16 %v449
    %v1097 = vunpack.c.l.b16 %v450
    %v1098 = vunpack.c.h.b16 %v450
    %v1099 = vunpack.c.l.b16 %v451
    %v1100 = vunpack.c.h.b16 %v451
    %v1101 = vunpack.c.l.b16 %v452
    %v1102 = vunpack.c.h.b16 %v452
    %v1103 = vunpack.c.l.b16 %v453
    %v1104 = vunpack.c.h.b16 %v453
    %v1105 = vunpack.c.l.b16 %v454
    %v1106 = vunpack.c.h.b16 %v454
    %v1107 = vunpack.c.l.b16 %v455
    %v1108 = vunpack.c.h.b16 %v455
    %v1109 = vunpack.c.l.b16 %v456
    %v1110 = vunpack.c.h.b16 %v456
    %v1111 = vunpack.c.l.b16 %v457
    %v1112 = vunpack.c.h.b16 %v457
    %v1113 = vunpack.c.l.b16 %v458
    %v1114 = vunpack.c.h.b16 %v458
    %v1115 = vunpack.c.l.b16 %v459
    %v1116 = vunpack.c.h.b16 %v459
    %v1117 = vunpack.c.l.b16 %v460
    %v1118 = vunpack.c.h.b16 %v460
    %v1119 = vunpack.c.l.b16 %v461
    %v1120 = vunpack.c.h.b16 %v461
    %v1121 = vunpack.c.l.b16 %v462
    %v1122 = vunpack.c.h.b16 %v462
    %v1123 = vunpack.c.l.b16 %v463
    %v1124 = vunpack.c.h.b16 %v463
    %v1125 = vunpack.c.l.b16 %v464
    %v1126 = vunpack.c.h.b16 %v464
    %v1127 = vunpack.c.l.b16 %v465
    %v1128 = vunpack.c.h.b16 %v465
    %v1129 = vunpack.c.l.b16 %v466
    %v1130 = vunpack.c.h.b16 %v466
    %v1131 = vunpack.c.l.b16 %v467
    %v1132 = vunpack.c.h.b16 %v467
    %v1133 = vunpack.c.l.b16 %v468
    %v1134 = vunpack.c.h.b16 %v468
    %v1135 = vunpack.c.l.b16 %v469
    %v1136 = vunpack.c.h.b16 %v469
    %v1137 = vunpack.c.l.b16 %v470
    %v1138 = vunpack.c.h.b16 %v470
    %v1139 = vunpack.c.l.b16 %v471
    %v1140 = vunpack.c.h.b16 %v471
    %v1141 = vunpack.c.l.b16 %v472
    %v1142 = vunpack.c.h.b16 %v472
    %v1143 = vunpack.c.l.b16 %v473
    %v1144 = vunpack.c.h.b16 %v473
    %v1145 = vunpack.c.l.b16 %v474
    %v1146 = vunpack.c.h.b16 %v474
    %v1147 = vunpack.c.l.b16 %v475
    %v1148 = vunpack.c.h.b16 %v475
    %v1149 = vunpack.c.l.b16 %v476
    %v1150 = vunpack.c.h.b16 %v476
    %v1151 = vunpack.c.l.b16 %v477
    %v1152 = vunpack.c.h.b16 %v477
    %v1153 = vunpack.c.l.b16 %v478
    %v1154 = vunpack.c.h.b16 %v478
    %v1155 = vunpack.c.l.b16 %v479
    %v1156 = vunpack.c.h.b16 %v479
    %v1157 = vunpack.c.l.b16 %v480
    %v1158 = vunpack.c.h.b16 %v480
    %v1159 = vunpack.c.l.b16 %v481
    %v1160 = vunpack.c.h.b16 %v481
    %v1161 = vunpack.c.l.b16 %v482
    %v1162 = vunpack.c.h.b16 %v482
    %v1163 = vunpack.c.l.b16 %v483
    %v1164 = vunpack.c.h.b16 %v483
    %v1165 = vunpack.c.l.b16 %v484
    %v1166 = vunpack.c.h.b16 %v484
    %v1167 = vunpack.c.l.b16 %v485
    %v1168 = vunpack.c.h.b16 %v485
    %v1169 = vunpack.c.l.b16 %v486
    %v1170 = vunpack.c.h.b16 %v486
    %v1171 = vunpack.c.l.b16 %v487
    %v1172 = vunpack.c.h.b16 %v487
    %v1173 = vunpack.c.l.b16 %v488
    %v1174 = vunpack.c.h.b16 %v488
    %v1175 = vunpack.c.l.b16 %v489
    %v1176 = vunpack.c.h.b16 %v489
    %v1177 = vunpack.c.l.b16 %v490
    %v1178 = vunpack.c.h.b16 %v490
    %v1179 = vunpack.c.l.b16 %v491
    %v1180 = vunpack.c.h.b16 %v491
    %v1181 = vunpack.c.l.b16 %v492
    %v1182 = vunpack.c.h.b16 %v492
    %v1183 = vunpack.c.l.b16 %v493
    %v1184 = vunpack.c.h.b16 %v493
    %v1185 = vunpack.c.l.b16 %v494
    %v1186 = vunpack.c.h.b16 %v494
    %v1187 = vunpack.c.l.b16 %v495
    %v1188 = vunpack.c.h.b16 %v495
    %v1189 = vunpack.c.l.b16 %v496
    %v1190 = vunpack.c.h.b16 %v496
    %v1191 = vunpack.c.l.b16 %v497
    %v1192 = vunpack.c.h.b16 %v497
    %v1193 = vunpack.c.l.b16 %v498
    %v1194 = vunpack.c.h.b16 %v498
    %v1195 = vunpack.c.l.b16 %v499
    %v1196 = vunpack.c.h.b16 %v499
    %v1197 = vunpack.c.l.b16 %v500
    %v1198 = vunpack.c.h.b16 %v500
    %v1199 = vunpack.c.l.b16 %v501
    %v1200 = vunpack.c.h.b16 %v501
    %v1201 = vunpack.c.l.b16 %v502
    %v1202 = vunpack.c.h.b16 %v502
    %v1203 = vunpack.c.l.b16 %v503
    %v1204 = vunpack.c.h.b16 %v503
    %v1205 = vunpack.c.l.b16 %v504
    %v1206 = vunpack.c.h.b16 %v504
    %v1207 = vunpack.c.l.b16 %v505
    %v1208 = vunpack.c.h.b16 %v505
    %v1209 = vunpack.c.l.b16 %v506
    %v1210 = vunpack.c.h.b16 %v506
    %v1211 = vunpack.c.l.b16 %v507
    %v1212 = vunpack.c.h.b16 %v507
    %v1213 = vunpack.c.l.b16 %v508
    %v1214 = vunpack.c.h.b16 %v508
    %v1215 = vunpack.c.l.b16 %v509
    %v1216 = vunpack.c.h.b16 %v509
    %v1217 = vunpack.c.l.b16 %v510
    %v1218 = vunpack.c.h.b16 %v510
    %v1219 = vunpack.c.l.b16 %v511
    %v1220 = vunpack.c.h.b16 %v511
    %v1221 = vunpack.c.l.b16 %v512
    %v1222 = vunpack.c.h.b16 %v512
    %v1223 = vunpack.c.l.b16 %v513
    %v1224 = vunpack.c.h.b16 %v513
    %v1225 = vunpack.c.l.b16 %v514
    %v1226 = vunpack.c.h.b16 %v514
    %v1227 = vunpack.c.l.b16 %v515
    %v1228 = vunpack.c.h.b16 %v515
    %v1229 = vunpack.c.l.b16 %v516
    %v1230 = vunpack.c.h.b16 %v516
    %v1231 = vunpack.c.l.b16 %v517
    %v1232 = vunpack.c.h.b16 %v517
    %v1233 = vunpack.c.l.b16 %v518
    %v1234 = vunpack.c.h.b16 %v518
    %v1235 = vunpack.c.l.b16 %v519
    %v1236 = vunpack.c.h.b16 %v519
    %v1237 = vunpack.c.l.b16 %v520
    %v1238 = vunpack.c.h.b16 %v520
    %v1239 = vunpack.c.l.b16 %v521
    %v1240 = vunpack.c.h.b16 %v521
    %v1241 = vunpack.c.l.b16 %v522
    %v1242 = vunpack.c.h.b16 %v522
    %v1243 = vunpack.c.l.b16 %v523
    %v1244 = vunpack.c.h.b16 %v523
    %v1245 = vunpack.c.l.b16 %v524
    %v1246 = vunpack.c.h.b16 %v524
    %v1247 = vunpack.c.l.b16 %v525
    %v1248 = vunpack.c.h.b16 %v525
    %v1249 = vunpack.c.l.b16 %v526
    %v1250 = vunpack.c.h.b16 %v526
    %v1251 = vunpack.c.l.b16 %v527
    %v1252 = vunpack.c.h.b16 %v527
    %v1253 = vunpack.c.l.b16 %v528
    %v1254 = vunpack.c.h.b16 %v528
    %v1255 = vunpack.c.l.b16 %v529
    %v1256 = vunpack.c.h.b16 %v529
    %v1257 = vunpack.c.l.b16 %v530
    %v1258 = vunpack.c.h.b16 %v530
    %v1259 = vunpack.c.l.b16 %v531
    %v1260 = vunpack.c.h.b16 %v531
    %v1261 = vunpack.c.l.b16 %v532
    %v1262 = vunpack.c.h.b16 %v532
    %v1263 = vunpack.c.l.b16 %v533
    %v1264 = vunpack.c.h.b16 %v533
    %v1265 = vunpack.c.l.b16 %v534
    %v1266 = vunpack.c.h.b16 %v534
    %v1267 = vunpack.c.l.b16 %v535
    %v1268 = vunpack.c.h.b16 %v535
    %v1269 = vunpack.c.l.b16 %v536
    %v1270 = vunpack.c.h.b16 %v536
    %v1271 = vunpack.c.l.b16 %v537
    %v1272 = vunpack.c.h.b16 %v537
    %v1273 = vunpack.c.l.b16 %v538
    %v1274 = vunpack.c.h.b16 %v538
    %v1275 = vunpack.c.l.b16 %v539
    %v1276 = vunpack.c.h.b16 %v539
    %v1277 = vunpack.c.l.b16 %v540
    %v1278 = vunpack.c.h.b16 %v540
    %v1279 = vunpack.c.l.b16 %v541
    %v1280 = vunpack.c.h.b16 %v541
    %v1281 = vunpack.c.l.b16 %v542
    %v1282 = vunpack.c.h.b16 %v542
    %v1283 = vunpack.c.l.b16 %v543
    %v1284 = vunpack.c.h.b16 %v543
    %v1285 = vunpack.c.l.b16 %v544
    %v1286 = vunpack.c.h.b16 %v544
    %v1287 = vunpack.c.l.b16 %v545
    %v1288 = vunpack.c.h.b16 %v545
    %v1289 = vunpack.c.l.b16 %v546
    %v1290 = vunpack.c.h.b16 %v546
    %v1291 = vunpack.c.l.b16 %v547
    %v1292 = vunpack.c.h.b16 %v547
    %v1293 = vunpack.c.l.b16 %v548
    %v1294 = vunpack.c.h.b16 %v548
    %v1295 = vunpack.c.l.b16 %v549
    %v1296 = vunpack.c.h.b16 %v549
    %v1297 = vunpack.c.l.b16 %v550
    %v1298 = vunpack.c.h.b16 %v550
    %v1299 = vunpack.c.l.b16 %v551
    %v1300 = vunpack.c.h.b16 %v551
    %v1301 = vunpack.c.l.b16 %v552
    %v1302 = vunpack.c.h.b16 %v552
    %v1303 = vunpack.c.l.b16 %v553
    %v1304 = vunpack.c.h.b16 %v553
    %v1305 = vunpack.c.l.b16 %v554
    %v1306 = vunpack.c.h.b16 %v554
    %v1307 = vunpack.c.l.b16 %v555
    %v1308 = vunpack.c.h.b16 %v555
    %v1309 = vunpack.c.l.b16 %v556
    %v1310 = vunpack.c.h.b16 %v556
    %v1311 = vunpack.c.l.b16 %v557
    %v1312 = vunpack.c.h.b16 %v557
    %v1313 = vunpack.c.l.b16 %v558
    %v1314 = vunpack.c.h.b16 %v558
    %v1315 = vunpack.c.l.b16 %v559
    %v1316 = vunpack.c.h.b16 %v559
    %v1317 = vunpack.c.l.b16 %v560
    %v1318 = vunpack.c.h.b16 %v560
    %v1319 = vunpack.c.l.b16 %v561
    %v1320 = vunpack.c.h.b16 %v561
    %v1321 = vunpack.c.l.b16 %v562
    %v1322 = vunpack.c.h.b16 %v562
    %v1323 = vunpack.c.l.b16 %v563
    %v1324 = vunpack.c.h.b16 %v563
    %v1325 = vunpack.c.l.b16 %v564
    %v1326 = vunpack.c.h.b16 %v564
    %v1327 = vunpack.c.l.b16 %v565
    %v1328 = vunpack.c.h.b16 %v565
    %v1329 = vunpack.c.l.b16 %v566
    %v1330 = vunpack.c.h.b16 %v566
    %v1331 = vunpack.c.l.b16 %v567
    %v1332 = vunpack.c.h.b16 %v567
    %v1333 = vunpack.c.l.b16 %v568
    %v1334 = vunpack.c.h.b16 %v568
    %v1335 = vunpack.c.l.b16 %v569
    %v1336 = vunpack.c.h.b16 %v569
    %v1337 = vunpack.c.l.b16 %v570
    %v1338 = vunpack.c.h.b16 %v570
    %v1339 = vunpack.c.l.b16 %v571
    %v1340 = vunpack.c.h.b16 %v571
    %v1341 = vunpack.c.l.b16 %v572
    %v1342 = vunpack.c.h.b16 %v572
    %v1343 = vunpack.c.l.b16 %v573
    %v1344 = vunpack.c.h.b16 %v573
    %v1345 = vunpack.c.l.b16 %v574
    %v1346 = vunpack.c.h.b16 %v574
    %v1347 = vunpack.c.l.b16 %v575
    %v1348 = vunpack.c.h.b16 %v575
    %v1349 = vunpack.c.l.b16 %v576
    %v1350 = vunpack.c.h.b16 %v576
    %v1351 = vunpack.c.l.b16 %v577
    %v1352 = vunpack.c.h.b16 %v577
    %v1353 = vunpack.c.l.b16 %v578
    %v1354 = vunpack.c.h.b16 %v578
    %v1355 = vunpack.c.l.b16 %v579
    %v1356 = vunpack.c.h.b16 %v579
    %v1357 = vunpack.c.l.b16 %v580
    %v1358 = vunpack.c.h.b16 %v580
    %v1359 = vunpack.c.l.b16 %v581
    %v1360 = vunpack.c.h.b16 %v581
    %v1361 = vunpack.c.l.b16 %v582
    %v1362 = vunpack.c.h.b16 %v582
    %v1363 = vunpack.c.l.b16 %v583
    %v1364 = vunpack.c.h.b16 %v583
    %v1365 = vunpack.c.l.b16 %v584
    %v1366 = vunpack.c.h.b16 %v584
    %v1367 = vunpack.c.l.b16 %v585
    %v1368 = vunpack.c.h.b16 %v585
    %v1369 = vunpack.c.l.b16 %v586
    %v1370 = vunpack.c.h.b16 %v586
    %v1371 = vunpack.c.l.b16 %v587
    %v1372 = vunpack.c.h.b16 %v587
    %v1373 = vunpack.c.l.b16 %v588
    %v1374 = vunpack.c.h.b16 %v588
    %v1375 = vunpack.c.l.b16 %v589
    %v1376 = vunpack.c.h.b16 %v589
    %v1377 = vunpack.c.l.b16 %v590
    %v1378 = vunpack.c.h.b16 %v590
    %v1379 = vunpack.c.l.b16 %v591
    %v1380 = vunpack.c.h.b16 %v591
    %v1381 = vunpack.c.l.b16 %v592
    %v1382 = vunpack.c.h.b16 %v592
    %v1383 = vunpack.c.l.b16 %v593
    %v1384 = vunpack.c.h.b16 %v593
    %v1385 = vunpack.c.l.b16 %v594
    %v1386 = vunpack.c.h.b16 %v594
    %v1387 = vunpack.c.l.b16 %v595
    %v1388 = vunpack.c.h.b16 %v595
    %v1389 = vunpack.c.l.b16 %v596
    %v1390 = vunpack.c.h.b16 %v596
    %v1391 = vunpack.c.l.b16 %v597
    %v1392 = vunpack.c.h.b16 %v597
    %v1393 = vunpack.c.l.b16 %v598
    %v1394 = vunpack.c.h.b16 %v598
    %v1395 = vunpack.c.l.b16 %v599
    %v1396 = vunpack.c.h.b16 %v599
    %v1397 = vunpack.c.l.b16 %v600
    %v1398 = vunpack.c.h.b16 %v600
    %v1399 = vunpack.c.l.b16 %v601
    %v1400 = vunpack.c.h.b16 %v601
    %v1401 = vunpack.c.l.b16 %v602
    %v1402 = vunpack.c.h.b16 %v602
    %v1403 = vunpack.c.l.b16 %v603
    %v1404 = vunpack.c.h.b16 %v603
    %v1405 = vunpack.c.l.b16 %v604
    %v1406 = vunpack.c.h.b16 %v604
    %v1407 = vunpack.c.l.b16 %v605
    %v1408 = vunpack.c.h.b16 %v605
    %v1409 = vunpack.c.l.b16 %v606
    %v1410 = vunpack.c.h.b16 %v606
    %v1411 = vunpack.c.l.b16 %v607
    %v1412 = vunpack.c.h.b16 %v607
    %v1413 = vunpack.c.l.b16 %v608
    %v1414 = vunpack.c.h.b16 %v608
    %v1415 = vunpack.c.l.b16 %v609
    %v1416 = vunpack.c.h.b16 %v609
    %v1417 = vunpack.c.l.b16 %v610
    %v1418 = vunpack.c.h.b16 %v610
    %v1419 = vunpack.c.l.b16 %v611
    %v1420 = vunpack.c.h.b16 %v611
    %v1421 = vunpack.c.l.b16 %v612
    %v1422 = vunpack.c.h.b16 %v612
    %v1423 = vunpack.c.l.b16 %v613
    %v1424 = vunpack.c.h.b16 %v613
    %v1425 = vunpack.c.l.b16 %v614
    %v1426 = vunpack.c.h.b16 %v614
    %v1427 = vunpack.c.l.b16 %v615
    %v1428 = vunpack.c.h.b16 %v615
    %v1429 = vunpack.c.l.b16 %v616
    %v1430 = vunpack.c.h.b16 %v616
    %v1431 = vunpack.c.l.b16 %v617
    %v1432 = vunpack.c.h.b16 %v617
    %v1433 = vunpack.c.l.b16 %v618
    %v1434 = vunpack.c.h.b16 %v618
    %v1435 = vunpack.c.l.b16 %v619
    %v1436 = vunpack.c.h.b16 %v619
    %v1437 = vunpack.c.l.b16 %v620
    %v1438 = vunpack.c.h.b16 %v620
    %v1439 = vunpack.c.l.b16 %v621
    %v1440 = vunpack.c.h.b16 %v621
    %v1441 = vunpack.c.l.b16 %v622
    %v1442 = vunpack.c.h.b16 %v622
    %v1443 = vunpack.c.l.b16 %v623
    %v1444 = vunpack.c.h.b16 %v623
    %v1445 = vunpack.c.l.b16 %v624
    %v1446 = vunpack.c.h.b16 %v624
    %v1447 = vunpack.c.l.b16 %v625
    %v1448 = vunpack.c.h.b16 %v625
    %v1449 = vunpack.c.l.b16 %v626
    %v1450 = vunpack.c.h.b16 %v626
    %v1451 = vunpack.c.l.b16 %v627
    %v1452 = vunpack.c.h.b16 %v627
    %v1453 = vunpack.c.l.b16 %v628
    %v1454 = vunpack.c.h.b16 %v628
    %v1455 = vunpack.c.l.b16 %v629
    %v1456 = vunpack.c.h.b16 %v629
    %v1457 = vunpack.c.l.b16 %v630
    %v1458 = vunpack.c.h.b16 %v630
    %v1459 = vunpack.c.l.b16 %v631
    %v1460 = vunpack.c.h.b16 %v631
    %v1461 = vunpack.c.l.b16 %v632
    %v1462 = vunpack.c.h.b16 %v632
    %v1463 = vunpack.c.l.b16 %v633
    %v1464 = vunpack.c.h.b16 %v633
    %v1465 = vunpack.c.l.b16 %v634
    %v1466 = vunpack.c.h.b16 %v634
    %v1467 = vunpack.c.l.b16 %v635
    %v1468 = vunpack.c.h.b16 %v635
    %v1469 = vunpack.c.l.b16 %v636
    %v1470 = vunpack.c.h.b16 %v636
    %v1471 = vunpack.c.l.b16 %v637
    %v1472 = vunpack.c.h.b16 %v637
    %v1473 = vunpack.c.l.b16 %v638
    %v1474 = vunpack.c.h.b16 %v638
    %v1475 = vunpack.c.l.b16 %v639
    %v1476 = vunpack.c.h.b16 %v639
    %v1477 = vunpack.c.l.b16 %v640
    %v1478 = vunpack.c.h.b16 %v640
    %v1479 = vunpack.c.l.b16 %v641
    %v1480 = vunpack.c.h.b16 %v641
    %v1481 = vunpack.c.l.b16 %v642
    %v1482 = vunpack.c.h.b16 %v642
    %v1483 = vunpack.c.l.b16 %v643
    %v1484 = vunpack.c.h.b16 %v643
    %v1485 = vunpack.c.l.b16 %v644
    %v1486 = vunpack.c.h.b16 %v644
    %v1487 = vunpack.c.l.b16 %v645
    %v1488 = vunpack.c.h.b16 %v645
    %v1489 = vunpack.c.l.b16 %v646
    %v1490 = vunpack.c.h.b16 %v646
    %v1491 = vunpack.c.l.b16 %v647
    %v1492 = vunpack.c.h.b16 %v647
    %v1493 = vunpack.c.l.b16 %v648
    %v1494 = vunpack.c.h.b16 %v648
    %v1495 = vunpack.c.l.b16 %v649
    %v1496 = vunpack.c.h.b16 %v649
    %v1497 = vunpack.c.l.b16 %v650
    %v1498 = vunpack.c.h.b16 %v650
    %v1499 = vunpack.c.l.b16 %v651
    %v1500 = vunpack.c.h.b16 %v651
    %v1501 = vunpack.c.l.b16 %v652
    %v1502 = vunpack.c.h.b16 %v652
    %v1503 = vunpack.c.l.b16 %v653
    %v1504 = vunpack.c.h.b16 %v653
    %v1505 = vunpack.c.l.b16 %v654
    %v1506 = vunpack.c.h.b16 %v654
    %v1507 = vunpack.c.l.b16 %v655
    %v1508 = vunpack.c.h.b16 %v655
    %v1509 = vunpack.c.l.b16 %v656
    %v1510 = vunpack.c.h.b16 %v656
    %v1511 = vunpack.c.l.b16 %v657
    %v1512 = vunpack.c.h.b16 %v657
    %v1513 = vunpack.c.l.b16 %v658
    %v1514 = vunpack.c.h.b16 %v658
    %v1515 = vunpack.c.l.b16 %v659
    %v1516 = vunpack.c.h.b16 %v659
    %v1517 = vunpack.c.l.b16 %v660
    %v1518 = vunpack.c.h.b16 %v660
    %v1519 = vunpack.c.l.b16 %v661
    %v1520 = vunpack.c.h.b16 %v661
    %v1521 = vunpack.c.l.b16 %v662
    %v1522 = vunpack.c.h.b16 %v662
    %v1523 = vunpack.c.l.b16 %v663
    %v1524 = vunpack.c.h.b16 %v663
    %v1525 = vunpack.c.l.b16 %v664
    %v1526 = vunpack.c.h.b16 %v664
    %v1527 = vunpack.c.l.b16 %v665
    %v1528 = vunpack.c.h.b16 %v665
    %v1529 = vunpack.c.l.b16 %v666
    %v1530 = vunpack.c.h.b16 %v666
    %v1531 = vunpack.c.l.b16 %v667
    %v1532 = vunpack.c.h.b16 %v667
    %v1533 = vunpack.c.l.b16 %v668
    %v1534 = vunpack.c.h.b16 %v668
    %v1535 = vunpack.c.l.b16 %v669
    %v1536 = vunpack.c.h.b16 %v669
    %v1537 = vunpack.c.l.b16 %v670
    %v1538 = vunpack.c.h.b16 %v670
    %v1539 = vunpack.c.l.b16 %v671
    %v1540 = vunpack.c.h.b16 %v671
    %v1541 = vunpack.c.l.b16 %v672
    %v1542 = vunpack.c.h.b16 %v672
    %v1543 = vunpack.c.l.b16 %v673
    %v1544 = vunpack.c.h.b16 %v673
    %v1545 = vunpack.c.l.b16 %v674
    %v1546 = vunpack.c.h.b16 %v674
    %v1547 = vunpack.c.l.b16 %v675
    %v1548 = vunpack.c.h.b16 %v675
    %v1549 = vunpack.c.l.b16 %v676
    %v1550 = vunpack.c.h.b16 %v676
    %v1551 = vunpack.c.l.b16 %v677
    %v1552 = vunpack.c.h.b16 %v677
    %v1553 = vunpack.c.l.b16 %v678
    %v1554 = vunpack.c.h.b16 %v678
    %v1555 = vunpack.c.l.b16 %v679
    %v1556 = vunpack.c.h.b16 %v679
    %v1557 = vunpack.c.l.b16 %v680
    %v1558 = vunpack.c.h.b16 %v680
    %v1559 = vunpack.c.l.b16 %v681
    %v1560 = vunpack.c.h.b16 %v681
    %v1561 = vunpack.c.l.b16 %v682
    %v1562 = vunpack.c.h.b16 %v682
    %v1563 = vunpack.c.l.b16 %v683
    %v1564 = vunpack.c.h.b16 %v683
    %v1565 = vunpack.c.l.b16 %v684
    %v1566 = vunpack.c.h.b16 %v684
    %v1567 = vunpack.c.l.b16 %v685
    %v1568 = vunpack.c.h.b16 %v685
    %v1569 = vunpack.c.l.b16 %v686
    %v1570 = vunpack.c.h.b16 %v686
    %v1571 = vunpack.c.l.b16 %v687
    %v1572 = vunpack.c.h.b16 %v687
    %v1573 = vunpack.c.l.b16 %v688
    %v1574 = vunpack.c.h.b16 %v688
    %v1575 = vunpack.c.l.b16 %v689
    %v1576 = vunpack.c.h.b16 %v689
    %v1577 = vunpack.c.l.b16 %v690
    %v1578 = vunpack.c.h.b16 %v690
    %v1579 = vunpack.c.l.b16 %v691
    %v1580 = vunpack.c.h.b16 %v691
    %v1581 = vunpack.c.l.b16 %v692
    %v1582 = vunpack.c.h.b16 %v692
    %v1583 = vunpack.c.l.b16 %v693
    %v1584 = vunpack.c.h.b16 %v693
    %v1585 = vunpack.c.l.b16 %v694
    %v1586 = vunpack.c.h.b16 %v694
    %v1587 = vunpack.c.l.b16 %v695
    %v1588 = vunpack.c.h.b16 %v695
    %v1589 = vpack.c.b16 %v1079, %v1077
    %v1590 = vpack.c.b16 %v1080, %v1078
    %v1591 = vpack.c.b16 %v1083, %v1081
    %v1592 = vpack.c.b16 %v1084, %v1082
    %v1593 = vpack.c.b16 %v1087, %v1085
    %v1594 = vpack.c.b16 %v1088, %v1086
    %v1595 = vpack.c.b16 %v1091, %v1089
    %v1596 = vpack.c.b16 %v1092, %v1090
    %v1597 = vpack.c.b16 %v1095, %v1093
    %v1598 = vpack.c.b16 %v1096, %v1094
    %v1599 = vpack.c.b16 %v1099, %v1097
    %v1600 = vpack.c.b16 %v1100, %v1098
    %v1601 = vpack.c.b16 %v1103, %v1101
    %v1602 = vpack.c.b16 %v1104, %v1102
    %v1603 = vpack.c.b16 %v1107, %v1105
    %v1604 = vpack.c.b16 %v1108, %v1106
    %v1605 = vpack.c.b16 %v1111, %v1109
    %v1606 = vpack.c.b16 %v1112, %v1110
    %v1607 = vpack.c.b16 %v1115, %v1113
    %v1608 = vpack.c.b16 %v1116, %v1114
    %v1609 = vpack.c.b16 %v1119, %v1117
    %v1610 = vpack.c.b16 %v1120, %v1118
    %v1611 = vpack.c.b16 %v1123, %v1121
    %v1612 = vpack.c.b16 %v1124, %v1122
    %v1613 = vpack.c.b16 %v1127, %v1125
    %v1614 = vpack.c.b16 %v1128, %v1126
    %v1615 = vpack.c.b16 %v1131, %v1129
    %v1616 = vpack.c.b16 %v1132, %v1130
    %v1617 = vpack.c.b16 %v1135, %v1133
    %v1618 = vpack.c.b16 %v1136, %v1134
    %v1619 = vpack.c.b16 %v1139, %v1137
    %v1620 = vpack.c.b16 %v1140, %v1138
    %v1621 = vpack.c.b16 %v1143, %v1141
    %v1622 = vpack.c.b16 %v1144, %v1142
    %v1623 = vpack.c.b16 %v1147, %v1145
    %v1624 = vpack.c.b16 %v1148, %v1146
    %v1625 = vpack.c.b16 %v1151, %v1149
    %v1626 = vpack.c.b16 %v1152, %v1150
    %v1627 = vpack.c.b16 %v1155, %v1153
    %v1628 = vpack.c.b16 %v1156, %v1154
    %v1629 = vpack.c.b16 %v1159, %v1157
    %v1630 = vpack.c.b16 %v1160, %v1158
    %v1631 = vpack.c.b16 %v1163, %v1161
    %v1632 = vpack.c.b16 %v1164, %v1162
    %v1633 = vpack.c.b16 %v1167, %v1165
    %v1634 = vpack.c.b16 %v1168, %v1166
    %v1635 = vpack.c.b16 %v1171, %v1169
    %v1636 = vpack.c.b16 %v1172, %v1170
    %v1637 = vpack.c.b16 %v1175, %v1173
    %v1638 = vpack.c.b16 %v1176, %v1174
    %v1639 = vpack.c.b16 %v1179, %v1177
    %v1640 = vpack.c.b16 %v1180, %v1178
    %v1641 = vpack.c.b16 %v1183, %v1181
    %v1642 = vpack.c.b16 %v1184, %v1182
    %v1643 = vpack.c.b16 %v1187, %v1185
    %v1644 = vpack.c.b16 %v1188, %v1186
    %v1645 = vpack.c.b16 %v1191, %v1189
    %v1646 = vpack.c.b16 %v1192, %v1190
    %v1647 = vpack.c.b16 %v1195, %v1193
    %v1648 = vpack.c.b16 %v1196, %v1194
    %v1649 = vpack.c.b16 %v1199, %v1197
    %v1650 = vpack.c.b16 %v1200, %v1198
    %v1651 = vpack.c.b16 %v1203, %v1201
    %v1652 = vpack.c.b16 %v1204, %v1202
    %v1653 = vpack.c.b16 %v1207, %v1205
    %v1654 = vpack.c.b16 %v1208, %v1206
    %v1655 = vpack.c.b16 %v1211, %v1209
    %v1656 = vpack.c.b16 %v1212, %v1210
    %v1657 = vpack.c.b16 %v1215, %v1213
    %v1658 = vpack.c.b16 %v1216, %v1214
    %v1659 = vpack.c.b16 %v1219, %v1217
    %v1660 = vpack.c.b16 %v1220, %v1218
    %v1661 = vpack.c.b16 %v1223, %v1221
    %v1662 = vpack.c.b16 %v1224, %v1222
    %v1663 = vpack.c.b16 %v1227, %v1225
    %v1664 = vpack.c.b16 %v1228, %v1226
    %v1665 = vpack.c.b16 %v1231, %v1229
    %v1666 = vpack.c.b16 %v1232, %v1230
    %v1667 = vpack.c.b16 %v1235, %v1233
    %v1668 = vpack.c.b16 %v1236, %v1234
    %v1669 = vpack.c.b16 %v1239, %v1237
    %v1670 = vpack.c.b16 %v1240, %v1238
    %v1671 = vpack.c.b16 %v1243, %v1241
    %v1672 = vpack.c.b16 %v1244, %v1242
    %v1673 = vpack.c.b16 %v1247, %v1245
    %v1674 = vpack.c.b16 %v1248, %v1246
    %v1675 = vpack.c.b16 %v1251, %v1249
    %v1676 = vpack.c.b16 %v1252, %v1250
    %v1677 = vpack.c.b16 %v1255, %v1253
    %v1678 = vpack.c.b16 %v1256, %v1254
    %v1679 = vpack.c.b16 %v1259, %v1257
    %v1680 = vpack.c.b16 %v1260, %v1258
    %v1681 = vpack.c.b16 %v1263, %v1261
    %v1682 = vpack.c.b16 %v1264, %v1262
    %v1683 = vpack.c.b16 %v1267, %v1265
    %v1684 = vpack.c.b16 %v1268, %v1266
    %v1685 = vpack.c.b16 %v1271, %v1269
    %v1686 = vpack.c.b16 %v1272, %v1270
    %v1687 = vpack.c.b16 %v1275, %v1273
    %v1688 = vpack.c.b16 %v1276, %v1274
    %v1689 = vpack.c.b16 %v1279, %v1277
    %v1690 = vpack.c.b16 %v1280, %v1278
    %v1691 = vpack.c.b16 %v1283, %v1281
    %v1692 = vpack.c.b16 %v1284, %v1282
    %v1693 = vpack.c.b16 %v1287, %v1285
    %v1694 = vpack.c.b16 %v1288, %v1286
    %v1695 = vpack.c.b16 %v1291, %v1289
    %v1696 = vpack.c.b16 %v1292, %v1290
    %v1697 = vpack.c.b16 %v1295, %v1293
    %v1698 = vpack.c.b16 %v1296, %v1294
    %v1699 = vpack.c.b16 %v1299, %v1297
    %v1700 = vpack.c.b16 %v1300, %v1298
    %v1701 = vpack.c.b16 %v1303, %v1301
    %v1702 = vpack.c.b16 %v1304, %v1302
    %v1703 = vpack.c.b16 %v1307, %v1305
    %v1704 = vpack.c.b16 %v1308, %v1306
    %v1705 = vpack.c.b16 %v1311, %v1309
    %v1706 = vpack.c.b16 %v1312, %v1310
    %v1707 = vpack.c.b16 %v1315, %v1313
    %v1708 = vpack.c.b16 %v1316, %v1314
    %v1709 = vpack.c.b16 %v1319, %v1317
    %v1710 = vpack.c.b16 %v1320, %v1318
    %v1711 = vpack.c.b16 %v1323, %v1321
    %v1712 = vpack.c.b16 %v1324, %v1322
    %v1713 = vpack.c.b16 %v1327, %v1325
    %v1714 = vpack.c.b16 %v1328, %v1326
    %v1715 = vpack.c.b16 %v1331, %v1329
    %v1716 = vpack.c.b16 %v1332, %v1330
    %v1717 = vpack.c.b16 %v1335, %v1333
    %v1718 = vpack.c.b16 %v1336, %v1334
    %v1719 = vpack.c.b16 %v1339, %v1337
    %v1720 = vpack.c.b16 %v1340, %v1338
    %v1721 = vpack.c.b16 %v1343, %v1341
    %v1722 = vpack.c.b16 %v1344, %v1342
    %v1723 = vpack.c.b16 %v1347, %v1345
    %v1724 = vpack.c.b16 %v1348, %v1346
    %v1725 = vpack.c.b16 %v1351, %v1349
    %v1726 = vpack.c.b16 %v1352, %v1350
    %v1727 = vpack.c.b16 %v1355, %v1353
    %v1728 = vpack.c.b16 %v1356, %v1354
    %v1729 = vpack.c.b16 %v1359, %v1357
    %v1730 = vpack.c.b16 %v1360, %v1358
    %v1731 = vpack.c.b16 %v1363, %v1361
    %v1732 = vpack.c.b16 %v1364, %v1362
    %v1733 = vpack.c.b16 %v1367, %v1365
    %v1734 = vpack.c.b16 %v1368, %v1366
    %v1735 = vpack.c.b16 %v1371, %v1369
    %v1736 = vpack.c.b16 %v1372, %v1370
    %v1737 = vpack.c.b16 %v1375, %v1373
    %v1738 = vpack.c.b16 %v1376, %v1374
    %v1739 = vpack.c.b16 %v1379, %v1377
    %v1740 = vpack.c.b16 %v1380, %v1378
    %v1741 = vpack.c.b16 %v1383, %v1381
    %v1742 = vpack.c.b16 %v1384, %v1382
    %v1743 = vpack.c.b16 %v1387, %v1385
    %v1744 = vpack.c.b16 %v1388, %v1386
    %v1745 = vpack.c.b16 %v1391, %v1389
    %v1746 = vpack.c.b16 %v1392, %v1390
    %v1747 = vpack.c.b16 %v1395, %v1393
    %v1748 = vpack.c.b16 %v1396, %v1394
    %v1749 = vpack.c.b16 %v1399, %v1397
    %v1750 = vpack.c.b16 %v1400, %v1398
    %v1751 = vpack.c.b16 %v1403, %v1401
    %v1752 = vpack.c.b16 %v1404, %v1402
    %v1753 = vpack.c.b16 %v1407, %v1405
    %v1754 = vpack.c.b16 %v1408, %v1406
    %v1755 = vpack.c.b16 %v1411, %v1409
    %v1756 = vpack.c.b16 %v1412, %v1410
    %v1757 = vpack.c.b16 %v1415, %v1413
    %v1758 = vpack.c.b16 %v1416, %v1414
    %v1759 = vpack.c.b16 %v1419, %v1417
    %v1760 = vpack.c.b16 %v1420, %v1418
    %v1761 = vpack.c.b16 %v1423, %v1421
    %v1762 = vpack.c.b16 %v1424, %v1422
    %v1763 = vpack.c.b16 %v1427, %v1425
    %v1764 = vpack.c.b16 %v1428, %v1426
    %v1765 = vpack.c.b16 %v1431, %v1429
    %v1766 = vpack.c.b16 %v1432, %v1430
    %v1767 = vpack.c.b16 %v1435, %v1433
    %v1768 = vpack.c.b16 %v1436, %v1434
    %v1769 = vpack.c.b16 %v1439, %v1437
    %v1770 = vpack.c.b16 %v1440, %v1438
    %v1771 = vpack.c.b16 %v1443, %v1441
    %v1772 = vpack.c.b16 %v1444, %v1442
    %v1773 = vpack.c.b16 %v1447, %v1445
    %v1774 = vpack.c.b16 %v1448, %v1446
    %v1775 = vpack.c.b16 %v1451, %v1449
    %v1776 = vpack.c.b16 %v1452, %v1450
    %v1777 = vpack.c.b16 %v1455, %v1453
    %v1778 = vpack.c.b16 %v1456, %v1454
    %v1779 = vpack.c.b16 %v1459, %v1457
    %v1780 = vpack.c.b16 %v1460, %v1458
    %v1781 = vpack.c.b16 %v1463, %v1461
    %v1782 = vpack.c.b16 %v1464, %v1462
    %v1783 = vpack.c.b16 %v1467, %v1465
    %v1784 = vpack.c.b16 %v1468, %v1466
    %v1785 = vpack.c.b16 %v1471, %v1469
    %v1786 = vpack.c.b16 %v1472, %v1470
    %v1787 = vpack.c.b16 %v1475, %v1473
    %v1788 = vpack.c.b16 %v1476, %v1474
    %v1789 = vpack.c.b16 %v1479, %v1477
    %v1790 = vpack.c.b16 %v1480, %v1478
    %v1791 = vpack.c.b16 %v1483, %v1481
    %v1792 = vpack.c.b16 %v1484, %v1482
    %v1793 = vpack.c.b16 %v1487, %v1485
    %v1794 = vpack.c.b16 %v1488, %v1486
    %v1795 = vpack.c.b16 %v1491, %v1489
    %v1796 = vpack.c.b16 %v1492, %v1490
    %v1797 = vpack.c.b16 %v1495, %v1493
    %v1798 = vpack.c.b16 %v1496, %v1494
    %v1799 = vpack.c.b16 %v1499, %v1497
    %v1800 = vpack.c.b16 %v1500, %v1498
    %v1801 = vpack.c.b16 %v1503, %v1501
    %v1802 = vpack.c.b16 %v1504, %v1502
    %v1803 = vpack.c.b16 %v1507, %v1505
    %v1804 = vpack.c.b16 %v1508, %v1506
    %v1805 = vpack.c.b16 %v1511, %v1509
    %v1806 = vpack.c.b16 %v1512, %v1510
    %v1807 = vpack.c.b16 %v1515, %v1513
    %v1808 = vpack.c.b16 %v1516, %v1514
    %v1809 = vpack.c.b16 %v1519, %v1517
    %v1810 = vpack.c.b16 %v1520, %v1518
    %v1811 = vpack.c.b16 %v1523, %v1521
    %v1812 = vpack.c.b16 %v1524, %v1522
    %v1813 = vpack.c.b16 %v1527, %v1525
    %v1814 = vpack.c.b16 %v1528, %v1526
    %v1815 = vpack.c.b16 %v1531, %v1529
    %v1816 = vpack.c.b16 %v1532, %v1530
    %v1817 = vpack.c.b16 %v1535, %v1533
    %v1818 = vpack.c.b16 %v1536, %v1534
    %v1819 = vpack.c.b16 %v1539, %v1537
    %v1820 = vpack.c.b16 %v1540, %v1538
    %v1821 = vpack.c.b16 %v1543, %v1541
    %v1822 = vpack.c.b16 %v1544, %v1542
    %v1823 = vpack.c.b16 %v1547, %v1545
    %v1824 = vpack.c.b16 %v1548, %v1546
    %v1825 = vpack.c.b16 %v1551, %v1549
    %v1826 = vpack.c.b16 %v1552, %v1550
    %v1827 = vpack.c.b16 %v1555, %v1553
    %v1828 = vpack.c.b16 %v1556, %v1554
    %v1829 = vpack.c.b16 %v1559, %v1557
    %v1830 = vpack.c.b16 %v1560, %v1558
    %v1831 = vpack.c.b16 %v1563, %v1561
    %v1832 = vpack.c.b16 %v1564, %v1562
    %v1833 = vpack.c.b16 %v1567, %v1565
    %v1834 = vpack.c.b16 %v1568, %v1566
    %v1835 = vpack.c.b16 %v1571, %v1569
    %v1836 = vpack.c.b16 %v1572, %v1570
    %v1837 = vpack.c.b16 %v1575, %v1573
    %v1838 = vpack.c.b16 %v1576, %v1574
    %v1839 = vpack.c.b16 %v1579, %v1577
    %v1840 = vpack.c.b16 %v1580, %v1578
    %v1841 = vpack.c.b16 %v1583, %v1581
    %v1842 = vpack.c.b16 %v1584, %v1582
    %v1843 = vpack.c.b16 %v1587, %v1585
    %v1844 = vpack.c.b16 %v1588, %v1586
    %2101 = vmatprep.subr.bf16.mxu0 %v1590
    %2102 = vmatpush1.bf16.msra.mxu0 %v1589
    %2103 = vmatprep.subr.bf16.mxu0 %v1592
    %2104 = vmatpush1.bf16.msra.mxu0 %v1591
    %2105 = vmatprep.subr.bf16.mxu0 %v1594
    %2106 = vmatpush1.bf16.msra.mxu0 %v1593
    %2107 = vmatprep.subr.bf16.mxu0 %v1596
    %2108 = vmatpush1.bf16.msra.mxu0 %v1595
    %2109 = vmatprep.subr.bf16.mxu0 %v1598
    %2110 = vmatpush1.bf16.msra.mxu0 %v1597
    %2111 = vmatprep.subr.bf16.mxu0 %v1600
    %2112 = vmatpush1.bf16.msra.mxu0 %v1599
    %2113 = vmatprep.subr.bf16.mxu0 %v1602
    %2114 = vmatpush1.bf16.msra.mxu0 %v1601
    %2115 = vmatprep.subr.bf16.mxu0 %v1604
    %2116 = vmatpush1.bf16.msra.mxu0 %v1603
    %2117 = vmatprep.subr.bf16.mxu0 %v1606
    %2118 = vmatpush1.bf16.msra.mxu0 %v1605
    %2119 = vmatprep.subr.bf16.mxu0 %v1608
    %2120 = vmatpush1.bf16.msra.mxu0 %v1607
    %2121 = vmatprep.subr.bf16.mxu0 %v1610
    %2122 = vmatpush1.bf16.msra.mxu0 %v1609
    %2123 = vmatprep.subr.bf16.mxu0 %v1612
    %2124 = vmatpush1.bf16.msra.mxu0 %v1611
    %2125 = vmatprep.subr.bf16.mxu0 %v1614
    %2126 = vmatpush1.bf16.msra.mxu0 %v1613
    %2127 = vmatprep.subr.bf16.mxu0 %v1616
    %2128 = vmatpush1.bf16.msra.mxu0 %v1615
    %2129 = vmatprep.subr.bf16.mxu0 %v1618
    %2130 = vmatpush1.bf16.msra.mxu0 %v1617
    %2131 = vmatprep.subr.bf16.mxu0 %v1620
    %2132 = vmatpush1.bf16.msra.mxu0 %v1619
    %2133 = vmatprep.mubr.bf16.mxu0 %v790
    %2134 = vmatmul.mubr.bf16.gmra.mrb[0].mxu0 %v789
    %v2135 = vpop.f32.mrb[0].mxu0
    %v2136 = vadd.f32 %v701, %v2135
    %v2137 = vpop.f32.mrb[0].mxu0
    %v2138 = vadd.f32 %v705, %v2137
    %v2139 = vpop.f32.mrb[0].mxu0
    %v2140 = vpop.f32.mrb[0].mxu0
    %2141 = vdwg.mxu0
    %2142 = vmatprep.subr.bf16.mxu0 %v1622
    %2143 = vmatpush1.bf16.msra.mxu0 %v1621
    %2144 = vmatprep.subr.bf16.mxu0 %v1624
    %2145 = vmatpush1.bf16.msra.mxu0 %v1623
    %2146 = vmatprep.subr.bf16.mxu0 %v1626
    %2147 = vmatpush1.bf16.msra.mxu0 %v1625
    %2148 = vmatprep.subr.bf16.mxu0 %v1628
    %2149 = vmatpush1.bf16.msra.mxu0 %v1627
    %2150 = vmatprep.subr.bf16.mxu0 %v1630
    %2151 = vmatpush1.bf16.msra.mxu0 %v1629
    %2152 = vmatprep.subr.bf16.mxu0 %v1632
    %2153 = vmatpush1.bf16.msra.mxu0 %v1631
    %2154 = vmatprep.subr.bf16.mxu0 %v1634
    %2155 = vmatpush1.bf16.msra.mxu0 %v1633
    %2156 = vmatprep.subr.bf16.mxu0 %v1636
    %2157 = vmatpush1.bf16.msra.mxu0 %v1635
    %2158 = vmatprep.subr.bf16.mxu0 %v1638
    %2159 = vmatpush1.bf16.msra.mxu0 %v1637
    %2160 = vmatprep.subr.bf16.mxu0 %v1640
    %2161 = vmatpush1.bf16.msra.mxu0 %v1639
    %2162 = vmatprep.subr.bf16.mxu0 %v1642
    %2163 = vmatpush1.bf16.msra.mxu0 %v1641
    %2164 = vmatprep.subr.bf16.mxu0 %v1644
    %2165 = vmatpush1.bf16.msra.mxu0 %v1643
    %2166 = vmatprep.subr.bf16.mxu0 %v1646
    %2167 = vmatpush1.bf16.msra.mxu0 %v1645
    %2168 = vmatprep.subr.bf16.mxu0 %v1648
    %2169 = vmatpush1.bf16.msra.mxu0 %v1647
    %2170 = vmatprep.subr.bf16.mxu0 %v1650
    %2171 = vmatpush1.bf16.msra.mxu0 %v1649
    %2172 = vmatprep.subr.bf16.mxu0 %v1652
    %2173 = vmatpush1.bf16.msra.mxu0 %v1651
    %2174 = vmatprep.mubr.bf16.mxu0 %v792
    %2175 = vmatmul.mubr.bf16.gmra.mrb[0].mxu0 %v791
    %v2176 = vpop.f32.mrb[0].mxu0
    %v2177 = vadd.f32 %v2136, %v2176
    %v2178 = vpop.f32.mrb[0].mxu0
    %v2179 = vadd.f32 %v2138, %v2178
    %v2180 = vpop.f32.mrb[0].mxu0
    %v2181 = vpop.f32.mrb[0].mxu0
    %2182 = vdwg.mxu0
    %2183 = vmatprep.subr.bf16.mxu0 %v1654
    %2184 = vmatpush1.bf16.msra.mxu0 %v1653
    %2185 = vmatprep.subr.bf16.mxu0 %v1656
    %2186 = vmatpush1.bf16.msra.mxu0 %v1655
    %2187 = vmatprep.subr.bf16.mxu0 %v1658
    %2188 = vmatpush1.bf16.msra.mxu0 %v1657
    %2189 = vmatprep.subr.bf16.mxu0 %v1660
    %2190 = vmatpush1.bf16.msra.mxu0 %v1659
    %2191 = vmatprep.subr.bf16.mxu0 %v1662
    %2192 = vmatpush1.bf16.msra.mxu0 %v1661
    %2193 = vmatprep.subr.bf16.mxu0 %v1664
    %2194 = vmatpush1.bf16.msra.mxu0 %v1663
    %2195 = vmatprep.subr.bf16.mxu0 %v1666
    %2196 = vmatpush1.bf16.msra.mxu0 %v1665
    %2197 = vmatprep.subr.bf16.mxu0 %v1668
    %2198 = vmatpush1.bf16.msra.mxu0 %v1667
    %2199 = vmatprep.subr.bf16.mxu0 %v1670
    %2200 = vmatpush1.bf16.msra.mxu0 %v1669
    %2201 = vmatprep.subr.bf16.mxu0 %v1672
    %2202 = vmatpush1.bf16.msra.mxu0 %v1671
    %2203 = vmatprep.subr.bf16.mxu0 %v1674
    %2204 = vmatpush1.bf16.msra.mxu0 %v1673
    %2205 = vmatprep.subr.bf16.mxu0 %v1676
    %2206 = vmatpush1.bf16.msra.mxu0 %v1675
    %2207 = vmatprep.subr.bf16.mxu0 %v1678
    %2208 = vmatpush1.bf16.msra.mxu0 %v1677
    %2209 = vmatprep.subr.bf16.mxu0 %v1680
    %2210 = vmatpush1.bf16.msra.mxu0 %v1679
    %2211 = vmatprep.subr.bf16.mxu0 %v1682
    %2212 = vmatpush1.bf16.msra.mxu0 %v1681
    %2213 = vmatprep.subr.bf16.mxu0 %v1684
    %2214 = vmatpush1.bf16.msra.mxu0 %v1683
    %2215 = vmatprep.mubr.bf16.mxu0 %v794
    %2216 = vmatmul.mubr.bf16.gmra.mrb[0].mxu0 %v793
    %v2217 = vpop.f32.mrb[0].mxu0
    %v2218 = vadd.f32 %v2177, %v2217
    %v2219 = vpop.f32.mrb[0].mxu0
    %v2220 = vadd.f32 %v2179, %v2219
    %v2221 = vpop.f32.mrb[0].mxu0
    %v2222 = vpop.f32.mrb[0].mxu0
    %2223 = vdwg.mxu0
    %2224 = vmatprep.subr.bf16.mxu0 %v1686
    %2225 = vmatpush1.bf16.msra.mxu0 %v1685
    %2226 = vmatprep.subr.bf16.mxu0 %v1688
    %2227 = vmatpush1.bf16.msra.mxu0 %v1687
    %2228 = vmatprep.subr.bf16.mxu0 %v1690
    %2229 = vmatpush1.bf16.msra.mxu0 %v1689
    %2230 = vmatprep.subr.bf16.mxu0 %v1692
    %2231 = vmatpush1.bf16.msra.mxu0 %v1691
    %2232 = vmatprep.subr.bf16.mxu0 %v1694
    %2233 = vmatpush1.bf16.msra.mxu0 %v1693
    %2234 = vmatprep.subr.bf16.mxu0 %v1696
    %2235 = vmatpush1.bf16.msra.mxu0 %v1695
    %2236 = vmatprep.subr.bf16.mxu0 %v1698
    %2237 = vmatpush1.bf16.msra.mxu0 %v1697
    %2238 = vmatprep.subr.bf16.mxu0 %v1700
    %2239 = vmatpush1.bf16.msra.mxu0 %v1699
    %2240 = vmatprep.subr.bf16.mxu0 %v1702
    %2241 = vmatpush1.bf16.msra.mxu0 %v1701
    %2242 = vmatprep.subr.bf16.mxu0 %v1704
    %2243 = vmatpush1.bf16.msra.mxu0 %v1703
    %2244 = vmatprep.subr.bf16.mxu0 %v1706
    %2245 = vmatpush1.bf16.msra.mxu0 %v1705
    %2246 = vmatprep.subr.bf16.mxu0 %v1708
    %2247 = vmatpush1.bf16.msra.mxu0 %v1707
    %2248 = vmatprep.subr.bf16.mxu0 %v1710
    %2249 = vmatpush1.bf16.msra.mxu0 %v1709
    %2250 = vmatprep.subr.bf16.mxu0 %v1712
    %2251 = vmatpush1.bf16.msra.mxu0 %v1711
    %2252 = vmatprep.subr.bf16.mxu0 %v1714
    %2253 = vmatpush1.bf16.msra.mxu0 %v1713
    %2254 = vmatprep.subr.bf16.mxu0 %v1716
    %2255 = vmatpush1.bf16.msra.mxu0 %v1715
    %2256 = vmatprep.mubr.bf16.mxu0 %v796
    %2257 = vmatmul.mubr.bf16.gmra.mrb[0].mxu0 %v795
    %v2258 = vpop.f32.mrb[0].mxu0
    %v2259 = vadd.f32 %v2218, %v2258
    %v2260 = vpop.f32.mrb[0].mxu0
    %v2261 = vadd.f32 %v2220, %v2260
    %v2262 = vpop.f32.mrb[0].mxu0
    %v2263 = vpop.f32.mrb[0].mxu0
    %2264 = vdwg.mxu0
    %2265 = vmatprep.subr.bf16.mxu0 %v1718
    %2266 = vmatpush1.bf16.msra.mxu0 %v1717
    %2267 = vmatprep.subr.bf16.mxu0 %v1720
    %2268 = vmatpush1.bf16.msra.mxu0 %v1719
    %2269 = vmatprep.subr.bf16.mxu0 %v1722
    %2270 = vmatpush1.bf16.msra.mxu0 %v1721
    %2271 = vmatprep.subr.bf16.mxu0 %v1724
    %2272 = vmatpush1.bf16.msra.mxu0 %v1723
    %2273 = vmatprep.subr.bf16.mxu0 %v1726
    %2274 = vmatpush1.bf16.msra.mxu0 %v1725
    %2275 = vmatprep.subr.bf16.mxu0 %v1728
    %2276 = vmatpush1.bf16.msra.mxu0 %v1727
    %2277 = vmatprep.subr.bf16.mxu0 %v1730
    %2278 = vmatpush1.bf16.msra.mxu0 %v1729
    %2279 = vmatprep.subr.bf16.mxu0 %v1732
    %2280 = vmatpush1.bf16.msra.mxu0 %v1731
    %2281 = vmatprep.subr.bf16.mxu0 %v1734
    %2282 = vmatpush1.bf16.msra.mxu0 %v1733
    %2283 = vmatprep.subr.bf16.mxu0 %v1736
    %2284 = vmatpush1.bf16.msra.mxu0 %v1735
    %2285 = vmatprep.subr.bf16.mxu0 %v1738
    %2286 = vmatpush1.bf16.msra.mxu0 %v1737
    %2287 = vmatprep.subr.bf16.mxu0 %v1740
    %2288 = vmatpush1.bf16.msra.mxu0 %v1739
    %2289 = vmatprep.subr.bf16.mxu0 %v1742
    %2290 = vmatpush1.bf16.msra.mxu0 %v1741
    %2291 = vmatprep.subr.bf16.mxu0 %v1744
    %2292 = vmatpush1.bf16.msra.mxu0 %v1743
    %2293 = vmatprep.subr.bf16.mxu0 %v1746
    %2294 = vmatpush1.bf16.msra.mxu0 %v1745
    %2295 = vmatprep.subr.bf16.mxu0 %v1748
    %2296 = vmatpush1.bf16.msra.mxu0 %v1747
    %2297 = vmatprep.mubr.bf16.mxu0 %v798
    %2298 = vmatmul.mubr.bf16.gmra.mrb[0].mxu0 %v797
    %v2299 = vpop.f32.mrb[0].mxu0
    %v2300 = vadd.f32 %v2259, %v2299
    %v2301 = vpop.f32.mrb[0].mxu0
    %v2302 = vadd.f32 %v2261, %v2301
    %v2303 = vpop.f32.mrb[0].mxu0
    %v2304 = vpop.f32.mrb[0].mxu0
    %2305 = vdwg.mxu0
    %2306 = vmatprep.subr.bf16.mxu0 %v1750
    %2307 = vmatpush1.bf16.msra.mxu0 %v1749
    %2308 = vmatprep.subr.bf16.mxu0 %v1752
    %2309 = vmatpush1.bf16.msra.mxu0 %v1751
    %2310 = vmatprep.subr.bf16.mxu0 %v1754
    %2311 = vmatpush1.bf16.msra.mxu0 %v1753
    %2312 = vmatprep.subr.bf16.mxu0 %v1756
    %2313 = vmatpush1.bf16.msra.mxu0 %v1755
    %2314 = vmatprep.subr.bf16.mxu0 %v1758
    %2315 = vmatpush1.bf16.msra.mxu0 %v1757
    %2316 = vmatprep.subr.bf16.mxu0 %v1760
    %2317 = vmatpush1.bf16.msra.mxu0 %v1759
    %2318 = vmatprep.subr.bf16.mxu0 %v1762
    %2319 = vmatpush1.bf16.msra.mxu0 %v1761
    %2320 = vmatprep.subr.bf16.mxu0 %v1764
    %2321 = vmatpush1.bf16.msra.mxu0 %v1763
    %2322 = vmatprep.subr.bf16.mxu0 %v1766
    %2323 = vmatpush1.bf16.msra.mxu0 %v1765
    %2324 = vmatprep.subr.bf16.mxu0 %v1768
    %2325 = vmatpush1.bf16.msra.mxu0 %v1767
    %2326 = vmatprep.subr.bf16.mxu0 %v1770
    %2327 = vmatpush1.bf16.msra.mxu0 %v1769
    %2328 = vmatprep.subr.bf16.mxu0 %v1772
    %2329 = vmatpush1.bf16.msra.mxu0 %v1771
    %2330 = vmatprep.subr.bf16.mxu0 %v1774
    %2331 = vmatpush1.bf16.msra.mxu0 %v1773
    %2332 = vmatprep.subr.bf16.mxu0 %v1776
    %2333 = vmatpush1.bf16.msra.mxu0 %v1775
    %2334 = vmatprep.subr.bf16.mxu0 %v1778
    %2335 = vmatpush1.bf16.msra.mxu0 %v1777
    %2336 = vmatprep.subr.bf16.mxu0 %v1780
    %2337 = vmatpush1.bf16.msra.mxu0 %v1779
    %2338 = vmatprep.mubr.bf16.mxu0 %v800
    %2339 = vmatmul.mubr.bf16.gmra.mrb[0].mxu0 %v799
    %v2340 = vpop.f32.mrb[0].mxu0
    %v2341 = vadd.f32 %v2300, %v2340
    %v2342 = vpop.f32.mrb[0].mxu0
    %v2343 = vadd.f32 %v2302, %v2342
    %v2344 = vpop.f32.mrb[0].mxu0
    %v2345 = vpop.f32.mrb[0].mxu0
    %2346 = vdwg.mxu0
    %2347 = vmatprep.subr.bf16.mxu0 %v1782
    %2348 = vmatpush1.bf16.msra.mxu0 %v1781
    %2349 = vmatprep.subr.bf16.mxu0 %v1784
    %2350 = vmatpush1.bf16.msra.mxu0 %v1783
    %2351 = vmatprep.subr.bf16.mxu0 %v1786
    %2352 = vmatpush1.bf16.msra.mxu0 %v1785
    %2353 = vmatprep.subr.bf16.mxu0 %v1788
    %2354 = vmatpush1.bf16.msra.mxu0 %v1787
    %2355 = vmatprep.subr.bf16.mxu0 %v1790
    %2356 = vmatpush1.bf16.msra.mxu0 %v1789
    %2357 = vmatprep.subr.bf16.mxu0 %v1792
    %2358 = vmatpush1.bf16.msra.mxu0 %v1791
    %2359 = vmatprep.subr.bf16.mxu0 %v1794
    %2360 = vmatpush1.bf16.msra.mxu0 %v1793
    %2361 = vmatprep.subr.bf16.mxu0 %v1796
    %2362 = vmatpush1.bf16.msra.mxu0 %v1795
    %2363 = vmatprep.subr.bf16.mxu0 %v1798
    %2364 = vmatpush1.bf16.msra.mxu0 %v1797
    %2365 = vmatprep.subr.bf16.mxu0 %v1800
    %2366 = vmatpush1.bf16.msra.mxu0 %v1799
    %2367 = vmatprep.subr.bf16.mxu0 %v1802
    %2368 = vmatpush1.bf16.msra.mxu0 %v1801
    %2369 = vmatprep.subr.bf16.mxu0 %v1804
    %2370 = vmatpush1.bf16.msra.mxu0 %v1803
    %2371 = vmatprep.subr.bf16.mxu0 %v1806
    %2372 = vmatpush1.bf16.msra.mxu0 %v1805
    %2373 = vmatprep.subr.bf16.mxu0 %v1808
    %2374 = vmatpush1.bf16.msra.mxu0 %v1807
    %2375 = vmatprep.subr.bf16.mxu0 %v1810
    %2376 = vmatpush1.bf16.msra.mxu0 %v1809
    %2377 = vmatprep.subr.bf16.mxu0 %v1812
    %2378 = vmatpush1.bf16.msra.mxu0 %v1811
    %2379 = vmatprep.mubr.bf16.mxu0 %v802
    %2380 = vmatmul.mubr.bf16.gmra.mrb[0].mxu0 %v801
    %v2381 = vpop.f32.mrb[0].mxu0
    %v2382 = vadd.f32 %v2341, %v2381
    %v2383 = vpop.f32.mrb[0].mxu0
    %v2384 = vadd.f32 %v2343, %v2383
    %v2385 = vpop.f32.mrb[0].mxu0
    %v2386 = vpop.f32.mrb[0].mxu0
    %2387 = vdwg.mxu0
    %2388 = vmatprep.subr.bf16.mxu0 %v1814
    %2389 = vmatpush1.bf16.msra.mxu0 %v1813
    %2390 = vmatprep.subr.bf16.mxu0 %v1816
    %2391 = vmatpush1.bf16.msra.mxu0 %v1815
    %2392 = vmatprep.subr.bf16.mxu0 %v1818
    %2393 = vmatpush1.bf16.msra.mxu0 %v1817
    %2394 = vmatprep.subr.bf16.mxu0 %v1820
    %2395 = vmatpush1.bf16.msra.mxu0 %v1819
    %2396 = vmatprep.subr.bf16.mxu0 %v1822
    %2397 = vmatpush1.bf16.msra.mxu0 %v1821
    %2398 = vmatprep.subr.bf16.mxu0 %v1824
    %2399 = vmatpush1.bf16.msra.mxu0 %v1823
    %2400 = vmatprep.subr.bf16.mxu0 %v1826
    %2401 = vmatpush1.bf16.msra.mxu0 %v1825
    %2402 = vmatprep.subr.bf16.mxu0 %v1828
    %2403 = vmatpush1.bf16.msra.mxu0 %v1827
    %2404 = vmatprep.subr.bf16.mxu0 %v1830
    %2405 = vmatpush1.bf16.msra.mxu0 %v1829
    %2406 = vmatprep.subr.bf16.mxu0 %v1832
    %2407 = vmatpush1.bf16.msra.mxu0 %v1831
    %2408 = vmatprep.subr.bf16.mxu0 %v1834
    %2409 = vmatpush1.bf16.msra.mxu0 %v1833
    %2410 = vmatprep.subr.bf16.mxu0 %v1836
    %2411 = vmatpush1.bf16.msra.mxu0 %v1835
    %2412 = vmatprep.subr.bf16.mxu0 %v1838
    %2413 = vmatpush1.bf16.msra.mxu0 %v1837
    %2414 = vmatprep.subr.bf16.mxu0 %v1840
    %2415 = vmatpush1.bf16.msra.mxu0 %v1839
    %2416 = vmatprep.subr.bf16.mxu0 %v1842
    %2417 = vmatpush1.bf16.msra.mxu0 %v1841
    %2418 = vmatprep.subr.bf16.mxu0 %v1844
    %2419 = vmatpush1.bf16.msra.mxu0 %v1843
    %2420 = vmatprep.mubr.bf16.mxu0 %v804
    %2421 = vmatmul.mubr.bf16.gmra.mrb[0].mxu0 %v803
    %v2422 = vpop.f32.mrb[0].mxu0
    %v2423 = vadd.f32 %v2382, %v2422
    %v2424 = vpop.f32.mrb[0].mxu0
    %v2425 = vadd.f32 %v2384, %v2424
    %v2426 = vpop.f32.mrb[0].mxu0
    %v2427 = vpop.f32.mrb[0].mxu0
    %2428 = vdwg.mxu0
    %v2429 = vmax.f32 %v2423, 0.0
    %v2430 = vmax.f32 %v2425, 0.0
    %v2431 = vmul.f32 %v2429, %v2429
    %v2432 = vmul.f32 %v2430, %v2430
    %vm2433 = vcmask 1041408
    %v2434 = vsel %vm2433, %v2431, 0.0
    %v2435 = vsel %vm2433, %v2432, 0.0
    %v2436 = vadd.f32 %v2434, %v2435
    %2437 = vadd.xlane.f32.xlu0 %v2436
    %v2438 = vpop.xlane.xlu0 %2437
    %v2439 = vmax.f32 %v2438, 1e-24
    %v2440 = vrsqrt.pop %v2439
    %v2441 = vmul.f32 %v2440, 10.0
    %v2442 = vmul.f32 %v2429, %v2441
    %v2443 = vmul.f32 %v2430, %v2441
    %v2446 = vcombine.low %v2442, %v2443
    %v2448 = vunpack.c.l.s4 1983009808
    %v2449 = vunpack.c.0.s8 %v2448
    %v2450 = vlaneseq
    %v2451 = vshrl.u32 %v2450, 7
    %v2452 = vsub.s32 %v2449, %v2451
    %v2453 = vrot.slane %v2446, %v2452
    %2455 = vst [vmem:[#allocation8] sm:$0xf] %v2453
    %v2456 = vld [vmem:[#allocation2 + $0x80] sm:$0xff]
    %v2457 = vld [vmem:[#allocation2 + $0x88] sm:$0xff]
    %v2458 = vld [vmem:[#allocation2 + $0x90] sm:$0xff]
    %v2459 = vld [vmem:[#allocation2 + $0x98] sm:$0xff]
    %v2460 = vld [vmem:[#allocation2 + $0xa0] sm:$0xff]
    %v2461 = vld [vmem:[#allocation2 + $0xa8] sm:$0xff]
    %v2462 = vld [vmem:[#allocation2 + $0xb0] sm:$0xff]
    %v2463 = vld [vmem:[#allocation2 + $0xb8] sm:$0xff]
    %v2464 = vld [vmem:[#allocation2 + $0xc0] sm:$0xff]
    %v2465 = vld [vmem:[#allocation2 + $0xc8] sm:$0xff]
    %v2466 = vld [vmem:[#allocation2 + $0xd0] sm:$0xff]
    %v2467 = vld [vmem:[#allocation2 + $0xd8] sm:$0xff]
    %v2468 = vld [vmem:[#allocation2 + $0xe0] sm:$0xff]
    %v2469 = vld [vmem:[#allocation2 + $0xe8] sm:$0xff]
    %v2470 = vld [vmem:[#allocation2 + $0xf0] sm:$0xff]
    %v2471 = vld [vmem:[#allocation2 + $0xf8] sm:$0xff]
    %v2472 = vld [vmem:[#allocation2 + $0x380] sm:$0xff]
    %v2473 = vld [vmem:[#allocation2 + $0x388] sm:$0xff]
    %v2474 = vld [vmem:[#allocation2 + $0x390] sm:$0xff]
    %v2475 = vld [vmem:[#allocation2 + $0x398] sm:$0xff]
    %v2476 = vld [vmem:[#allocation2 + $0x3a0] sm:$0xff]
    %v2477 = vld [vmem:[#allocation2 + $0x3a8] sm:$0xff]
    %v2478 = vld [vmem:[#allocation2 + $0x3b0] sm:$0xff]
    %v2479 = vld [vmem:[#allocation2 + $0x3b8] sm:$0xff]
    %v2480 = vld [vmem:[#allocation2 + $0x3c0] sm:$0xff]
    %v2481 = vld [vmem:[#allocation2 + $0x3c8] sm:$0xff]
    %v2482 = vld [vmem:[#allocation2 + $0x3d0] sm:$0xff]
    %v2483 = vld [vmem:[#allocation2 + $0x3d8] sm:$0xff]
    %v2484 = vld [vmem:[#allocation2 + $0x3e0] sm:$0xff]
    %v2485 = vld [vmem:[#allocation2 + $0x3e8] sm:$0xff]
    %v2486 = vld [vmem:[#allocation2 + $0x3f0] sm:$0xff]
    %v2487 = vld [vmem:[#allocation2 + $0x3f8] sm:$0xff]
    %v2488 = vunpack.c.l.bf16 %v2456
    %v2489 = vunpack.c.h.bf16 %v2456
    %v2490 = vunpack.c.l.bf16 %v2457
    %v2491 = vunpack.c.h.bf16 %v2457
    %v2492 = vunpack.c.l.bf16 %v2458
    %v2493 = vunpack.c.h.bf16 %v2458
    %v2494 = vunpack.c.l.bf16 %v2459
    %v2495 = vunpack.c.h.bf16 %v2459
    %v2496 = vunpack.c.l.bf16 %v2460
    %v2497 = vunpack.c.h.bf16 %v2460
    %v2498 = vunpack.c.l.bf16 %v2461
    %v2499 = vunpack.c.h.bf16 %v2461
    %v2500 = vunpack.c.l.bf16 %v2462
    %v2501 = vunpack.c.h.bf16 %v2462
    %v2502 = vunpack.c.l.bf16 %v2463
    %v2503 = vunpack.c.h.bf16 %v2463
    %v2504 = vunpack.c.l.bf16 %v2464
    %v2505 = vunpack.c.h.bf16 %v2464
    %v2506 = vunpack.c.l.bf16 %v2465
    %v2507 = vunpack.c.h.bf16 %v2465
    %v2508 = vunpack.c.l.bf16 %v2466
    %v2509 = vunpack.c.h.bf16 %v2466
    %v2510 = vunpack.c.l.bf16 %v2467
    %v2511 = vunpack.c.h.bf16 %v2467
    %v2512 = vunpack.c.l.bf16 %v2468
    %v2513 = vunpack.c.h.bf16 %v2468
    %v2514 = vunpack.c.l.bf16 %v2469
    %v2515 = vunpack.c.h.bf16 %v2469
    %v2516 = vunpack.c.l.bf16 %v2470
    %v2517 = vunpack.c.h.bf16 %v2470
    %v2518 = vunpack.c.l.bf16 %v2471
    %v2519 = vunpack.c.h.bf16 %v2471
    %v2520 = vunpack.c.l.bf16 %v2472
    %v2521 = vunpack.c.h.bf16 %v2472
    %v2522 = vunpack.c.l.bf16 %v2473
    %v2523 = vunpack.c.h.bf16 %v2473
    %v2524 = vunpack.c.l.bf16 %v2474
    %v2525 = vunpack.c.h.bf16 %v2474
    %v2526 = vunpack.c.l.bf16 %v2475
    %v2527 = vunpack.c.h.bf16 %v2475
    %v2528 = vunpack.c.l.bf16 %v2476
    %v2529 = vunpack.c.h.bf16 %v2476
    %v2530 = vunpack.c.l.bf16 %v2477
    %v2531 = vunpack.c.h.bf16 %v2477
    %v2532 = vunpack.c.l.bf16 %v2478
    %v2533 = vunpack.c.h.bf16 %v2478
    %v2534 = vunpack.c.l.bf16 %v2479
    %v2535 = vunpack.c.h.bf16 %v2479
    %v2536 = vunpack.c.l.bf16 %v2480
    %v2537 = vunpack.c.h.bf16 %v2480
    %v2538 = vunpack.c.l.bf16 %v2481
    %v2539 = vunpack.c.h.bf16 %v2481
    %v2540 = vunpack.c.l.bf16 %v2482
    %v2541 = vunpack.c.h.bf16 %v2482
    %v2542 = vunpack.c.l.bf16 %v2483
    %v2543 = vunpack.c.h.bf16 %v2483
    %v2544 = vunpack.c.l.bf16 %v2484
    %v2545 = vunpack.c.h.bf16 %v2484
    %v2546 = vunpack.c.l.bf16 %v2485
    %v2547 = vunpack.c.h.bf16 %v2485
    %v2548 = vunpack.c.l.bf16 %v2486
    %v2549 = vunpack.c.h.bf16 %v2486
    %v2550 = vunpack.c.l.bf16 %v2487
    %v2551 = vunpack.c.h.bf16 %v2487
    %v2552 = vadd.f32 %v2488, %v2504
    %v2553 = vrot.slane %v2552, 4
    %v2554 = vadd.f32 %v2552, %v2553
    %v2555 = vrot.slane %v2554, 2
    %v2556 = vadd.f32 %v2554, %v2555
    %v2557 = vrot.slane %v2556, 1
    %v2558 = vadd.f32 %v2556, %v2557
    %v2559 = vadd.f32 %v2489, %v2505
    %v2560 = vrot.slane %v2559, 4
    %v2561 = vadd.f32 %v2559, %v2560
    %v2562 = vrot.slane %v2561, 2
    %v2563 = vadd.f32 %v2561, %v2562
    %v2564 = vrot.slane %v2563, 1
    %v2565 = vadd.f32 %v2563, %v2564
    %v2566 = vadd.f32 %v2490, %v2506
    %v2567 = vrot.slane %v2566, 4
    %v2568 = vadd.f32 %v2566, %v2567
    %v2569 = vrot.slane %v2568, 2
    %v2570 = vadd.f32 %v2568, %v2569
    %v2571 = vrot.slane %v2570, 1
    %v2572 = vadd.f32 %v2570, %v2571
    %v2573 = vadd.f32 %v2491, %v2507
    %v2574 = vrot.slane %v2573, 4
    %v2575 = vadd.f32 %v2573, %v2574
    %v2576 = vrot.slane %v2575, 2
    %v2577 = vadd.f32 %v2575, %v2576
    %v2578 = vrot.slane %v2577, 1
    %v2579 = vadd.f32 %v2577, %v2578
    %v2580 = vadd.f32 %v2492, %v2508
    %v2581 = vrot.slane %v2580, 4
    %v2582 = vadd.f32 %v2580, %v2581
    %v2583 = vrot.slane %v2582, 2
    %v2584 = vadd.f32 %v2582, %v2583
    %v2585 = vrot.slane %v2584, 1
    %v2586 = vadd.f32 %v2584, %v2585
    %v2587 = vadd.f32 %v2493, %v2509
    %v2588 = vrot.slane %v2587, 4
    %v2589 = vadd.f32 %v2587, %v2588
    %v2590 = vrot.slane %v2589, 2
    %v2591 = vadd.f32 %v2589, %v2590
    %v2592 = vrot.slane %v2591, 1
    %v2593 = vadd.f32 %v2591, %v2592
    %v2594 = vadd.f32 %v2494, %v2510
    %v2595 = vrot.slane %v2594, 4
    %v2596 = vadd.f32 %v2594, %v2595
    %v2597 = vrot.slane %v2596, 2
    %v2598 = vadd.f32 %v2596, %v2597
    %v2599 = vrot.slane %v2598, 1
    %v2600 = vadd.f32 %v2598, %v2599
    %v2601 = vadd.f32 %v2495, %v2511
    %v2602 = vrot.slane %v2601, 4
    %v2603 = vadd.f32 %v2601, %v2602
    %v2604 = vrot.slane %v2603, 2
    %v2605 = vadd.f32 %v2603, %v2604
    %v2606 = vrot.slane %v2605, 1
    %v2607 = vadd.f32 %v2605, %v2606
    %v2608 = vadd.f32 %v2496, %v2512
    %v2609 = vrot.slane %v2608, 4
    %v2610 = vadd.f32 %v2608, %v2609
    %v2611 = vrot.slane %v2610, 2
    %v2612 = vadd.f32 %v2610, %v2611
    %v2613 = vrot.slane %v2612, 1
    %v2614 = vadd.f32 %v2612, %v2613
    %v2615 = vadd.f32 %v2497, %v2513
    %v2616 = vrot.slane %v2615, 4
    %v2617 = vadd.f32 %v2615, %v2616
    %v2618 = vrot.slane %v2617, 2
    %v2619 = vadd.f32 %v2617, %v2618
    %v2620 = vrot.slane %v2619, 1
    %v2621 = vadd.f32 %v2619, %v2620
    %v2622 = vadd.f32 %v2498, %v2514
    %v2623 = vrot.slane %v2622, 4
    %v2624 = vadd.f32 %v2622, %v2623
    %v2625 = vrot.slane %v2624, 2
    %v2626 = vadd.f32 %v2624, %v2625
    %v2627 = vrot.slane %v2626, 1
    %v2628 = vadd.f32 %v2626, %v2627
    %v2629 = vadd.f32 %v2499, %v2515
    %v2630 = vrot.slane %v2629, 4
    %v2631 = vadd.f32 %v2629, %v2630
    %v2632 = vrot.slane %v2631, 2
    %v2633 = vadd.f32 %v2631, %v2632
    %v2634 = vrot.slane %v2633, 1
    %v2635 = vadd.f32 %v2633, %v2634
    %v2636 = vadd.f32 %v2500, %v2516
    %v2637 = vrot.slane %v2636, 4
    %v2638 = vadd.f32 %v2636, %v2637
    %v2639 = vrot.slane %v2638, 2
    %v2640 = vadd.f32 %v2638, %v2639
    %v2641 = vrot.slane %v2640, 1
    %v2642 = vadd.f32 %v2640, %v2641
    %v2643 = vadd.f32 %v2501, %v2517
    %v2644 = vrot.slane %v2643, 4
    %v2645 = vadd.f32 %v2643, %v2644
    %v2646 = vrot.slane %v2645, 2
    %v2647 = vadd.f32 %v2645, %v2646
    %v2648 = vrot.slane %v2647, 1
    %v2649 = vadd.f32 %v2647, %v2648
    %v2650 = vadd.f32 %v2502, %v2518
    %v2651 = vrot.slane %v2650, 4
    %v2652 = vadd.f32 %v2650, %v2651
    %v2653 = vrot.slane %v2652, 2
    %v2654 = vadd.f32 %v2652, %v2653
    %v2655 = vrot.slane %v2654, 1
    %v2656 = vadd.f32 %v2654, %v2655
    %v2657 = vadd.f32 %v2503, %v2519
    %v2658 = vrot.slane %v2657, 4
    %v2659 = vadd.f32 %v2657, %v2658
    %v2660 = vrot.slane %v2659, 2
    %v2661 = vadd.f32 %v2659, %v2660
    %v2662 = vrot.slane %v2661, 1
    %v2663 = vadd.f32 %v2661, %v2662
    %v2664 = vadd.f32 %v2520, %v2536
    %v2665 = vrot.slane %v2664, 4
    %v2666 = vadd.f32 %v2664, %v2665
    %v2667 = vrot.slane %v2666, 2
    %v2668 = vadd.f32 %v2666, %v2667
    %v2669 = vrot.slane %v2668, 1
    %v2670 = vadd.f32 %v2668, %v2669
    %v2671 = vadd.f32 %v2521, %v2537
    %v2672 = vrot.slane %v2671, 4
    %v2673 = vadd.f32 %v2671, %v2672
    %v2674 = vrot.slane %v2673, 2
    %v2675 = vadd.f32 %v2673, %v2674
    %v2676 = vrot.slane %v2675, 1
    %v2677 = vadd.f32 %v2675, %v2676
    %v2678 = vadd.f32 %v2522, %v2538
    %v2679 = vrot.slane %v2678, 4
    %v2680 = vadd.f32 %v2678, %v2679
    %v2681 = vrot.slane %v2680, 2
    %v2682 = vadd.f32 %v2680, %v2681
    %v2683 = vrot.slane %v2682, 1
    %v2684 = vadd.f32 %v2682, %v2683
    %v2685 = vadd.f32 %v2523, %v2539
    %v2686 = vrot.slane %v2685, 4
    %v2687 = vadd.f32 %v2685, %v2686
    %v2688 = vrot.slane %v2687, 2
    %v2689 = vadd.f32 %v2687, %v2688
    %v2690 = vrot.slane %v2689, 1
    %v2691 = vadd.f32 %v2689, %v2690
    %v2692 = vadd.f32 %v2524, %v2540
    %v2693 = vrot.slane %v2692, 4
    %v2694 = vadd.f32 %v2692, %v2693
    %v2695 = vrot.slane %v2694, 2
    %v2696 = vadd.f32 %v2694, %v2695
    %v2697 = vrot.slane %v2696, 1
    %v2698 = vadd.f32 %v2696, %v2697
    %v2699 = vadd.f32 %v2525, %v2541
    %v2700 = vrot.slane %v2699, 4
    %v2701 = vadd.f32 %v2699, %v2700
    %v2702 = vrot.slane %v2701, 2
    %v2703 = vadd.f32 %v2701, %v2702
    %v2704 = vrot.slane %v2703, 1
    %v2705 = vadd.f32 %v2703, %v2704
    %v2706 = vadd.f32 %v2526, %v2542
    %v2707 = vrot.slane %v2706, 4
    %v2708 = vadd.f32 %v2706, %v2707
    %v2709 = vrot.slane %v2708, 2
    %v2710 = vadd.f32 %v2708, %v2709
    %v2711 = vrot.slane %v2710, 1
    %v2712 = vadd.f32 %v2710, %v2711
    %v2713 = vadd.f32 %v2527, %v2543
    %v2714 = vrot.slane %v2713, 4
    %v2715 = vadd.f32 %v2713, %v2714
    %v2716 = vrot.slane %v2715, 2
    %v2717 = vadd.f32 %v2715, %v2716
    %v2718 = vrot.slane %v2717, 1
    %v2719 = vadd.f32 %v2717, %v2718
    %v2720 = vadd.f32 %v2528, %v2544
    %v2721 = vrot.slane %v2720, 4
    %v2722 = vadd.f32 %v2720, %v2721
    %v2723 = vrot.slane %v2722, 2
    %v2724 = vadd.f32 %v2722, %v2723
    %v2725 = vrot.slane %v2724, 1
    %v2726 = vadd.f32 %v2724, %v2725
    %v2727 = vadd.f32 %v2529, %v2545
    %v2728 = vrot.slane %v2727, 4
    %v2729 = vadd.f32 %v2727, %v2728
    %v2730 = vrot.slane %v2729, 2
    %v2731 = vadd.f32 %v2729, %v2730
    %v2732 = vrot.slane %v2731, 1
    %v2733 = vadd.f32 %v2731, %v2732
    %v2734 = vadd.f32 %v2530, %v2546
    %v2735 = vrot.slane %v2734, 4
    %v2736 = vadd.f32 %v2734, %v2735
    %v2737 = vrot.slane %v2736, 2
    %v2738 = vadd.f32 %v2736, %v2737
    %v2739 = vrot.slane %v2738, 1
    %v2740 = vadd.f32 %v2738, %v2739
    %v2741 = vadd.f32 %v2531, %v2547
    %v2742 = vrot.slane %v2741, 4
    %v2743 = vadd.f32 %v2741, %v2742
    %v2744 = vrot.slane %v2743, 2
    %v2745 = vadd.f32 %v2743, %v2744
    %v2746 = vrot.slane %v2745, 1
    %v2747 = vadd.f32 %v2745, %v2746
    %v2748 = vadd.f32 %v2532, %v2548
    %v2749 = vrot.slane %v2748, 4
    %v2750 = vadd.f32 %v2748, %v2749
    %v2751 = vrot.slane %v2750, 2
    %v2752 = vadd.f32 %v2750, %v2751
    %v2753 = vrot.slane %v2752, 1
    %v2754 = vadd.f32 %v2752, %v2753
    %v2755 = vadd.f32 %v2533, %v2549
    %v2756 = vrot.slane %v2755, 4
    %v2757 = vadd.f32 %v2755, %v2756
    %v2758 = vrot.slane %v2757, 2
    %v2759 = vadd.f32 %v2757, %v2758
    %v2760 = vrot.slane %v2759, 1
    %v2761 = vadd.f32 %v2759, %v2760
    %v2762 = vadd.f32 %v2534, %v2550
    %v2763 = vrot.slane %v2762, 4
    %v2764 = vadd.f32 %v2762, %v2763
    %v2765 = vrot.slane %v2764, 2
    %v2766 = vadd.f32 %v2764, %v2765
    %v2767 = vrot.slane %v2766, 1
    %v2768 = vadd.f32 %v2766, %v2767
    %v2769 = vadd.f32 %v2535, %v2551
    %v2770 = vrot.slane %v2769, 4
    %v2771 = vadd.f32 %v2769, %v2770
    %v2772 = vrot.slane %v2771, 2
    %v2773 = vadd.f32 %v2771, %v2772
    %v2774 = vrot.slane %v2773, 1
    %v2775 = vadd.f32 %v2773, %v2774
    %v2776 = vmul.f32 %v2558, 0.0625
    %v2777 = vmul.f32 %v2565, 0.0625
    %v2778 = vmul.f32 %v2572, 0.0625
    %v2779 = vmul.f32 %v2579, 0.0625
    %v2780 = vmul.f32 %v2586, 0.0625
    %v2781 = vmul.f32 %v2593, 0.0625
    %v2782 = vmul.f32 %v2600, 0.0625
    %v2783 = vmul.f32 %v2607, 0.0625
    %v2784 = vmul.f32 %v2614, 0.0625
    %v2785 = vmul.f32 %v2621, 0.0625
    %v2786 = vmul.f32 %v2628, 0.0625
    %v2787 = vmul.f32 %v2635, 0.0625
    %v2788 = vmul.f32 %v2642, 0.0625
    %v2789 = vmul.f32 %v2649, 0.0625
    %v2790 = vmul.f32 %v2656, 0.0625
    %v2791 = vmul.f32 %v2663, 0.0625
    %v2792 = vmul.f32 %v2670, 0.0625
    %v2793 = vmul.f32 %v2677, 0.0625
    %v2794 = vmul.f32 %v2684, 0.0625
    %v2795 = vmul.f32 %v2691, 0.0625
    %v2796 = vmul.f32 %v2698, 0.0625
    %v2797 = vmul.f32 %v2705, 0.0625
    %v2798 = vmul.f32 %v2712, 0.0625
    %v2799 = vmul.f32 %v2719, 0.0625
    %v2800 = vmul.f32 %v2726, 0.0625
    %v2801 = vmul.f32 %v2733, 0.0625
    %v2802 = vmul.f32 %v2740, 0.0625
    %v2803 = vmul.f32 %v2747, 0.0625
    %v2804 = vmul.f32 %v2754, 0.0625
    %v2805 = vmul.f32 %v2761, 0.0625
    %v2806 = vmul.f32 %v2768, 0.0625
    %v2807 = vmul.f32 %v2775, 0.0625
    %v2808 = vpack.c.bf16 %v2776, %v2776
    %v2809 = vpack.c.bf16 %v2777, %v2777
    %v2810 = vpack.c.bf16 %v2778, %v2778
    %v2811 = vpack.c.bf16 %v2779, %v2779
    %v2812 = vpack.c.bf16 %v2780, %v2780
    %v2813 = vpack.c.bf16 %v2781, %v2781
    %v2814 = vpack.c.bf16 %v2782, %v2782
    %v2815 = vpack.c.bf16 %v2783, %v2783
    %v2816 = vpack.c.bf16 %v2784, %v2784
    %v2817 = vpack.c.bf16 %v2785, %v2785
    %v2818 = vpack.c.bf16 %v2786, %v2786
    %v2819 = vpack.c.bf16 %v2787, %v2787
    %v2820 = vpack.c.bf16 %v2788, %v2788
    %v2821 = vpack.c.bf16 %v2789, %v2789
    %v2822 = vpack.c.bf16 %v2790, %v2790
    %v2823 = vpack.c.bf16 %v2791, %v2791
    %v2824 = vpack.c.bf16 %v2792, %v2792
    %v2825 = vpack.c.bf16 %v2793, %v2793
    %v2826 = vpack.c.bf16 %v2794, %v2794
    %v2827 = vpack.c.bf16 %v2795, %v2795
    %v2828 = vpack.c.bf16 %v2796, %v2796
    %v2829 = vpack.c.bf16 %v2797, %v2797
    %v2830 = vpack.c.bf16 %v2798, %v2798
    %v2831 = vpack.c.bf16 %v2799, %v2799
    %v2832 = vpack.c.bf16 %v2800, %v2800
    %v2833 = vpack.c.bf16 %v2801, %v2801
    %v2834 = vpack.c.bf16 %v2802, %v2802
    %v2835 = vpack.c.bf16 %v2803, %v2803
    %v2836 = vpack.c.bf16 %v2804, %v2804
    %v2837 = vpack.c.bf16 %v2805, %v2805
    %v2838 = vpack.c.bf16 %v2806, %v2806
    %v2839 = vpack.c.bf16 %v2807, %v2807
    %s2840 = scalar_lea.vmem [#allocation5], 2048
    %v2841 = vld [vmem:[%s2840] sm:$0xff]
    %v2842 = vld [vmem:[%s2840 + $0x8] sm:$0xff]
    %v2843 = vld [vmem:[%s2840 + $0x10] sm:$0xff]
    %v2844 = vld [vmem:[%s2840 + $0x18] sm:$0xff]
    %v2845 = vld [vmem:[%s2840 + $0x20] sm:$0xff]
    %v2846 = vld [vmem:[%s2840 + $0x28] sm:$0xff]
    %v2847 = vld [vmem:[%s2840 + $0x30] sm:$0xff]
    %v2848 = vld [vmem:[%s2840 + $0x38] sm:$0xff]
    %v2849 = vld [vmem:[%s2840 + $0x40] sm:$0xff]
    %v2850 = vld [vmem:[%s2840 + $0x48] sm:$0xff]
    %v2851 = vld [vmem:[%s2840 + $0x50] sm:$0xff]
    %v2852 = vld [vmem:[%s2840 + $0x58] sm:$0xff]
    %v2853 = vld [vmem:[%s2840 + $0x60] sm:$0xff]
    %v2854 = vld [vmem:[%s2840 + $0x68] sm:$0xff]
    %v2855 = vld [vmem:[%s2840 + $0x70] sm:$0xff]
    %v2856 = vld [vmem:[%s2840 + $0x78] sm:$0xff]
    %v2857 = vld [vmem:[%s2840 + $0x80] sm:$0xff]
    %v2858 = vld [vmem:[%s2840 + $0x88] sm:$0xff]
    %v2859 = vld [vmem:[%s2840 + $0x90] sm:$0xff]
    %v2860 = vld [vmem:[%s2840 + $0x98] sm:$0xff]
    %v2861 = vld [vmem:[%s2840 + $0xa0] sm:$0xff]
    %v2862 = vld [vmem:[%s2840 + $0xa8] sm:$0xff]
    %v2863 = vld [vmem:[%s2840 + $0xb0] sm:$0xff]
    %v2864 = vld [vmem:[%s2840 + $0xb8] sm:$0xff]
    %v2865 = vld [vmem:[%s2840 + $0xc0] sm:$0xff]
    %v2866 = vld [vmem:[%s2840 + $0xc8] sm:$0xff]
    %v2867 = vld [vmem:[%s2840 + $0xd0] sm:$0xff]
    %v2868 = vld [vmem:[%s2840 + $0xd8] sm:$0xff]
    %v2869 = vld [vmem:[%s2840 + $0xe0] sm:$0xff]
    %v2870 = vld [vmem:[%s2840 + $0xe8] sm:$0xff]
    %v2871 = vld [vmem:[%s2840 + $0xf0] sm:$0xff]
    %v2872 = vld [vmem:[%s2840 + $0xf8] sm:$0xff]
    %v2873 = vld [vmem:[%s2840 + $0x100] sm:$0xff]
    %v2874 = vld [vmem:[%s2840 + $0x108] sm:$0xff]
    %v2875 = vld [vmem:[%s2840 + $0x110] sm:$0xff]
    %v2876 = vld [vmem:[%s2840 + $0x118] sm:$0xff]
    %v2877 = vld [vmem:[%s2840 + $0x120] sm:$0xff]
    %v2878 = vld [vmem:[%s2840 + $0x128] sm:$0xff]
    %v2879 = vld [vmem:[%s2840 + $0x130] sm:$0xff]
    %v2880 = vld [vmem:[%s2840 + $0x138] sm:$0xff]
    %v2881 = vld [vmem:[%s2840 + $0x140] sm:$0xff]
    %v2882 = vld [vmem:[%s2840 + $0x148] sm:$0xff]
    %v2883 = vld [vmem:[%s2840 + $0x150] sm:$0xff]
    %v2884 = vld [vmem:[%s2840 + $0x158] sm:$0xff]
    %v2885 = vld [vmem:[%s2840 + $0x160] sm:$0xff]
    %v2886 = vld [vmem:[%s2840 + $0x168] sm:$0xff]
    %v2887 = vld [vmem:[%s2840 + $0x170] sm:$0xff]
    %v2888 = vld [vmem:[%s2840 + $0x178] sm:$0xff]
    %v2889 = vld [vmem:[%s2840 + $0x180] sm:$0xff]
    %v2890 = vld [vmem:[%s2840 + $0x188] sm:$0xff]
    %v2891 = vld [vmem:[%s2840 + $0x190] sm:$0xff]
    %v2892 = vld [vmem:[%s2840 + $0x198] sm:$0xff]
    %v2893 = vld [vmem:[%s2840 + $0x1a0] sm:$0xff]
    %v2894 = vld [vmem:[%s2840 + $0x1a8] sm:$0xff]
    %v2895 = vld [vmem:[%s2840 + $0x1b0] sm:$0xff]
    %v2896 = vld [vmem:[%s2840 + $0x1b8] sm:$0xff]
    %v2897 = vld [vmem:[%s2840 + $0x1c0] sm:$0xff]
    %v2898 = vld [vmem:[%s2840 + $0x1c8] sm:$0xff]
    %v2899 = vld [vmem:[%s2840 + $0x1d0] sm:$0xff]
    %v2900 = vld [vmem:[%s2840 + $0x1d8] sm:$0xff]
    %v2901 = vld [vmem:[%s2840 + $0x1e0] sm:$0xff]
    %v2902 = vld [vmem:[%s2840 + $0x1e8] sm:$0xff]
    %v2903 = vld [vmem:[%s2840 + $0x1f0] sm:$0xff]
    %v2904 = vld [vmem:[%s2840 + $0x1f8] sm:$0xff]
    %v2905 = vld [vmem:[%s2840 + $0x200] sm:$0xff]
    %v2906 = vld [vmem:[%s2840 + $0x208] sm:$0xff]
    %v2907 = vld [vmem:[%s2840 + $0x210] sm:$0xff]
    %v2908 = vld [vmem:[%s2840 + $0x218] sm:$0xff]
    %v2909 = vld [vmem:[%s2840 + $0x220] sm:$0xff]
    %v2910 = vld [vmem:[%s2840 + $0x228] sm:$0xff]
    %v2911 = vld [vmem:[%s2840 + $0x230] sm:$0xff]
    %v2912 = vld [vmem:[%s2840 + $0x238] sm:$0xff]
    %v2913 = vld [vmem:[%s2840 + $0x240] sm:$0xff]
    %v2914 = vld [vmem:[%s2840 + $0x248] sm:$0xff]
    %v2915 = vld [vmem:[%s2840 + $0x250] sm:$0xff]
    %v2916 = vld [vmem:[%s2840 + $0x258] sm:$0xff]
    %v2917 = vld [vmem:[%s2840 + $0x260] sm:$0xff]
    %v2918 = vld [vmem:[%s2840 + $0x268] sm:$0xff]
    %v2919 = vld [vmem:[%s2840 + $0x270] sm:$0xff]
    %v2920 = vld [vmem:[%s2840 + $0x278] sm:$0xff]
    %v2921 = vld [vmem:[%s2840 + $0x280] sm:$0xff]
    %v2922 = vld [vmem:[%s2840 + $0x288] sm:$0xff]
    %v2923 = vld [vmem:[%s2840 + $0x290] sm:$0xff]
    %v2924 = vld [vmem:[%s2840 + $0x298] sm:$0xff]
    %v2925 = vld [vmem:[%s2840 + $0x2a0] sm:$0xff]
    %v2926 = vld [vmem:[%s2840 + $0x2a8] sm:$0xff]
    %v2927 = vld [vmem:[%s2840 + $0x2b0] sm:$0xff]
    %v2928 = vld [vmem:[%s2840 + $0x2b8] sm:$0xff]
    %v2929 = vld [vmem:[%s2840 + $0x2c0] sm:$0xff]
    %v2930 = vld [vmem:[%s2840 + $0x2c8] sm:$0xff]
    %v2931 = vld [vmem:[%s2840 + $0x2d0] sm:$0xff]
    %v2932 = vld [vmem:[%s2840 + $0x2d8] sm:$0xff]
    %v2933 = vld [vmem:[%s2840 + $0x2e0] sm:$0xff]
    %v2934 = vld [vmem:[%s2840 + $0x2e8] sm:$0xff]
    %v2935 = vld [vmem:[%s2840 + $0x2f0] sm:$0xff]
    %v2936 = vld [vmem:[%s2840 + $0x2f8] sm:$0xff]
    %v2937 = vld [vmem:[%s2840 + $0x300] sm:$0xff]
    %v2938 = vld [vmem:[%s2840 + $0x308] sm:$0xff]
    %v2939 = vld [vmem:[%s2840 + $0x310] sm:$0xff]
    %v2940 = vld [vmem:[%s2840 + $0x318] sm:$0xff]
    %v2941 = vld [vmem:[%s2840 + $0x320] sm:$0xff]
    %v2942 = vld [vmem:[%s2840 + $0x328] sm:$0xff]
    %v2943 = vld [vmem:[%s2840 + $0x330] sm:$0xff]
    %v2944 = vld [vmem:[%s2840 + $0x338] sm:$0xff]
    %v2945 = vld [vmem:[%s2840 + $0x340] sm:$0xff]
    %v2946 = vld [vmem:[%s2840 + $0x348] sm:$0xff]
    %v2947 = vld [vmem:[%s2840 + $0x350] sm:$0xff]
    %v2948 = vld [vmem:[%s2840 + $0x358] sm:$0xff]
    %v2949 = vld [vmem:[%s2840 + $0x360] sm:$0xff]
    %v2950 = vld [vmem:[%s2840 + $0x368] sm:$0xff]
    %v2951 = vld [vmem:[%s2840 + $0x370] sm:$0xff]
    %v2952 = vld [vmem:[%s2840 + $0x378] sm:$0xff]
    %v2953 = vld [vmem:[%s2840 + $0x380] sm:$0xff]
    %v2954 = vld [vmem:[%s2840 + $0x388] sm:$0xff]
    %v2955 = vld [vmem:[%s2840 + $0x390] sm:$0xff]
    %v2956 = vld [vmem:[%s2840 + $0x398] sm:$0xff]
    %v2957 = vld [vmem:[%s2840 + $0x3a0] sm:$0xff]
    %v2958 = vld [vmem:[%s2840 + $0x3a8] sm:$0xff]
    %v2959 = vld [vmem:[%s2840 + $0x3b0] sm:$0xff]
    %v2960 = vld [vmem:[%s2840 + $0x3b8] sm:$0xff]
    %v2961 = vld [vmem:[%s2840 + $0x3c0] sm:$0xff]
    %v2962 = vld [vmem:[%s2840 + $0x3c8] sm:$0xff]
    %v2963 = vld [vmem:[%s2840 + $0x3d0] sm:$0xff]
    %v2964 = vld [vmem:[%s2840 + $0x3d8] sm:$0xff]
    %v2965 = vld [vmem:[%s2840 + $0x3e0] sm:$0xff]
    %v2966 = vld [vmem:[%s2840 + $0x3e8] sm:$0xff]
    %v2967 = vld [vmem:[%s2840 + $0x3f0] sm:$0xff]
    %v2968 = vld [vmem:[%s2840 + $0x3f8] sm:$0xff]
    %v2969 = vld [vmem:[%s2840 + $0x400] sm:$0xff]
    %v2970 = vld [vmem:[%s2840 + $0x408] sm:$0xff]
    %v2971 = vld [vmem:[%s2840 + $0x410] sm:$0xff]
    %v2972 = vld [vmem:[%s2840 + $0x418] sm:$0xff]
    %v2973 = vld [vmem:[%s2840 + $0x420] sm:$0xff]
    %v2974 = vld [vmem:[%s2840 + $0x428] sm:$0xff]
    %v2975 = vld [vmem:[%s2840 + $0x430] sm:$0xff]
    %v2976 = vld [vmem:[%s2840 + $0x438] sm:$0xff]
    %v2977 = vld [vmem:[%s2840 + $0x440] sm:$0xff]
    %v2978 = vld [vmem:[%s2840 + $0x448] sm:$0xff]
    %v2979 = vld [vmem:[%s2840 + $0x450] sm:$0xff]
    %v2980 = vld [vmem:[%s2840 + $0x458] sm:$0xff]
    %v2981 = vld [vmem:[%s2840 + $0x460] sm:$0xff]
    %v2982 = vld [vmem:[%s2840 + $0x468] sm:$0xff]
    %v2983 = vld [vmem:[%s2840 + $0x470] sm:$0xff]
    %v2984 = vld [vmem:[%s2840 + $0x478] sm:$0xff]
    %v2985 = vld [vmem:[%s2840 + $0x480] sm:$0xff]
    %v2986 = vld [vmem:[%s2840 + $0x488] sm:$0xff]
    %v2987 = vld [vmem:[%s2840 + $0x490] sm:$0xff]
    %v2988 = vld [vmem:[%s2840 + $0x498] sm:$0xff]
    %v2989 = vld [vmem:[%s2840 + $0x4a0] sm:$0xff]
    %v2990 = vld [vmem:[%s2840 + $0x4a8] sm:$0xff]
    %v2991 = vld [vmem:[%s2840 + $0x4b0] sm:$0xff]
    %v2992 = vld [vmem:[%s2840 + $0x4b8] sm:$0xff]
    %v2993 = vld [vmem:[%s2840 + $0x4c0] sm:$0xff]
    %v2994 = vld [vmem:[%s2840 + $0x4c8] sm:$0xff]
    %v2995 = vld [vmem:[%s2840 + $0x4d0] sm:$0xff]
    %v2996 = vld [vmem:[%s2840 + $0x4d8] sm:$0xff]
    %v2997 = vld [vmem:[%s2840 + $0x4e0] sm:$0xff]
    %v2998 = vld [vmem:[%s2840 + $0x4e8] sm:$0xff]
    %v2999 = vld [vmem:[%s2840 + $0x4f0] sm:$0xff]
    %v3000 = vld [vmem:[%s2840 + $0x4f8] sm:$0xff]
    %v3001 = vld [vmem:[%s2840 + $0x500] sm:$0xff]
    %v3002 = vld [vmem:[%s2840 + $0x508] sm:$0xff]
    %v3003 = vld [vmem:[%s2840 + $0x510] sm:$0xff]
    %v3004 = vld [vmem:[%s2840 + $0x518] sm:$0xff]
    %v3005 = vld [vmem:[%s2840 + $0x520] sm:$0xff]
    %v3006 = vld [vmem:[%s2840 + $0x528] sm:$0xff]
    %v3007 = vld [vmem:[%s2840 + $0x530] sm:$0xff]
    %v3008 = vld [vmem:[%s2840 + $0x538] sm:$0xff]
    %v3009 = vld [vmem:[%s2840 + $0x540] sm:$0xff]
    %v3010 = vld [vmem:[%s2840 + $0x548] sm:$0xff]
    %v3011 = vld [vmem:[%s2840 + $0x550] sm:$0xff]
    %v3012 = vld [vmem:[%s2840 + $0x558] sm:$0xff]
    %v3013 = vld [vmem:[%s2840 + $0x560] sm:$0xff]
    %v3014 = vld [vmem:[%s2840 + $0x568] sm:$0xff]
    %v3015 = vld [vmem:[%s2840 + $0x570] sm:$0xff]
    %v3016 = vld [vmem:[%s2840 + $0x578] sm:$0xff]
    %v3017 = vld [vmem:[%s2840 + $0x580] sm:$0xff]
    %v3018 = vld [vmem:[%s2840 + $0x588] sm:$0xff]
    %v3019 = vld [vmem:[%s2840 + $0x590] sm:$0xff]
    %v3020 = vld [vmem:[%s2840 + $0x598] sm:$0xff]
    %v3021 = vld [vmem:[%s2840 + $0x5a0] sm:$0xff]
    %v3022 = vld [vmem:[%s2840 + $0x5a8] sm:$0xff]
    %v3023 = vld [vmem:[%s2840 + $0x5b0] sm:$0xff]
    %v3024 = vld [vmem:[%s2840 + $0x5b8] sm:$0xff]
    %v3025 = vld [vmem:[%s2840 + $0x5c0] sm:$0xff]
    %v3026 = vld [vmem:[%s2840 + $0x5c8] sm:$0xff]
    %v3027 = vld [vmem:[%s2840 + $0x5d0] sm:$0xff]
    %v3028 = vld [vmem:[%s2840 + $0x5d8] sm:$0xff]
    %v3029 = vld [vmem:[%s2840 + $0x5e0] sm:$0xff]
    %v3030 = vld [vmem:[%s2840 + $0x5e8] sm:$0xff]
    %v3031 = vld [vmem:[%s2840 + $0x5f0] sm:$0xff]
    %v3032 = vld [vmem:[%s2840 + $0x5f8] sm:$0xff]
    %v3033 = vld [vmem:[%s2840 + $0x600] sm:$0xff]
    %v3034 = vld [vmem:[%s2840 + $0x608] sm:$0xff]
    %v3035 = vld [vmem:[%s2840 + $0x610] sm:$0xff]
    %v3036 = vld [vmem:[%s2840 + $0x618] sm:$0xff]
    %v3037 = vld [vmem:[%s2840 + $0x620] sm:$0xff]
    %v3038 = vld [vmem:[%s2840 + $0x628] sm:$0xff]
    %v3039 = vld [vmem:[%s2840 + $0x630] sm:$0xff]
    %v3040 = vld [vmem:[%s2840 + $0x638] sm:$0xff]
    %v3041 = vld [vmem:[%s2840 + $0x640] sm:$0xff]
    %v3042 = vld [vmem:[%s2840 + $0x648] sm:$0xff]
    %v3043 = vld [vmem:[%s2840 + $0x650] sm:$0xff]
    %v3044 = vld [vmem:[%s2840 + $0x658] sm:$0xff]
    %v3045 = vld [vmem:[%s2840 + $0x660] sm:$0xff]
    %v3046 = vld [vmem:[%s2840 + $0x668] sm:$0xff]
    %v3047 = vld [vmem:[%s2840 + $0x670] sm:$0xff]
    %v3048 = vld [vmem:[%s2840 + $0x678] sm:$0xff]
    %v3049 = vld [vmem:[%s2840 + $0x680] sm:$0xff]
    %v3050 = vld [vmem:[%s2840 + $0x688] sm:$0xff]
    %v3051 = vld [vmem:[%s2840 + $0x690] sm:$0xff]
    %v3052 = vld [vmem:[%s2840 + $0x698] sm:$0xff]
    %v3053 = vld [vmem:[%s2840 + $0x6a0] sm:$0xff]
    %v3054 = vld [vmem:[%s2840 + $0x6a8] sm:$0xff]
    %v3055 = vld [vmem:[%s2840 + $0x6b0] sm:$0xff]
    %v3056 = vld [vmem:[%s2840 + $0x6b8] sm:$0xff]
    %v3057 = vld [vmem:[%s2840 + $0x6c0] sm:$0xff]
    %v3058 = vld [vmem:[%s2840 + $0x6c8] sm:$0xff]
    %v3059 = vld [vmem:[%s2840 + $0x6d0] sm:$0xff]
    %v3060 = vld [vmem:[%s2840 + $0x6d8] sm:$0xff]
    %v3061 = vld [vmem:[%s2840 + $0x6e0] sm:$0xff]
    %v3062 = vld [vmem:[%s2840 + $0x6e8] sm:$0xff]
    %v3063 = vld [vmem:[%s2840 + $0x6f0] sm:$0xff]
    %v3064 = vld [vmem:[%s2840 + $0x6f8] sm:$0xff]
    %v3065 = vld [vmem:[%s2840 + $0x700] sm:$0xff]
    %v3066 = vld [vmem:[%s2840 + $0x708] sm:$0xff]
    %v3067 = vld [vmem:[%s2840 + $0x710] sm:$0xff]
    %v3068 = vld [vmem:[%s2840 + $0x718] sm:$0xff]
    %v3069 = vld [vmem:[%s2840 + $0x720] sm:$0xff]
    %v3070 = vld [vmem:[%s2840 + $0x728] sm:$0xff]
    %v3071 = vld [vmem:[%s2840 + $0x730] sm:$0xff]
    %v3072 = vld [vmem:[%s2840 + $0x738] sm:$0xff]
    %v3073 = vld [vmem:[%s2840 + $0x740] sm:$0xff]
    %v3074 = vld [vmem:[%s2840 + $0x748] sm:$0xff]
    %v3075 = vld [vmem:[%s2840 + $0x750] sm:$0xff]
    %v3076 = vld [vmem:[%s2840 + $0x758] sm:$0xff]
    %v3077 = vld [vmem:[%s2840 + $0x760] sm:$0xff]
    %v3078 = vld [vmem:[%s2840 + $0x768] sm:$0xff]
    %v3079 = vld [vmem:[%s2840 + $0x770] sm:$0xff]
    %v3080 = vld [vmem:[%s2840 + $0x778] sm:$0xff]
    %v3081 = vld [vmem:[%s2840 + $0x780] sm:$0xff]
    %v3082 = vld [vmem:[%s2840 + $0x788] sm:$0xff]
    %v3083 = vld [vmem:[%s2840 + $0x790] sm:$0xff]
    %v3084 = vld [vmem:[%s2840 + $0x798] sm:$0xff]
    %v3085 = vld [vmem:[%s2840 + $0x7a0] sm:$0xff]
    %v3086 = vld [vmem:[%s2840 + $0x7a8] sm:$0xff]
    %v3087 = vld [vmem:[%s2840 + $0x7b0] sm:$0xff]
    %v3088 = vld [vmem:[%s2840 + $0x7b8] sm:$0xff]
    %v3089 = vld [vmem:[%s2840 + $0x7c0] sm:$0xff]
    %v3090 = vld [vmem:[%s2840 + $0x7c8] sm:$0xff]
    %v3091 = vld [vmem:[%s2840 + $0x7d0] sm:$0xff]
    %v3092 = vld [vmem:[%s2840 + $0x7d8] sm:$0xff]
    %v3093 = vld [vmem:[%s2840 + $0x7e0] sm:$0xff]
    %v3094 = vld [vmem:[%s2840 + $0x7e8] sm:$0xff]
    %v3095 = vld [vmem:[%s2840 + $0x7f0] sm:$0xff]
    %v3096 = vld [vmem:[%s2840 + $0x7f8] sm:$0xff]
    %s3097 = scalar_lea.vmem [#allocation7], 2
    %v3098 = vld [vmem:[%s3097] sm:$0x3]
    %v3100 = vlaneseq
    %v3101 = vshrl.u32 %v3100, 7
    %v3102 = vsub.s32 0, %v3101
    %v3103 = vrot.slane %v3098, %v3102
    %v3104 = vlaneseq
    %v3105 = vshrl.u32 %v3104, 7
    %v3106 = vsub.s32 1, %v3105
    %v3107 = vrot.slane %v3098, %v3106
    %v3142 = vunpack.c.l.b16 %v2808
    %v3143 = vunpack.c.l.b16 %v2809
    %v3144 = vunpack.c.l.b16 %v2810
    %v3145 = vunpack.c.l.b16 %v2811
    %v3146 = vunpack.c.l.b16 %v2812
    %v3147 = vunpack.c.l.b16 %v2813
    %v3148 = vunpack.c.l.b16 %v2814
    %v3149 = vunpack.c.l.b16 %v2815
    %v3150 = vunpack.c.l.b16 %v2816
    %v3151 = vunpack.c.l.b16 %v2817
    %v3152 = vunpack.c.l.b16 %v2818
    %v3153 = vunpack.c.l.b16 %v2819
    %v3154 = vunpack.c.l.b16 %v2820
    %v3155 = vunpack.c.l.b16 %v2821
    %v3156 = vunpack.c.l.b16 %v2822
    %v3157 = vunpack.c.l.b16 %v2823
    %v3158 = vunpack.c.l.b16 %v2824
    %v3159 = vunpack.c.l.b16 %v2825
    %v3160 = vunpack.c.l.b16 %v2826
    %v3161 = vunpack.c.l.b16 %v2827
    %v3162 = vunpack.c.l.b16 %v2828
    %v3163 = vunpack.c.l.b16 %v2829
    %v3164 = vunpack.c.l.b16 %v2830
    %v3165 = vunpack.c.l.b16 %v2831
    %v3166 = vunpack.c.l.b16 %v2832
    %v3167 = vunpack.c.l.b16 %v2833
    %v3168 = vunpack.c.l.b16 %v2834
    %v3169 = vunpack.c.l.b16 %v2835
    %v3170 = vunpack.c.l.b16 %v2836
    %v3171 = vunpack.c.l.b16 %v2837
    %v3172 = vunpack.c.l.b16 %v2838
    %v3173 = vunpack.c.l.b16 %v2839
    %v3174 = vsel %vm772, %v3158, %v3142
    %v3175 = vsel %vm772, %v3159, %v3143
    %v3176 = vsel %vm772, %v3160, %v3144
    %v3177 = vsel %vm772, %v3161, %v3145
    %v3178 = vsel %vm772, %v3162, %v3146
    %v3179 = vsel %vm772, %v3163, %v3147
    %v3180 = vsel %vm772, %v3164, %v3148
    %v3181 = vsel %vm772, %v3165, %v3149
    %v3182 = vsel %vm772, %v3166, %v3150
    %v3183 = vsel %vm772, %v3167, %v3151
    %v3184 = vsel %vm772, %v3168, %v3152
    %v3185 = vsel %vm772, %v3169, %v3153
    %v3186 = vsel %vm772, %v3170, %v3154
    %v3187 = vsel %vm772, %v3171, %v3155
    %v3188 = vsel %vm772, %v3172, %v3156
    %v3189 = vsel %vm772, %v3173, %v3157
    %v3190 = vpack.c.b16 %v3174, %v3174
    %v3191 = vpack.c.b16 %v3175, %v3175
    %v3192 = vpack.c.b16 %v3176, %v3176
    %v3193 = vpack.c.b16 %v3177, %v3177
    %v3194 = vpack.c.b16 %v3178, %v3178
    %v3195 = vpack.c.b16 %v3179, %v3179
    %v3196 = vpack.c.b16 %v3180, %v3180
    %v3197 = vpack.c.b16 %v3181, %v3181
    %v3198 = vpack.c.b16 %v3182, %v3182
    %v3199 = vpack.c.b16 %v3183, %v3183
    %v3200 = vpack.c.b16 %v3184, %v3184
    %v3201 = vpack.c.b16 %v3185, %v3185
    %v3202 = vpack.c.b16 %v3186, %v3186
    %v3203 = vpack.c.b16 %v3187, %v3187
    %v3204 = vpack.c.b16 %v3188, %v3188
    %v3205 = vpack.c.b16 %v3189, %v3189
    %v3478 = vunpack.c.l.b16 %v2841
    %v3479 = vunpack.c.h.b16 %v2841
    %v3480 = vunpack.c.l.b16 %v2842
    %v3481 = vunpack.c.h.b16 %v2842
    %v3482 = vunpack.c.l.b16 %v2843
    %v3483 = vunpack.c.h.b16 %v2843
    %v3484 = vunpack.c.l.b16 %v2844
    %v3485 = vunpack.c.h.b16 %v2844
    %v3486 = vunpack.c.l.b16 %v2845
    %v3487 = vunpack.c.h.b16 %v2845
    %v3488 = vunpack.c.l.b16 %v2846
    %v3489 = vunpack.c.h.b16 %v2846
    %v3490 = vunpack.c.l.b16 %v2847
    %v3491 = vunpack.c.h.b16 %v2847
    %v3492 = vunpack.c.l.b16 %v2848
    %v3493 = vunpack.c.h.b16 %v2848
    %v3494 = vunpack.c.l.b16 %v2849
    %v3495 = vunpack.c.h.b16 %v2849
    %v3496 = vunpack.c.l.b16 %v2850
    %v3497 = vunpack.c.h.b16 %v2850
    %v3498 = vunpack.c.l.b16 %v2851
    %v3499 = vunpack.c.h.b16 %v2851
    %v3500 = vunpack.c.l.b16 %v2852
    %v3501 = vunpack.c.h.b16 %v2852
    %v3502 = vunpack.c.l.b16 %v2853
    %v3503 = vunpack.c.h.b16 %v2853
    %v3504 = vunpack.c.l.b16 %v2854
    %v3505 = vunpack.c.h.b16 %v2854
    %v3506 = vunpack.c.l.b16 %v2855
    %v3507 = vunpack.c.h.b16 %v2855
    %v3508 = vunpack.c.l.b16 %v2856
    %v3509 = vunpack.c.h.b16 %v2856
    %v3510 = vunpack.c.l.b16 %v2857
    %v3511 = vunpack.c.h.b16 %v2857
    %v3512 = vunpack.c.l.b16 %v2858
    %v3513 = vunpack.c.h.b16 %v2858
    %v3514 = vunpack.c.l.b16 %v2859
    %v3515 = vunpack.c.h.b16 %v2859
    %v3516 = vunpack.c.l.b16 %v2860
    %v3517 = vunpack.c.h.b16 %v2860
    %v3518 = vunpack.c.l.b16 %v2861
    %v3519 = vunpack.c.h.b16 %v2861
    %v3520 = vunpack.c.l.b16 %v2862
    %v3521 = vunpack.c.h.b16 %v2862
    %v3522 = vunpack.c.l.b16 %v2863
    %v3523 = vunpack.c.h.b16 %v2863
    %v3524 = vunpack.c.l.b16 %v2864
    %v3525 = vunpack.c.h.b16 %v2864
    %v3526 = vunpack.c.l.b16 %v2865
    %v3527 = vunpack.c.h.b16 %v2865
    %v3528 = vunpack.c.l.b16 %v2866
    %v3529 = vunpack.c.h.b16 %v2866
    %v3530 = vunpack.c.l.b16 %v2867
    %v3531 = vunpack.c.h.b16 %v2867
    %v3532 = vunpack.c.l.b16 %v2868
    %v3533 = vunpack.c.h.b16 %v2868
    %v3534 = vunpack.c.l.b16 %v2869
    %v3535 = vunpack.c.h.b16 %v2869
    %v3536 = vunpack.c.l.b16 %v2870
    %v3537 = vunpack.c.h.b16 %v2870
    %v3538 = vunpack.c.l.b16 %v2871
    %v3539 = vunpack.c.h.b16 %v2871
    %v3540 = vunpack.c.l.b16 %v2872
    %v3541 = vunpack.c.h.b16 %v2872
    %v3542 = vunpack.c.l.b16 %v2873
    %v3543 = vunpack.c.h.b16 %v2873
    %v3544 = vunpack.c.l.b16 %v2874
    %v3545 = vunpack.c.h.b16 %v2874
    %v3546 = vunpack.c.l.b16 %v2875
    %v3547 = vunpack.c.h.b16 %v2875
    %v3548 = vunpack.c.l.b16 %v2876
    %v3549 = vunpack.c.h.b16 %v2876
    %v3550 = vunpack.c.l.b16 %v2877
    %v3551 = vunpack.c.h.b16 %v2877
    %v3552 = vunpack.c.l.b16 %v2878
    %v3553 = vunpack.c.h.b16 %v2878
    %v3554 = vunpack.c.l.b16 %v2879
    %v3555 = vunpack.c.h.b16 %v2879
    %v3556 = vunpack.c.l.b16 %v2880
    %v3557 = vunpack.c.h.b16 %v2880
    %v3558 = vunpack.c.l.b16 %v2881
    %v3559 = vunpack.c.h.b16 %v2881
    %v3560 = vunpack.c.l.b16 %v2882
    %v3561 = vunpack.c.h.b16 %v2882
    %v3562 = vunpack.c.l.b16 %v2883
    %v3563 = vunpack.c.h.b16 %v2883
    %v3564 = vunpack.c.l.b16 %v2884
    %v3565 = vunpack.c.h.b16 %v2884
    %v3566 = vunpack.c.l.b16 %v2885
    %v3567 = vunpack.c.h.b16 %v2885
    %v3568 = vunpack.c.l.b16 %v2886
    %v3569 = vunpack.c.h.b16 %v2886
    %v3570 = vunpack.c.l.b16 %v2887
    %v3571 = vunpack.c.h.b16 %v2887
    %v3572 = vunpack.c.l.b16 %v2888
    %v3573 = vunpack.c.h.b16 %v2888
    %v3574 = vunpack.c.l.b16 %v2889
    %v3575 = vunpack.c.h.b16 %v2889
    %v3576 = vunpack.c.l.b16 %v2890
    %v3577 = vunpack.c.h.b16 %v2890
    %v3578 = vunpack.c.l.b16 %v2891
    %v3579 = vunpack.c.h.b16 %v2891
    %v3580 = vunpack.c.l.b16 %v2892
    %v3581 = vunpack.c.h.b16 %v2892
    %v3582 = vunpack.c.l.b16 %v2893
    %v3583 = vunpack.c.h.b16 %v2893
    %v3584 = vunpack.c.l.b16 %v2894
    %v3585 = vunpack.c.h.b16 %v2894
    %v3586 = vunpack.c.l.b16 %v2895
    %v3587 = vunpack.c.h.b16 %v2895
    %v3588 = vunpack.c.l.b16 %v2896
    %v3589 = vunpack.c.h.b16 %v2896
    %v3590 = vunpack.c.l.b16 %v2897
    %v3591 = vunpack.c.h.b16 %v2897
    %v3592 = vunpack.c.l.b16 %v2898
    %v3593 = vunpack.c.h.b16 %v2898
    %v3594 = vunpack.c.l.b16 %v2899
    %v3595 = vunpack.c.h.b16 %v2899
    %v3596 = vunpack.c.l.b16 %v2900
    %v3597 = vunpack.c.h.b16 %v2900
    %v3598 = vunpack.c.l.b16 %v2901
    %v3599 = vunpack.c.h.b16 %v2901
    %v3600 = vunpack.c.l.b16 %v2902
    %v3601 = vunpack.c.h.b16 %v2902
    %v3602 = vunpack.c.l.b16 %v2903
    %v3603 = vunpack.c.h.b16 %v2903
    %v3604 = vunpack.c.l.b16 %v2904
    %v3605 = vunpack.c.h.b16 %v2904
    %v3606 = vunpack.c.l.b16 %v2905
    %v3607 = vunpack.c.h.b16 %v2905
    %v3608 = vunpack.c.l.b16 %v2906
    %v3609 = vunpack.c.h.b16 %v2906
    %v3610 = vunpack.c.l.b16 %v2907
    %v3611 = vunpack.c.h.b16 %v2907
    %v3612 = vunpack.c.l.b16 %v2908
    %v3613 = vunpack.c.h.b16 %v2908
    %v3614 = vunpack.c.l.b16 %v2909
    %v3615 = vunpack.c.h.b16 %v2909
    %v3616 = vunpack.c.l.b16 %v2910
    %v3617 = vunpack.c.h.b16 %v2910
    %v3618 = vunpack.c.l.b16 %v2911
    %v3619 = vunpack.c.h.b16 %v2911
    %v3620 = vunpack.c.l.b16 %v2912
    %v3621 = vunpack.c.h.b16 %v2912
    %v3622 = vunpack.c.l.b16 %v2913
    %v3623 = vunpack.c.h.b16 %v2913
    %v3624 = vunpack.c.l.b16 %v2914
    %v3625 = vunpack.c.h.b16 %v2914
    %v3626 = vunpack.c.l.b16 %v2915
    %v3627 = vunpack.c.h.b16 %v2915
    %v3628 = vunpack.c.l.b16 %v2916
    %v3629 = vunpack.c.h.b16 %v2916
    %v3630 = vunpack.c.l.b16 %v2917
    %v3631 = vunpack.c.h.b16 %v2917
    %v3632 = vunpack.c.l.b16 %v2918
    %v3633 = vunpack.c.h.b16 %v2918
    %v3634 = vunpack.c.l.b16 %v2919
    %v3635 = vunpack.c.h.b16 %v2919
    %v3636 = vunpack.c.l.b16 %v2920
    %v3637 = vunpack.c.h.b16 %v2920
    %v3638 = vunpack.c.l.b16 %v2921
    %v3639 = vunpack.c.h.b16 %v2921
    %v3640 = vunpack.c.l.b16 %v2922
    %v3641 = vunpack.c.h.b16 %v2922
    %v3642 = vunpack.c.l.b16 %v2923
    %v3643 = vunpack.c.h.b16 %v2923
    %v3644 = vunpack.c.l.b16 %v2924
    %v3645 = vunpack.c.h.b16 %v2924
    %v3646 = vunpack.c.l.b16 %v2925
    %v3647 = vunpack.c.h.b16 %v2925
    %v3648 = vunpack.c.l.b16 %v2926
    %v3649 = vunpack.c.h.b16 %v2926
    %v3650 = vunpack.c.l.b16 %v2927
    %v3651 = vunpack.c.h.b16 %v2927
    %v3652 = vunpack.c.l.b16 %v2928
    %v3653 = vunpack.c.h.b16 %v2928
    %v3654 = vunpack.c.l.b16 %v2929
    %v3655 = vunpack.c.h.b16 %v2929
    %v3656 = vunpack.c.l.b16 %v2930
    %v3657 = vunpack.c.h.b16 %v2930
    %v3658 = vunpack.c.l.b16 %v2931
    %v3659 = vunpack.c.h.b16 %v2931
    %v3660 = vunpack.c.l.b16 %v2932
    %v3661 = vunpack.c.h.b16 %v2932
    %v3662 = vunpack.c.l.b16 %v2933
    %v3663 = vunpack.c.h.b16 %v2933
    %v3664 = vunpack.c.l.b16 %v2934
    %v3665 = vunpack.c.h.b16 %v2934
    %v3666 = vunpack.c.l.b16 %v2935
    %v3667 = vunpack.c.h.b16 %v2935
    %v3668 = vunpack.c.l.b16 %v2936
    %v3669 = vunpack.c.h.b16 %v2936
    %v3670 = vunpack.c.l.b16 %v2937
    %v3671 = vunpack.c.h.b16 %v2937
    %v3672 = vunpack.c.l.b16 %v2938
    %v3673 = vunpack.c.h.b16 %v2938
    %v3674 = vunpack.c.l.b16 %v2939
    %v3675 = vunpack.c.h.b16 %v2939
    %v3676 = vunpack.c.l.b16 %v2940
    %v3677 = vunpack.c.h.b16 %v2940
    %v3678 = vunpack.c.l.b16 %v2941
    %v3679 = vunpack.c.h.b16 %v2941
    %v3680 = vunpack.c.l.b16 %v2942
    %v3681 = vunpack.c.h.b16 %v2942
    %v3682 = vunpack.c.l.b16 %v2943
    %v3683 = vunpack.c.h.b16 %v2943
    %v3684 = vunpack.c.l.b16 %v2944
    %v3685 = vunpack.c.h.b16 %v2944
    %v3686 = vunpack.c.l.b16 %v2945
    %v3687 = vunpack.c.h.b16 %v2945
    %v3688 = vunpack.c.l.b16 %v2946
    %v3689 = vunpack.c.h.b16 %v2946
    %v3690 = vunpack.c.l.b16 %v2947
    %v3691 = vunpack.c.h.b16 %v2947
    %v3692 = vunpack.c.l.b16 %v2948
    %v3693 = vunpack.c.h.b16 %v2948
    %v3694 = vunpack.c.l.b16 %v2949
    %v3695 = vunpack.c.h.b16 %v2949
    %v3696 = vunpack.c.l.b16 %v2950
    %v3697 = vunpack.c.h.b16 %v2950
    %v3698 = vunpack.c.l.b16 %v2951
    %v3699 = vunpack.c.h.b16 %v2951
    %v3700 = vunpack.c.l.b16 %v2952
    %v3701 = vunpack.c.h.b16 %v2952
    %v3702 = vunpack.c.l.b16 %v2953
    %v3703 = vunpack.c.h.b16 %v2953
    %v3704 = vunpack.c.l.b16 %v2954
    %v3705 = vunpack.c.h.b16 %v2954
    %v3706 = vunpack.c.l.b16 %v2955
    %v3707 = vunpack.c.h.b16 %v2955
    %v3708 = vunpack.c.l.b16 %v2956
    %v3709 = vunpack.c.h.b16 %v2956
    %v3710 = vunpack.c.l.b16 %v2957
    %v3711 = vunpack.c.h.b16 %v2957
    %v3712 = vunpack.c.l.b16 %v2958
    %v3713 = vunpack.c.h.b16 %v2958
    %v3714 = vunpack.c.l.b16 %v2959
    %v3715 = vunpack.c.h.b16 %v2959
    %v3716 = vunpack.c.l.b16 %v2960
    %v3717 = vunpack.c.h.b16 %v2960
    %v3718 = vunpack.c.l.b16 %v2961
    %v3719 = vunpack.c.h.b16 %v2961
    %v3720 = vunpack.c.l.b16 %v2962
    %v3721 = vunpack.c.h.b16 %v2962
    %v3722 = vunpack.c.l.b16 %v2963
    %v3723 = vunpack.c.h.b16 %v2963
    %v3724 = vunpack.c.l.b16 %v2964
    %v3725 = vunpack.c.h.b16 %v2964
    %v3726 = vunpack.c.l.b16 %v2965
    %v3727 = vunpack.c.h.b16 %v2965
    %v3728 = vunpack.c.l.b16 %v2966
    %v3729 = vunpack.c.h.b16 %v2966
    %v3730 = vunpack.c.l.b16 %v2967
    %v3731 = vunpack.c.h.b16 %v2967
    %v3732 = vunpack.c.l.b16 %v2968
    %v3733 = vunpack.c.h.b16 %v2968
    %v3734 = vunpack.c.l.b16 %v2969
    %v3735 = vunpack.c.h.b16 %v2969
    %v3736 = vunpack.c.l.b16 %v2970
    %v3737 = vunpack.c.h.b16 %v2970
    %v3738 = vunpack.c.l.b16 %v2971
    %v3739 = vunpack.c.h.b16 %v2971
    %v3740 = vunpack.c.l.b16 %v2972
    %v3741 = vunpack.c.h.b16 %v2972
    %v3742 = vunpack.c.l.b16 %v2973
    %v3743 = vunpack.c.h.b16 %v2973
    %v3744 = vunpack.c.l.b16 %v2974
    %v3745 = vunpack.c.h.b16 %v2974
    %v3746 = vunpack.c.l.b16 %v2975
    %v3747 = vunpack.c.h.b16 %v2975
    %v3748 = vunpack.c.l.b16 %v2976
    %v3749 = vunpack.c.h.b16 %v2976
    %v3750 = vunpack.c.l.b16 %v2977
    %v3751 = vunpack.c.h.b16 %v2977
    %v3752 = vunpack.c.l.b16 %v2978
    %v3753 = vunpack.c.h.b16 %v2978
    %v3754 = vunpack.c.l.b16 %v2979
    %v3755 = vunpack.c.h.b16 %v2979
    %v3756 = vunpack.c.l.b16 %v2980
    %v3757 = vunpack.c.h.b16 %v2980
    %v3758 = vunpack.c.l.b16 %v2981
    %v3759 = vunpack.c.h.b16 %v2981
    %v3760 = vunpack.c.l.b16 %v2982
    %v3761 = vunpack.c.h.b16 %v2982
    %v3762 = vunpack.c.l.b16 %v2983
    %v3763 = vunpack.c.h.b16 %v2983
    %v3764 = vunpack.c.l.b16 %v2984
    %v3765 = vunpack.c.h.b16 %v2984
    %v3766 = vunpack.c.l.b16 %v2985
    %v3767 = vunpack.c.h.b16 %v2985
    %v3768 = vunpack.c.l.b16 %v2986
    %v3769 = vunpack.c.h.b16 %v2986
    %v3770 = vunpack.c.l.b16 %v2987
    %v3771 = vunpack.c.h.b16 %v2987
    %v3772 = vunpack.c.l.b16 %v2988
    %v3773 = vunpack.c.h.b16 %v2988
    %v3774 = vunpack.c.l.b16 %v2989
    %v3775 = vunpack.c.h.b16 %v2989
    %v3776 = vunpack.c.l.b16 %v2990
    %v3777 = vunpack.c.h.b16 %v2990
    %v3778 = vunpack.c.l.b16 %v2991
    %v3779 = vunpack.c.h.b16 %v2991
    %v3780 = vunpack.c.l.b16 %v2992
    %v3781 = vunpack.c.h.b16 %v2992
    %v3782 = vunpack.c.l.b16 %v2993
    %v3783 = vunpack.c.h.b16 %v2993
    %v3784 = vunpack.c.l.b16 %v2994
    %v3785 = vunpack.c.h.b16 %v2994
    %v3786 = vunpack.c.l.b16 %v2995
    %v3787 = vunpack.c.h.b16 %v2995
    %v3788 = vunpack.c.l.b16 %v2996
    %v3789 = vunpack.c.h.b16 %v2996
    %v3790 = vunpack.c.l.b16 %v2997
    %v3791 = vunpack.c.h.b16 %v2997
    %v3792 = vunpack.c.l.b16 %v2998
    %v3793 = vunpack.c.h.b16 %v2998
    %v3794 = vunpack.c.l.b16 %v2999
    %v3795 = vunpack.c.h.b16 %v2999
    %v3796 = vunpack.c.l.b16 %v3000
    %v3797 = vunpack.c.h.b16 %v3000
    %v3798 = vunpack.c.l.b16 %v3001
    %v3799 = vunpack.c.h.b16 %v3001
    %v3800 = vunpack.c.l.b16 %v3002
    %v3801 = vunpack.c.h.b16 %v3002
    %v3802 = vunpack.c.l.b16 %v3003
    %v3803 = vunpack.c.h.b16 %v3003
    %v3804 = vunpack.c.l.b16 %v3004
    %v3805 = vunpack.c.h.b16 %v3004
    %v3806 = vunpack.c.l.b16 %v3005
    %v3807 = vunpack.c.h.b16 %v3005
    %v3808 = vunpack.c.l.b16 %v3006
    %v3809 = vunpack.c.h.b16 %v3006
    %v3810 = vunpack.c.l.b16 %v3007
    %v3811 = vunpack.c.h.b16 %v3007
    %v3812 = vunpack.c.l.b16 %v3008
    %v3813 = vunpack.c.h.b16 %v3008
    %v3814 = vunpack.c.l.b16 %v3009
    %v3815 = vunpack.c.h.b16 %v3009
    %v3816 = vunpack.c.l.b16 %v3010
    %v3817 = vunpack.c.h.b16 %v3010
    %v3818 = vunpack.c.l.b16 %v3011
    %v3819 = vunpack.c.h.b16 %v3011
    %v3820 = vunpack.c.l.b16 %v3012
    %v3821 = vunpack.c.h.b16 %v3012
    %v3822 = vunpack.c.l.b16 %v3013
    %v3823 = vunpack.c.h.b16 %v3013
    %v3824 = vunpack.c.l.b16 %v3014
    %v3825 = vunpack.c.h.b16 %v3014
    %v3826 = vunpack.c.l.b16 %v3015
    %v3827 = vunpack.c.h.b16 %v3015
    %v3828 = vunpack.c.l.b16 %v3016
    %v3829 = vunpack.c.h.b16 %v3016
    %v3830 = vunpack.c.l.b16 %v3017
    %v3831 = vunpack.c.h.b16 %v3017
    %v3832 = vunpack.c.l.b16 %v3018
    %v3833 = vunpack.c.h.b16 %v3018
    %v3834 = vunpack.c.l.b16 %v3019
    %v3835 = vunpack.c.h.b16 %v3019
    %v3836 = vunpack.c.l.b16 %v3020
    %v3837 = vunpack.c.h.b16 %v3020
    %v3838 = vunpack.c.l.b16 %v3021
    %v3839 = vunpack.c.h.b16 %v3021
    %v3840 = vunpack.c.l.b16 %v3022
    %v3841 = vunpack.c.h.b16 %v3022
    %v3842 = vunpack.c.l.b16 %v3023
    %v3843 = vunpack.c.h.b16 %v3023
    %v3844 = vunpack.c.l.b16 %v3024
    %v3845 = vunpack.c.h.b16 %v3024
    %v3846 = vunpack.c.l.b16 %v3025
    %v3847 = vunpack.c.h.b16 %v3025
    %v3848 = vunpack.c.l.b16 %v3026
    %v3849 = vunpack.c.h.b16 %v3026
    %v3850 = vunpack.c.l.b16 %v3027
    %v3851 = vunpack.c.h.b16 %v3027
    %v3852 = vunpack.c.l.b16 %v3028
    %v3853 = vunpack.c.h.b16 %v3028
    %v3854 = vunpack.c.l.b16 %v3029
    %v3855 = vunpack.c.h.b16 %v3029
    %v3856 = vunpack.c.l.b16 %v3030
    %v3857 = vunpack.c.h.b16 %v3030
    %v3858 = vunpack.c.l.b16 %v3031
    %v3859 = vunpack.c.h.b16 %v3031
    %v3860 = vunpack.c.l.b16 %v3032
    %v3861 = vunpack.c.h.b16 %v3032
    %v3862 = vunpack.c.l.b16 %v3033
    %v3863 = vunpack.c.h.b16 %v3033
    %v3864 = vunpack.c.l.b16 %v3034
    %v3865 = vunpack.c.h.b16 %v3034
    %v3866 = vunpack.c.l.b16 %v3035
    %v3867 = vunpack.c.h.b16 %v3035
    %v3868 = vunpack.c.l.b16 %v3036
    %v3869 = vunpack.c.h.b16 %v3036
    %v3870 = vunpack.c.l.b16 %v3037
    %v3871 = vunpack.c.h.b16 %v3037
    %v3872 = vunpack.c.l.b16 %v3038
    %v3873 = vunpack.c.h.b16 %v3038
    %v3874 = vunpack.c.l.b16 %v3039
    %v3875 = vunpack.c.h.b16 %v3039
    %v3876 = vunpack.c.l.b16 %v3040
    %v3877 = vunpack.c.h.b16 %v3040
    %v3878 = vunpack.c.l.b16 %v3041
    %v3879 = vunpack.c.h.b16 %v3041
    %v3880 = vunpack.c.l.b16 %v3042
    %v3881 = vunpack.c.h.b16 %v3042
    %v3882 = vunpack.c.l.b16 %v3043
    %v3883 = vunpack.c.h.b16 %v3043
    %v3884 = vunpack.c.l.b16 %v3044
    %v3885 = vunpack.c.h.b16 %v3044
    %v3886 = vunpack.c.l.b16 %v3045
    %v3887 = vunpack.c.h.b16 %v3045
    %v3888 = vunpack.c.l.b16 %v3046
    %v3889 = vunpack.c.h.b16 %v3046
    %v3890 = vunpack.c.l.b16 %v3047
    %v3891 = vunpack.c.h.b16 %v3047
    %v3892 = vunpack.c.l.b16 %v3048
    %v3893 = vunpack.c.h.b16 %v3048
    %v3894 = vunpack.c.l.b16 %v3049
    %v3895 = vunpack.c.h.b16 %v3049
    %v3896 = vunpack.c.l.b16 %v3050
    %v3897 = vunpack.c.h.b16 %v3050
    %v3898 = vunpack.c.l.b16 %v3051
    %v3899 = vunpack.c.h.b16 %v3051
    %v3900 = vunpack.c.l.b16 %v3052
    %v3901 = vunpack.c.h.b16 %v3052
    %v3902 = vunpack.c.l.b16 %v3053
    %v3903 = vunpack.c.h.b16 %v3053
    %v3904 = vunpack.c.l.b16 %v3054
    %v3905 = vunpack.c.h.b16 %v3054
    %v3906 = vunpack.c.l.b16 %v3055
    %v3907 = vunpack.c.h.b16 %v3055
    %v3908 = vunpack.c.l.b16 %v3056
    %v3909 = vunpack.c.h.b16 %v3056
    %v3910 = vunpack.c.l.b16 %v3057
    %v3911 = vunpack.c.h.b16 %v3057
    %v3912 = vunpack.c.l.b16 %v3058
    %v3913 = vunpack.c.h.b16 %v3058
    %v3914 = vunpack.c.l.b16 %v3059
    %v3915 = vunpack.c.h.b16 %v3059
    %v3916 = vunpack.c.l.b16 %v3060
    %v3917 = vunpack.c.h.b16 %v3060
    %v3918 = vunpack.c.l.b16 %v3061
    %v3919 = vunpack.c.h.b16 %v3061
    %v3920 = vunpack.c.l.b16 %v3062
    %v3921 = vunpack.c.h.b16 %v3062
    %v3922 = vunpack.c.l.b16 %v3063
    %v3923 = vunpack.c.h.b16 %v3063
    %v3924 = vunpack.c.l.b16 %v3064
    %v3925 = vunpack.c.h.b16 %v3064
    %v3926 = vunpack.c.l.b16 %v3065
    %v3927 = vunpack.c.h.b16 %v3065
    %v3928 = vunpack.c.l.b16 %v3066
    %v3929 = vunpack.c.h.b16 %v3066
    %v3930 = vunpack.c.l.b16 %v3067
    %v3931 = vunpack.c.h.b16 %v3067
    %v3932 = vunpack.c.l.b16 %v3068
    %v3933 = vunpack.c.h.b16 %v3068
    %v3934 = vunpack.c.l.b16 %v3069
    %v3935 = vunpack.c.h.b16 %v3069
    %v3936 = vunpack.c.l.b16 %v3070
    %v3937 = vunpack.c.h.b16 %v3070
    %v3938 = vunpack.c.l.b16 %v3071
    %v3939 = vunpack.c.h.b16 %v3071
    %v3940 = vunpack.c.l.b16 %v3072
    %v3941 = vunpack.c.h.b16 %v3072
    %v3942 = vunpack.c.l.b16 %v3073
    %v3943 = vunpack.c.h.b16 %v3073
    %v3944 = vunpack.c.l.b16 %v3074
    %v3945 = vunpack.c.h.b16 %v3074
    %v3946 = vunpack.c.l.b16 %v3075
    %v3947 = vunpack.c.h.b16 %v3075
    %v3948 = vunpack.c.l.b16 %v3076
    %v3949 = vunpack.c.h.b16 %v3076
    %v3950 = vunpack.c.l.b16 %v3077
    %v3951 = vunpack.c.h.b16 %v3077
    %v3952 = vunpack.c.l.b16 %v3078
    %v3953 = vunpack.c.h.b16 %v3078
    %v3954 = vunpack.c.l.b16 %v3079
    %v3955 = vunpack.c.h.b16 %v3079
    %v3956 = vunpack.c.l.b16 %v3080
    %v3957 = vunpack.c.h.b16 %v3080
    %v3958 = vunpack.c.l.b16 %v3081
    %v3959 = vunpack.c.h.b16 %v3081
    %v3960 = vunpack.c.l.b16 %v3082
    %v3961 = vunpack.c.h.b16 %v3082
    %v3962 = vunpack.c.l.b16 %v3083
    %v3963 = vunpack.c.h.b16 %v3083
    %v3964 = vunpack.c.l.b16 %v3084
    %v3965 = vunpack.c.h.b16 %v3084
    %v3966 = vunpack.c.l.b16 %v3085
    %v3967 = vunpack.c.h.b16 %v3085
    %v3968 = vunpack.c.l.b16 %v3086
    %v3969 = vunpack.c.h.b16 %v3086
    %v3970 = vunpack.c.l.b16 %v3087
    %v3971 = vunpack.c.h.b16 %v3087
    %v3972 = vunpack.c.l.b16 %v3088
    %v3973 = vunpack.c.h.b16 %v3088
    %v3974 = vunpack.c.l.b16 %v3089
    %v3975 = vunpack.c.h.b16 %v3089
    %v3976 = vunpack.c.l.b16 %v3090
    %v3977 = vunpack.c.h.b16 %v3090
    %v3978 = vunpack.c.l.b16 %v3091
    %v3979 = vunpack.c.h.b16 %v3091
    %v3980 = vunpack.c.l.b16 %v3092
    %v3981 = vunpack.c.h.b16 %v3092
    %v3982 = vunpack.c.l.b16 %v3093
    %v3983 = vunpack.c.h.b16 %v3093
    %v3984 = vunpack.c.l.b16 %v3094
    %v3985 = vunpack.c.h.b16 %v3094
    %v3986 = vunpack.c.l.b16 %v3095
    %v3987 = vunpack.c.h.b16 %v3095
    %v3988 = vunpack.c.l.b16 %v3096
    %v3989 = vunpack.c.h.b16 %v3096
    %v3990 = vpack.c.b16 %v3480, %v3478
    %v3991 = vpack.c.b16 %v3481, %v3479
    %v3992 = vpack.c.b16 %v3484, %v3482
    %v3993 = vpack.c.b16 %v3485, %v3483
    %v3994 = vpack.c.b16 %v3488, %v3486
    %v3995 = vpack.c.b16 %v3489, %v3487
    %v3996 = vpack.c.b16 %v3492, %v3490
    %v3997 = vpack.c.b16 %v3493, %v3491
    %v3998 = vpack.c.b16 %v3496, %v3494
    %v3999 = vpack.c.b16 %v3497, %v3495
    %v4000 = vpack.c.b16 %v3500, %v3498
    %v4001 = vpack.c.b16 %v3501, %v3499
    %v4002 = vpack.c.b16 %v3504, %v3502
    %v4003 = vpack.c.b16 %v3505, %v3503
    %v4004 = vpack.c.b16 %v3508, %v3506
    %v4005 = vpack.c.b16 %v3509, %v3507
    %v4006 = vpack.c.b16 %v3512, %v3510
    %v4007 = vpack.c.b16 %v3513, %v3511
    %v4008 = vpack.c.b16 %v3516, %v3514
    %v4009 = vpack.c.b16 %v3517, %v3515
    %v4010 = vpack.c.b16 %v3520, %v3518
    %v4011 = vpack.c.b16 %v3521, %v3519
    %v4012 = vpack.c.b16 %v3524, %v3522
    %v4013 = vpack.c.b16 %v3525, %v3523
    %v4014 = vpack.c.b16 %v3528, %v3526
    %v4015 = vpack.c.b16 %v3529, %v3527
    %v4016 = vpack.c.b16 %v3532, %v3530
    %v4017 = vpack.c.b16 %v3533, %v3531
    %v4018 = vpack.c.b16 %v3536, %v3534
    %v4019 = vpack.c.b16 %v3537, %v3535
    %v4020 = vpack.c.b16 %v3540, %v3538
    %v4021 = vpack.c.b16 %v3541, %v3539
    %v4022 = vpack.c.b16 %v3544, %v3542
    %v4023 = vpack.c.b16 %v3545, %v3543
    %v4024 = vpack.c.b16 %v3548, %v3546
    %v4025 = vpack.c.b16 %v3549, %v3547
    %v4026 = vpack.c.b16 %v3552, %v3550
    %v4027 = vpack.c.b16 %v3553, %v3551
    %v4028 = vpack.c.b16 %v3556, %v3554
    %v4029 = vpack.c.b16 %v3557, %v3555
    %v4030 = vpack.c.b16 %v3560, %v3558
    %v4031 = vpack.c.b16 %v3561, %v3559
    %v4032 = vpack.c.b16 %v3564, %v3562
    %v4033 = vpack.c.b16 %v3565, %v3563
    %v4034 = vpack.c.b16 %v3568, %v3566
    %v4035 = vpack.c.b16 %v3569, %v3567
    %v4036 = vpack.c.b16 %v3572, %v3570
    %v4037 = vpack.c.b16 %v3573, %v3571
    %v4038 = vpack.c.b16 %v3576, %v3574
    %v4039 = vpack.c.b16 %v3577, %v3575
    %v4040 = vpack.c.b16 %v3580, %v3578
    %v4041 = vpack.c.b16 %v3581, %v3579
    %v4042 = vpack.c.b16 %v3584, %v3582
    %v4043 = vpack.c.b16 %v3585, %v3583
    %v4044 = vpack.c.b16 %v3588, %v3586
    %v4045 = vpack.c.b16 %v3589, %v3587
    %v4046 = vpack.c.b16 %v3592, %v3590
    %v4047 = vpack.c.b16 %v3593, %v3591
    %v4048 = vpack.c.b16 %v3596, %v3594
    %v4049 = vpack.c.b16 %v3597, %v3595
    %v4050 = vpack.c.b16 %v3600, %v3598
    %v4051 = vpack.c.b16 %v3601, %v3599
    %v4052 = vpack.c.b16 %v3604, %v3602
    %v4053 = vpack.c.b16 %v3605, %v3603
    %v4054 = vpack.c.b16 %v3608, %v3606
    %v4055 = vpack.c.b16 %v3609, %v3607
    %v4056 = vpack.c.b16 %v3612, %v3610
    %v4057 = vpack.c.b16 %v3613, %v3611
    %v4058 = vpack.c.b16 %v3616, %v3614
    %v4059 = vpack.c.b16 %v3617, %v3615
    %v4060 = vpack.c.b16 %v3620, %v3618
    %v4061 = vpack.c.b16 %v3621, %v3619
    %v4062 = vpack.c.b16 %v3624, %v3622
    %v4063 = vpack.c.b16 %v3625, %v3623
    %v4064 = vpack.c.b16 %v3628, %v3626
    %v4065 = vpack.c.b16 %v3629, %v3627
    %v4066 = vpack.c.b16 %v3632, %v3630
    %v4067 = vpack.c.b16 %v3633, %v3631
    %v4068 = vpack.c.b16 %v3636, %v3634
    %v4069 = vpack.c.b16 %v3637, %v3635
    %v4070 = vpack.c.b16 %v3640, %v3638
    %v4071 = vpack.c.b16 %v3641, %v3639
    %v4072 = vpack.c.b16 %v3644, %v3642
    %v4073 = vpack.c.b16 %v3645, %v3643
    %v4074 = vpack.c.b16 %v3648, %v3646
    %v4075 = vpack.c.b16 %v3649, %v3647
    %v4076 = vpack.c.b16 %v3652, %v3650
    %v4077 = vpack.c.b16 %v3653, %v3651
    %v4078 = vpack.c.b16 %v3656, %v3654
    %v4079 = vpack.c.b16 %v3657, %v3655
    %v4080 = vpack.c.b16 %v3660, %v3658
    %v4081 = vpack.c.b16 %v3661, %v3659
    %v4082 = vpack.c.b16 %v3664, %v3662
    %v4083 = vpack.c.b16 %v3665, %v3663
    %v4084 = vpack.c.b16 %v3668, %v3666
    %v4085 = vpack.c.b16 %v3669, %v3667
    %v4086 = vpack.c.b16 %v3672, %v3670
    %v4087 = vpack.c.b16 %v3673, %v3671
    %v4088 = vpack.c.b16 %v3676, %v3674
    %v4089 = vpack.c.b16 %v3677, %v3675
    %v4090 = vpack.c.b16 %v3680, %v3678
    %v4091 = vpack.c.b16 %v3681, %v3679
    %v4092 = vpack.c.b16 %v3684, %v3682
    %v4093 = vpack.c.b16 %v3685, %v3683
    %v4094 = vpack.c.b16 %v3688, %v3686
    %v4095 = vpack.c.b16 %v3689, %v3687
    %v4096 = vpack.c.b16 %v3692, %v3690
    %v4097 = vpack.c.b16 %v3693, %v3691
    %v4098 = vpack.c.b16 %v3696, %v3694
    %v4099 = vpack.c.b16 %v3697, %v3695
    %v4100 = vpack.c.b16 %v3700, %v3698
    %v4101 = vpack.c.b16 %v3701, %v3699
    %v4102 = vpack.c.b16 %v3704, %v3702
    %v4103 = vpack.c.b16 %v3705, %v3703
    %v4104 = vpack.c.b16 %v3708, %v3706
    %v4105 = vpack.c.b16 %v3709, %v3707
    %v4106 = vpack.c.b16 %v3712, %v3710
    %v4107 = vpack.c.b16 %v3713, %v3711
    %v4108 = vpack.c.b16 %v3716, %v3714
    %v4109 = vpack.c.b16 %v3717, %v3715
    %v4110 = vpack.c.b16 %v3720, %v3718
    %v4111 = vpack.c.b16 %v3721, %v3719
    %v4112 = vpack.c.b16 %v3724, %v3722
    %v4113 = vpack.c.b16 %v3725, %v3723
    %v4114 = vpack.c.b16 %v3728, %v3726
    %v4115 = vpack.c.b16 %v3729, %v3727
    %v4116 = vpack.c.b16 %v3732, %v3730
    %v4117 = vpack.c.b16 %v3733, %v3731
    %v4118 = vpack.c.b16 %v3736, %v3734
    %v4119 = vpack.c.b16 %v3737, %v3735
    %v4120 = vpack.c.b16 %v3740, %v3738
    %v4121 = vpack.c.b16 %v3741, %v3739
    %v4122 = vpack.c.b16 %v3744, %v3742
    %v4123 = vpack.c.b16 %v3745, %v3743
    %v4124 = vpack.c.b16 %v3748, %v3746
    %v4125 = vpack.c.b16 %v3749, %v3747
    %v4126 = vpack.c.b16 %v3752, %v3750
    %v4127 = vpack.c.b16 %v3753, %v3751
    %v4128 = vpack.c.b16 %v3756, %v3754
    %v4129 = vpack.c.b16 %v3757, %v3755
    %v4130 = vpack.c.b16 %v3760, %v3758
    %v4131 = vpack.c.b16 %v3761, %v3759
    %v4132 = vpack.c.b16 %v3764, %v3762
    %v4133 = vpack.c.b16 %v3765, %v3763
    %v4134 = vpack.c.b16 %v3768, %v3766
    %v4135 = vpack.c.b16 %v3769, %v3767
    %v4136 = vpack.c.b16 %v3772, %v3770
    %v4137 = vpack.c.b16 %v3773, %v3771
    %v4138 = vpack.c.b16 %v3776, %v3774
    %v4139 = vpack.c.b16 %v3777, %v3775
    %v4140 = vpack.c.b16 %v3780, %v3778
    %v4141 = vpack.c.b16 %v3781, %v3779
    %v4142 = vpack.c.b16 %v3784, %v3782
    %v4143 = vpack.c.b16 %v3785, %v3783
    %v4144 = vpack.c.b16 %v3788, %v3786
    %v4145 = vpack.c.b16 %v3789, %v3787
    %v4146 = vpack.c.b16 %v3792, %v3790
    %v4147 = vpack.c.b16 %v3793, %v3791
    %v4148 = vpack.c.b16 %v3796, %v3794
    %v4149 = vpack.c.b16 %v3797, %v3795
    %v4150 = vpack.c.b16 %v3800, %v3798
    %v4151 = vpack.c.b16 %v3801, %v3799
    %v4152 = vpack.c.b16 %v3804, %v3802
    %v4153 = vpack.c.b16 %v3805, %v3803
    %v4154 = vpack.c.b16 %v3808, %v3806
    %v4155 = vpack.c.b16 %v3809, %v3807
    %v4156 = vpack.c.b16 %v3812, %v3810
    %v4157 = vpack.c.b16 %v3813, %v3811
    %v4158 = vpack.c.b16 %v3816, %v3814
    %v4159 = vpack.c.b16 %v3817, %v3815
    %v4160 = vpack.c.b16 %v3820, %v3818
    %v4161 = vpack.c.b16 %v3821, %v3819
    %v4162 = vpack.c.b16 %v3824, %v3822
    %v4163 = vpack.c.b16 %v3825, %v3823
    %v4164 = vpack.c.b16 %v3828, %v3826
    %v4165 = vpack.c.b16 %v3829, %v3827
    %v4166 = vpack.c.b16 %v3832, %v3830
    %v4167 = vpack.c.b16 %v3833, %v3831
    %v4168 = vpack.c.b16 %v3836, %v3834
    %v4169 = vpack.c.b16 %v3837, %v3835
    %v4170 = vpack.c.b16 %v3840, %v3838
    %v4171 = vpack.c.b16 %v3841, %v3839
    %v4172 = vpack.c.b16 %v3844, %v3842
    %v4173 = vpack.c.b16 %v3845, %v3843
    %v4174 = vpack.c.b16 %v3848, %v3846
    %v4175 = vpack.c.b16 %v3849, %v3847
    %v4176 = vpack.c.b16 %v3852, %v3850
    %v4177 = vpack.c.b16 %v3853, %v3851
    %v4178 = vpack.c.b16 %v3856, %v3854
    %v4179 = vpack.c.b16 %v3857, %v3855
    %v4180 = vpack.c.b16 %v3860, %v3858
    %v4181 = vpack.c.b16 %v3861, %v3859
    %v4182 = vpack.c.b16 %v3864, %v3862
    %v4183 = vpack.c.b16 %v3865, %v3863
    %v4184 = vpack.c.b16 %v3868, %v3866
    %v4185 = vpack.c.b16 %v3869, %v3867
    %v4186 = vpack.c.b16 %v3872, %v3870
    %v4187 = vpack.c.b16 %v3873, %v3871
    %v4188 = vpack.c.b16 %v3876, %v3874
    %v4189 = vpack.c.b16 %v3877, %v3875
    %v4190 = vpack.c.b16 %v3880, %v3878
    %v4191 = vpack.c.b16 %v3881, %v3879
    %v4192 = vpack.c.b16 %v3884, %v3882
    %v4193 = vpack.c.b16 %v3885, %v3883
    %v4194 = vpack.c.b16 %v3888, %v3886
    %v4195 = vpack.c.b16 %v3889, %v3887
    %v4196 = vpack.c.b16 %v3892, %v3890
    %v4197 = vpack.c.b16 %v3893, %v3891
    %v4198 = vpack.c.b16 %v3896, %v3894
    %v4199 = vpack.c.b16 %v3897, %v3895
    %v4200 = vpack.c.b16 %v3900, %v3898
    %v4201 = vpack.c.b16 %v3901, %v3899
    %v4202 = vpack.c.b16 %v3904, %v3902
    %v4203 = vpack.c.b16 %v3905, %v3903
    %v4204 = vpack.c.b16 %v3908, %v3906
    %v4205 = vpack.c.b16 %v3909, %v3907
    %v4206 = vpack.c.b16 %v3912, %v3910
    %v4207 = vpack.c.b16 %v3913, %v3911
    %v4208 = vpack.c.b16 %v3916, %v3914
    %v4209 = vpack.c.b16 %v3917, %v3915
    %v4210 = vpack.c.b16 %v3920, %v3918
    %v4211 = vpack.c.b16 %v3921, %v3919
    %v4212 = vpack.c.b16 %v3924, %v3922
    %v4213 = vpack.c.b16 %v3925, %v3923
    %v4214 = vpack.c.b16 %v3928, %v3926
    %v4215 = vpack.c.b16 %v3929, %v3927
    %v4216 = vpack.c.b16 %v3932, %v3930
    %v4217 = vpack.c.b16 %v3933, %v3931
    %v4218 = vpack.c.b16 %v3936, %v3934
    %v4219 = vpack.c.b16 %v3937, %v3935
    %v4220 = vpack.c.b16 %v3940, %v3938
    %v4221 = vpack.c.b16 %v3941, %v3939
    %v4222 = vpack.c.b16 %v3944, %v3942
    %v4223 = vpack.c.b16 %v3945, %v3943
    %v4224 = vpack.c.b16 %v3948, %v3946
    %v4225 = vpack.c.b16 %v3949, %v3947
    %v4226 = vpack.c.b16 %v3952, %v3950
    %v4227 = vpack.c.b16 %v3953, %v3951
    %v4228 = vpack.c.b16 %v3956, %v3954
    %v4229 = vpack.c.b16 %v3957, %v3955
    %v4230 = vpack.c.b16 %v3960, %v3958
    %v4231 = vpack.c.b16 %v3961, %v3959
    %v4232 = vpack.c.b16 %v3964, %v3962
    %v4233 = vpack.c.b16 %v3965, %v3963
    %v4234 = vpack.c.b16 %v3968, %v3966
    %v4235 = vpack.c.b16 %v3969, %v3967
    %v4236 = vpack.c.b16 %v3972, %v3970
    %v4237 = vpack.c.b16 %v3973, %v3971
    %v4238 = vpack.c.b16 %v3976, %v3974
    %v4239 = vpack.c.b16 %v3977, %v3975
    %v4240 = vpack.c.b16 %v3980, %v3978
    %v4241 = vpack.c.b16 %v3981, %v3979
    %v4242 = vpack.c.b16 %v3984, %v3982
    %v4243 = vpack.c.b16 %v3985, %v3983
    %v4244 = vpack.c.b16 %v3988, %v3986
    %v4245 = vpack.c.b16 %v3989, %v3987
    %4502 = vmatprep.subr.bf16.mxu0 %v3991
    %4503 = vmatpush1.bf16.msra.mxu0 %v3990
    %4504 = vmatprep.subr.bf16.mxu0 %v3993
    %4505 = vmatpush1.bf16.msra.mxu0 %v3992
    %4506 = vmatprep.subr.bf16.mxu0 %v3995
    %4507 = vmatpush1.bf16.msra.mxu0 %v3994
    %4508 = vmatprep.subr.bf16.mxu0 %v3997
    %4509 = vmatpush1.bf16.msra.mxu0 %v3996
    %4510 = vmatprep.subr.bf16.mxu0 %v3999
    %4511 = vmatpush1.bf16.msra.mxu0 %v3998
    %4512 = vmatprep.subr.bf16.mxu0 %v4001
    %4513 = vmatpush1.bf16.msra.mxu0 %v4000
    %4514 = vmatprep.subr.bf16.mxu0 %v4003
    %4515 = vmatpush1.bf16.msra.mxu0 %v4002
    %4516 = vmatprep.subr.bf16.mxu0 %v4005
    %4517 = vmatpush1.bf16.msra.mxu0 %v4004
    %4518 = vmatprep.subr.bf16.mxu0 %v4007
    %4519 = vmatpush1.bf16.msra.mxu0 %v4006
    %4520 = vmatprep.subr.bf16.mxu0 %v4009
    %4521 = vmatpush1.bf16.msra.mxu0 %v4008
    %4522 = vmatprep.subr.bf16.mxu0 %v4011
    %4523 = vmatpush1.bf16.msra.mxu0 %v4010
    %4524 = vmatprep.subr.bf16.mxu0 %v4013
    %4525 = vmatpush1.bf16.msra.mxu0 %v4012
    %4526 = vmatprep.subr.bf16.mxu0 %v4015
    %4527 = vmatpush1.bf16.msra.mxu0 %v4014
    %4528 = vmatprep.subr.bf16.mxu0 %v4017
    %4529 = vmatpush1.bf16.msra.mxu0 %v4016
    %4530 = vmatprep.subr.bf16.mxu0 %v4019
    %4531 = vmatpush1.bf16.msra.mxu0 %v4018
    %4532 = vmatprep.subr.bf16.mxu0 %v4021
    %4533 = vmatpush1.bf16.msra.mxu0 %v4020
    %4534 = vmatprep.mubr.bf16.mxu0 %v3191
    %4535 = vmatmul.mubr.bf16.gmra.mrb[0].mxu0 %v3190
    %v4536 = vpop.f32.mrb[0].mxu0
    %v4537 = vadd.f32 %v3103, %v4536
    %v4538 = vpop.f32.mrb[0].mxu0
    %v4539 = vadd.f32 %v3107, %v4538
    %v4540 = vpop.f32.mrb[0].mxu0
    %v4541 = vpop.f32.mrb[0].mxu0
    %4542 = vdwg.mxu0
    %4543 = vmatprep.subr.bf16.mxu0 %v4023
    %4544 = vmatpush1.bf16.msra.mxu0 %v4022
    %4545 = vmatprep.subr.bf16.mxu0 %v4025
    %4546 = vmatpush1.bf16.msra.mxu0 %v4024
    %4547 = vmatprep.subr.bf16.mxu0 %v4027
    %4548 = vmatpush1.bf16.msra.mxu0 %v4026
    %4549 = vmatprep.subr.bf16.mxu0 %v4029
    %4550 = vmatpush1.bf16.msra.mxu0 %v4028
    %4551 = vmatprep.subr.bf16.mxu0 %v4031
    %4552 = vmatpush1.bf16.msra.mxu0 %v4030
    %4553 = vmatprep.subr.bf16.mxu0 %v4033
    %4554 = vmatpush1.bf16.msra.mxu0 %v4032
    %4555 = vmatprep.subr.bf16.mxu0 %v4035
    %4556 = vmatpush1.bf16.msra.mxu0 %v4034
    %4557 = vmatprep.subr.bf16.mxu0 %v4037
    %4558 = vmatpush1.bf16.msra.mxu0 %v4036
    %4559 = vmatprep.subr.bf16.mxu0 %v4039
    %4560 = vmatpush1.bf16.msra.mxu0 %v4038
    %4561 = vmatprep.subr.bf16.mxu0 %v4041
    %4562 = vmatpush1.bf16.msra.mxu0 %v4040
    %4563 = vmatprep.subr.bf16.mxu0 %v4043
    %4564 = vmatpush1.bf16.msra.mxu0 %v4042
    %4565 = vmatprep.subr.bf16.mxu0 %v4045
    %4566 = vmatpush1.bf16.msra.mxu0 %v4044
    %4567 = vmatprep.subr.bf16.mxu0 %v4047
    %4568 = vmatpush1.bf16.msra.mxu0 %v4046
    %4569 = vmatprep.subr.bf16.mxu0 %v4049
    %4570 = vmatpush1.bf16.msra.mxu0 %v4048
    %4571 = vmatprep.subr.bf16.mxu0 %v4051
    %4572 = vmatpush1.bf16.msra.mxu0 %v4050
    %4573 = vmatprep.subr.bf16.mxu0 %v4053
    %4574 = vmatpush1.bf16.msra.mxu0 %v4052
    %4575 = vmatprep.mubr.bf16.mxu0 %v3193
    %4576 = vmatmul.mubr.bf16.gmra.mrb[0].mxu0 %v3192
    %v4577 = vpop.f32.mrb[0].mxu0
    %v4578 = vadd.f32 %v4537, %v4577
    %v4579 = vpop.f32.mrb[0].mxu0
    %v4580 = vadd.f32 %v4539, %v4579
    %v4581 = vpop.f32.mrb[0].mxu0
    %v4582 = vpop.f32.mrb[0].mxu0
    %4583 = vdwg.mxu0
    %4584 = vmatprep.subr.bf16.mxu0 %v4055
    %4585 = vmatpush1.bf16.msra.mxu0 %v4054
    %4586 = vmatprep.subr.bf16.mxu0 %v4057
    %4587 = vmatpush1.bf16.msra.mxu0 %v4056
    %4588 = vmatprep.subr.bf16.mxu0 %v4059
    %4589 = vmatpush1.bf16.msra.mxu0 %v4058
    %4590 = vmatprep.subr.bf16.mxu0 %v4061
    %4591 = vmatpush1.bf16.msra.mxu0 %v4060
    %4592 = vmatprep.subr.bf16.mxu0 %v4063
    %4593 = vmatpush1.bf16.msra.mxu0 %v4062
    %4594 = vmatprep.subr.bf16.mxu0 %v4065
    %4595 = vmatpush1.bf16.msra.mxu0 %v4064
    %4596 = vmatprep.subr.bf16.mxu0 %v4067
    %4597 = vmatpush1.bf16.msra.mxu0 %v4066
    %4598 = vmatprep.subr.bf16.mxu0 %v4069
    %4599 = vmatpush1.bf16.msra.mxu0 %v4068
    %4600 = vmatprep.subr.bf16.mxu0 %v4071
    %4601 = vmatpush1.bf16.msra.mxu0 %v4070
    %4602 = vmatprep.subr.bf16.mxu0 %v4073
    %4603 = vmatpush1.bf16.msra.mxu0 %v4072
    %4604 = vmatprep.subr.bf16.mxu0 %v4075
    %4605 = vmatpush1.bf16.msra.mxu0 %v4074
    %4606 = vmatprep.subr.bf16.mxu0 %v4077
    %4607 = vmatpush1.bf16.msra.mxu0 %v4076
    %4608 = vmatprep.subr.bf16.mxu0 %v4079
    %4609 = vmatpush1.bf16.msra.mxu0 %v4078
    %4610 = vmatprep.subr.bf16.mxu0 %v4081
    %4611 = vmatpush1.bf16.msra.mxu0 %v4080
    %4612 = vmatprep.subr.bf16.mxu0 %v4083
    %4613 = vmatpush1.bf16.msra.mxu0 %v4082
    %4614 = vmatprep.subr.bf16.mxu0 %v4085
    %4615 = vmatpush1.bf16.msra.mxu0 %v4084
    %4616 = vmatprep.mubr.bf16.mxu0 %v3195
    %4617 = vmatmul.mubr.bf16.gmra.mrb[0].mxu0 %v3194
    %v4618 = vpop.f32.mrb[0].mxu0
    %v4619 = vadd.f32 %v4578, %v4618
    %v4620 = vpop.f32.mrb[0].mxu0
    %v4621 = vadd.f32 %v4580, %v4620
    %v4622 = vpop.f32.mrb[0].mxu0
    %v4623 = vpop.f32.mrb[0].mxu0
    %4624 = vdwg.mxu0
    %4625 = vmatprep.subr.bf16.mxu0 %v4087
    %4626 = vmatpush1.bf16.msra.mxu0 %v4086
    %4627 = vmatprep.subr.bf16.mxu0 %v4089
    %4628 = vmatpush1.bf16.msra.mxu0 %v4088
    %4629 = vmatprep.subr.bf16.mxu0 %v4091
    %4630 = vmatpush1.bf16.msra.mxu0 %v4090
    %4631 = vmatprep.subr.bf16.mxu0 %v4093
    %4632 = vmatpush1.bf16.msra.mxu0 %v4092
    %4633 = vmatprep.subr.bf16.mxu0 %v4095
    %4634 = vmatpush1.bf16.msra.mxu0 %v4094
    %4635 = vmatprep.subr.bf16.mxu0 %v4097
    %4636 = vmatpush1.bf16.msra.mxu0 %v4096
    %4637 = vmatprep.subr.bf16.mxu0 %v4099
    %4638 = vmatpush1.bf16.msra.mxu0 %v4098
    %4639 = vmatprep.subr.bf16.mxu0 %v4101
    %4640 = vmatpush1.bf16.msra.mxu0 %v4100
    %4641 = vmatprep.subr.bf16.mxu0 %v4103
    %4642 = vmatpush1.bf16.msra.mxu0 %v4102
    %4643 = vmatprep.subr.bf16.mxu0 %v4105
    %4644 = vmatpush1.bf16.msra.mxu0 %v4104
    %4645 = vmatprep.subr.bf16.mxu0 %v4107
    %4646 = vmatpush1.bf16.msra.mxu0 %v4106
    %4647 = vmatprep.subr.bf16.mxu0 %v4109
    %4648 = vmatpush1.bf16.msra.mxu0 %v4108
    %4649 = vmatprep.subr.bf16.mxu0 %v4111
    %4650 = vmatpush1.bf16.msra.mxu0 %v4110
    %4651 = vmatprep.subr.bf16.mxu0 %v4113
    %4652 = vmatpush1.bf16.msra.mxu0 %v4112
    %4653 = vmatprep.subr.bf16.mxu0 %v4115
    %4654 = vmatpush1.bf16.msra.mxu0 %v4114
    %4655 = vmatprep.subr.bf16.mxu0 %v4117
    %4656 = vmatpush1.bf16.msra.mxu0 %v4116
    %4657 = vmatprep.mubr.bf16.mxu0 %v3197
    %4658 = vmatmul.mubr.bf16.gmra.mrb[0].mxu0 %v3196
    %v4659 = vpop.f32.mrb[0].mxu0
    %v4660 = vadd.f32 %v4619, %v4659
    %v4661 = vpop.f32.mrb[0].mxu0
    %v4662 = vadd.f32 %v4621, %v4661
    %v4663 = vpop.f32.mrb[0].mxu0
    %v4664 = vpop.f32.mrb[0].mxu0
    %4665 = vdwg.mxu0
    %4666 = vmatprep.subr.bf16.mxu0 %v4119
    %4667 = vmatpush1.bf16.msra.mxu0 %v4118
    %4668 = vmatprep.subr.bf16.mxu0 %v4121
    %4669 = vmatpush1.bf16.msra.mxu0 %v4120
    %4670 = vmatprep.subr.bf16.mxu0 %v4123
    %4671 = vmatpush1.bf16.msra.mxu0 %v4122
    %4672 = vmatprep.subr.bf16.mxu0 %v4125
    %4673 = vmatpush1.bf16.msra.mxu0 %v4124
    %4674 = vmatprep.subr.bf16.mxu0 %v4127
    %4675 = vmatpush1.bf16.msra.mxu0 %v4126
    %4676 = vmatprep.subr.bf16.mxu0 %v4129
    %4677 = vmatpush1.bf16.msra.mxu0 %v4128
    %4678 = vmatprep.subr.bf16.mxu0 %v4131
    %4679 = vmatpush1.bf16.msra.mxu0 %v4130
    %4680 = vmatprep.subr.bf16.mxu0 %v4133
    %4681 = vmatpush1.bf16.msra.mxu0 %v4132
    %4682 = vmatprep.subr.bf16.mxu0 %v4135
    %4683 = vmatpush1.bf16.msra.mxu0 %v4134
    %4684 = vmatprep.subr.bf16.mxu0 %v4137
    %4685 = vmatpush1.bf16.msra.mxu0 %v4136
    %4686 = vmatprep.subr.bf16.mxu0 %v4139
    %4687 = vmatpush1.bf16.msra.mxu0 %v4138
    %4688 = vmatprep.subr.bf16.mxu0 %v4141
    %4689 = vmatpush1.bf16.msra.mxu0 %v4140
    %4690 = vmatprep.subr.bf16.mxu0 %v4143
    %4691 = vmatpush1.bf16.msra.mxu0 %v4142
    %4692 = vmatprep.subr.bf16.mxu0 %v4145
    %4693 = vmatpush1.bf16.msra.mxu0 %v4144
    %4694 = vmatprep.subr.bf16.mxu0 %v4147
    %4695 = vmatpush1.bf16.msra.mxu0 %v4146
    %4696 = vmatprep.subr.bf16.mxu0 %v4149
    %4697 = vmatpush1.bf16.msra.mxu0 %v4148
    %4698 = vmatprep.mubr.bf16.mxu0 %v3199
    %4699 = vmatmul.mubr.bf16.gmra.mrb[0].mxu0 %v3198
    %v4700 = vpop.f32.mrb[0].mxu0
    %v4701 = vadd.f32 %v4660, %v4700
    %v4702 = vpop.f32.mrb[0].mxu0
    %v4703 = vadd.f32 %v4662, %v4702
    %v4704 = vpop.f32.mrb[0].mxu0
    %v4705 = vpop.f32.mrb[0].mxu0
    %4706 = vdwg.mxu0
    %4707 = vmatprep.subr.bf16.mxu0 %v4151
    %4708 = vmatpush1.bf16.msra.mxu0 %v4150
    %4709 = vmatprep.subr.bf16.mxu0 %v4153
    %4710 = vmatpush1.bf16.msra.mxu0 %v4152
    %4711 = vmatprep.subr.bf16.mxu0 %v4155
    %4712 = vmatpush1.bf16.msra.mxu0 %v4154
    %4713 = vmatprep.subr.bf16.mxu0 %v4157
    %4714 = vmatpush1.bf16.msra.mxu0 %v4156
    %4715 = vmatprep.subr.bf16.mxu0 %v4159
    %4716 = vmatpush1.bf16.msra.mxu0 %v4158
    %4717 = vmatprep.subr.bf16.mxu0 %v4161
    %4718 = vmatpush1.bf16.msra.mxu0 %v4160
    %4719 = vmatprep.subr.bf16.mxu0 %v4163
    %4720 = vmatpush1.bf16.msra.mxu0 %v4162
    %4721 = vmatprep.subr.bf16.mxu0 %v4165
    %4722 = vmatpush1.bf16.msra.mxu0 %v4164
    %4723 = vmatprep.subr.bf16.mxu0 %v4167
    %4724 = vmatpush1.bf16.msra.mxu0 %v4166
    %4725 = vmatprep.subr.bf16.mxu0 %v4169
    %4726 = vmatpush1.bf16.msra.mxu0 %v4168
    %4727 = vmatprep.subr.bf16.mxu0 %v4171
    %4728 = vmatpush1.bf16.msra.mxu0 %v4170
    %4729 = vmatprep.subr.bf16.mxu0 %v4173
    %4730 = vmatpush1.bf16.msra.mxu0 %v4172
    %4731 = vmatprep.subr.bf16.mxu0 %v4175
    %4732 = vmatpush1.bf16.msra.mxu0 %v4174
    %4733 = vmatprep.subr.bf16.mxu0 %v4177
    %4734 = vmatpush1.bf16.msra.mxu0 %v4176
    %4735 = vmatprep.subr.bf16.mxu0 %v4179
    %4736 = vmatpush1.bf16.msra.mxu0 %v4178
    %4737 = vmatprep.subr.bf16.mxu0 %v4181
    %4738 = vmatpush1.bf16.msra.mxu0 %v4180
    %4739 = vmatprep.mubr.bf16.mxu0 %v3201
    %4740 = vmatmul.mubr.bf16.gmra.mrb[0].mxu0 %v3200
    %v4741 = vpop.f32.mrb[0].mxu0
    %v4742 = vadd.f32 %v4701, %v4741
    %v4743 = vpop.f32.mrb[0].mxu0
    %v4744 = vadd.f32 %v4703, %v4743
    %v4745 = vpop.f32.mrb[0].mxu0
    %v4746 = vpop.f32.mrb[0].mxu0
    %4747 = vdwg.mxu0
    %4748 = vmatprep.subr.bf16.mxu0 %v4183
    %4749 = vmatpush1.bf16.msra.mxu0 %v4182
    %4750 = vmatprep.subr.bf16.mxu0 %v4185
    %4751 = vmatpush1.bf16.msra.mxu0 %v4184
    %4752 = vmatprep.subr.bf16.mxu0 %v4187
    %4753 = vmatpush1.bf16.msra.mxu0 %v4186
    %4754 = vmatprep.subr.bf16.mxu0 %v4189
    %4755 = vmatpush1.bf16.msra.mxu0 %v4188
    %4756 = vmatprep.subr.bf16.mxu0 %v4191
    %4757 = vmatpush1.bf16.msra.mxu0 %v4190
    %4758 = vmatprep.subr.bf16.mxu0 %v4193
    %4759 = vmatpush1.bf16.msra.mxu0 %v4192
    %4760 = vmatprep.subr.bf16.mxu0 %v4195
    %4761 = vmatpush1.bf16.msra.mxu0 %v4194
    %4762 = vmatprep.subr.bf16.mxu0 %v4197
    %4763 = vmatpush1.bf16.msra.mxu0 %v4196
    %4764 = vmatprep.subr.bf16.mxu0 %v4199
    %4765 = vmatpush1.bf16.msra.mxu0 %v4198
    %4766 = vmatprep.subr.bf16.mxu0 %v4201
    %4767 = vmatpush1.bf16.msra.mxu0 %v4200
    %4768 = vmatprep.subr.bf16.mxu0 %v4203
    %4769 = vmatpush1.bf16.msra.mxu0 %v4202
    %4770 = vmatprep.subr.bf16.mxu0 %v4205
    %4771 = vmatpush1.bf16.msra.mxu0 %v4204
    %4772 = vmatprep.subr.bf16.mxu0 %v4207
    %4773 = vmatpush1.bf16.msra.mxu0 %v4206
    %4774 = vmatprep.subr.bf16.mxu0 %v4209
    %4775 = vmatpush1.bf16.msra.mxu0 %v4208
    %4776 = vmatprep.subr.bf16.mxu0 %v4211
    %4777 = vmatpush1.bf16.msra.mxu0 %v4210
    %4778 = vmatprep.subr.bf16.mxu0 %v4213
    %4779 = vmatpush1.bf16.msra.mxu0 %v4212
    %4780 = vmatprep.mubr.bf16.mxu0 %v3203
    %4781 = vmatmul.mubr.bf16.gmra.mrb[0].mxu0 %v3202
    %v4782 = vpop.f32.mrb[0].mxu0
    %v4783 = vadd.f32 %v4742, %v4782
    %v4784 = vpop.f32.mrb[0].mxu0
    %v4785 = vadd.f32 %v4744, %v4784
    %v4786 = vpop.f32.mrb[0].mxu0
    %v4787 = vpop.f32.mrb[0].mxu0
    %4788 = vdwg.mxu0
    %4789 = vmatprep.subr.bf16.mxu0 %v4215
    %4790 = vmatpush1.bf16.msra.mxu0 %v4214
    %4791 = vmatprep.subr.bf16.mxu0 %v4217
    %4792 = vmatpush1.bf16.msra.mxu0 %v4216
    %4793 = vmatprep.subr.bf16.mxu0 %v4219
    %4794 = vmatpush1.bf16.msra.mxu0 %v4218
    %4795 = vmatprep.subr.bf16.mxu0 %v4221
    %4796 = vmatpush1.bf16.msra.mxu0 %v4220
    %4797 = vmatprep.subr.bf16.mxu0 %v4223
    %4798 = vmatpush1.bf16.msra.mxu0 %v4222
    %4799 = vmatprep.subr.bf16.mxu0 %v4225
    %4800 = vmatpush1.bf16.msra.mxu0 %v4224
    %4801 = vmatprep.subr.bf16.mxu0 %v4227
    %4802 = vmatpush1.bf16.msra.mxu0 %v4226
    %4803 = vmatprep.subr.bf16.mxu0 %v4229
    %4804 = vmatpush1.bf16.msra.mxu0 %v4228
    %4805 = vmatprep.subr.bf16.mxu0 %v4231
    %4806 = vmatpush1.bf16.msra.mxu0 %v4230
    %4807 = vmatprep.subr.bf16.mxu0 %v4233
    %4808 = vmatpush1.bf16.msra.mxu0 %v4232
    %4809 = vmatprep.subr.bf16.mxu0 %v4235
    %4810 = vmatpush1.bf16.msra.mxu0 %v4234
    %4811 = vmatprep.subr.bf16.mxu0 %v4237
    %4812 = vmatpush1.bf16.msra.mxu0 %v4236
    %4813 = vmatprep.subr.bf16.mxu0 %v4239
    %4814 = vmatpush1.bf16.msra.mxu0 %v4238
    %4815 = vmatprep.subr.bf16.mxu0 %v4241
    %4816 = vmatpush1.bf16.msra.mxu0 %v4240
    %4817 = vmatprep.subr.bf16.mxu0 %v4243
    %4818 = vmatpush1.bf16.msra.mxu0 %v4242
    %4819 = vmatprep.subr.bf16.mxu0 %v4245
    %4820 = vmatpush1.bf16.msra.mxu0 %v4244
    %4821 = vmatprep.mubr.bf16.mxu0 %v3205
    %4822 = vmatmul.mubr.bf16.gmra.mrb[0].mxu0 %v3204
    %v4823 = vpop.f32.mrb[0].mxu0
    %v4824 = vadd.f32 %v4783, %v4823
    %v4825 = vpop.f32.mrb[0].mxu0
    %v4826 = vadd.f32 %v4785, %v4825
    %v4827 = vpop.f32.mrb[0].mxu0
    %v4828 = vpop.f32.mrb[0].mxu0
    %4829 = vdwg.mxu0
    %v4830 = vmax.f32 %v4824, 0.0
    %v4831 = vmax.f32 %v4826, 0.0
    %v4832 = vmul.f32 %v4830, %v4830
    %v4833 = vmul.f32 %v4831, %v4831
    %v4834 = vsel %vm2433, %v4832, 0.0
    %v4835 = vsel %vm2433, %v4833, 0.0
    %v4836 = vadd.f32 %v4834, %v4835
    %4837 = vadd.xlane.f32.xlu0 %v4836
    %v4838 = vpop.xlane.xlu0 %4837
    %v4839 = vmax.f32 %v4838, 1e-24
    %v4840 = vrsqrt.pop %v4839
    %v4841 = vmul.f32 %v4840, 10.0
    %v4842 = vmul.f32 %v4830, %v4841
    %v4843 = vmul.f32 %v4831, %v4841
    %v4846 = vcombine.low %v4842, %v4843
    %v4848 = vunpack.c.l.s4 1983009808
    %v4849 = vunpack.c.0.s8 %v4848
    %v4850 = vlaneseq
    %v4851 = vshrl.u32 %v4850, 7
    %v4852 = vsub.s32 %v4849, %v4851
    %v4853 = vrot.slane %v4846, %v4852
    %4855 = vst [vmem:[#allocation8 + $0x4] sm:$0xf] %v4853
    %v4856 = vld [vmem:[#allocation2 + $0x100] sm:$0xff]
    %v4857 = vld [vmem:[#allocation2 + $0x108] sm:$0xff]
    %v4858 = vld [vmem:[#allocation2 + $0x110] sm:$0xff]
    %v4859 = vld [vmem:[#allocation2 + $0x118] sm:$0xff]
    %v4860 = vld [vmem:[#allocation2 + $0x120] sm:$0xff]
    %v4861 = vld [vmem:[#allocation2 + $0x128] sm:$0xff]
    %v4862 = vld [vmem:[#allocation2 + $0x130] sm:$0xff]
    %v4863 = vld [vmem:[#allocation2 + $0x138] sm:$0xff]
    %v4864 = vld [vmem:[#allocation2 + $0x140] sm:$0xff]
    %v4865 = vld [vmem:[#allocation2 + $0x148] sm:$0xff]
    %v4866 = vld [vmem:[#allocation2 + $0x150] sm:$0xff]
    %v4867 = vld [vmem:[#allocation2 + $0x158] sm:$0xff]
    %v4868 = vld [vmem:[#allocation2 + $0x160] sm:$0xff]
    %v4869 = vld [vmem:[#allocation2 + $0x168] sm:$0xff]
    %v4870 = vld [vmem:[#allocation2 + $0x170] sm:$0xff]
    %v4871 = vld [vmem:[#allocation2 + $0x178] sm:$0xff]
    %v4872 = vld [vmem:[#allocation2 + $0x400] sm:$0xff]
    %v4873 = vld [vmem:[#allocation2 + $0x408] sm:$0xff]
    %v4874 = vld [vmem:[#allocation2 + $0x410] sm:$0xff]
    %v4875 = vld [vmem:[#allocation2 + $0x418] sm:$0xff]
    %v4876 = vld [vmem:[#allocation2 + $0x420] sm:$0xff]
    %v4877 = vld [vmem:[#allocation2 + $0x428] sm:$0xff]
    %v4878 = vld [vmem:[#allocation2 + $0x430] sm:$0xff]
    %v4879 = vld [vmem:[#allocation2 + $0x438] sm:$0xff]
    %v4880 = vld [vmem:[#allocation2 + $0x440] sm:$0xff]
    %v4881 = vld [vmem:[#allocation2 + $0x448] sm:$0xff]
    %v4882 = vld [vmem:[#allocation2 + $0x450] sm:$0xff]
    %v4883 = vld [vmem:[#allocation2 + $0x458] sm:$0xff]
    %v4884 = vld [vmem:[#allocation2 + $0x460] sm:$0xff]
    %v4885 = vld [vmem:[#allocation2 + $0x468] sm:$0xff]
    %v4886 = vld [vmem:[#allocation2 + $0x470] sm:$0xff]
    %v4887 = vld [vmem:[#allocation2 + $0x478] sm:$0xff]
    %v4888 = vunpack.c.l.bf16 %v4856
    %v4889 = vunpack.c.h.bf16 %v4856
    %v4890 = vunpack.c.l.bf16 %v4857
    %v4891 = vunpack.c.h.bf16 %v4857
    %v4892 = vunpack.c.l.bf16 %v4858
    %v4893 = vunpack.c.h.bf16 %v4858
    %v4894 = vunpack.c.l.bf16 %v4859
    %v4895 = vunpack.c.h.bf16 %v4859
    %v4896 = vunpack.c.l.bf16 %v4860
    %v4897 = vunpack.c.h.bf16 %v4860
    %v4898 = vunpack.c.l.bf16 %v4861
    %v4899 = vunpack.c.h.bf16 %v4861
    %v4900 = vunpack.c.l.bf16 %v4862
    %v4901 = vunpack.c.h.bf16 %v4862
    %v4902 = vunpack.c.l.bf16 %v4863
    %v4903 = vunpack.c.h.bf16 %v4863
    %v4904 = vunpack.c.l.bf16 %v4864
    %v4905 = vunpack.c.h.bf16 %v4864
    %v4906 = vunpack.c.l.bf16 %v4865
    %v4907 = vunpack.c.h.bf16 %v4865
    %v4908 = vunpack.c.l.bf16 %v4866
    %v4909 = vunpack.c.h.bf16 %v4866
    %v4910 = vunpack.c.l.bf16 %v4867
    %v4911 = vunpack.c.h.bf16 %v4867
    %v4912 = vunpack.c.l.bf16 %v4868
    %v4913 = vunpack.c.h.bf16 %v4868
    %v4914 = vunpack.c.l.bf16 %v4869
    %v4915 = vunpack.c.h.bf16 %v4869
    %v4916 = vunpack.c.l.bf16 %v4870
    %v4917 = vunpack.c.h.bf16 %v4870
    %v4918 = vunpack.c.l.bf16 %v4871
    %v4919 = vunpack.c.h.bf16 %v4871
    %v4920 = vunpack.c.l.bf16 %v4872
    %v4921 = vunpack.c.h.bf16 %v4872
    %v4922 = vunpack.c.l.bf16 %v4873
    %v4923 = vunpack.c.h.bf16 %v4873
    %v4924 = vunpack.c.l.bf16 %v4874
    %v4925 = vunpack.c.h.bf16 %v4874
    %v4926 = vunpack.c.l.bf16 %v4875
    %v4927 = vunpack.c.h.bf16 %v4875
    %v4928 = vunpack.c.l.bf16 %v4876
    %v4929 = vunpack.c.h.bf16 %v4876
    %v4930 = vunpack.c.l.bf16 %v4877
    %v4931 = vunpack.c.h.bf16 %v4877
    %v4932 = vunpack.c.l.bf16 %v4878
    %v4933 = vunpack.c.h.bf16 %v4878
    %v4934 = vunpack.c.l.bf16 %v4879
    %v4935 = vunpack.c.h.bf16 %v4879
    %v4936 = vunpack.c.l.bf16 %v4880
    %v4937 = vunpack.c.h.bf16 %v4880
    %v4938 = vunpack.c.l.bf16 %v4881
    %v4939 = vunpack.c.h.bf16 %v4881
    %v4940 = vunpack.c.l.bf16 %v4882
    %v4941 = vunpack.c.h.bf16 %v4882
    %v4942 = vunpack.c.l.bf16 %v4883
    %v4943 = vunpack.c.h.bf16 %v4883
    %v4944 = vunpack.c.l.bf16 %v4884
    %v4945 = vunpack.c.h.bf16 %v4884
    %v4946 = vunpack.c.l.bf16 %v4885
    %v4947 = vunpack.c.h.bf16 %v4885
    %v4948 = vunpack.c.l.bf16 %v4886
    %v4949 = vunpack.c.h.bf16 %v4886
    %v4950 = vunpack.c.l.bf16 %v4887
    %v4951 = vunpack.c.h.bf16 %v4887
    %v4952 = vadd.f32 %v4888, %v4904
    %v4953 = vrot.slane %v4952, 4
    %v4954 = vadd.f32 %v4952, %v4953
    %v4955 = vrot.slane %v4954, 2
    %v4956 = vadd.f32 %v4954, %v4955
    %v4957 = vrot.slane %v4956, 1
    %v4958 = vadd.f32 %v4956, %v4957
    %v4959 = vadd.f32 %v4889, %v4905
    %v4960 = vrot.slane %v4959, 4
    %v4961 = vadd.f32 %v4959, %v4960
    %v4962 = vrot.slane %v4961, 2
    %v4963 = vadd.f32 %v4961, %v4962
    %v4964 = vrot.slane %v4963, 1
    %v4965 = vadd.f32 %v4963, %v4964
    %v4966 = vadd.f32 %v4890, %v4906
    %v4967 = vrot.slane %v4966, 4
    %v4968 = vadd.f32 %v4966, %v4967
    %v4969 = vrot.slane %v4968, 2
    %v4970 = vadd.f32 %v4968, %v4969
    %v4971 = vrot.slane %v4970, 1
    %v4972 = vadd.f32 %v4970, %v4971
    %v4973 = vadd.f32 %v4891, %v4907
    %v4974 = vrot.slane %v4973, 4
    %v4975 = vadd.f32 %v4973, %v4974
    %v4976 = vrot.slane %v4975, 2
    %v4977 = vadd.f32 %v4975, %v4976
    %v4978 = vrot.slane %v4977, 1
    %v4979 = vadd.f32 %v4977, %v4978
    %v4980 = vadd.f32 %v4892, %v4908
    %v4981 = vrot.slane %v4980, 4
    %v4982 = vadd.f32 %v4980, %v4981
    %v4983 = vrot.slane %v4982, 2
    %v4984 = vadd.f32 %v4982, %v4983
    %v4985 = vrot.slane %v4984, 1
    %v4986 = vadd.f32 %v4984, %v4985
    %v4987 = vadd.f32 %v4893, %v4909
    %v4988 = vrot.slane %v4987, 4
    %v4989 = vadd.f32 %v4987, %v4988
    %v4990 = vrot.slane %v4989, 2
    %v4991 = vadd.f32 %v4989, %v4990
    %v4992 = vrot.slane %v4991, 1
    %v4993 = vadd.f32 %v4991, %v4992
    %v4994 = vadd.f32 %v4894, %v4910
    %v4995 = vrot.slane %v4994, 4
    %v4996 = vadd.f32 %v4994, %v4995
    %v4997 = vrot.slane %v4996, 2
    %v4998 = vadd.f32 %v4996, %v4997
    %v4999 = vrot.slane %v4998, 1
    %v5000 = vadd.f32 %v4998, %v4999
    %v5001 = vadd.f32 %v4895, %v4911
    %v5002 = vrot.slane %v5001, 4
    %v5003 = vadd.f32 %v5001, %v5002
    %v5004 = vrot.slane %v5003, 2
    %v5005 = vadd.f32 %v5003, %v5004
    %v5006 = vrot.slane %v5005, 1
    %v5007 = vadd.f32 %v5005, %v5006
    %v5008 = vadd.f32 %v4896, %v4912
    %v5009 = vrot.slane %v5008, 4
    %v5010 = vadd.f32 %v5008, %v5009
    %v5011 = vrot.slane %v5010, 2
    %v5012 = vadd.f32 %v5010, %v5011
    %v5013 = vrot.slane %v5012, 1
    %v5014 = vadd.f32 %v5012, %v5013
    %v5015 = vadd.f32 %v4897, %v4913
    %v5016 = vrot.slane %v5015, 4
    %v5017 = vadd.f32 %v5015, %v5016
    %v5018 = vrot.slane %v5017, 2
    %v5019 = vadd.f32 %v5017, %v5018
    %v5020 = vrot.slane %v5019, 1
    %v5021 = vadd.f32 %v5019, %v5020
    %v5022 = vadd.f32 %v4898, %v4914
    %v5023 = vrot.slane %v5022, 4
    %v5024 = vadd.f32 %v5022, %v5023
    %v5025 = vrot.slane %v5024, 2
    %v5026 = vadd.f32 %v5024, %v5025
    %v5027 = vrot.slane %v5026, 1
    %v5028 = vadd.f32 %v5026, %v5027
    %v5029 = vadd.f32 %v4899, %v4915
    %v5030 = vrot.slane %v5029, 4
    %v5031 = vadd.f32 %v5029, %v5030
    %v5032 = vrot.slane %v5031, 2
    %v5033 = vadd.f32 %v5031, %v5032
    %v5034 = vrot.slane %v5033, 1
    %v5035 = vadd.f32 %v5033, %v5034
    %v5036 = vadd.f32 %v4900, %v4916
    %v5037 = vrot.slane %v5036, 4
    %v5038 = vadd.f32 %v5036, %v5037
    %v5039 = vrot.slane %v5038, 2
    %v5040 = vadd.f32 %v5038, %v5039
    %v5041 = vrot.slane %v5040, 1
    %v5042 = vadd.f32 %v5040, %v5041
    %v5043 = vadd.f32 %v4901, %v4917
    %v5044 = vrot.slane %v5043, 4
    %v5045 = vadd.f32 %v5043, %v5044
    %v5046 = vrot.slane %v5045, 2
    %v5047 = vadd.f32 %v5045, %v5046
    %v5048 = vrot.slane %v5047, 1
    %v5049 = vadd.f32 %v5047, %v5048
    %v5050 = vadd.f32 %v4902, %v4918
    %v5051 = vrot.slane %v5050, 4
    %v5052 = vadd.f32 %v5050, %v5051
    %v5053 = vrot.slane %v5052, 2
    %v5054 = vadd.f32 %v5052, %v5053
    %v5055 = vrot.slane %v5054, 1
    %v5056 = vadd.f32 %v5054, %v5055
    %v5057 = vadd.f32 %v4903, %v4919
    %v5058 = vrot.slane %v5057, 4
    %v5059 = vadd.f32 %v5057, %v5058
    %v5060 = vrot.slane %v5059, 2
    %v5061 = vadd.f32 %v5059, %v5060
    %v5062 = vrot.slane %v5061, 1
    %v5063 = vadd.f32 %v5061, %v5062
    %v5064 = vadd.f32 %v4920, %v4936
    %v5065 = vrot.slane %v5064, 4
    %v5066 = vadd.f32 %v5064, %v5065
    %v5067 = vrot.slane %v5066, 2
    %v5068 = vadd.f32 %v5066, %v5067
    %v5069 = vrot.slane %v5068, 1
    %v5070 = vadd.f32 %v5068, %v5069
    %v5071 = vadd.f32 %v4921, %v4937
    %v5072 = vrot.slane %v5071, 4
    %v5073 = vadd.f32 %v5071, %v5072
    %v5074 = vrot.slane %v5073, 2
    %v5075 = vadd.f32 %v5073, %v5074
    %v5076 = vrot.slane %v5075, 1
    %v5077 = vadd.f32 %v5075, %v5076
    %v5078 = vadd.f32 %v4922, %v4938
    %v5079 = vrot.slane %v5078, 4
    %v5080 = vadd.f32 %v5078, %v5079
    %v5081 = vrot.slane %v5080, 2
    %v5082 = vadd.f32 %v5080, %v5081
    %v5083 = vrot.slane %v5082, 1
    %v5084 = vadd.f32 %v5082, %v5083
    %v5085 = vadd.f32 %v4923, %v4939
    %v5086 = vrot.slane %v5085, 4
    %v5087 = vadd.f32 %v5085, %v5086
    %v5088 = vrot.slane %v5087, 2
    %v5089 = vadd.f32 %v5087, %v5088
    %v5090 = vrot.slane %v5089, 1
    %v5091 = vadd.f32 %v5089, %v5090
    %v5092 = vadd.f32 %v4924, %v4940
    %v5093 = vrot.slane %v5092, 4
    %v5094 = vadd.f32 %v5092, %v5093
    %v5095 = vrot.slane %v5094, 2
    %v5096 = vadd.f32 %v5094, %v5095
    %v5097 = vrot.slane %v5096, 1
    %v5098 = vadd.f32 %v5096, %v5097
    %v5099 = vadd.f32 %v4925, %v4941
    %v5100 = vrot.slane %v5099, 4
    %v5101 = vadd.f32 %v5099, %v5100
    %v5102 = vrot.slane %v5101, 2
    %v5103 = vadd.f32 %v5101, %v5102
    %v5104 = vrot.slane %v5103, 1
    %v5105 = vadd.f32 %v5103, %v5104
    %v5106 = vadd.f32 %v4926, %v4942
    %v5107 = vrot.slane %v5106, 4
    %v5108 = vadd.f32 %v5106, %v5107
    %v5109 = vrot.slane %v5108, 2
    %v5110 = vadd.f32 %v5108, %v5109
    %v5111 = vrot.slane %v5110, 1
    %v5112 = vadd.f32 %v5110, %v5111
    %v5113 = vadd.f32 %v4927, %v4943
    %v5114 = vrot.slane %v5113, 4
    %v5115 = vadd.f32 %v5113, %v5114
    %v5116 = vrot.slane %v5115, 2
    %v5117 = vadd.f32 %v5115, %v5116
    %v5118 = vrot.slane %v5117, 1
    %v5119 = vadd.f32 %v5117, %v5118
    %v5120 = vadd.f32 %v4928, %v4944
    %v5121 = vrot.slane %v5120, 4
    %v5122 = vadd.f32 %v5120, %v5121
    %v5123 = vrot.slane %v5122, 2
    %v5124 = vadd.f32 %v5122, %v5123
    %v5125 = vrot.slane %v5124, 1
    %v5126 = vadd.f32 %v5124, %v5125
    %v5127 = vadd.f32 %v4929, %v4945
    %v5128 = vrot.slane %v5127, 4
    %v5129 = vadd.f32 %v5127, %v5128
    %v5130 = vrot.slane %v5129, 2
    %v5131 = vadd.f32 %v5129, %v5130
    %v5132 = vrot.slane %v5131, 1
    %v5133 = vadd.f32 %v5131, %v5132
    %v5134 = vadd.f32 %v4930, %v4946
    %v5135 = vrot.slane %v5134, 4
    %v5136 = vadd.f32 %v5134, %v5135
    %v5137 = vrot.slane %v5136, 2
    %v5138 = vadd.f32 %v5136, %v5137
    %v5139 = vrot.slane %v5138, 1
    %v5140 = vadd.f32 %v5138, %v5139
    %v5141 = vadd.f32 %v4931, %v4947
    %v5142 = vrot.slane %v5141, 4
    %v5143 = vadd.f32 %v5141, %v5142
    %v5144 = vrot.slane %v5143, 2
    %v5145 = vadd.f32 %v5143, %v5144
    %v5146 = vrot.slane %v5145, 1
    %v5147 = vadd.f32 %v5145, %v5146
    %v5148 = vadd.f32 %v4932, %v4948
    %v5149 = vrot.slane %v5148, 4
    %v5150 = vadd.f32 %v5148, %v5149
    %v5151 = vrot.slane %v5150, 2
    %v5152 = vadd.f32 %v5150, %v5151
    %v5153 = vrot.slane %v5152, 1
    %v5154 = vadd.f32 %v5152, %v5153
    %v5155 = vadd.f32 %v4933, %v4949
    %v5156 = vrot.slane %v5155, 4
    %v5157 = vadd.f32 %v5155, %v5156
    %v5158 = vrot.slane %v5157, 2
    %v5159 = vadd.f32 %v5157, %v5158
    %v5160 = vrot.slane %v5159, 1
    %v5161 = vadd.f32 %v5159, %v5160
    %v5162 = vadd.f32 %v4934, %v4950
    %v5163 = vrot.slane %v5162, 4
    %v5164 = vadd.f32 %v5162, %v5163
    %v5165 = vrot.slane %v5164, 2
    %v5166 = vadd.f32 %v5164, %v5165
    %v5167 = vrot.slane %v5166, 1
    %v5168 = vadd.f32 %v5166, %v5167
    %v5169 = vadd.f32 %v4935, %v4951
    %v5170 = vrot.slane %v5169, 4
    %v5171 = vadd.f32 %v5169, %v5170
    %v5172 = vrot.slane %v5171, 2
    %v5173 = vadd.f32 %v5171, %v5172
    %v5174 = vrot.slane %v5173, 1
    %v5175 = vadd.f32 %v5173, %v5174
    %v5176 = vmul.f32 %v4958, 0.0625
    %v5177 = vmul.f32 %v4965, 0.0625
    %v5178 = vmul.f32 %v4972, 0.0625
    %v5179 = vmul.f32 %v4979, 0.0625
    %v5180 = vmul.f32 %v4986, 0.0625
    %v5181 = vmul.f32 %v4993, 0.0625
    %v5182 = vmul.f32 %v5000, 0.0625
    %v5183 = vmul.f32 %v5007, 0.0625
    %v5184 = vmul.f32 %v5014, 0.0625
    %v5185 = vmul.f32 %v5021, 0.0625
    %v5186 = vmul.f32 %v5028, 0.0625
    %v5187 = vmul.f32 %v5035, 0.0625
    %v5188 = vmul.f32 %v5042, 0.0625
    %v5189 = vmul.f32 %v5049, 0.0625
    %v5190 = vmul.f32 %v5056, 0.0625
    %v5191 = vmul.f32 %v5063, 0.0625
    %v5192 = vmul.f32 %v5070, 0.0625
    %v5193 = vmul.f32 %v5077, 0.0625
    %v5194 = vmul.f32 %v5084, 0.0625
    %v5195 = vmul.f32 %v5091, 0.0625
    %v5196 = vmul.f32 %v5098, 0.0625
    %v5197 = vmul.f32 %v5105, 0.0625
    %v5198 = vmul.f32 %v5112, 0.0625
    %v5199 = vmul.f32 %v5119, 0.0625
    %v5200 = vmul.f32 %v5126, 0.0625
    %v5201 = vmul.f32 %v5133, 0.0625
    %v5202 = vmul.f32 %v5140, 0.0625
    %v5203 = vmul.f32 %v5147, 0.0625
    %v5204 = vmul.f32 %v5154, 0.0625
    %v5205 = vmul.f32 %v5161, 0.0625
    %v5206 = vmul.f32 %v5168, 0.0625
    %v5207 = vmul.f32 %v5175, 0.0625
    %v5208 = vpack.c.bf16 %v5176, %v5176
    %v5209 = vpack.c.bf16 %v5177, %v5177
    %v5210 = vpack.c.bf16 %v5178, %v5178
    %v5211 = vpack.c.bf16 %v5179, %v5179
    %v5212 = vpack.c.bf16 %v5180, %v5180
    %v5213 = vpack.c.bf16 %v5181, %v5181
    %v5214 = vpack.c.bf16 %v5182, %v5182
    %v5215 = vpack.c.bf16 %v5183, %v5183
    %v5216 = vpack.c.bf16 %v5184, %v5184
    %v5217 = vpack.c.bf16 %v5185, %v5185
    %v5218 = vpack.c.bf16 %v5186, %v5186
    %v5219 = vpack.c.bf16 %v5187, %v5187
    %v5220 = vpack.c.bf16 %v5188, %v5188
    %v5221 = vpack.c.bf16 %v5189, %v5189
    %v5222 = vpack.c.bf16 %v5190, %v5190
    %v5223 = vpack.c.bf16 %v5191, %v5191
    %v5224 = vpack.c.bf16 %v5192, %v5192
    %v5225 = vpack.c.bf16 %v5193, %v5193
    %v5226 = vpack.c.bf16 %v5194, %v5194
    %v5227 = vpack.c.bf16 %v5195, %v5195
    %v5228 = vpack.c.bf16 %v5196, %v5196
    %v5229 = vpack.c.bf16 %v5197, %v5197
    %v5230 = vpack.c.bf16 %v5198, %v5198
    %v5231 = vpack.c.bf16 %v5199, %v5199
    %v5232 = vpack.c.bf16 %v5200, %v5200
    %v5233 = vpack.c.bf16 %v5201, %v5201
    %v5234 = vpack.c.bf16 %v5202, %v5202
    %v5235 = vpack.c.bf16 %v5203, %v5203
    %v5236 = vpack.c.bf16 %v5204, %v5204
    %v5237 = vpack.c.bf16 %v5205, %v5205
    %v5238 = vpack.c.bf16 %v5206, %v5206
    %v5239 = vpack.c.bf16 %v5207, %v5207
    %s5240 = scalar_lea.vmem [#allocation5], 4096
    %v5241 = vld [vmem:[%s5240] sm:$0xff]
    %v5242 = vld [vmem:[%s5240 + $0x8] sm:$0xff]
    %v5243 = vld [vmem:[%s5240 + $0x10] sm:$0xff]
    %v5244 = vld [vmem:[%s5240 + $0x18] sm:$0xff]
    %v5245 = vld [vmem:[%s5240 + $0x20] sm:$0xff]
    %v5246 = vld [vmem:[%s5240 + $0x28] sm:$0xff]
    %v5247 = vld [vmem:[%s5240 + $0x30] sm:$0xff]
    %v5248 = vld [vmem:[%s5240 + $0x38] sm:$0xff]
    %v5249 = vld [vmem:[%s5240 + $0x40] sm:$0xff]
    %v5250 = vld [vmem:[%s5240 + $0x48] sm:$0xff]
    %v5251 = vld [vmem:[%s5240 + $0x50] sm:$0xff]
    %v5252 = vld [vmem:[%s5240 + $0x58] sm:$0xff]
    %v5253 = vld [vmem:[%s5240 + $0x60] sm:$0xff]
    %v5254 = vld [vmem:[%s5240 + $0x68] sm:$0xff]
    %v5255 = vld [vmem:[%s5240 + $0x70] sm:$0xff]
    %v5256 = vld [vmem:[%s5240 + $0x78] sm:$0xff]
    %v5257 = vld [vmem:[%s5240 + $0x80] sm:$0xff]
    %v5258 = vld [vmem:[%s5240 + $0x88] sm:$0xff]
    %v5259 = vld [vmem:[%s5240 + $0x90] sm:$0xff]
    %v5260 = vld [vmem:[%s5240 + $0x98] sm:$0xff]
    %v5261 = vld [vmem:[%s5240 + $0xa0] sm:$0xff]
    %v5262 = vld [vmem:[%s5240 + $0xa8] sm:$0xff]
    %v5263 = vld [vmem:[%s5240 + $0xb0] sm:$0xff]
    %v5264 = vld [vmem:[%s5240 + $0xb8] sm:$0xff]
    %v5265 = vld [vmem:[%s5240 + $0xc0] sm:$0xff]
    %v5266 = vld [vmem:[%s5240 + $0xc8] sm:$0xff]
    %v5267 = vld [vmem:[%s5240 + $0xd0] sm:$0xff]
    %v5268 = vld [vmem:[%s5240 + $0xd8] sm:$0xff]
    %v5269 = vld [vmem:[%s5240 + $0xe0] sm:$0xff]
    %v5270 = vld [vmem:[%s5240 + $0xe8] sm:$0xff]
    %v5271 = vld [vmem:[%s5240 + $0xf0] sm:$0xff]
    %v5272 = vld [vmem:[%s5240 + $0xf8] sm:$0xff]
    %v5273 = vld [vmem:[%s5240 + $0x100] sm:$0xff]
    %v5274 = vld [vmem:[%s5240 + $0x108] sm:$0xff]
    %v5275 = vld [vmem:[%s5240 + $0x110] sm:$0xff]
    %v5276 = vld [vmem:[%s5240 + $0x118] sm:$0xff]
    %v5277 = vld [vmem:[%s5240 + $0x120] sm:$0xff]
    %v5278 = vld [vmem:[%s5240 + $0x128] sm:$0xff]
    %v5279 = vld [vmem:[%s5240 + $0x130] sm:$0xff]
    %v5280 = vld [vmem:[%s5240 + $0x138] sm:$0xff]
    %v5281 = vld [vmem:[%s5240 + $0x140] sm:$0xff]
    %v5282 = vld [vmem:[%s5240 + $0x148] sm:$0xff]
    %v5283 = vld [vmem:[%s5240 + $0x150] sm:$0xff]
    %v5284 = vld [vmem:[%s5240 + $0x158] sm:$0xff]
    %v5285 = vld [vmem:[%s5240 + $0x160] sm:$0xff]
    %v5286 = vld [vmem:[%s5240 + $0x168] sm:$0xff]
    %v5287 = vld [vmem:[%s5240 + $0x170] sm:$0xff]
    %v5288 = vld [vmem:[%s5240 + $0x178] sm:$0xff]
    %v5289 = vld [vmem:[%s5240 + $0x180] sm:$0xff]
    %v5290 = vld [vmem:[%s5240 + $0x188] sm:$0xff]
    %v5291 = vld [vmem:[%s5240 + $0x190] sm:$0xff]
    %v5292 = vld [vmem:[%s5240 + $0x198] sm:$0xff]
    %v5293 = vld [vmem:[%s5240 + $0x1a0] sm:$0xff]
    %v5294 = vld [vmem:[%s5240 + $0x1a8] sm:$0xff]
    %v5295 = vld [vmem:[%s5240 + $0x1b0] sm:$0xff]
    %v5296 = vld [vmem:[%s5240 + $0x1b8] sm:$0xff]
    %v5297 = vld [vmem:[%s5240 + $0x1c0] sm:$0xff]
    %v5298 = vld [vmem:[%s5240 + $0x1c8] sm:$0xff]
    %v5299 = vld [vmem:[%s5240 + $0x1d0] sm:$0xff]
    %v5300 = vld [vmem:[%s5240 + $0x1d8] sm:$0xff]
    %v5301 = vld [vmem:[%s5240 + $0x1e0] sm:$0xff]
    %v5302 = vld [vmem:[%s5240 + $0x1e8] sm:$0xff]
    %v5303 = vld [vmem:[%s5240 + $0x1f0] sm:$0xff]
    %v5304 = vld [vmem:[%s5240 + $0x1f8] sm:$0xff]
    %v5305 = vld [vmem:[%s5240 + $0x200] sm:$0xff]
    %v5306 = vld [vmem:[%s5240 + $0x208] sm:$0xff]
    %v5307 = vld [vmem:[%s5240 + $0x210] sm:$0xff]
    %v5308 = vld [vmem:[%s5240 + $0x218] sm:$0xff]
    %v5309 = vld [vmem:[%s5240 + $0x220] sm:$0xff]
    %v5310 = vld [vmem:[%s5240 + $0x228] sm:$0xff]
    %v5311 = vld [vmem:[%s5240 + $0x230] sm:$0xff]
    %v5312 = vld [vmem:[%s5240 + $0x238] sm:$0xff]
    %v5313 = vld [vmem:[%s5240 + $0x240] sm:$0xff]
    %v5314 = vld [vmem:[%s5240 + $0x248] sm:$0xff]
    %v5315 = vld [vmem:[%s5240 + $0x250] sm:$0xff]
    %v5316 = vld [vmem:[%s5240 + $0x258] sm:$0xff]
    %v5317 = vld [vmem:[%s5240 + $0x260] sm:$0xff]
    %v5318 = vld [vmem:[%s5240 + $0x268] sm:$0xff]
    %v5319 = vld [vmem:[%s5240 + $0x270] sm:$0xff]
    %v5320 = vld [vmem:[%s5240 + $0x278] sm:$0xff]
    %v5321 = vld [vmem:[%s5240 + $0x280] sm:$0xff]
    %v5322 = vld [vmem:[%s5240 + $0x288] sm:$0xff]
    %v5323 = vld [vmem:[%s5240 + $0x290] sm:$0xff]
    %v5324 = vld [vmem:[%s5240 + $0x298] sm:$0xff]
    %v5325 = vld [vmem:[%s5240 + $0x2a0] sm:$0xff]
    %v5326 = vld [vmem:[%s5240 + $0x2a8] sm:$0xff]
    %v5327 = vld [vmem:[%s5240 + $0x2b0] sm:$0xff]
    %v5328 = vld [vmem:[%s5240 + $0x2b8] sm:$0xff]
    %v5329 = vld [vmem:[%s5240 + $0x2c0] sm:$0xff]
    %v5330 = vld [vmem:[%s5240 + $0x2c8] sm:$0xff]
    %v5331 = vld [vmem:[%s5240 + $0x2d0] sm:$0xff]
    %v5332 = vld [vmem:[%s5240 + $0x2d8] sm:$0xff]
    %v5333 = vld [vmem:[%s5240 + $0x2e0] sm:$0xff]
    %v5334 = vld [vmem:[%s5240 + $0x2e8] sm:$0xff]
    %v5335 = vld [vmem:[%s5240 + $0x2f0] sm:$0xff]
    %v5336 = vld [vmem:[%s5240 + $0x2f8] sm:$0xff]
    %v5337 = vld [vmem:[%s5240 + $0x300] sm:$0xff]
    %v5338 = vld [vmem:[%s5240 + $0x308] sm:$0xff]
    %v5339 = vld [vmem:[%s5240 + $0x310] sm:$0xff]
    %v5340 = vld [vmem:[%s5240 + $0x318] sm:$0xff]
    %v5341 = vld [vmem:[%s5240 + $0x320] sm:$0xff]
    %v5342 = vld [vmem:[%s5240 + $0x328] sm:$0xff]
    %v5343 = vld [vmem:[%s5240 + $0x330] sm:$0xff]
    %v5344 = vld [vmem:[%s5240 + $0x338] sm:$0xff]
    %v5345 = vld [vmem:[%s5240 + $0x340] sm:$0xff]
    %v5346 = vld [vmem:[%s5240 + $0x348] sm:$0xff]
    %v5347 = vld [vmem:[%s5240 + $0x350] sm:$0xff]
    %v5348 = vld [vmem:[%s5240 + $0x358] sm:$0xff]
    %v5349 = vld [vmem:[%s5240 + $0x360] sm:$0xff]
    %v5350 = vld [vmem:[%s5240 + $0x368] sm:$0xff]
    %v5351 = vld [vmem:[%s5240 + $0x370] sm:$0xff]
    %v5352 = vld [vmem:[%s5240 + $0x378] sm:$0xff]
    %v5353 = vld [vmem:[%s5240 + $0x380] sm:$0xff]
    %v5354 = vld [vmem:[%s5240 + $0x388] sm:$0xff]
    %v5355 = vld [vmem:[%s5240 + $0x390] sm:$0xff]
    %v5356 = vld [vmem:[%s5240 + $0x398] sm:$0xff]
    %v5357 = vld [vmem:[%s5240 + $0x3a0] sm:$0xff]
    %v5358 = vld [vmem:[%s5240 + $0x3a8] sm:$0xff]
    %v5359 = vld [vmem:[%s5240 + $0x3b0] sm:$0xff]
    %v5360 = vld [vmem:[%s5240 + $0x3b8] sm:$0xff]
    %v5361 = vld [vmem:[%s5240 + $0x3c0] sm:$0xff]
    %v5362 = vld [vmem:[%s5240 + $0x3c8] sm:$0xff]
    %v5363 = vld [vmem:[%s5240 + $0x3d0] sm:$0xff]
    %v5364 = vld [vmem:[%s5240 + $0x3d8] sm:$0xff]
    %v5365 = vld [vmem:[%s5240 + $0x3e0] sm:$0xff]
    %v5366 = vld [vmem:[%s5240 + $0x3e8] sm:$0xff]
    %v5367 = vld [vmem:[%s5240 + $0x3f0] sm:$0xff]
    %v5368 = vld [vmem:[%s5240 + $0x3f8] sm:$0xff]
    %v5369 = vld [vmem:[%s5240 + $0x400] sm:$0xff]
    %v5370 = vld [vmem:[%s5240 + $0x408] sm:$0xff]
    %v5371 = vld [vmem:[%s5240 + $0x410] sm:$0xff]
    %v5372 = vld [vmem:[%s5240 + $0x418] sm:$0xff]
    %v5373 = vld [vmem:[%s5240 + $0x420] sm:$0xff]
    %v5374 = vld [vmem:[%s5240 + $0x428] sm:$0xff]
    %v5375 = vld [vmem:[%s5240 + $0x430] sm:$0xff]
    %v5376 = vld [vmem:[%s5240 + $0x438] sm:$0xff]
    %v5377 = vld [vmem:[%s5240 + $0x440] sm:$0xff]
    %v5378 = vld [vmem:[%s5240 + $0x448] sm:$0xff]
    %v5379 = vld [vmem:[%s5240 + $0x450] sm:$0xff]
    %v5380 = vld [vmem:[%s5240 + $0x458] sm:$0xff]
    %v5381 = vld [vmem:[%s5240 + $0x460] sm:$0xff]
    %v5382 = vld [vmem:[%s5240 + $0x468] sm:$0xff]
    %v5383 = vld [vmem:[%s5240 + $0x470] sm:$0xff]
    %v5384 = vld [vmem:[%s5240 + $0x478] sm:$0xff]
    %v5385 = vld [vmem:[%s5240 + $0x480] sm:$0xff]
    %v5386 = vld [vmem:[%s5240 + $0x488] sm:$0xff]
    %v5387 = vld [vmem:[%s5240 + $0x490] sm:$0xff]
    %v5388 = vld [vmem:[%s5240 + $0x498] sm:$0xff]
    %v5389 = vld [vmem:[%s5240 + $0x4a0] sm:$0xff]
    %v5390 = vld [vmem:[%s5240 + $0x4a8] sm:$0xff]
    %v5391 = vld [vmem:[%s5240 + $0x4b0] sm:$0xff]
    %v5392 = vld [vmem:[%s5240 + $0x4b8] sm:$0xff]
    %v5393 = vld [vmem:[%s5240 + $0x4c0] sm:$0xff]
    %v5394 = vld [vmem:[%s5240 + $0x4c8] sm:$0xff]
    %v5395 = vld [vmem:[%s5240 + $0x4d0] sm:$0xff]
    %v5396 = vld [vmem:[%s5240 + $0x4d8] sm:$0xff]
    %v5397 = vld [vmem:[%s5240 + $0x4e0] sm:$0xff]
    %v5398 = vld [vmem:[%s5240 + $0x4e8] sm:$0xff]
    %v5399 = vld [vmem:[%s5240 + $0x4f0] sm:$0xff]
    %v5400 = vld [vmem:[%s5240 + $0x4f8] sm:$0xff]
    %v5401 = vld [vmem:[%s5240 + $0x500] sm:$0xff]
    %v5402 = vld [vmem:[%s5240 + $0x508] sm:$0xff]
    %v5403 = vld [vmem:[%s5240 + $0x510] sm:$0xff]
    %v5404 = vld [vmem:[%s5240 + $0x518] sm:$0xff]
    %v5405 = vld [vmem:[%s5240 + $0x520] sm:$0xff]
    %v5406 = vld [vmem:[%s5240 + $0x528] sm:$0xff]
    %v5407 = vld [vmem:[%s5240 + $0x530] sm:$0xff]
    %v5408 = vld [vmem:[%s5240 + $0x538] sm:$0xff]
    %v5409 = vld [vmem:[%s5240 + $0x540] sm:$0xff]
    %v5410 = vld [vmem:[%s5240 + $0x548] sm:$0xff]
    %v5411 = vld [vmem:[%s5240 + $0x550] sm:$0xff]
    %v5412 = vld [vmem:[%s5240 + $0x558] sm:$0xff]
    %v5413 = vld [vmem:[%s5240 + $0x560] sm:$0xff]
    %v5414 = vld [vmem:[%s5240 + $0x568] sm:$0xff]
    %v5415 = vld [vmem:[%s5240 + $0x570] sm:$0xff]
    %v5416 = vld [vmem:[%s5240 + $0x578] sm:$0xff]
    %v5417 = vld [vmem:[%s5240 + $0x580] sm:$0xff]
    %v5418 = vld [vmem:[%s5240 + $0x588] sm:$0xff]
    %v5419 = vld [vmem:[%s5240 + $0x590] sm:$0xff]
    %v5420 = vld [vmem:[%s5240 + $0x598] sm:$0xff]
    %v5421 = vld [vmem:[%s5240 + $0x5a0] sm:$0xff]
    %v5422 = vld [vmem:[%s5240 + $0x5a8] sm:$0xff]
    %v5423 = vld [vmem:[%s5240 + $0x5b0] sm:$0xff]
    %v5424 = vld [vmem:[%s5240 + $0x5b8] sm:$0xff]
    %v5425 = vld [vmem:[%s5240 + $0x5c0] sm:$0xff]
    %v5426 = vld [vmem:[%s5240 + $0x5c8] sm:$0xff]
    %v5427 = vld [vmem:[%s5240 + $0x5d0] sm:$0xff]
    %v5428 = vld [vmem:[%s5240 + $0x5d8] sm:$0xff]
    %v5429 = vld [vmem:[%s5240 + $0x5e0] sm:$0xff]
    %v5430 = vld [vmem:[%s5240 + $0x5e8] sm:$0xff]
    %v5431 = vld [vmem:[%s5240 + $0x5f0] sm:$0xff]
    %v5432 = vld [vmem:[%s5240 + $0x5f8] sm:$0xff]
    %v5433 = vld [vmem:[%s5240 + $0x600] sm:$0xff]
    %v5434 = vld [vmem:[%s5240 + $0x608] sm:$0xff]
    %v5435 = vld [vmem:[%s5240 + $0x610] sm:$0xff]
    %v5436 = vld [vmem:[%s5240 + $0x618] sm:$0xff]
    %v5437 = vld [vmem:[%s5240 + $0x620] sm:$0xff]
    %v5438 = vld [vmem:[%s5240 + $0x628] sm:$0xff]
    %v5439 = vld [vmem:[%s5240 + $0x630] sm:$0xff]
    %v5440 = vld [vmem:[%s5240 + $0x638] sm:$0xff]
    %v5441 = vld [vmem:[%s5240 + $0x640] sm:$0xff]
    %v5442 = vld [vmem:[%s5240 + $0x648] sm:$0xff]
    %v5443 = vld [vmem:[%s5240 + $0x650] sm:$0xff]
    %v5444 = vld [vmem:[%s5240 + $0x658] sm:$0xff]
    %v5445 = vld [vmem:[%s5240 + $0x660] sm:$0xff]
    %v5446 = vld [vmem:[%s5240 + $0x668] sm:$0xff]
    %v5447 = vld [vmem:[%s5240 + $0x670] sm:$0xff]
    %v5448 = vld [vmem:[%s5240 + $0x678] sm:$0xff]
    %v5449 = vld [vmem:[%s5240 + $0x680] sm:$0xff]
    %v5450 = vld [vmem:[%s5240 + $0x688] sm:$0xff]
    %v5451 = vld [vmem:[%s5240 + $0x690] sm:$0xff]
    %v5452 = vld [vmem:[%s5240 + $0x698] sm:$0xff]
    %v5453 = vld [vmem:[%s5240 + $0x6a0] sm:$0xff]
    %v5454 = vld [vmem:[%s5240 + $0x6a8] sm:$0xff]
    %v5455 = vld [vmem:[%s5240 + $0x6b0] sm:$0xff]
    %v5456 = vld [vmem:[%s5240 + $0x6b8] sm:$0xff]
    %v5457 = vld [vmem:[%s5240 + $0x6c0] sm:$0xff]
    %v5458 = vld [vmem:[%s5240 + $0x6c8] sm:$0xff]
    %v5459 = vld [vmem:[%s5240 + $0x6d0] sm:$0xff]
    %v5460 = vld [vmem:[%s5240 + $0x6d8] sm:$0xff]
    %v5461 = vld [vmem:[%s5240 + $0x6e0] sm:$0xff]
    %v5462 = vld [vmem:[%s5240 + $0x6e8] sm:$0xff]
    %v5463 = vld [vmem:[%s5240 + $0x6f0] sm:$0xff]
    %v5464 = vld [vmem:[%s5240 + $0x6f8] sm:$0xff]
    %v5465 = vld [vmem:[%s5240 + $0x700] sm:$0xff]
    %v5466 = vld [vmem:[%s5240 + $0x708] sm:$0xff]
    %v5467 = vld [vmem:[%s5240 + $0x710] sm:$0xff]
    %v5468 = vld [vmem:[%s5240 + $0x718] sm:$0xff]
    %v5469 = vld [vmem:[%s5240 + $0x720] sm:$0xff]
    %v5470 = vld [vmem:[%s5240 + $0x728] sm:$0xff]
    %v5471 = vld [vmem:[%s5240 + $0x730] sm:$0xff]
    %v5472 = vld [vmem:[%s5240 + $0x738] sm:$0xff]
    %v5473 = vld [vmem:[%s5240 + $0x740] sm:$0xff]
    %v5474 = vld [vmem:[%s5240 + $0x748] sm:$0xff]
    %v5475 = vld [vmem:[%s5240 + $0x750] sm:$0xff]
    %v5476 = vld [vmem:[%s5240 + $0x758] sm:$0xff]
    %v5477 = vld [vmem:[%s5240 + $0x760] sm:$0xff]
    %v5478 = vld [vmem:[%s5240 + $0x768] sm:$0xff]
    %v5479 = vld [vmem:[%s5240 + $0x770] sm:$0xff]
    %v5480 = vld [vmem:[%s5240 + $0x778] sm:$0xff]
    %v5481 = vld [vmem:[%s5240 + $0x780] sm:$0xff]
    %v5482 = vld [vmem:[%s5240 + $0x788] sm:$0xff]
    %v5483 = vld [vmem:[%s5240 + $0x790] sm:$0xff]
    %v5484 = vld [vmem:[%s5240 + $0x798] sm:$0xff]
    %v5485 = vld [vmem:[%s5240 + $0x7a0] sm:$0xff]
    %v5486 = vld [vmem:[%s5240 + $0x7a8] sm:$0xff]
    %v5487 = vld [vmem:[%s5240 + $0x7b0] sm:$0xff]
    %v5488 = vld [vmem:[%s5240 + $0x7b8] sm:$0xff]
    %v5489 = vld [vmem:[%s5240 + $0x7c0] sm:$0xff]
    %v5490 = vld [vmem:[%s5240 + $0x7c8] sm:$0xff]
    %v5491 = vld [vmem:[%s5240 + $0x7d0] sm:$0xff]
    %v5492 = vld [vmem:[%s5240 + $0x7d8] sm:$0xff]
    %v5493 = vld [vmem:[%s5240 + $0x7e0] sm:$0xff]
    %v5494 = vld [vmem:[%s5240 + $0x7e8] sm:$0xff]
    %v5495 = vld [vmem:[%s5240 + $0x7f0] sm:$0xff]
    %v5496 = vld [vmem:[%s5240 + $0x7f8] sm:$0xff]
    %s5497 = scalar_lea.vmem [#allocation7], 4
    %v5498 = vld [vmem:[%s5497] sm:$0x3]
    %v5500 = vlaneseq
    %v5501 = vshrl.u32 %v5500, 7
    %v5502 = vsub.s32 0, %v5501
    %v5503 = vrot.slane %v5498, %v5502
    %v5504 = vlaneseq
    %v5505 = vshrl.u32 %v5504, 7
    %v5506 = vsub.s32 1, %v5505
    %v5507 = vrot.slane %v5498, %v5506
    %v5542 = vunpack.c.l.b16 %v5208
    %v5543 = vunpack.c.l.b16 %v5209
    %v5544 = vunpack.c.l.b16 %v5210
    %v5545 = vunpack.c.l.b16 %v5211
    %v5546 = vunpack.c.l.b16 %v5212
    %v5547 = vunpack.c.l.b16 %v5213
    %v5548 = vunpack.c.l.b16 %v5214
    %v5549 = vunpack.c.l.b16 %v5215
    %v5550 = vunpack.c.l.b16 %v5216
    %v5551 = vunpack.c.l.b16 %v5217
    %v5552 = vunpack.c.l.b16 %v5218
    %v5553 = vunpack.c.l.b16 %v5219
    %v5554 = vunpack.c.l.b16 %v5220
    %v5555 = vunpack.c.l.b16 %v5221
    %v5556 = vunpack.c.l.b16 %v5222
    %v5557 = vunpack.c.l.b16 %v5223
    %v5558 = vunpack.c.l.b16 %v5224
    %v5559 = vunpack.c.l.b16 %v5225
    %v5560 = vunpack.c.l.b16 %v5226
    %v5561 = vunpack.c.l.b16 %v5227
    %v5562 = vunpack.c.l.b16 %v5228
    %v5563 = vunpack.c.l.b16 %v5229
    %v5564 = vunpack.c.l.b16 %v5230
    %v5565 = vunpack.c.l.b16 %v5231
    %v5566 = vunpack.c.l.b16 %v5232
    %v5567 = vunpack.c.l.b16 %v5233
    %v5568 = vunpack.c.l.b16 %v5234
    %v5569 = vunpack.c.l.b16 %v5235
    %v5570 = vunpack.c.l.b16 %v5236
    %v5571 = vunpack.c.l.b16 %v5237
    %v5572 = vunpack.c.l.b16 %v5238
    %v5573 = vunpack.c.l.b16 %v5239
    %v5574 = vsel %vm772, %v5558, %v5542
    %v5575 = vsel %vm772, %v5559, %v5543
    %v5576 = vsel %vm772, %v5560, %v5544
    %v5577 = vsel %vm772, %v5561, %v5545
    %v5578 = vsel %vm772, %v5562, %v5546
    %v5579 = vsel %vm772, %v5563, %v5547
    %v5580 = vsel %vm772, %v5564, %v5548
    %v5581 = vsel %vm772, %v5565, %v5549
    %v5582 = vsel %vm772, %v5566, %v5550
    %v5583 = vsel %vm772, %v5567, %v5551
    %v5584 = vsel %vm772, %v5568, %v5552
    %v5585 = vsel %vm772, %v5569, %v5553
    %v5586 = vsel %vm772, %v5570, %v5554
    %v5587 = vsel %vm772, %v5571, %v5555
    %v5588 = vsel %vm772, %v5572, %v5556
    %v5589 = vsel %vm772, %v5573, %v5557
    %v5590 = vpack.c.b16 %v5574, %v5574
    %v5591 = vpack.c.b16 %v5575, %v5575
    %v5592 = vpack.c.b16 %v5576, %v5576
    %v5593 = vpack.c.b16 %v5577, %v5577
    %v5594 = vpack.c.b16 %v5578, %v5578
    %v5595 = vpack.c.b16 %v5579, %v5579
    %v5596 = vpack.c.b16 %v5580, %v5580
    %v5597 = vpack.c.b16 %v5581, %v5581
    %v5598 = vpack.c.b16 %v5582, %v5582
    %v5599 = vpack.c.b16 %v5583, %v5583
    %v5600 = vpack.c.b16 %v5584, %v5584
    %v5601 = vpack.c.b16 %v5585, %v5585
    %v5602 = vpack.c.b16 %v5586, %v5586
    %v5603 = vpack.c.b16 %v5587, %v5587
    %v5604 = vpack.c.b16 %v5588, %v5588
    %v5605 = vpack.c.b16 %v5589, %v5589
    %v5878 = vunpack.c.l.b16 %v5241
    %v5879 = vunpack.c.h.b16 %v5241
    %v5880 = vunpack.c.l.b16 %v5242
    %v5881 = vunpack.c.h.b16 %v5242
    %v5882 = vunpack.c.l.b16 %v5243
    %v5883 = vunpack.c.h.b16 %v5243
    %v5884 = vunpack.c.l.b16 %v5244
    %v5885 = vunpack.c.h.b16 %v5244
    %v5886 = vunpack.c.l.b16 %v5245
    %v5887 = vunpack.c.h.b16 %v5245
    %v5888 = vunpack.c.l.b16 %v5246
    %v5889 = vunpack.c.h.b16 %v5246
    %v5890 = vunpack.c.l.b16 %v5247
    %v5891 = vunpack.c.h.b16 %v5247
    %v5892 = vunpack.c.l.b16 %v5248
    %v5893 = vunpack.c.h.b16 %v5248
    %v5894 = vunpack.c.l.b16 %v5249
    %v5895 = vunpack.c.h.b16 %v5249
    %v5896 = vunpack.c.l.b16 %v5250
    %v5897 = vunpack.c.h.b16 %v5250
    %v5898 = vunpack.c.l.b16 %v5251
    %v5899 = vunpack.c.h.b16 %v5251
    %v5900 = vunpack.c.l.b16 %v5252
    %v5901 = vunpack.c.h.b16 %v5252
    %v5902 = vunpack.c.l.b16 %v5253
    %v5903 = vunpack.c.h.b16 %v5253
    %v5904 = vunpack.c.l.b16 %v5254
    %v5905 = vunpack.c.h.b16 %v5254
    %v5906 = vunpack.c.l.b16 %v5255
    %v5907 = vunpack.c.h.b16 %v5255
    %v5908 = vunpack.c.l.b16 %v5256
    %v5909 = vunpack.c.h.b16 %v5256
    %v5910 = vunpack.c.l.b16 %v5257
    %v5911 = vunpack.c.h.b16 %v5257
    %v5912 = vunpack.c.l.b16 %v5258
    %v5913 = vunpack.c.h.b16 %v5258
    %v5914 = vunpack.c.l.b16 %v5259
    %v5915 = vunpack.c.h.b16 %v5259
    %v5916 = vunpack.c.l.b16 %v5260
    %v5917 = vunpack.c.h.b16 %v5260
    %v5918 = vunpack.c.l.b16 %v5261
    %v5919 = vunpack.c.h.b16 %v5261
    %v5920 = vunpack.c.l.b16 %v5262
    %v5921 = vunpack.c.h.b16 %v5262
    %v5922 = vunpack.c.l.b16 %v5263
    %v5923 = vunpack.c.h.b16 %v5263
    %v5924 = vunpack.c.l.b16 %v5264
    %v5925 = vunpack.c.h.b16 %v5264
    %v5926 = vunpack.c.l.b16 %v5265
    %v5927 = vunpack.c.h.b16 %v5265
    %v5928 = vunpack.c.l.b16 %v5266
    %v5929 = vunpack.c.h.b16 %v5266
    %v5930 = vunpack.c.l.b16 %v5267
    %v5931 = vunpack.c.h.b16 %v5267
    %v5932 = vunpack.c.l.b16 %v5268
    %v5933 = vunpack.c.h.b16 %v5268
    %v5934 = vunpack.c.l.b16 %v5269
    %v5935 = vunpack.c.h.b16 %v5269
    %v5936 = vunpack.c.l.b16 %v5270
    %v5937 = vunpack.c.h.b16 %v5270
    %v5938 = vunpack.c.l.b16 %v5271
    %v5939 = vunpack.c.h.b16 %v5271
    %v5940 = vunpack.c.l.b16 %v5272
    %v5941 = vunpack.c.h.b16 %v5272
    %v5942 = vunpack.c.l.b16 %v5273
    %v5943 = vunpack.c.h.b16 %v5273
    %v5944 = vunpack.c.l.b16 %v5274
    %v5945 = vunpack.c.h.b16 %v5274
    %v5946 = vunpack.c.l.b16 %v5275
    %v5947 = vunpack.c.h.b16 %v5275
    %v5948 = vunpack.c.l.b16 %v5276
    %v5949 = vunpack.c.h.b16 %v5276
    %v5950 = vunpack.c.l.b16 %v5277
    %v5951 = vunpack.c.h.b16 %v5277
    %v5952 = vunpack.c.l.b16 %v5278
    %v5953 = vunpack.c.h.b16 %v5278
    %v5954 = vunpack.c.l.b16 %v5279
    %v5955 = vunpack.c.h.b16 %v5279
    %v5956 = vunpack.c.l.b16 %v5280
    %v5957 = vunpack.c.h.b16 %v5280
    %v5958 = vunpack.c.l.b16 %v5281
    %v5959 = vunpack.c.h.b16 %v5281
    %v5960 = vunpack.c.l.b16 %v5282
    %v5961 = vunpack.c.h.b16 %v5282
    %v5962 = vunpack.c.l.b16 %v5283
    %v5963 = vunpack.c.h.b16 %v5283
    %v5964 = vunpack.c.l.b16 %v5284
    %v5965 = vunpack.c.h.b16 %v5284
    %v5966 = vunpack.c.l.b16 %v5285
    %v5967 = vunpack.c.h.b16 %v5285
    %v5968 = vunpack.c.l.b16 %v5286
    %v5969 = vunpack.c.h.b16 %v5286
    %v5970 = vunpack.c.l.b16 %v5287
    %v5971 = vunpack.c.h.b16 %v5287
    %v5972 = vunpack.c.l.b16 %v5288
    %v5973 = vunpack.c.h.b16 %v5288
    %v5974 = vunpack.c.l.b16 %v5289
    %v5975 = vunpack.c.h.b16 %v5289
    %v5976 = vunpack.c.l.b16 %v5290
    %v5977 = vunpack.c.h.b16 %v5290
    %v5978 = vunpack.c.l.b16 %v5291
    %v5979 = vunpack.c.h.b16 %v5291
    %v5980 = vunpack.c.l.b16 %v5292
    %v5981 = vunpack.c.h.b16 %v5292
    %v5982 = vunpack.c.l.b16 %v5293
    %v5983 = vunpack.c.h.b16 %v5293
    %v5984 = vunpack.c.l.b16 %v5294
    %v5985 = vunpack.c.h.b16 %v5294
    %v5986 = vunpack.c.l.b16 %v5295
    %v5987 = vunpack.c.h.b16 %v5295
    %v5988 = vunpack.c.l.b16 %v5296
    %v5989 = vunpack.c.h.b16 %v5296
    %v5990 = vunpack.c.l.b16 %v5297
    %v5991 = vunpack.c.h.b16 %v5297
    %v5992 = vunpack.c.l.b16 %v5298
    %v5993 = vunpack.c.h.b16 %v5298
    %v5994 = vunpack.c.l.b16 %v5299
    %v5995 = vunpack.c.h.b16 %v5299
    %v5996 = vunpack.c.l.b16 %v5300
    %v5997 = vunpack.c.h.b16 %v5300
    %v5998 = vunpack.c.l.b16 %v5301
    %v5999 = vunpack.c.h.b16 %v5301
    %v6000 = vunpack.c.l.b16 %v5302
    %v6001 = vunpack.c.h.b16 %v5302
    %v6002 = vunpack.c.l.b16 %v5303
    %v6003 = vunpack.c.h.b16 %v5303
    %v6004 = vunpack.c.l.b16 %v5304
    %v6005 = vunpack.c.h.b16 %v5304
    %v6006 = vunpack.c.l.b16 %v5305
    %v6007 = vunpack.c.h.b16 %v5305
    %v6008 = vunpack.c.l.b16 %v5306
    %v6009 = vunpack.c.h.b16 %v5306
    %v6010 = vunpack.c.l.b16 %v5307
    %v6011 = vunpack.c.h.b16 %v5307
    %v6012 = vunpack.c.l.b16 %v5308
    %v6013 = vunpack.c.h.b16 %v5308
    %v6014 = vunpack.c.l.b16 %v5309
    %v6015 = vunpack.c.h.b16 %v5309
    %v6016 = vunpack.c.l.b16 %v5310
    %v6017 = vunpack.c.h.b16 %v5310
    %v6018 = vunpack.c.l.b16 %v5311
    %v6019 = vunpack.c.h.b16 %v5311
    %v6020 = vunpack.c.l.b16 %v5312
    %v6021 = vunpack.c.h.b16 %v5312
    %v6022 = vunpack.c.l.b16 %v5313
    %v6023 = vunpack.c.h.b16 %v5313
    %v6024 = vunpack.c.l.b16 %v5314
    %v6025 = vunpack.c.h.b16 %v5314
    %v6026 = vunpack.c.l.b16 %v5315
    %v6027 = vunpack.c.h.b16 %v5315
    %v6028 = vunpack.c.l.b16 %v5316
    %v6029 = vunpack.c.h.b16 %v5316
    %v6030 = vunpack.c.l.b16 %v5317
    %v6031 = vunpack.c.h.b16 %v5317
    %v6032 = vunpack.c.l.b16 %v5318
    %v6033 = vunpack.c.h.b16 %v5318
    %v6034 = vunpack.c.l.b16 %v5319
    %v6035 = vunpack.c.h.b16 %v5319
    %v6036 = vunpack.c.l.b16 %v5320
    %v6037 = vunpack.c.h.b16 %v5320
    %v6038 = vunpack.c.l.b16 %v5321
    %v6039 = vunpack.c.h.b16 %v5321
    %v6040 = vunpack.c.l.b16 %v5322
    %v6041 = vunpack.c.h.b16 %v5322
    %v6042 = vunpack.c.l.b16 %v5323
    %v6043 = vunpack.c.h.b16 %v5323
    %v6044 = vunpack.c.l.b16 %v5324
    %v6045 = vunpack.c.h.b16 %v5324
    %v6046 = vunpack.c.l.b16 %v5325
    %v6047 = vunpack.c.h.b16 %v5325
    %v6048 = vunpack.c.l.b16 %v5326
    %v6049 = vunpack.c.h.b16 %v5326
    %v6050 = vunpack.c.l.b16 %v5327
    %v6051 = vunpack.c.h.b16 %v5327
    %v6052 = vunpack.c.l.b16 %v5328
    %v6053 = vunpack.c.h.b16 %v5328
    %v6054 = vunpack.c.l.b16 %v5329
    %v6055 = vunpack.c.h.b16 %v5329
    %v6056 = vunpack.c.l.b16 %v5330
    %v6057 = vunpack.c.h.b16 %v5330
    %v6058 = vunpack.c.l.b16 %v5331
    %v6059 = vunpack.c.h.b16 %v5331
    %v6060 = vunpack.c.l.b16 %v5332
    %v6061 = vunpack.c.h.b16 %v5332
    %v6062 = vunpack.c.l.b16 %v5333
    %v6063 = vunpack.c.h.b16 %v5333
    %v6064 = vunpack.c.l.b16 %v5334
    %v6065 = vunpack.c.h.b16 %v5334
    %v6066 = vunpack.c.l.b16 %v5335
    %v6067 = vunpack.c.h.b16 %v5335
    %v6068 = vunpack.c.l.b16 %v5336
    %v6069 = vunpack.c.h.b16 %v5336
    %v6070 = vunpack.c.l.b16 %v5337
    %v6071 = vunpack.c.h.b16 %v5337
    %v6072 = vunpack.c.l.b16 %v5338
    %v6073 = vunpack.c.h.b16 %v5338
    %v6074 = vunpack.c.l.b16 %v5339
    %v6075 = vunpack.c.h.b16 %v5339
    %v6076 = vunpack.c.l.b16 %v5340
    %v6077 = vunpack.c.h.b16 %v5340
    %v6078 = vunpack.c.l.b16 %v5341
    %v6079 = vunpack.c.h.b16 %v5341
    %v6080 = vunpack.c.l.b16 %v5342
    %v6081 = vunpack.c.h.b16 %v5342
    %v6082 = vunpack.c.l.b16 %v5343
    %v6083 = vunpack.c.h.b16 %v5343
    %v6084 = vunpack.c.l.b16 %v5344
    %v6085 = vunpack.c.h.b16 %v5344
    %v6086 = vunpack.c.l.b16 %v5345
    %v6087 = vunpack.c.h.b16 %v5345
    %v6088 = vunpack.c.l.b16 %v5346
    %v6089 = vunpack.c.h.b16 %v5346
    %v6090 = vunpack.c.l.b16 %v5347
    %v6091 = vunpack.c.h.b16 %v5347
    %v6092 = vunpack.c.l.b16 %v5348
    %v6093 = vunpack.c.h.b16 %v5348
    %v6094 = vunpack.c.l.b16 %v5349
    %v6095 = vunpack.c.h.b16 %v5349
    %v6096 = vunpack.c.l.b16 %v5350
    %v6097 = vunpack.c.h.b16 %v5350
    %v6098 = vunpack.c.l.b16 %v5351
    %v6099 = vunpack.c.h.b16 %v5351
    %v6100 = vunpack.c.l.b16 %v5352
    %v6101 = vunpack.c.h.b16 %v5352
    %v6102 = vunpack.c.l.b16 %v5353
    %v6103 = vunpack.c.h.b16 %v5353
    %v6104 = vunpack.c.l.b16 %v5354
    %v6105 = vunpack.c.h.b16 %v5354
    %v6106 = vunpack.c.l.b16 %v5355
    %v6107 = vunpack.c.h.b16 %v5355
    %v6108 = vunpack.c.l.b16 %v5356
    %v6109 = vunpack.c.h.b16 %v5356
    %v6110 = vunpack.c.l.b16 %v5357
    %v6111 = vunpack.c.h.b16 %v5357
    %v6112 = vunpack.c.l.b16 %v5358
    %v6113 = vunpack.c.h.b16 %v5358
    %v6114 = vunpack.c.l.b16 %v5359
    %v6115 = vunpack.c.h.b16 %v5359
    %v6116 = vunpack.c.l.b16 %v5360
    %v6117 = vunpack.c.h.b16 %v5360
    %v6118 = vunpack.c.l.b16 %v5361
    %v6119 = vunpack.c.h.b16 %v5361
    %v6120 = vunpack.c.l.b16 %v5362
    %v6121 = vunpack.c.h.b16 %v5362
    %v6122 = vunpack.c.l.b16 %v5363
    %v6123 = vunpack.c.h.b16 %v5363
    %v6124 = vunpack.c.l.b16 %v5364
    %v6125 = vunpack.c.h.b16 %v5364
    %v6126 = vunpack.c.l.b16 %v5365
    %v6127 = vunpack.c.h.b16 %v5365
    %v6128 = vunpack.c.l.b16 %v5366
    %v6129 = vunpack.c.h.b16 %v5366
    %v6130 = vunpack.c.l.b16 %v5367
    %v6131 = vunpack.c.h.b16 %v5367
    %v6132 = vunpack.c.l.b16 %v5368
    %v6133 = vunpack.c.h.b16 %v5368
    %v6134 = vunpack.c.l.b16 %v5369
    %v6135 = vunpack.c.h.b16 %v5369
    %v6136 = vunpack.c.l.b16 %v5370
    %v6137 = vunpack.c.h.b16 %v5370
    %v6138 = vunpack.c.l.b16 %v5371
    %v6139 = vunpack.c.h.b16 %v5371
    %v6140 = vunpack.c.l.b16 %v5372
    %v6141 = vunpack.c.h.b16 %v5372
    %v6142 = vunpack.c.l.b16 %v5373
    %v6143 = vunpack.c.h.b16 %v5373
    %v6144 = vunpack.c.l.b16 %v5374
    %v6145 = vunpack.c.h.b16 %v5374
    %v6146 = vunpack.c.l.b16 %v5375
    %v6147 = vunpack.c.h.b16 %v5375
    %v6148 = vunpack.c.l.b16 %v5376
    %v6149 = vunpack.c.h.b16 %v5376
    %v6150 = vunpack.c.l.b16 %v5377
    %v6151 = vunpack.c.h.b16 %v5377
    %v6152 = vunpack.c.l.b16 %v5378
    %v6153 = vunpack.c.h.b16 %v5378
    %v6154 = vunpack.c.l.b16 %v5379
    %v6155 = vunpack.c.h.b16 %v5379
    %v6156 = vunpack.c.l.b16 %v5380
    %v6157 = vunpack.c.h.b16 %v5380
    %v6158 = vunpack.c.l.b16 %v5381
    %v6159 = vunpack.c.h.b16 %v5381
    %v6160 = vunpack.c.l.b16 %v5382
    %v6161 = vunpack.c.h.b16 %v5382
    %v6162 = vunpack.c.l.b16 %v5383
    %v6163 = vunpack.c.h.b16 %v5383
    %v6164 = vunpack.c.l.b16 %v5384
    %v6165 = vunpack.c.h.b16 %v5384
    %v6166 = vunpack.c.l.b16 %v5385
    %v6167 = vunpack.c.h.b16 %v5385
    %v6168 = vunpack.c.l.b16 %v5386
    %v6169 = vunpack.c.h.b16 %v5386
    %v6170 = vunpack.c.l.b16 %v5387
    %v6171 = vunpack.c.h.b16 %v5387
    %v6172 = vunpack.c.l.b16 %v5388
    %v6173 = vunpack.c.h.b16 %v5388
    %v6174 = vunpack.c.l.b16 %v5389
    %v6175 = vunpack.c.h.b16 %v5389
    %v6176 = vunpack.c.l.b16 %v5390
    %v6177 = vunpack.c.h.b16 %v5390
    %v6178 = vunpack.c.l.b16 %v5391
    %v6179 = vunpack.c.h.b16 %v5391
    %v6180 = vunpack.c.l.b16 %v5392
    %v6181 = vunpack.c.h.b16 %v5392
    %v6182 = vunpack.c.l.b16 %v5393
    %v6183 = vunpack.c.h.b16 %v5393
    %v6184 = vunpack.c.l.b16 %v5394
    %v6185 = vunpack.c.h.b16 %v5394
    %v6186 = vunpack.c.l.b16 %v5395
    %v6187 = vunpack.c.h.b16 %v5395
    %v6188 = vunpack.c.l.b16 %v5396
    %v6189 = vunpack.c.h.b16 %v5396
    %v6190 = vunpack.c.l.b16 %v5397
    %v6191 = vunpack.c.h.b16 %v5397
    %v6192 = vunpack.c.l.b16 %v5398
    %v6193 = vunpack.c.h.b16 %v5398
    %v6194 = vunpack.c.l.b16 %v5399
    %v6195 = vunpack.c.h.b16 %v5399
    %v6196 = vunpack.c.l.b16 %v5400
    %v6197 = vunpack.c.h.b16 %v5400
    %v6198 = vunpack.c.l.b16 %v5401
    %v6199 = vunpack.c.h.b16 %v5401
    %v6200 = vunpack.c.l.b16 %v5402
    %v6201 = vunpack.c.h.b16 %v5402
    %v6202 = vunpack.c.l.b16 %v5403
    %v6203 = vunpack.c.h.b16 %v5403
    %v6204 = vunpack.c.l.b16 %v5404
    %v6205 = vunpack.c.h.b16 %v5404
    %v6206 = vunpack.c.l.b16 %v5405
    %v6207 = vunpack.c.h.b16 %v5405
    %v6208 = vunpack.c.l.b16 %v5406
    %v6209 = vunpack.c.h.b16 %v5406
    %v6210 = vunpack.c.l.b16 %v5407
    %v6211 = vunpack.c.h.b16 %v5407
    %v6212 = vunpack.c.l.b16 %v5408
    %v6213 = vunpack.c.h.b16 %v5408
    %v6214 = vunpack.c.l.b16 %v5409
    %v6215 = vunpack.c.h.b16 %v5409
    %v6216 = vunpack.c.l.b16 %v5410
    %v6217 = vunpack.c.h.b16 %v5410
    %v6218 = vunpack.c.l.b16 %v5411
    %v6219 = vunpack.c.h.b16 %v5411
    %v6220 = vunpack.c.l.b16 %v5412
    %v6221 = vunpack.c.h.b16 %v5412
    %v6222 = vunpack.c.l.b16 %v5413
    %v6223 = vunpack.c.h.b16 %v5413
    %v6224 = vunpack.c.l.b16 %v5414
    %v6225 = vunpack.c.h.b16 %v5414
    %v6226 = vunpack.c.l.b16 %v5415
    %v6227 = vunpack.c.h.b16 %v5415
    %v6228 = vunpack.c.l.b16 %v5416
    %v6229 = vunpack.c.h.b16 %v5416
    %v6230 = vunpack.c.l.b16 %v5417
    %v6231 = vunpack.c.h.b16 %v5417
    %v6232 = vunpack.c.l.b16 %v5418
    %v6233 = vunpack.c.h.b16 %v5418
    %v6234 = vunpack.c.l.b16 %v5419
    %v6235 = vunpack.c.h.b16 %v5419
    %v6236 = vunpack.c.l.b16 %v5420
    %v6237 = vunpack.c.h.b16 %v5420
    %v6238 = vunpack.c.l.b16 %v5421
    %v6239 = vunpack.c.h.b16 %v5421
    %v6240 = vunpack.c.l.b16 %v5422
    %v6241 = vunpack.c.h.b16 %v5422
    %v6242 = vunpack.c.l.b16 %v5423
    %v6243 = vunpack.c.h.b16 %v5423
    %v6244 = vunpack.c.l.b16 %v5424
    %v6245 = vunpack.c.h.b16 %v5424
    %v6246 = vunpack.c.l.b16 %v5425
    %v6247 = vunpack.c.h.b16 %v5425
    %v6248 = vunpack.c.l.b16 %v5426
    %v6249 = vunpack.c.h.b16 %v5426
    %v6250 = vunpack.c.l.b16 %v5427
    %v6251 = vunpack.c.h.b16 %v5427
    %v6252 = vunpack.c.l.b16 %v5428
    %v6253 = vunpack.c.h.b16 %v5428
    %v6254 = vunpack.c.l.b16 %v5429
    %v6255 = vunpack.c.h.b16 %v5429
    %v6256 = vunpack.c.l.b16 %v5430
    %v6257 = vunpack.c.h.b16 %v5430
    %v6258 = vunpack.c.l.b16 %v5431
    %v6259 = vunpack.c.h.b16 %v5431
    %v6260 = vunpack.c.l.b16 %v5432
    %v6261 = vunpack.c.h.b16 %v5432
    %v6262 = vunpack.c.l.b16 %v5433
    %v6263 = vunpack.c.h.b16 %v5433
    %v6264 = vunpack.c.l.b16 %v5434
    %v6265 = vunpack.c.h.b16 %v5434
    %v6266 = vunpack.c.l.b16 %v5435
    %v6267 = vunpack.c.h.b16 %v5435
    %v6268 = vunpack.c.l.b16 %v5436
    %v6269 = vunpack.c.h.b16 %v5436
    %v6270 = vunpack.c.l.b16 %v5437
    %v6271 = vunpack.c.h.b16 %v5437
    %v6272 = vunpack.c.l.b16 %v5438
    %v6273 = vunpack.c.h.b16 %v5438
    %v6274 = vunpack.c.l.b16 %v5439
    %v6275 = vunpack.c.h.b16 %v5439
    %v6276 = vunpack.c.l.b16 %v5440
    %v6277 = vunpack.c.h.b16 %v5440
    %v6278 = vunpack.c.l.b16 %v5441
    %v6279 = vunpack.c.h.b16 %v5441
    %v6280 = vunpack.c.l.b16 %v5442
    %v6281 = vunpack.c.h.b16 %v5442
    %v6282 = vunpack.c.l.b16 %v5443
    %v6283 = vunpack.c.h.b16 %v5443
    %v6284 = vunpack.c.l.b16 %v5444
    %v6285 = vunpack.c.h.b16 %v5444
    %v6286 = vunpack.c.l.b16 %v5445
    %v6287 = vunpack.c.h.b16 %v5445
    %v6288 = vunpack.c.l.b16 %v5446
    %v6289 = vunpack.c.h.b16 %v5446
    %v6290 = vunpack.c.l.b16 %v5447
    %v6291 = vunpack.c.h.b16 %v5447
    %v6292 = vunpack.c.l.b16 %v5448
    %v6293 = vunpack.c.h.b16 %v5448
    %v6294 = vunpack.c.l.b16 %v5449
    %v6295 = vunpack.c.h.b16 %v5449
    %v6296 = vunpack.c.l.b16 %v5450
    %v6297 = vunpack.c.h.b16 %v5450
    %v6298 = vunpack.c.l.b16 %v5451
    %v6299 = vunpack.c.h.b16 %v5451
    %v6300 = vunpack.c.l.b16 %v5452
    %v6301 = vunpack.c.h.b16 %v5452
    %v6302 = vunpack.c.l.b16 %v5453
    %v6303 = vunpack.c.h.b16 %v5453
    %v6304 = vunpack.c.l.b16 %v5454
    %v6305 = vunpack.c.h.b16 %v5454
    %v6306 = vunpack.c.l.b16 %v5455
    %v6307 = vunpack.c.h.b16 %v5455
    %v6308 = vunpack.c.l.b16 %v5456
    %v6309 = vunpack.c.h.b16 %v5456
    %v6310 = vunpack.c.l.b16 %v5457
    %v6311 = vunpack.c.h.b16 %v5457
    %v6312 = vunpack.c.l.b16 %v5458
    %v6313 = vunpack.c.h.b16 %v5458
    %v6314 = vunpack.c.l.b16 %v5459
    %v6315 = vunpack.c.h.b16 %v5459
    %v6316 = vunpack.c.l.b16 %v5460
    %v6317 = vunpack.c.h.b16 %v5460
    %v6318 = vunpack.c.l.b16 %v5461
    %v6319 = vunpack.c.h.b16 %v5461
    %v6320 = vunpack.c.l.b16 %v5462
    %v6321 = vunpack.c.h.b16 %v5462
    %v6322 = vunpack.c.l.b16 %v5463
    %v6323 = vunpack.c.h.b16 %v5463
    %v6324 = vunpack.c.l.b16 %v5464
    %v6325 = vunpack.c.h.b16 %v5464
    %v6326 = vunpack.c.l.b16 %v5465
    %v6327 = vunpack.c.h.b16 %v5465
    %v6328 = vunpack.c.l.b16 %v5466
    %v6329 = vunpack.c.h.b16 %v5466
    %v6330 = vunpack.c.l.b16 %v5467
    %v6331 = vunpack.c.h.b16 %v5467
    %v6332 = vunpack.c.l.b16 %v5468
    %v6333 = vunpack.c.h.b16 %v5468
    %v6334 = vunpack.c.l.b16 %v5469
    %v6335 = vunpack.c.h.b16 %v5469
    %v6336 = vunpack.c.l.b16 %v5470
    %v6337 = vunpack.c.h.b16 %v5470
    %v6338 = vunpack.c.l.b16 %v5471
    %v6339 = vunpack.c.h.b16 %v5471
    %v6340 = vunpack.c.l.b16 %v5472
    %v6341 = vunpack.c.h.b16 %v5472
    %v6342 = vunpack.c.l.b16 %v5473
    %v6343 = vunpack.c.h.b16 %v5473
    %v6344 = vunpack.c.l.b16 %v5474
    %v6345 = vunpack.c.h.b16 %v5474
    %v6346 = vunpack.c.l.b16 %v5475
    %v6347 = vunpack.c.h.b16 %v5475
    %v6348 = vunpack.c.l.b16 %v5476
    %v6349 = vunpack.c.h.b16 %v5476
    %v6350 = vunpack.c.l.b16 %v5477
    %v6351 = vunpack.c.h.b16 %v5477
    %v6352 = vunpack.c.l.b16 %v5478
    %v6353 = vunpack.c.h.b16 %v5478
    %v6354 = vunpack.c.l.b16 %v5479
    %v6355 = vunpack.c.h.b16 %v5479
    %v6356 = vunpack.c.l.b16 %v5480
    %v6357 = vunpack.c.h.b16 %v5480
    %v6358 = vunpack.c.l.b16 %v5481
    %v6359 = vunpack.c.h.b16 %v5481
    %v6360 = vunpack.c.l.b16 %v5482
    %v6361 = vunpack.c.h.b16 %v5482
    %v6362 = vunpack.c.l.b16 %v5483
    %v6363 = vunpack.c.h.b16 %v5483
    %v6364 = vunpack.c.l.b16 %v5484
    %v6365 = vunpack.c.h.b16 %v5484
    %v6366 = vunpack.c.l.b16 %v5485
    %v6367 = vunpack.c.h.b16 %v5485
    %v6368 = vunpack.c.l.b16 %v5486
    %v6369 = vunpack.c.h.b16 %v5486
    %v6370 = vunpack.c.l.b16 %v5487
    %v6371 = vunpack.c.h.b16 %v5487
    %v6372 = vunpack.c.l.b16 %v5488
    %v6373 = vunpack.c.h.b16 %v5488
    %v6374 = vunpack.c.l.b16 %v5489
    %v6375 = vunpack.c.h.b16 %v5489
    %v6376 = vunpack.c.l.b16 %v5490
    %v6377 = vunpack.c.h.b16 %v5490
    %v6378 = vunpack.c.l.b16 %v5491
    %v6379 = vunpack.c.h.b16 %v5491
    %v6380 = vunpack.c.l.b16 %v5492
    %v6381 = vunpack.c.h.b16 %v5492
    %v6382 = vunpack.c.l.b16 %v5493
    %v6383 = vunpack.c.h.b16 %v5493
    %v6384 = vunpack.c.l.b16 %v5494
    %v6385 = vunpack.c.h.b16 %v5494
    %v6386 = vunpack.c.l.b16 %v5495
    %v6387 = vunpack.c.h.b16 %v5495
    %v6388 = vunpack.c.l.b16 %v5496
    %v6389 = vunpack.c.h.b16 %v5496
    %v6390 = vpack.c.b16 %v5880, %v5878
    %v6391 = vpack.c.b16 %v5881, %v5879
    %v6392 = vpack.c.b16 %v5884, %v5882
    %v6393 = vpack.c.b16 %v5885, %v5883
    %v6394 = vpack.c.b16 %v5888, %v5886
    %v6395 = vpack.c.b16 %v5889, %v5887
    %v6396 = vpack.c.b16 %v5892, %v5890
    %v6397 = vpack.c.b16 %v5893, %v5891
    %v6398 = vpack.c.b16 %v5896, %v5894
    %v6399 = vpack.c.b16 %v5897, %v5895
    %v6400 = vpack.c.b16 %v5900, %v5898
    %v6401 = vpack.c.b16 %v5901, %v5899
    %v6402 = vpack.c.b16 %v5904, %v5902
    %v6403 = vpack.c.b16 %v5905, %v5903
    %v6404 = vpack.c.b16 %v5908, %v5906
    %v6405 = vpack.c.b16 %v5909, %v5907
    %v6406 = vpack.c.b16 %v5912, %v5910
    %v6407 = vpack.c.b16 %v5913, %v5911
    %v6408 = vpack.c.b16 %v5916, %v5914
    %v6409 = vpack.c.b16 %v5917, %v5915
    %v6410 = vpack.c.b16 %v5920, %v5918
    %v6411 = vpack.c.b16 %v5921, %v5919
    %v6412 = vpack.c.b16 %v5924, %v5922
    %v6413 = vpack.c.b16 %v5925, %v5923
    %v6414 = vpack.c.b16 %v5928, %v5926
    %v6415 = vpack.c.b16 %v5929, %v5927
    %v6416 = vpack.c.b16 %v5932, %v5930
    %v6417 = vpack.c.b16 %v5933, %v5931
    %v6418 = vpack.c.b16 %v5936, %v5934
    %v6419 = vpack.c.b16 %v5937, %v5935
    %v6420 = vpack.c.b16 %v5940, %v5938
    %v6421 = vpack.c.b16 %v5941, %v5939
    %v6422 = vpack.c.b16 %v5944, %v5942
    %v6423 = vpack.c.b16 %v5945, %v5943
    %v6424 = vpack.c.b16 %v5948, %v5946
    %v6425 = vpack.c.b16 %v5949, %v5947
    %v6426 = vpack.c.b16 %v5952, %v5950
    %v6427 = vpack.c.b16 %v5953, %v5951
    %v6428 = vpack.c.b16 %v5956, %v5954
    %v6429 = vpack.c.b16 %v5957, %v5955
    %v6430 = vpack.c.b16 %v5960, %v5958
    %v6431 = vpack.c.b16 %v5961, %v5959
    %v6432 = vpack.c.b16 %v5964, %v5962
    %v6433 = vpack.c.b16 %v5965, %v5963
    %v6434 = vpack.c.b16 %v5968, %v5966
    %v6435 = vpack.c.b16 %v5969, %v5967
    %v6436 = vpack.c.b16 %v5972, %v5970
    %v6437 = vpack.c.b16 %v5973, %v5971
    %v6438 = vpack.c.b16 %v5976, %v5974
    %v6439 = vpack.c.b16 %v5977, %v5975
    %v6440 = vpack.c.b16 %v5980, %v5978
    %v6441 = vpack.c.b16 %v5981, %v5979
    %v6442 = vpack.c.b16 %v5984, %v5982
    %v6443 = vpack.c.b16 %v5985, %v5983
    %v6444 = vpack.c.b16 %v5988, %v5986
    %v6445 = vpack.c.b16 %v5989, %v5987
    %v6446 = vpack.c.b16 %v5992, %v5990
    %v6447 = vpack.c.b16 %v5993, %v5991
    %v6448 = vpack.c.b16 %v5996, %v5994
    %v6449 = vpack.c.b16 %v5997, %v5995
    %v6450 = vpack.c.b16 %v6000, %v5998
    %v6451 = vpack.c.b16 %v6001, %v5999
    %v6452 = vpack.c.b16 %v6004, %v6002
    %v6453 = vpack.c.b16 %v6005, %v6003
    %v6454 = vpack.c.b16 %v6008, %v6006
    %v6455 = vpack.c.b16 %v6009, %v6007
    %v6456 = vpack.c.b16 %v6012, %v6010
    %v6457 = vpack.c.b16 %v6013, %v6011
    %v6458 = vpack.c.b16 %v6016, %v6014
    %v6459 = vpack.c.b16 %v6017, %v6015
    %v6460 = vpack.c.b16 %v6020, %v6018
    %v6461 = vpack.c.b16 %v6021, %v6019
    %v6462 = vpack.c.b16 %v6024, %v6022
    %v6463 = vpack.c.b16 %v6025, %v6023
    %v6464 = vpack.c.b16 %v6028, %v6026
    %v6465 = vpack.c.b16 %v6029, %v6027
    %v6466 = vpack.c.b16 %v6032, %v6030
    %v6467 = vpack.c.b16 %v6033, %v6031
    %v6468 = vpack.c.b16 %v6036, %v6034
    %v6469 = vpack.c.b16 %v6037, %v6035
    %v6470 = vpack.c.b16 %v6040, %v6038
    %v6471 = vpack.c.b16 %v6041, %v6039
    %v6472 = vpack.c.b16 %v6044, %v6042
    %v6473 = vpack.c.b16 %v6045, %v6043
    %v6474 = vpack.c.b16 %v6048, %v6046
    %v6475 = vpack.c.b16 %v6049, %v6047
    %v6476 = vpack.c.b16 %v6052, %v6050
    %v6477 = vpack.c.b16 %v6053, %v6051
    %v6478 = vpack.c.b16 %v6056, %v6054
    %v6479 = vpack.c.b16 %v6057, %v6055
    %v6480 = vpack.c.b16 %v6060, %v6058
    %v6481 = vpack.c.b16 %v6061, %v6059
    %v6482 = vpack.c.b16 %v6064, %v6062
    %v6483 = vpack.c.b16 %v6065, %v6063
    %v6484 = vpack.c.b16 %v6068, %v6066
    %v6485 = vpack.c.b16 %v6069, %v6067
    %v6486 = vpack.c.b16 %v6072, %v6070
    %v6487 = vpack.c.b16 %v6073, %v6071
    %v6488 = vpack.c.b16 %v6076, %v6074
    %v6489 = vpack.c.b16 %v6077, %v6075
    %v6490 = vpack.c.b16 %v6080, %v6078
    %v6491 = vpack.c.b16 %v6081, %v6079
    %v6492 = vpack.c.b16 %v6084, %v6082
    %v6493 = vpack.c.b16 %v6085, %v6083
    %v6494 = vpack.c.b16 %v6088, %v6086
    %v6495 = vpack.c.b16 %v6089, %v6087
    %v6496 = vpack.c.b16 %v6092, %v6090
    %v6497 = vpack.c.b16 %v6093, %v6091
    %v6498 = vpack.c.b16 %v6096, %v6094
    %v6499 = vpack.c.b16 %v6097, %v6095
    %v6500 = vpack.c.b16 %v6100, %v6098
    %v6501 = vpack.c.b16 %v6101, %v6099
    %v6502 = vpack.c.b16 %v6104, %v6102
    %v6503 = vpack.c.b16 %v6105, %v6103
    %v6504 = vpack.c.b16 %v6108, %v6106
    %v6505 = vpack.c.b16 %v6109, %v6107
    %v6506 = vpack.c.b16 %v6112, %v6110
    %v6507 = vpack.c.b16 %v6113, %v6111
    %v6508 = vpack.c.b16 %v6116, %v6114
    %v6509 = vpack.c.b16 %v6117, %v6115
    %v6510 = vpack.c.b16 %v6120, %v6118
    %v6511 = vpack.c.b16 %v6121, %v6119
    %v6512 = vpack.c.b16 %v6124, %v6122
    %v6513 = vpack.c.b16 %v6125, %v6123
    %v6514 = vpack.c.b16 %v6128, %v6126
    %v6515 = vpack.c.b16 %v6129, %v6127
    %v6516 = vpack.c.b16 %v6132, %v6130
    %v6517 = vpack.c.b16 %v6133, %v6131
    %v6518 = vpack.c.b16 %v6136, %v6134
    %v6519 = vpack.c.b16 %v6137, %v6135
    %v6520 = vpack.c.b16 %v6140, %v6138
    %v6521 = vpack.c.b16 %v6141, %v6139
    %v6522 = vpack.c.b16 %v6144, %v6142
    %v6523 = vpack.c.b16 %v6145, %v6143
    %v6524 = vpack.c.b16 %v6148, %v6146
    %v6525 = vpack.c.b16 %v6149, %v6147
    %v6526 = vpack.c.b16 %v6152, %v6150
    %v6527 = vpack.c.b16 %v6153, %v6151
    %v6528 = vpack.c.b16 %v6156, %v6154
    %v6529 = vpack.c.b16 %v6157, %v6155
    %v6530 = vpack.c.b16 %v6160, %v6158
    %v6531 = vpack.c.b16 %v6161, %v6159
    %v6532 = vpack.c.b16 %v6164, %v6162
    %v6533 = vpack.c.b16 %v6165, %v6163
    %v6534 = vpack.c.b16 %v6168, %v6166
    %v6535 = vpack.c.b16 %v6169, %v6167
    %v6536 = vpack.c.b16 %v6172, %v6170
    %v6537 = vpack.c.b16 %v6173, %v6171
    %v6538 = vpack.c.b16 %v6176, %v6174
    %v6539 = vpack.c.b16 %v6177, %v6175
    %v6540 = vpack.c.b16 %v6180, %v6178
    %v6541 = vpack.c.b16 %v6181, %v6179
    %v6542 = vpack.c.b16 %v6184, %v6182
    %v6543 = vpack.c.b16 %v6185, %v6183
    %v6544 = vpack.c.b16 %v6188, %v6186
    %v6545 = vpack.c.b16 %v6189, %v6187
    %v6546 = vpack.c.b16 %v6192, %v6190
    %v6547 = vpack.c.b16 %v6193, %v6191
    %v6548 = vpack.c.b16 %v6196, %v6194
    %v6549 = vpack.c.b16 %v6197, %v6195
    %v6550 = vpack.c.b16 %v6200, %v6198
    %v6551 = vpack.c.b16 %v6201, %v6199
    %v6552 = vpack.c.b16 %v6204, %v6202
    %v6553 = vpack.c.b16 %v6205, %v6203
    %v6554 = vpack.c.b16 %v6208, %v6206
    %v6555 = vpack.c.b16 %v6209, %v6207
    %v6556 = vpack.c.b16 %v6212, %v6210
    %v6557 = vpack.c.b16 %v6213, %v6211
    %v6558 = vpack.c.b16 %v6216, %v6214
    %v6559 = vpack.c.b16 %v6217, %v6215
    %v6560 = vpack.c.b16 %v6220, %v6218
    %v6561 = vpack.c.b16 %v6221, %v6219
    %v6562 = vpack.c.b16 %v6224, %v6222
    %v6563 = vpack.c.b16 %v6225, %v6223
    %v6564 = vpack.c.b16 %v6228, %v6226
    %v6565 = vpack.c.b16 %v6229, %v6227
    %v6566 = vpack.c.b16 %v6232, %v6230
    %v6567 = vpack.c.b16 %v6233, %v6231
    %v6568 = vpack.c.b16 %v6236, %v6234
    %v6569 = vpack.c.b16 %v6237, %v6235
    %v6570 = vpack.c.b16 %v6240, %v6238
    %v6571 = vpack.c.b16 %v6241, %v6239
    %v6572 = vpack.c.b16 %v6244, %v6242
    %v6573 = vpack.c.b16 %v6245, %v6243
    %v6574 = vpack.c.b16 %v6248, %v6246
    %v6575 = vpack.c.b16 %v6249, %v6247
    %v6576 = vpack.c.b16 %v6252, %v6250
    %v6577 = vpack.c.b16 %v6253, %v6251
    %v6578 = vpack.c.b16 %v6256, %v6254
    %v6579 = vpack.c.b16 %v6257, %v6255
    %v6580 = vpack.c.b16 %v6260, %v6258
    %v6581 = vpack.c.b16 %v6261, %v6259
    %v6582 = vpack.c.b16 %v6264, %v6262
    %v6583 = vpack.c.b16 %v6265, %v6263
    %v6584 = vpack.c.b16 %v6268, %v6266
    %v6585 = vpack.c.b16 %v6269, %v6267
    %v6586 = vpack.c.b16 %v6272, %v6270
    %v6587 = vpack.c.b16 %v6273, %v6271
    %v6588 = vpack.c.b16 %v6276, %v6274
    %v6589 = vpack.c.b16 %v6277, %v6275
    %v6590 = vpack.c.b16 %v6280, %v6278
    %v6591 = vpack.c.b16 %v6281, %v6279
    %v6592 = vpack.c.b16 %v6284, %v6282
    %v6593 = vpack.c.b16 %v6285, %v6283
    %v6594 = vpack.c.b16 %v6288, %v6286
    %v6595 = vpack.c.b16 %v6289, %v6287
    %v6596 = vpack.c.b16 %v6292, %v6290
    %v6597 = vpack.c.b16 %v6293, %v6291
    %v6598 = vpack.c.b16 %v6296, %v6294
    %v6599 = vpack.c.b16 %v6297, %v6295
    %v6600 = vpack.c.b16 %v6300, %v6298
    %v6601 = vpack.c.b16 %v6301, %v6299
    %v6602 = vpack.c.b16 %v6304, %v6302
    %v6603 = vpack.c.b16 %v6305, %v6303
    %v6604 = vpack.c.b16 %v6308, %v6306
    %v6605 = vpack.c.b16 %v6309, %v6307
    %v6606 = vpack.c.b16 %v6312, %v6310
    %v6607 = vpack.c.b16 %v6313, %v6311
    %v6608 = vpack.c.b16 %v6316, %v6314
    %v6609 = vpack.c.b16 %v6317, %v6315
    %v6610 = vpack.c.b16 %v6320, %v6318
    %v6611 = vpack.c.b16 %v6321, %v6319
    %v6612 = vpack.c.b16 %v6324, %v6322
    %v6613 = vpack.c.b16 %v6325, %v6323
    %v6614 = vpack.c.b16 %v6328, %v6326
    %v6615 = vpack.c.b16 %v6329, %v6327
    %v6616 = vpack.c.b16 %v6332, %v6330
    %v6617 = vpack.c.b16 %v6333, %v6331
    %v6618 = vpack.c.b16 %v6336, %v6334
    %v6619 = vpack.c.b16 %v6337, %v6335
    %v6620 = vpack.c.b16 %v6340, %v6338
    %v6621 = vpack.c.b16 %v6341, %v6339
    %v6622 = vpack.c.b16 %v6344, %v6342
    %v6623 = vpack.c.b16 %v6345, %v6343
    %v6624 = vpack.c.b16 %v6348, %v6346
    %v6625 = vpack.c.b16 %v6349, %v6347
    %v6626 = vpack.c.b16 %v6352, %v6350
    %v6627 = vpack.c.b16 %v6353, %v6351
    %v6628 = vpack.c.b16 %v6356, %v6354
    %v6629 = vpack.c.b16 %v6357, %v6355
    %v6630 = vpack.c.b16 %v6360, %v6358
    %v6631 = vpack.c.b16 %v6361, %v6359
    %v6632 = vpack.c.b16 %v6364, %v6362
    %v6633 = vpack.c.b16 %v6365, %v6363
    %v6634 = vpack.c.b16 %v6368, %v6366
    %v6635 = vpack.c.b16 %v6369, %v6367
    %v6636 = vpack.c.b16 %v6372, %v6370
    %v6637 = vpack.c.b16 %v6373, %v6371
    %v6638 = vpack.c.b16 %v6376, %v6374
    %v6639 = vpack.c.b16 %v6377, %v6375
    %v6640 = vpack.c.b16 %v6380, %v6378
    %v6641 = vpack.c.b16 %v6381, %v6379
    %v6642 = vpack.c.b16 %v6384, %v6382
    %v6643 = vpack.c.b16 %v6385, %v6383
    %v6644 = vpack.c.b16 %v6388, %v6386
    %v6645 = vpack.c.b16 %v6389, %v6387
    %6902 = vmatprep.subr.bf16.mxu0 %v6391
    %6903 = vmatpush1.bf16.msra.mxu0 %v6390
    %6904 = vmatprep.subr.bf16.mxu0 %v6393
    %6905 = vmatpush1.bf16.msra.mxu0 %v6392
    %6906 = vmatprep.subr.bf16.mxu0 %v6395
    %6907 = vmatpush1.bf16.msra.mxu0 %v6394
    %6908 = vmatprep.subr.bf16.mxu0 %v6397
    %6909 = vmatpush1.bf16.msra.mxu0 %v6396
    %6910 = vmatprep.subr.bf16.mxu0 %v6399
    %6911 = vmatpush1.bf16.msra.mxu0 %v6398
    %6912 = vmatprep.subr.bf16.mxu0 %v6401
    %6913 = vmatpush1.bf16.msra.mxu0 %v6400
    %6914 = vmatprep.subr.bf16.mxu0 %v6403
    %6915 = vmatpush1.bf16.msra.mxu0 %v6402
    %6916 = vmatprep.subr.bf16.mxu0 %v6405
    %6917 = vmatpush1.bf16.msra.mxu0 %v6404
    %6918 = vmatprep.subr.bf16.mxu0 %v6407
    %6919 = vmatpush1.bf16.msra.mxu0 %v6406
    %6920 = vmatprep.subr.bf16.mxu0 %v6409
    %6921 = vmatpush1.bf16.msra.mxu0 %v6408
    %6922 = vmatprep.subr.bf16.mxu0 %v6411
    %6923 = vmatpush1.bf16.msra.mxu0 %v6410
    %6924 = vmatprep.subr.bf16.mxu0 %v6413
    %6925 = vmatpush1.bf16.msra.mxu0 %v6412
    %6926 = vmatprep.subr.bf16.mxu0 %v6415
    %6927 = vmatpush1.bf16.msra.mxu0 %v6414
    %6928 = vmatprep.subr.bf16.mxu0 %v6417
    %6929 = vmatpush1.bf16.msra.mxu0 %v6416
    %6930 = vmatprep.subr.bf16.mxu0 %v6419
    %6931 = vmatpush1.bf16.msra.mxu0 %v6418
    %6932 = vmatprep.subr.bf16.mxu0 %v6421
    %6933 = vmatpush1.bf16.msra.mxu0 %v6420
    %6934 = vmatprep.mubr.bf16.mxu0 %v5591
    %6935 = vmatmul.mubr.bf16.gmra.mrb[0].mxu0 %v5590
    %v6936 = vpop.f32.mrb[0].mxu0
    %v6937 = vadd.f32 %v5503, %v6936
    %v6938 = vpop.f32.mrb[0].mxu0
    %v6939 = vadd.f32 %v5507, %v6938
    %v6940 = vpop.f32.mrb[0].mxu0
    %v6941 = vpop.f32.mrb[0].mxu0
    %6942 = vdwg.mxu0
    %6943 = vmatprep.subr.bf16.mxu0 %v6423
    %6944 = vmatpush1.bf16.msra.mxu0 %v6422
    %6945 = vmatprep.subr.bf16.mxu0 %v6425
    %6946 = vmatpush1.bf16.msra.mxu0 %v6424
    %6947 = vmatprep.subr.bf16.mxu0 %v6427
    %6948 = vmatpush1.bf16.msra.mxu0 %v6426
    %6949 = vmatprep.subr.bf16.mxu0 %v6429
    %6950 = vmatpush1.bf16.msra.mxu0 %v6428
    %6951 = vmatprep.subr.bf16.mxu0 %v6431
    %6952 = vmatpush1.bf16.msra.mxu0 %v6430
    %6953 = vmatprep.subr.bf16.mxu0 %v6433
    %6954 = vmatpush1.bf16.msra.mxu0 %v6432
    %6955 = vmatprep.subr.bf16.mxu0 %v6435
    %6956 = vmatpush1.bf16.msra.mxu0 %v6434
    %6957 = vmatprep.subr.bf16.mxu0 %v6437
    %6958 = vmatpush1.bf16.msra.mxu0 %v6436
    %6959 = vmatprep.subr.bf16.mxu0 %v6439
    %6960 = vmatpush1.bf16.msra.mxu0 %v6438
    %6961 = vmatprep.subr.bf16.mxu0 %v6441
    %6962 = vmatpush1.bf16.msra.mxu0 %v6440
    %6963 = vmatprep.subr.bf16.mxu0 %v6443
    %6964 = vmatpush1.bf16.msra.mxu0 %v6442
    %6965 = vmatprep.subr.bf16.mxu0 %v6445
    %6966 = vmatpush1.bf16.msra.mxu0 %v6444
    %6967 = vmatprep.subr.bf16.mxu0 %v6447
    %6968 = vmatpush1.bf16.msra.mxu0 %v6446
    %6969 = vmatprep.subr.bf16.mxu0 %v6449
    %6970 = vmatpush1.bf16.msra.mxu0 %v6448
    %6971 = vmatprep.subr.bf16.mxu0 %v6451
    %6972 = vmatpush1.bf16.msra.mxu0 %v6450
    %6973 = vmatprep.subr.bf16.mxu0 %v6453
    %6974 = vmatpush1.bf16.msra.mxu0 %v6452
    %6975 = vmatprep.mubr.bf16.mxu0 %v5593
    %6976 = vmatmul.mubr.bf16.gmra.mrb[0].mxu0 %v5592
    %v6977 = vpop.f32.mrb[0].mxu0
    %v6978 = vadd.f32 %v6937, %v6977
    %v6979 = vpop.f32.mrb[0].mxu0
    %v6980 = vadd.f32 %v6939, %v6979
    %v6981 = vpop.f32.mrb[0].mxu0
    %v6982 = vpop.f32.mrb[0].mxu0
    %6983 = vdwg.mxu0
    %6984 = vmatprep.subr.bf16.mxu0 %v6455
    %6985 = vmatpush1.bf16.msra.mxu0 %v6454
    %6986 = vmatprep.subr.bf16.mxu0 %v6457
    %6987 = vmatpush1.bf16.msra.mxu0 %v6456
    %6988 = vmatprep.subr.bf16.mxu0 %v6459
    %6989 = vmatpush1.bf16.msra.mxu0 %v6458
    %6990 = vmatprep.subr.bf16.mxu0 %v6461
    %6991 = vmatpush1.bf16.msra.mxu0 %v6460
    %6992 = vmatprep.subr.bf16.mxu0 %v6463
    %6993 = vmatpush1.bf16.msra.mxu0 %v6462
    %6994 = vmatprep.subr.bf16.mxu0 %v6465
    %6995 = vmatpush1.bf16.msra.mxu0 %v6464
    %6996 = vmatprep.subr.bf16.mxu0 %v6467
    %6997 = vmatpush1.bf16.msra.mxu0 %v6466
    %6998 = vmatprep.subr.bf16.mxu0 %v6469
    %6999 = vmatpush1.bf16.msra.mxu0 %v6468
    %7000 = vmatprep.subr.bf16.mxu0 %v6471
    %7001 = vmatpush1.bf16.msra.mxu0 %v6470
    %7002 = vmatprep.subr.bf16.mxu0 %v6473
    %7003 = vmatpush1.bf16.msra.mxu0 %v6472
    %7004 = vmatprep.subr.bf16.mxu0 %v6475
    %7005 = vmatpush1.bf16.msra.mxu0 %v6474
    %7006 = vmatprep.subr.bf16.mxu0 %v6477
    %7007 = vmatpush1.bf16.msra.mxu0 %v6476
    %7008 = vmatprep.subr.bf16.mxu0 %v6479
    %7009 = vmatpush1.bf16.msra.mxu0 %v6478
    %7010 = vmatprep.subr.bf16.mxu0 %v6481
    %7011 = vmatpush1.bf16.msra.mxu0 %v6480
    %7012 = vmatprep.subr.bf16.mxu0 %v6483
    %7013 = vmatpush1.bf16.msra.mxu0 %v6482
    %7014 = vmatprep.subr.bf16.mxu0 %v6485
    %7015 = vmatpush1.bf16.msra.mxu0 %v6484
    %7016 = vmatprep.mubr.bf16.mxu0 %v5595
    %7017 = vmatmul.mubr.bf16.gmra.mrb[0].mxu0 %v5594
    %v7018 = vpop.f32.mrb[0].mxu0
    %v7019 = vadd.f32 %v6978, %v7018
    %v7020 = vpop.f32.mrb[0].mxu0
    %v7021 = vadd.f32 %v6980, %v7020
    %v7022 = vpop.f32.mrb[0].mxu0
    %v7023 = vpop.f32.mrb[0].mxu0
    %7024 = vdwg.mxu0
    %7025 = vmatprep.subr.bf16.mxu0 %v6487
    %7026 = vmatpush1.bf16.msra.mxu0 %v6486
    %7027 = vmatprep.subr.bf16.mxu0 %v6489
    %7028 = vmatpush1.bf16.msra.mxu0 %v6488
    %7029 = vmatprep.subr.bf16.mxu0 %v6491
    %7030 = vmatpush1.bf16.msra.mxu0 %v6490
    %7031 = vmatprep.subr.bf16.mxu0 %v6493
    %7032 = vmatpush1.bf16.msra.mxu0 %v6492
    %7033 = vmatprep.subr.bf16.mxu0 %v6495
    %7034 = vmatpush1.bf16.msra.mxu0 %v6494
    %7035 = vmatprep.subr.bf16.mxu0 %v6497
    %7036 = vmatpush1.bf16.msra.mxu0 %v6496
    %7037 = vmatprep.subr.bf16.mxu0 %v6499
    %7038 = vmatpush1.bf16.msra.mxu0 %v6498
    %7039 = vmatprep.subr.bf16.mxu0 %v6501
    %7040 = vmatpush1.bf16.msra.mxu0 %v6500
    %7041 = vmatprep.subr.bf16.mxu0 %v6503
    %7042 = vmatpush1.bf16.msra.mxu0 %v6502
    %7043 = vmatprep.subr.bf16.mxu0 %v6505
    %7044 = vmatpush1.bf16.msra.mxu0 %v6504
    %7045 = vmatprep.subr.bf16.mxu0 %v6507
    %7046 = vmatpush1.bf16.msra.mxu0 %v6506
    %7047 = vmatprep.subr.bf16.mxu0 %v6509
    %7048 = vmatpush1.bf16.msra.mxu0 %v6508
    %7049 = vmatprep.subr.bf16.mxu0 %v6511
    %7050 = vmatpush1.bf16.msra.mxu0 %v6510
    %7051 = vmatprep.subr.bf16.mxu0 %v6513
    %7052 = vmatpush1.bf16.msra.mxu0 %v6512
    %7053 = vmatprep.subr.bf16.mxu0 %v6515
    %7054 = vmatpush1.bf16.msra.mxu0 %v6514
    %7055 = vmatprep.subr.bf16.mxu0 %v6517
    %7056 = vmatpush1.bf16.msra.mxu0 %v6516
    %7057 = vmatprep.mubr.bf16.mxu0 %v5597
    %7058 = vmatmul.mubr.bf16.gmra.mrb[0].mxu0 %v5596
    %v7059 = vpop.f32.mrb[0].mxu0
    %v7060 = vadd.f32 %v7019, %v7059
    %v7061 = vpop.f32.mrb[0].mxu0
    %v7062 = vadd.f32 %v7021, %v7061
    %v7063 = vpop.f32.mrb[0].mxu0
    %v7064 = vpop.f32.mrb[0].mxu0
    %7065 = vdwg.mxu0
    %7066 = vmatprep.subr.bf16.mxu0 %v6519
    %7067 = vmatpush1.bf16.msra.mxu0 %v6518
    %7068 = vmatprep.subr.bf16.mxu0 %v6521
    %7069 = vmatpush1.bf16.msra.mxu0 %v6520
    %7070 = vmatprep.subr.bf16.mxu0 %v6523
    %7071 = vmatpush1.bf16.msra.mxu0 %v6522
    %7072 = vmatprep.subr.bf16.mxu0 %v6525
    %7073 = vmatpush1.bf16.msra.mxu0 %v6524
    %7074 = vmatprep.subr.bf16.mxu0 %v6527
    %7075 = vmatpush1.bf16.msra.mxu0 %v6526
    %7076 = vmatprep.subr.bf16.mxu0 %v6529
    %7077 = vmatpush1.bf16.msra.mxu0 %v6528
    %7078 = vmatprep.subr.bf16.mxu0 %v6531
    %7079 = vmatpush1.bf16.msra.mxu0 %v6530
    %7080 = vmatprep.subr.bf16.mxu0 %v6533
    %7081 = vmatpush1.bf16.msra.mxu0 %v6532
    %7082 = vmatprep.subr.bf16.mxu0 %v6535
    %7083 = vmatpush1.bf16.msra.mxu0 %v6534
    %7084 = vmatprep.subr.bf16.mxu0 %v6537
    %7085 = vmatpush1.bf16.msra.mxu0 %v6536
    %7086 = vmatprep.subr.bf16.mxu0 %v6539
    %7087 = vmatpush1.bf16.msra.mxu0 %v6538
    %7088 = vmatprep.subr.bf16.mxu0 %v6541
    %7089 = vmatpush1.bf16.msra.mxu0 %v6540
    %7090 = vmatprep.subr.bf16.mxu0 %v6543
    %7091 = vmatpush1.bf16.msra.mxu0 %v6542
    %7092 = vmatprep.subr.bf16.mxu0 %v6545
    %7093 = vmatpush1.bf16.msra.mxu0 %v6544
    %7094 = vmatprep.subr.bf16.mxu0 %v6547
    %7095 = vmatpush1.bf16.msra.mxu0 %v6546
    %7096 = vmatprep.subr.bf16.mxu0 %v6549
    %7097 = vmatpush1.bf16.msra.mxu0 %v6548
    %7098 = vmatprep.mubr.bf16.mxu0 %v5599
    %7099 = vmatmul.mubr.bf16.gmra.mrb[0].mxu0 %v5598
    %v7100 = vpop.f32.mrb[0].mxu0
    %v7101 = vadd.f32 %v7060, %v7100
    %v7102 = vpop.f32.mrb[0].mxu0
    %v7103 = vadd.f32 %v7062, %v7102
    %v7104 = vpop.f32.mrb[0].mxu0
    %v7105 = vpop.f32.mrb[0].mxu0
    %7106 = vdwg.mxu0
    %7107 = vmatprep.subr.bf16.mxu0 %v6551
    %7108 = vmatpush1.bf16.msra.mxu0 %v6550
    %7109 = vmatprep.subr.bf16.mxu0 %v6553
    %7110 = vmatpush1.bf16.msra.mxu0 %v6552
    %7111 = vmatprep.subr.bf16.mxu0 %v6555
    %7112 = vmatpush1.bf16.msra.mxu0 %v6554
    %7113 = vmatprep.subr.bf16.mxu0 %v6557
    %7114 = vmatpush1.bf16.msra.mxu0 %v6556
    %7115 = vmatprep.subr.bf16.mxu0 %v6559
    %7116 = vmatpush1.bf16.msra.mxu0 %v6558
    %7117 = vmatprep.subr.bf16.mxu0 %v6561
    %7118 = vmatpush1.bf16.msra.mxu0 %v6560
    %7119 = vmatprep.subr.bf16.mxu0 %v6563
    %7120 = vmatpush1.bf16.msra.mxu0 %v6562
    %7121 = vmatprep.subr.bf16.mxu0 %v6565
    %7122 = vmatpush1.bf16.msra.mxu0 %v6564
    %7123 = vmatprep.subr.bf16.mxu0 %v6567
    %7124 = vmatpush1.bf16.msra.mxu0 %v6566
    %7125 = vmatprep.subr.bf16.mxu0 %v6569
    %7126 = vmatpush1.bf16.msra.mxu0 %v6568
    %7127 = vmatprep.subr.bf16.mxu0 %v6571
    %7128 = vmatpush1.bf16.msra.mxu0 %v6570
    %7129 = vmatprep.subr.bf16.mxu0 %v6573
    %7130 = vmatpush1.bf16.msra.mxu0 %v6572
    %7131 = vmatprep.subr.bf16.mxu0 %v6575
    %7132 = vmatpush1.bf16.msra.mxu0 %v6574
    %7133 = vmatprep.subr.bf16.mxu0 %v6577
    %7134 = vmatpush1.bf16.msra.mxu0 %v6576
    %7135 = vmatprep.subr.bf16.mxu0 %v6579
    %7136 = vmatpush1.bf16.msra.mxu0 %v6578
    %7137 = vmatprep.subr.bf16.mxu0 %v6581
    %7138 = vmatpush1.bf16.msra.mxu0 %v6580
    %7139 = vmatprep.mubr.bf16.mxu0 %v5601
    %7140 = vmatmul.mubr.bf16.gmra.mrb[0].mxu0 %v5600
    %v7141 = vpop.f32.mrb[0].mxu0
    %v7142 = vadd.f32 %v7101, %v7141
    %v7143 = vpop.f32.mrb[0].mxu0
    %v7144 = vadd.f32 %v7103, %v7143
    %v7145 = vpop.f32.mrb[0].mxu0
    %v7146 = vpop.f32.mrb[0].mxu0
    %7147 = vdwg.mxu0
    %7148 = vmatprep.subr.bf16.mxu0 %v6583
    %7149 = vmatpush1.bf16.msra.mxu0 %v6582
    %7150 = vmatprep.subr.bf16.mxu0 %v6585
    %7151 = vmatpush1.bf16.msra.mxu0 %v6584
    %7152 = vmatprep.subr.bf16.mxu0 %v6587
    %7153 = vmatpush1.bf16.msra.mxu0 %v6586
    %7154 = vmatprep.subr.bf16.mxu0 %v6589
    %7155 = vmatpush1.bf16.msra.mxu0 %v6588
    %7156 = vmatprep.subr.bf16.mxu0 %v6591
    %7157 = vmatpush1.bf16.msra.mxu0 %v6590
    %7158 = vmatprep.subr.bf16.mxu0 %v6593
    %7159 = vmatpush1.bf16.msra.mxu0 %v6592
    %7160 = vmatprep.subr.bf16.mxu0 %v6595
    %7161 = vmatpush1.bf16.msra.mxu0 %v6594
    %7162 = vmatprep.subr.bf16.mxu0 %v6597
    %7163 = vmatpush1.bf16.msra.mxu0 %v6596
    %7164 = vmatprep.subr.bf16.mxu0 %v6599
    %7165 = vmatpush1.bf16.msra.mxu0 %v6598
    %7166 = vmatprep.subr.bf16.mxu0 %v6601
    %7167 = vmatpush1.bf16.msra.mxu0 %v6600
    %7168 = vmatprep.subr.bf16.mxu0 %v6603
    %7169 = vmatpush1.bf16.msra.mxu0 %v6602
    %7170 = vmatprep.subr.bf16.mxu0 %v6605
    %7171 = vmatpush1.bf16.msra.mxu0 %v6604
    %7172 = vmatprep.subr.bf16.mxu0 %v6607
    %7173 = vmatpush1.bf16.msra.mxu0 %v6606
    %7174 = vmatprep.subr.bf16.mxu0 %v6609
    %7175 = vmatpush1.bf16.msra.mxu0 %v6608
    %7176 = vmatprep.subr.bf16.mxu0 %v6611
    %7177 = vmatpush1.bf16.msra.mxu0 %v6610
    %7178 = vmatprep.subr.bf16.mxu0 %v6613
    %7179 = vmatpush1.bf16.msra.mxu0 %v6612
    %7180 = vmatprep.mubr.bf16.mxu0 %v5603
    %7181 = vmatmul.mubr.bf16.gmra.mrb[0].mxu0 %v5602
    %v7182 = vpop.f32.mrb[0].mxu0
    %v7183 = vadd.f32 %v7142, %v7182
    %v7184 = vpop.f32.mrb[0].mxu0
    %v7185 = vadd.f32 %v7144, %v7184
    %v7186 = vpop.f32.mrb[0].mxu0
    %v7187 = vpop.f32.mrb[0].mxu0
    %7188 = vdwg.mxu0
    %7189 = vmatprep.subr.bf16.mxu0 %v6615
    %7190 = vmatpush1.bf16.msra.mxu0 %v6614
    %7191 = vmatprep.subr.bf16.mxu0 %v6617
    %7192 = vmatpush1.bf16.msra.mxu0 %v6616
    %7193 = vmatprep.subr.bf16.mxu0 %v6619
    %7194 = vmatpush1.bf16.msra.mxu0 %v6618
    %7195 = vmatprep.subr.bf16.mxu0 %v6621
    %7196 = vmatpush1.bf16.msra.mxu0 %v6620
    %7197 = vmatprep.subr.bf16.mxu0 %v6623
    %7198 = vmatpush1.bf16.msra.mxu0 %v6622
    %7199 = vmatprep.subr.bf16.mxu0 %v6625
    %7200 = vmatpush1.bf16.msra.mxu0 %v6624
    %7201 = vmatprep.subr.bf16.mxu0 %v6627
    %7202 = vmatpush1.bf16.msra.mxu0 %v6626
    %7203 = vmatprep.subr.bf16.mxu0 %v6629
    %7204 = vmatpush1.bf16.msra.mxu0 %v6628
    %7205 = vmatprep.subr.bf16.mxu0 %v6631
    %7206 = vmatpush1.bf16.msra.mxu0 %v6630
    %7207 = vmatprep.subr.bf16.mxu0 %v6633
    %7208 = vmatpush1.bf16.msra.mxu0 %v6632
    %7209 = vmatprep.subr.bf16.mxu0 %v6635
    %7210 = vmatpush1.bf16.msra.mxu0 %v6634
    %7211 = vmatprep.subr.bf16.mxu0 %v6637
    %7212 = vmatpush1.bf16.msra.mxu0 %v6636
    %7213 = vmatprep.subr.bf16.mxu0 %v6639
    %7214 = vmatpush1.bf16.msra.mxu0 %v6638
    %7215 = vmatprep.subr.bf16.mxu0 %v6641
    %7216 = vmatpush1.bf16.msra.mxu0 %v6640
    %7217 = vmatprep.subr.bf16.mxu0 %v6643
    %7218 = vmatpush1.bf16.msra.mxu0 %v6642
    %7219 = vmatprep.subr.bf16.mxu0 %v6645
    %7220 = vmatpush1.bf16.msra.mxu0 %v6644
    %7221 = vmatprep.mubr.bf16.mxu0 %v5605
    %7222 = vmatmul.mubr.bf16.gmra.mrb[0].mxu0 %v5604
    %v7223 = vpop.f32.mrb[0].mxu0
    %v7224 = vadd.f32 %v7183, %v7223
    %v7225 = vpop.f32.mrb[0].mxu0
    %v7226 = vadd.f32 %v7185, %v7225
    %v7227 = vpop.f32.mrb[0].mxu0
    %v7228 = vpop.f32.mrb[0].mxu0
    %7229 = vdwg.mxu0
    %v7230 = vmax.f32 %v7224, 0.0
    %v7231 = vmax.f32 %v7226, 0.0
    %v7232 = vmul.f32 %v7230, %v7230
    %v7233 = vmul.f32 %v7231, %v7231
    %v7234 = vsel %vm2433, %v7232, 0.0
    %v7235 = vsel %vm2433, %v7233, 0.0
    %v7236 = vadd.f32 %v7234, %v7235
    %7237 = vadd.xlane.f32.xlu0 %v7236
    %v7238 = vpop.xlane.xlu0 %7237
    %v7239 = vmax.f32 %v7238, 1e-24
    %v7240 = vrsqrt.pop %v7239
    %v7241 = vmul.f32 %v7240, 10.0
    %v7242 = vmul.f32 %v7230, %v7241
    %v7243 = vmul.f32 %v7231, %v7241
    %v7246 = vcombine.low %v7242, %v7243
    %v7248 = vunpack.c.l.s4 1983009808
    %v7249 = vunpack.c.0.s8 %v7248
    %v7250 = vlaneseq
    %v7251 = vshrl.u32 %v7250, 7
    %v7252 = vsub.s32 %v7249, %v7251
    %v7253 = vrot.slane %v7246, %v7252
    %7255 = vst [vmem:[#allocation8 + $0x8] sm:$0xf] %v7253
    %v7256 = vld [vmem:[#allocation2 + $0x180] sm:$0xff]
    %v7257 = vld [vmem:[#allocation2 + $0x188] sm:$0xff]
    %v7258 = vld [vmem:[#allocation2 + $0x190] sm:$0xff]
    %v7259 = vld [vmem:[#allocation2 + $0x198] sm:$0xff]
    %v7260 = vld [vmem:[#allocation2 + $0x1a0] sm:$0xff]
    %v7261 = vld [vmem:[#allocation2 + $0x1a8] sm:$0xff]
    %v7262 = vld [vmem:[#allocation2 + $0x1b0] sm:$0xff]
    %v7263 = vld [vmem:[#allocation2 + $0x1b8] sm:$0xff]
    %v7264 = vld [vmem:[#allocation2 + $0x1c0] sm:$0xff]
    %v7265 = vld [vmem:[#allocation2 + $0x1c8] sm:$0xff]
    %v7266 = vld [vmem:[#allocation2 + $0x1d0] sm:$0xff]
    %v7267 = vld [vmem:[#allocation2 + $0x1d8] sm:$0xff]
    %v7268 = vld [vmem:[#allocation2 + $0x1e0] sm:$0xff]
    %v7269 = vld [vmem:[#allocation2 + $0x1e8] sm:$0xff]
    %v7270 = vld [vmem:[#allocation2 + $0x1f0] sm:$0xff]
    %v7271 = vld [vmem:[#allocation2 + $0x1f8] sm:$0xff]
    %v7272 = vld [vmem:[#allocation2 + $0x480] sm:$0xff]
    %v7273 = vld [vmem:[#allocation2 + $0x488] sm:$0xff]
    %v7274 = vld [vmem:[#allocation2 + $0x490] sm:$0xff]
    %v7275 = vld [vmem:[#allocation2 + $0x498] sm:$0xff]
    %v7276 = vld [vmem:[#allocation2 + $0x4a0] sm:$0xff]
    %v7277 = vld [vmem:[#allocation2 + $0x4a8] sm:$0xff]
    %v7278 = vld [vmem:[#allocation2 + $0x4b0] sm:$0xff]
    %v7279 = vld [vmem:[#allocation2 + $0x4b8] sm:$0xff]
    %v7280 = vld [vmem:[#allocation2 + $0x4c0] sm:$0xff]
    %v7281 = vld [vmem:[#allocation2 + $0x4c8] sm:$0xff]
    %v7282 = vld [vmem:[#allocation2 + $0x4d0] sm:$0xff]
    %v7283 = vld [vmem:[#allocation2 + $0x4d8] sm:$0xff]
    %v7284 = vld [vmem:[#allocation2 + $0x4e0] sm:$0xff]
    %v7285 = vld [vmem:[#allocation2 + $0x4e8] sm:$0xff]
    %v7286 = vld [vmem:[#allocation2 + $0x4f0] sm:$0xff]
    %v7287 = vld [vmem:[#allocation2 + $0x4f8] sm:$0xff]
    %v7288 = vunpack.c.l.bf16 %v7256
    %v7289 = vunpack.c.h.bf16 %v7256
    %v7290 = vunpack.c.l.bf16 %v7257
    %v7291 = vunpack.c.h.bf16 %v7257
    %v7292 = vunpack.c.l.bf16 %v7258
    %v7293 = vunpack.c.h.bf16 %v7258
    %v7294 = vunpack.c.l.bf16 %v7259
    %v7295 = vunpack.c.h.bf16 %v7259
    %v7296 = vunpack.c.l.bf16 %v7260
    %v7297 = vunpack.c.h.bf16 %v7260
    %v7298 = vunpack.c.l.bf16 %v7261
    %v7299 = vunpack.c.h.bf16 %v7261
    %v7300 = vunpack.c.l.bf16 %v7262
    %v7301 = vunpack.c.h.bf16 %v7262
    %v7302 = vunpack.c.l.bf16 %v7263
    %v7303 = vunpack.c.h.bf16 %v7263
    %v7304 = vunpack.c.l.bf16 %v7264
    %v7305 = vunpack.c.h.bf16 %v7264
    %v7306 = vunpack.c.l.bf16 %v7265
    %v7307 = vunpack.c.h.bf16 %v7265
    %v7308 = vunpack.c.l.bf16 %v7266
    %v7309 = vunpack.c.h.bf16 %v7266
    %v7310 = vunpack.c.l.bf16 %v7267
    %v7311 = vunpack.c.h.bf16 %v7267
    %v7312 = vunpack.c.l.bf16 %v7268
    %v7313 = vunpack.c.h.bf16 %v7268
    %v7314 = vunpack.c.l.bf16 %v7269
    %v7315 = vunpack.c.h.bf16 %v7269
    %v7316 = vunpack.c.l.bf16 %v7270
    %v7317 = vunpack.c.h.bf16 %v7270
    %v7318 = vunpack.c.l.bf16 %v7271
    %v7319 = vunpack.c.h.bf16 %v7271
    %v7320 = vunpack.c.l.bf16 %v7272
    %v7321 = vunpack.c.h.bf16 %v7272
    %v7322 = vunpack.c.l.bf16 %v7273
    %v7323 = vunpack.c.h.bf16 %v7273
    %v7324 = vunpack.c.l.bf16 %v7274
    %v7325 = vunpack.c.h.bf16 %v7274
    %v7326 = vunpack.c.l.bf16 %v7275
    %v7327 = vunpack.c.h.bf16 %v7275
    %v7328 = vunpack.c.l.bf16 %v7276
    %v7329 = vunpack.c.h.bf16 %v7276
    %v7330 = vunpack.c.l.bf16 %v7277
    %v7331 = vunpack.c.h.bf16 %v7277
    %v7332 = vunpack.c.l.bf16 %v7278
    %v7333 = vunpack.c.h.bf16 %v7278
    %v7334 = vunpack.c.l.bf16 %v7279
    %v7335 = vunpack.c.h.bf16 %v7279
    %v7336 = vunpack.c.l.bf16 %v7280
    %v7337 = vunpack.c.h.bf16 %v7280
    %v7338 = vunpack.c.l.bf16 %v7281
    %v7339 = vunpack.c.h.bf16 %v7281
    %v7340 = vunpack.c.l.bf16 %v7282
    %v7341 = vunpack.c.h.bf16 %v7282
    %v7342 = vunpack.c.l.bf16 %v7283
    %v7343 = vunpack.c.h.bf16 %v7283
    %v7344 = vunpack.c.l.bf16 %v7284
    %v7345 = vunpack.c.h.bf16 %v7284
    %v7346 = vunpack.c.l.bf16 %v7285
    %v7347 = vunpack.c.h.bf16 %v7285
    %v7348 = vunpack.c.l.bf16 %v7286
    %v7349 = vunpack.c.h.bf16 %v7286
    %v7350 = vunpack.c.l.bf16 %v7287
    %v7351 = vunpack.c.h.bf16 %v7287
    %v7352 = vadd.f32 %v7288, %v7304
    %v7353 = vrot.slane %v7352, 4
    %v7354 = vadd.f32 %v7352, %v7353
    %v7355 = vrot.slane %v7354, 2
    %v7356 = vadd.f32 %v7354, %v7355
    %v7357 = vrot.slane %v7356, 1
    %v7358 = vadd.f32 %v7356, %v7357
    %v7359 = vadd.f32 %v7289, %v7305
    %v7360 = vrot.slane %v7359, 4
    %v7361 = vadd.f32 %v7359, %v7360
    %v7362 = vrot.slane %v7361, 2
    %v7363 = vadd.f32 %v7361, %v7362
    %v7364 = vrot.slane %v7363, 1
    %v7365 = vadd.f32 %v7363, %v7364
    %v7366 = vadd.f32 %v7290, %v7306
    %v7367 = vrot.slane %v7366, 4
    %v7368 = vadd.f32 %v7366, %v7367
    %v7369 = vrot.slane %v7368, 2
    %v7370 = vadd.f32 %v7368, %v7369
    %v7371 = vrot.slane %v7370, 1
    %v7372 = vadd.f32 %v7370, %v7371
    %v7373 = vadd.f32 %v7291, %v7307
    %v7374 = vrot.slane %v7373, 4
    %v7375 = vadd.f32 %v7373, %v7374
    %v7376 = vrot.slane %v7375, 2
    %v7377 = vadd.f32 %v7375, %v7376
    %v7378 = vrot.slane %v7377, 1
    %v7379 = vadd.f32 %v7377, %v7378
    %v7380 = vadd.f32 %v7292, %v7308
    %v7381 = vrot.slane %v7380, 4
    %v7382 = vadd.f32 %v7380, %v7381
    %v7383 = vrot.slane %v7382, 2
    %v7384 = vadd.f32 %v7382, %v7383
    %v7385 = vrot.slane %v7384, 1
    %v7386 = vadd.f32 %v7384, %v7385
    %v7387 = vadd.f32 %v7293, %v7309
    %v7388 = vrot.slane %v7387, 4
    %v7389 = vadd.f32 %v7387, %v7388
    %v7390 = vrot.slane %v7389, 2
    %v7391 = vadd.f32 %v7389, %v7390
    %v7392 = vrot.slane %v7391, 1
    %v7393 = vadd.f32 %v7391, %v7392
    %v7394 = vadd.f32 %v7294, %v7310
    %v7395 = vrot.slane %v7394, 4
    %v7396 = vadd.f32 %v7394, %v7395
    %v7397 = vrot.slane %v7396, 2
    %v7398 = vadd.f32 %v7396, %v7397
    %v7399 = vrot.slane %v7398, 1
    %v7400 = vadd.f32 %v7398, %v7399
    %v7401 = vadd.f32 %v7295, %v7311
    %v7402 = vrot.slane %v7401, 4
    %v7403 = vadd.f32 %v7401, %v7402
    %v7404 = vrot.slane %v7403, 2
    %v7405 = vadd.f32 %v7403, %v7404
    %v7406 = vrot.slane %v7405, 1
    %v7407 = vadd.f32 %v7405, %v7406
    %v7408 = vadd.f32 %v7296, %v7312
    %v7409 = vrot.slane %v7408, 4
    %v7410 = vadd.f32 %v7408, %v7409
    %v7411 = vrot.slane %v7410, 2
    %v7412 = vadd.f32 %v7410, %v7411
    %v7413 = vrot.slane %v7412, 1
    %v7414 = vadd.f32 %v7412, %v7413
    %v7415 = vadd.f32 %v7297, %v7313
    %v7416 = vrot.slane %v7415, 4
    %v7417 = vadd.f32 %v7415, %v7416
    %v7418 = vrot.slane %v7417, 2
    %v7419 = vadd.f32 %v7417, %v7418
    %v7420 = vrot.slane %v7419, 1
    %v7421 = vadd.f32 %v7419, %v7420
    %v7422 = vadd.f32 %v7298, %v7314
    %v7423 = vrot.slane %v7422, 4
    %v7424 = vadd.f32 %v7422, %v7423
    %v7425 = vrot.slane %v7424, 2
    %v7426 = vadd.f32 %v7424, %v7425
    %v7427 = vrot.slane %v7426, 1
    %v7428 = vadd.f32 %v7426, %v7427
    %v7429 = vadd.f32 %v7299, %v7315
    %v7430 = vrot.slane %v7429, 4
    %v7431 = vadd.f32 %v7429, %v7430
    %v7432 = vrot.slane %v7431, 2
    %v7433 = vadd.f32 %v7431, %v7432
    %v7434 = vrot.slane %v7433, 1
    %v7435 = vadd.f32 %v7433, %v7434
    %v7436 = vadd.f32 %v7300, %v7316
    %v7437 = vrot.slane %v7436, 4
    %v7438 = vadd.f32 %v7436, %v7437
    %v7439 = vrot.slane %v7438, 2
    %v7440 = vadd.f32 %v7438, %v7439
    %v7441 = vrot.slane %v7440, 1
    %v7442 = vadd.f32 %v7440, %v7441
    %v7443 = vadd.f32 %v7301, %v7317
    %v7444 = vrot.slane %v7443, 4
    %v7445 = vadd.f32 %v7443, %v7444
    %v7446 = vrot.slane %v7445, 2
    %v7447 = vadd.f32 %v7445, %v7446
    %v7448 = vrot.slane %v7447, 1
    %v7449 = vadd.f32 %v7447, %v7448
    %v7450 = vadd.f32 %v7302, %v7318
    %v7451 = vrot.slane %v7450, 4
    %v7452 = vadd.f32 %v7450, %v7451
    %v7453 = vrot.slane %v7452, 2
    %v7454 = vadd.f32 %v7452, %v7453
    %v7455 = vrot.slane %v7454, 1
    %v7456 = vadd.f32 %v7454, %v7455
    %v7457 = vadd.f32 %v7303, %v7319
    %v7458 = vrot.slane %v7457, 4
    %v7459 = vadd.f32 %v7457, %v7458
    %v7460 = vrot.slane %v7459, 2
    %v7461 = vadd.f32 %v7459, %v7460
    %v7462 = vrot.slane %v7461, 1
    %v7463 = vadd.f32 %v7461, %v7462
    %v7464 = vadd.f32 %v7320, %v7336
    %v7465 = vrot.slane %v7464, 4
    %v7466 = vadd.f32 %v7464, %v7465
    %v7467 = vrot.slane %v7466, 2
    %v7468 = vadd.f32 %v7466, %v7467
    %v7469 = vrot.slane %v7468, 1
    %v7470 = vadd.f32 %v7468, %v7469
    %v7471 = vadd.f32 %v7321, %v7337
    %v7472 = vrot.slane %v7471, 4
    %v7473 = vadd.f32 %v7471, %v7472
    %v7474 = vrot.slane %v7473, 2
    %v7475 = vadd.f32 %v7473, %v7474
    %v7476 = vrot.slane %v7475, 1
    %v7477 = vadd.f32 %v7475, %v7476
    %v7478 = vadd.f32 %v7322, %v7338
    %v7479 = vrot.slane %v7478, 4
    %v7480 = vadd.f32 %v7478, %v7479
    %v7481 = vrot.slane %v7480, 2
    %v7482 = vadd.f32 %v7480, %v7481
    %v7483 = vrot.slane %v7482, 1
    %v7484 = vadd.f32 %v7482, %v7483
    %v7485 = vadd.f32 %v7323, %v7339
    %v7486 = vrot.slane %v7485, 4
    %v7487 = vadd.f32 %v7485, %v7486
    %v7488 = vrot.slane %v7487, 2
    %v7489 = vadd.f32 %v7487, %v7488
    %v7490 = vrot.slane %v7489, 1
    %v7491 = vadd.f32 %v7489, %v7490
    %v7492 = vadd.f32 %v7324, %v7340
    %v7493 = vrot.slane %v7492, 4
    %v7494 = vadd.f32 %v7492, %v7493
    %v7495 = vrot.slane %v7494, 2
    %v7496 = vadd.f32 %v7494, %v7495
    %v7497 = vrot.slane %v7496, 1
    %v7498 = vadd.f32 %v7496, %v7497
    %v7499 = vadd.f32 %v7325, %v7341
    %v7500 = vrot.slane %v7499, 4
    %v7501 = vadd.f32 %v7499, %v7500
    %v7502 = vrot.slane %v7501, 2
    %v7503 = vadd.f32 %v7501, %v7502
    %v7504 = vrot.slane %v7503, 1
    %v7505 = vadd.f32 %v7503, %v7504
    %v7506 = vadd.f32 %v7326, %v7342
    %v7507 = vrot.slane %v7506, 4
    %v7508 = vadd.f32 %v7506, %v7507
    %v7509 = vrot.slane %v7508, 2
    %v7510 = vadd.f32 %v7508, %v7509
    %v7511 = vrot.slane %v7510, 1
    %v7512 = vadd.f32 %v7510, %v7511
    %v7513 = vadd.f32 %v7327, %v7343
    %v7514 = vrot.slane %v7513, 4
    %v7515 = vadd.f32 %v7513, %v7514
    %v7516 = vrot.slane %v7515, 2
    %v7517 = vadd.f32 %v7515, %v7516
    %v7518 = vrot.slane %v7517, 1
    %v7519 = vadd.f32 %v7517, %v7518
    %v7520 = vadd.f32 %v7328, %v7344
    %v7521 = vrot.slane %v7520, 4
    %v7522 = vadd.f32 %v7520, %v7521
    %v7523 = vrot.slane %v7522, 2
    %v7524 = vadd.f32 %v7522, %v7523
    %v7525 = vrot.slane %v7524, 1
    %v7526 = vadd.f32 %v7524, %v7525
    %v7527 = vadd.f32 %v7329, %v7345
    %v7528 = vrot.slane %v7527, 4
    %v7529 = vadd.f32 %v7527, %v7528
    %v7530 = vrot.slane %v7529, 2
    %v7531 = vadd.f32 %v7529, %v7530
    %v7532 = vrot.slane %v7531, 1
    %v7533 = vadd.f32 %v7531, %v7532
    %v7534 = vadd.f32 %v7330, %v7346
    %v7535 = vrot.slane %v7534, 4
    %v7536 = vadd.f32 %v7534, %v7535
    %v7537 = vrot.slane %v7536, 2
    %v7538 = vadd.f32 %v7536, %v7537
    %v7539 = vrot.slane %v7538, 1
    %v7540 = vadd.f32 %v7538, %v7539
    %v7541 = vadd.f32 %v7331, %v7347
    %v7542 = vrot.slane %v7541, 4
    %v7543 = vadd.f32 %v7541, %v7542
    %v7544 = vrot.slane %v7543, 2
    %v7545 = vadd.f32 %v7543, %v7544
    %v7546 = vrot.slane %v7545, 1
    %v7547 = vadd.f32 %v7545, %v7546
    %v7548 = vadd.f32 %v7332, %v7348
    %v7549 = vrot.slane %v7548, 4
    %v7550 = vadd.f32 %v7548, %v7549
    %v7551 = vrot.slane %v7550, 2
    %v7552 = vadd.f32 %v7550, %v7551
    %v7553 = vrot.slane %v7552, 1
    %v7554 = vadd.f32 %v7552, %v7553
    %v7555 = vadd.f32 %v7333, %v7349
    %v7556 = vrot.slane %v7555, 4
    %v7557 = vadd.f32 %v7555, %v7556
    %v7558 = vrot.slane %v7557, 2
    %v7559 = vadd.f32 %v7557, %v7558
    %v7560 = vrot.slane %v7559, 1
    %v7561 = vadd.f32 %v7559, %v7560
    %v7562 = vadd.f32 %v7334, %v7350
    %v7563 = vrot.slane %v7562, 4
    %v7564 = vadd.f32 %v7562, %v7563
    %v7565 = vrot.slane %v7564, 2
    %v7566 = vadd.f32 %v7564, %v7565
    %v7567 = vrot.slane %v7566, 1
    %v7568 = vadd.f32 %v7566, %v7567
    %v7569 = vadd.f32 %v7335, %v7351
    %v7570 = vrot.slane %v7569, 4
    %v7571 = vadd.f32 %v7569, %v7570
    %v7572 = vrot.slane %v7571, 2
    %v7573 = vadd.f32 %v7571, %v7572
    %v7574 = vrot.slane %v7573, 1
    %v7575 = vadd.f32 %v7573, %v7574
    %v7576 = vmul.f32 %v7358, 0.0625
    %v7577 = vmul.f32 %v7365, 0.0625
    %v7578 = vmul.f32 %v7372, 0.0625
    %v7579 = vmul.f32 %v7379, 0.0625
    %v7580 = vmul.f32 %v7386, 0.0625
    %v7581 = vmul.f32 %v7393, 0.0625
    %v7582 = vmul.f32 %v7400, 0.0625
    %v7583 = vmul.f32 %v7407, 0.0625
    %v7584 = vmul.f32 %v7414, 0.0625
    %v7585 = vmul.f32 %v7421, 0.0625
    %v7586 = vmul.f32 %v7428, 0.0625
    %v7587 = vmul.f32 %v7435, 0.0625
    %v7588 = vmul.f32 %v7442, 0.0625
    %v7589 = vmul.f32 %v7449, 0.0625
    %v7590 = vmul.f32 %v7456, 0.0625
    %v7591 = vmul.f32 %v7463, 0.0625
    %v7592 = vmul.f32 %v7470, 0.0625
    %v7593 = vmul.f32 %v7477, 0.0625
    %v7594 = vmul.f32 %v7484, 0.0625
    %v7595 = vmul.f32 %v7491, 0.0625
    %v7596 = vmul.f32 %v7498, 0.0625
    %v7597 = vmul.f32 %v7505, 0.0625
    %v7598 = vmul.f32 %v7512, 0.0625
    %v7599 = vmul.f32 %v7519, 0.0625
    %v7600 = vmul.f32 %v7526, 0.0625
    %v7601 = vmul.f32 %v7533, 0.0625
    %v7602 = vmul.f32 %v7540, 0.0625
    %v7603 = vmul.f32 %v7547, 0.0625
    %v7604 = vmul.f32 %v7554, 0.0625
    %v7605 = vmul.f32 %v7561, 0.0625
    %v7606 = vmul.f32 %v7568, 0.0625
    %v7607 = vmul.f32 %v7575, 0.0625
    %v7608 = vpack.c.bf16 %v7576, %v7576
    %v7609 = vpack.c.bf16 %v7577, %v7577
    %v7610 = vpack.c.bf16 %v7578, %v7578
    %v7611 = vpack.c.bf16 %v7579, %v7579
    %v7612 = vpack.c.bf16 %v7580, %v7580
    %v7613 = vpack.c.bf16 %v7581, %v7581
    %v7614 = vpack.c.bf16 %v7582, %v7582
    %v7615 = vpack.c.bf16 %v7583, %v7583
    %v7616 = vpack.c.bf16 %v7584, %v7584
    %v7617 = vpack.c.bf16 %v7585, %v7585
    %v7618 = vpack.c.bf16 %v7586, %v7586
    %v7619 = vpack.c.bf16 %v7587, %v7587
    %v7620 = vpack.c.bf16 %v7588, %v7588
    %v7621 = vpack.c.bf16 %v7589, %v7589
    %v7622 = vpack.c.bf16 %v7590, %v7590
    %v7623 = vpack.c.bf16 %v7591, %v7591
    %v7624 = vpack.c.bf16 %v7592, %v7592
    %v7625 = vpack.c.bf16 %v7593, %v7593
    %v7626 = vpack.c.bf16 %v7594, %v7594
    %v7627 = vpack.c.bf16 %v7595, %v7595
    %v7628 = vpack.c.bf16 %v7596, %v7596
    %v7629 = vpack.c.bf16 %v7597, %v7597
    %v7630 = vpack.c.bf16 %v7598, %v7598
    %v7631 = vpack.c.bf16 %v7599, %v7599
    %v7632 = vpack.c.bf16 %v7600, %v7600
    %v7633 = vpack.c.bf16 %v7601, %v7601
    %v7634 = vpack.c.bf16 %v7602, %v7602
    %v7635 = vpack.c.bf16 %v7603, %v7603
    %v7636 = vpack.c.bf16 %v7604, %v7604
    %v7637 = vpack.c.bf16 %v7605, %v7605
    %v7638 = vpack.c.bf16 %v7606, %v7606
    %v7639 = vpack.c.bf16 %v7607, %v7607
    %s7640 = scalar_lea.vmem [#allocation5], 6144
    %v7641 = vld [vmem:[%s7640] sm:$0xff]
    %v7642 = vld [vmem:[%s7640 + $0x8] sm:$0xff]
    %v7643 = vld [vmem:[%s7640 + $0x10] sm:$0xff]
    %v7644 = vld [vmem:[%s7640 + $0x18] sm:$0xff]
    %v7645 = vld [vmem:[%s7640 + $0x20] sm:$0xff]
    %v7646 = vld [vmem:[%s7640 + $0x28] sm:$0xff]
    %v7647 = vld [vmem:[%s7640 + $0x30] sm:$0xff]
    %v7648 = vld [vmem:[%s7640 + $0x38] sm:$0xff]
    %v7649 = vld [vmem:[%s7640 + $0x40] sm:$0xff]
    %v7650 = vld [vmem:[%s7640 + $0x48] sm:$0xff]
    %v7651 = vld [vmem:[%s7640 + $0x50] sm:$0xff]
    %v7652 = vld [vmem:[%s7640 + $0x58] sm:$0xff]
    %v7653 = vld [vmem:[%s7640 + $0x60] sm:$0xff]
    %v7654 = vld [vmem:[%s7640 + $0x68] sm:$0xff]
    %v7655 = vld [vmem:[%s7640 + $0x70] sm:$0xff]
    %v7656 = vld [vmem:[%s7640 + $0x78] sm:$0xff]
    %v7657 = vld [vmem:[%s7640 + $0x80] sm:$0xff]
    %v7658 = vld [vmem:[%s7640 + $0x88] sm:$0xff]
    %v7659 = vld [vmem:[%s7640 + $0x90] sm:$0xff]
    %v7660 = vld [vmem:[%s7640 + $0x98] sm:$0xff]
    %v7661 = vld [vmem:[%s7640 + $0xa0] sm:$0xff]
    %v7662 = vld [vmem:[%s7640 + $0xa8] sm:$0xff]
    %v7663 = vld [vmem:[%s7640 + $0xb0] sm:$0xff]
    %v7664 = vld [vmem:[%s7640 + $0xb8] sm:$0xff]
    %v7665 = vld [vmem:[%s7640 + $0xc0] sm:$0xff]
    %v7666 = vld [vmem:[%s7640 + $0xc8] sm:$0xff]
    %v7667 = vld [vmem:[%s7640 + $0xd0] sm:$0xff]
    %v7668 = vld [vmem:[%s7640 + $0xd8] sm:$0xff]
    %v7669 = vld [vmem:[%s7640 + $0xe0] sm:$0xff]
    %v7670 = vld [vmem:[%s7640 + $0xe8] sm:$0xff]
    %v7671 = vld [vmem:[%s7640 + $0xf0] sm:$0xff]
    %v7672 = vld [vmem:[%s7640 + $0xf8] sm:$0xff]
    %v7673 = vld [vmem:[%s7640 + $0x100] sm:$0xff]
    %v7674 = vld [vmem:[%s7640 + $0x108] sm:$0xff]
    %v7675 = vld [vmem:[%s7640 + $0x110] sm:$0xff]
    %v7676 = vld [vmem:[%s7640 + $0x118] sm:$0xff]
    %v7677 = vld [vmem:[%s7640 + $0x120] sm:$0xff]
    %v7678 = vld [vmem:[%s7640 + $0x128] sm:$0xff]
    %v7679 = vld [vmem:[%s7640 + $0x130] sm:$0xff]
    %v7680 = vld [vmem:[%s7640 + $0x138] sm:$0xff]
    %v7681 = vld [vmem:[%s7640 + $0x140] sm:$0xff]
    %v7682 = vld [vmem:[%s7640 + $0x148] sm:$0xff]
    %v7683 = vld [vmem:[%s7640 + $0x150] sm:$0xff]
    %v7684 = vld [vmem:[%s7640 + $0x158] sm:$0xff]
    %v7685 = vld [vmem:[%s7640 + $0x160] sm:$0xff]
    %v7686 = vld [vmem:[%s7640 + $0x168] sm:$0xff]
    %v7687 = vld [vmem:[%s7640 + $0x170] sm:$0xff]
    %v7688 = vld [vmem:[%s7640 + $0x178] sm:$0xff]
    %v7689 = vld [vmem:[%s7640 + $0x180] sm:$0xff]
    %v7690 = vld [vmem:[%s7640 + $0x188] sm:$0xff]
    %v7691 = vld [vmem:[%s7640 + $0x190] sm:$0xff]
    %v7692 = vld [vmem:[%s7640 + $0x198] sm:$0xff]
    %v7693 = vld [vmem:[%s7640 + $0x1a0] sm:$0xff]
    %v7694 = vld [vmem:[%s7640 + $0x1a8] sm:$0xff]
    %v7695 = vld [vmem:[%s7640 + $0x1b0] sm:$0xff]
    %v7696 = vld [vmem:[%s7640 + $0x1b8] sm:$0xff]
    %v7697 = vld [vmem:[%s7640 + $0x1c0] sm:$0xff]
    %v7698 = vld [vmem:[%s7640 + $0x1c8] sm:$0xff]
    %v7699 = vld [vmem:[%s7640 + $0x1d0] sm:$0xff]
    %v7700 = vld [vmem:[%s7640 + $0x1d8] sm:$0xff]
    %v7701 = vld [vmem:[%s7640 + $0x1e0] sm:$0xff]
    %v7702 = vld [vmem:[%s7640 + $0x1e8] sm:$0xff]
    %v7703 = vld [vmem:[%s7640 + $0x1f0] sm:$0xff]
    %v7704 = vld [vmem:[%s7640 + $0x1f8] sm:$0xff]
    %v7705 = vld [vmem:[%s7640 + $0x200] sm:$0xff]
    %v7706 = vld [vmem:[%s7640 + $0x208] sm:$0xff]
    %v7707 = vld [vmem:[%s7640 + $0x210] sm:$0xff]
    %v7708 = vld [vmem:[%s7640 + $0x218] sm:$0xff]
    %v7709 = vld [vmem:[%s7640 + $0x220] sm:$0xff]
    %v7710 = vld [vmem:[%s7640 + $0x228] sm:$0xff]
    %v7711 = vld [vmem:[%s7640 + $0x230] sm:$0xff]
    %v7712 = vld [vmem:[%s7640 + $0x238] sm:$0xff]
    %v7713 = vld [vmem:[%s7640 + $0x240] sm:$0xff]
    %v7714 = vld [vmem:[%s7640 + $0x248] sm:$0xff]
    %v7715 = vld [vmem:[%s7640 + $0x250] sm:$0xff]
    %v7716 = vld [vmem:[%s7640 + $0x258] sm:$0xff]
    %v7717 = vld [vmem:[%s7640 + $0x260] sm:$0xff]
    %v7718 = vld [vmem:[%s7640 + $0x268] sm:$0xff]
    %v7719 = vld [vmem:[%s7640 + $0x270] sm:$0xff]
    %v7720 = vld [vmem:[%s7640 + $0x278] sm:$0xff]
    %v7721 = vld [vmem:[%s7640 + $0x280] sm:$0xff]
    %v7722 = vld [vmem:[%s7640 + $0x288] sm:$0xff]
    %v7723 = vld [vmem:[%s7640 + $0x290] sm:$0xff]
    %v7724 = vld [vmem:[%s7640 + $0x298] sm:$0xff]
    %v7725 = vld [vmem:[%s7640 + $0x2a0] sm:$0xff]
    %v7726 = vld [vmem:[%s7640 + $0x2a8] sm:$0xff]
    %v7727 = vld [vmem:[%s7640 + $0x2b0] sm:$0xff]
    %v7728 = vld [vmem:[%s7640 + $0x2b8] sm:$0xff]
    %v7729 = vld [vmem:[%s7640 + $0x2c0] sm:$0xff]
    %v7730 = vld [vmem:[%s7640 + $0x2c8] sm:$0xff]
    %v7731 = vld [vmem:[%s7640 + $0x2d0] sm:$0xff]
    %v7732 = vld [vmem:[%s7640 + $0x2d8] sm:$0xff]
    %v7733 = vld [vmem:[%s7640 + $0x2e0] sm:$0xff]
    %v7734 = vld [vmem:[%s7640 + $0x2e8] sm:$0xff]
    %v7735 = vld [vmem:[%s7640 + $0x2f0] sm:$0xff]
    %v7736 = vld [vmem:[%s7640 + $0x2f8] sm:$0xff]
    %v7737 = vld [vmem:[%s7640 + $0x300] sm:$0xff]
    %v7738 = vld [vmem:[%s7640 + $0x308] sm:$0xff]
    %v7739 = vld [vmem:[%s7640 + $0x310] sm:$0xff]
    %v7740 = vld [vmem:[%s7640 + $0x318] sm:$0xff]
    %v7741 = vld [vmem:[%s7640 + $0x320] sm:$0xff]
    %v7742 = vld [vmem:[%s7640 + $0x328] sm:$0xff]
    %v7743 = vld [vmem:[%s7640 + $0x330] sm:$0xff]
    %v7744 = vld [vmem:[%s7640 + $0x338] sm:$0xff]
    %v7745 = vld [vmem:[%s7640 + $0x340] sm:$0xff]
    %v7746 = vld [vmem:[%s7640 + $0x348] sm:$0xff]
    %v7747 = vld [vmem:[%s7640 + $0x350] sm:$0xff]
    %v7748 = vld [vmem:[%s7640 + $0x358] sm:$0xff]
    %v7749 = vld [vmem:[%s7640 + $0x360] sm:$0xff]
    %v7750 = vld [vmem:[%s7640 + $0x368] sm:$0xff]
    %v7751 = vld [vmem:[%s7640 + $0x370] sm:$0xff]
    %v7752 = vld [vmem:[%s7640 + $0x378] sm:$0xff]
    %v7753 = vld [vmem:[%s7640 + $0x380] sm:$0xff]
    %v7754 = vld [vmem:[%s7640 + $0x388] sm:$0xff]
    %v7755 = vld [vmem:[%s7640 + $0x390] sm:$0xff]
    %v7756 = vld [vmem:[%s7640 + $0x398] sm:$0xff]
    %v7757 = vld [vmem:[%s7640 + $0x3a0] sm:$0xff]
    %v7758 = vld [vmem:[%s7640 + $0x3a8] sm:$0xff]
    %v7759 = vld [vmem:[%s7640 + $0x3b0] sm:$0xff]
    %v7760 = vld [vmem:[%s7640 + $0x3b8] sm:$0xff]
    %v7761 = vld [vmem:[%s7640 + $0x3c0] sm:$0xff]
    %v7762 = vld [vmem:[%s7640 + $0x3c8] sm:$0xff]
    %v7763 = vld [vmem:[%s7640 + $0x3d0] sm:$0xff]
    %v7764 = vld [vmem:[%s7640 + $0x3d8] sm:$0xff]
    %v7765 = vld [vmem:[%s7640 + $0x3e0] sm:$0xff]
    %v7766 = vld [vmem:[%s7640 + $0x3e8] sm:$0xff]
    %v7767 = vld [vmem:[%s7640 + $0x3f0] sm:$0xff]
    %v7768 = vld [vmem:[%s7640 + $0x3f8] sm:$0xff]
    %v7769 = vld [vmem:[%s7640 + $0x400] sm:$0xff]
    %v7770 = vld [vmem:[%s7640 + $0x408] sm:$0xff]
    %v7771 = vld [vmem:[%s7640 + $0x410] sm:$0xff]
    %v7772 = vld [vmem:[%s7640 + $0x418] sm:$0xff]
    %v7773 = vld [vmem:[%s7640 + $0x420] sm:$0xff]
    %v7774 = vld [vmem:[%s7640 + $0x428] sm:$0xff]
    %v7775 = vld [vmem:[%s7640 + $0x430] sm:$0xff]
    %v7776 = vld [vmem:[%s7640 + $0x438] sm:$0xff]
    %v7777 = vld [vmem:[%s7640 + $0x440] sm:$0xff]
    %v7778 = vld [vmem:[%s7640 + $0x448] sm:$0xff]
    %v7779 = vld [vmem:[%s7640 + $0x450] sm:$0xff]
    %v7780 = vld [vmem:[%s7640 + $0x458] sm:$0xff]
    %v7781 = vld [vmem:[%s7640 + $0x460] sm:$0xff]
    %v7782 = vld [vmem:[%s7640 + $0x468] sm:$0xff]
    %v7783 = vld [vmem:[%s7640 + $0x470] sm:$0xff]
    %v7784 = vld [vmem:[%s7640 + $0x478] sm:$0xff]
    %v7785 = vld [vmem:[%s7640 + $0x480] sm:$0xff]
    %v7786 = vld [vmem:[%s7640 + $0x488] sm:$0xff]
    %v7787 = vld [vmem:[%s7640 + $0x490] sm:$0xff]
    %v7788 = vld [vmem:[%s7640 + $0x498] sm:$0xff]
    %v7789 = vld [vmem:[%s7640 + $0x4a0] sm:$0xff]
    %v7790 = vld [vmem:[%s7640 + $0x4a8] sm:$0xff]
    %v7791 = vld [vmem:[%s7640 + $0x4b0] sm:$0xff]
    %v7792 = vld [vmem:[%s7640 + $0x4b8] sm:$0xff]
    %v7793 = vld [vmem:[%s7640 + $0x4c0] sm:$0xff]
    %v7794 = vld [vmem:[%s7640 + $0x4c8] sm:$0xff]
    %v7795 = vld [vmem:[%s7640 + $0x4d0] sm:$0xff]
    %v7796 = vld [vmem:[%s7640 + $0x4d8] sm:$0xff]
    %v7797 = vld [vmem:[%s7640 + $0x4e0] sm:$0xff]
    %v7798 = vld [vmem:[%s7640 + $0x4e8] sm:$0xff]
    %v7799 = vld [vmem:[%s7640 + $0x4f0] sm:$0xff]
    %v7800 = vld [vmem:[%s7640 + $0x4f8] sm:$0xff]
    %v7801 = vld [vmem:[%s7640 + $0x500] sm:$0xff]
    %v7802 = vld [vmem:[%s7640 + $0x508] sm:$0xff]
    %v7803 = vld [vmem:[%s7640 + $0x510] sm:$0xff]
    %v7804 = vld [vmem:[%s7640 + $0x518] sm:$0xff]
    %v7805 = vld [vmem:[%s7640 + $0x520] sm:$0xff]
    %v7806 = vld [vmem:[%s7640 + $0x528] sm:$0xff]
    %v7807 = vld [vmem:[%s7640 + $0x530] sm:$0xff]
    %v7808 = vld [vmem:[%s7640 + $0x538] sm:$0xff]
    %v7809 = vld [vmem:[%s7640 + $0x540] sm:$0xff]
    %v7810 = vld [vmem:[%s7640 + $0x548] sm:$0xff]
    %v7811 = vld [vmem:[%s7640 + $0x550] sm:$0xff]
    %v7812 = vld [vmem:[%s7640 + $0x558] sm:$0xff]
    %v7813 = vld [vmem:[%s7640 + $0x560] sm:$0xff]
    %v7814 = vld [vmem:[%s7640 + $0x568] sm:$0xff]
    %v7815 = vld [vmem:[%s7640 + $0x570] sm:$0xff]
    %v7816 = vld [vmem:[%s7640 + $0x578] sm:$0xff]
    %v7817 = vld [vmem:[%s7640 + $0x580] sm:$0xff]
    %v7818 = vld [vmem:[%s7640 + $0x588] sm:$0xff]
    %v7819 = vld [vmem:[%s7640 + $0x590] sm:$0xff]
    %v7820 = vld [vmem:[%s7640 + $0x598] sm:$0xff]
    %v7821 = vld [vmem:[%s7640 + $0x5a0] sm:$0xff]
    %v7822 = vld [vmem:[%s7640 + $0x5a8] sm:$0xff]
    %v7823 = vld [vmem:[%s7640 + $0x5b0] sm:$0xff]
    %v7824 = vld [vmem:[%s7640 + $0x5b8] sm:$0xff]
    %v7825 = vld [vmem:[%s7640 + $0x5c0] sm:$0xff]
    %v7826 = vld [vmem:[%s7640 + $0x5c8] sm:$0xff]
    %v7827 = vld [vmem:[%s7640 + $0x5d0] sm:$0xff]
    %v7828 = vld [vmem:[%s7640 + $0x5d8] sm:$0xff]
    %v7829 = vld [vmem:[%s7640 + $0x5e0] sm:$0xff]
    %v7830 = vld [vmem:[%s7640 + $0x5e8] sm:$0xff]
    %v7831 = vld [vmem:[%s7640 + $0x5f0] sm:$0xff]
    %v7832 = vld [vmem:[%s7640 + $0x5f8] sm:$0xff]
    %v7833 = vld [vmem:[%s7640 + $0x600] sm:$0xff]
    %v7834 = vld [vmem:[%s7640 + $0x608] sm:$0xff]
    %v7835 = vld [vmem:[%s7640 + $0x610] sm:$0xff]
    %v7836 = vld [vmem:[%s7640 + $0x618] sm:$0xff]
    %v7837 = vld [vmem:[%s7640 + $0x620] sm:$0xff]
    %v7838 = vld [vmem:[%s7640 + $0x628] sm:$0xff]
    %v7839 = vld [vmem:[%s7640 + $0x630] sm:$0xff]
    %v7840 = vld [vmem:[%s7640 + $0x638] sm:$0xff]
    %v7841 = vld [vmem:[%s7640 + $0x640] sm:$0xff]
    %v7842 = vld [vmem:[%s7640 + $0x648] sm:$0xff]
    %v7843 = vld [vmem:[%s7640 + $0x650] sm:$0xff]
    %v7844 = vld [vmem:[%s7640 + $0x658] sm:$0xff]
    %v7845 = vld [vmem:[%s7640 + $0x660] sm:$0xff]
    %v7846 = vld [vmem:[%s7640 + $0x668] sm:$0xff]
    %v7847 = vld [vmem:[%s7640 + $0x670] sm:$0xff]
    %v7848 = vld [vmem:[%s7640 + $0x678] sm:$0xff]
    %v7849 = vld [vmem:[%s7640 + $0x680] sm:$0xff]
    %v7850 = vld [vmem:[%s7640 + $0x688] sm:$0xff]
    %v7851 = vld [vmem:[%s7640 + $0x690] sm:$0xff]
    %v7852 = vld [vmem:[%s7640 + $0x698] sm:$0xff]
    %v7853 = vld [vmem:[%s7640 + $0x6a0] sm:$0xff]
    %v7854 = vld [vmem:[%s7640 + $0x6a8] sm:$0xff]
    %v7855 = vld [vmem:[%s7640 + $0x6b0] sm:$0xff]
    %v7856 = vld [vmem:[%s7640 + $0x6b8] sm:$0xff]
    %v7857 = vld [vmem:[%s7640 + $0x6c0] sm:$0xff]
    %v7858 = vld [vmem:[%s7640 + $0x6c8] sm:$0xff]
    %v7859 = vld [vmem:[%s7640 + $0x6d0] sm:$0xff]
    %v7860 = vld [vmem:[%s7640 + $0x6d8] sm:$0xff]
    %v7861 = vld [vmem:[%s7640 + $0x6e0] sm:$0xff]
    %v7862 = vld [vmem:[%s7640 + $0x6e8] sm:$0xff]
    %v7863 = vld [vmem:[%s7640 + $0x6f0] sm:$0xff]
    %v7864 = vld [vmem:[%s7640 + $0x6f8] sm:$0xff]
    %v7865 = vld [vmem:[%s7640 + $0x700] sm:$0xff]
    %v7866 = vld [vmem:[%s7640 + $0x708] sm:$0xff]
    %v7867 = vld [vmem:[%s7640 + $0x710] sm:$0xff]
    %v7868 = vld [vmem:[%s7640 + $0x718] sm:$0xff]
    %v7869 = vld [vmem:[%s7640 + $0x720] sm:$0xff]
    %v7870 = vld [vmem:[%s7640 + $0x728] sm:$0xff]
    %v7871 = vld [vmem:[%s7640 + $0x730] sm:$0xff]
    %v7872 = vld [vmem:[%s7640 + $0x738] sm:$0xff]
    %v7873 = vld [vmem:[%s7640 + $0x740] sm:$0xff]
    %v7874 = vld [vmem:[%s7640 + $0x748] sm:$0xff]
    %v7875 = vld [vmem:[%s7640 + $0x750] sm:$0xff]
    %v7876 = vld [vmem:[%s7640 + $0x758] sm:$0xff]
    %v7877 = vld [vmem:[%s7640 + $0x760] sm:$0xff]
    %v7878 = vld [vmem:[%s7640 + $0x768] sm:$0xff]
    %v7879 = vld [vmem:[%s7640 + $0x770] sm:$0xff]
    %v7880 = vld [vmem:[%s7640 + $0x778] sm:$0xff]
    %v7881 = vld [vmem:[%s7640 + $0x780] sm:$0xff]
    %v7882 = vld [vmem:[%s7640 + $0x788] sm:$0xff]
    %v7883 = vld [vmem:[%s7640 + $0x790] sm:$0xff]
    %v7884 = vld [vmem:[%s7640 + $0x798] sm:$0xff]
    %v7885 = vld [vmem:[%s7640 + $0x7a0] sm:$0xff]
    %v7886 = vld [vmem:[%s7640 + $0x7a8] sm:$0xff]
    %v7887 = vld [vmem:[%s7640 + $0x7b0] sm:$0xff]
    %v7888 = vld [vmem:[%s7640 + $0x7b8] sm:$0xff]
    %v7889 = vld [vmem:[%s7640 + $0x7c0] sm:$0xff]
    %v7890 = vld [vmem:[%s7640 + $0x7c8] sm:$0xff]
    %v7891 = vld [vmem:[%s7640 + $0x7d0] sm:$0xff]
    %v7892 = vld [vmem:[%s7640 + $0x7d8] sm:$0xff]
    %v7893 = vld [vmem:[%s7640 + $0x7e0] sm:$0xff]
    %v7894 = vld [vmem:[%s7640 + $0x7e8] sm:$0xff]
    %v7895 = vld [vmem:[%s7640 + $0x7f0] sm:$0xff]
    %v7896 = vld [vmem:[%s7640 + $0x7f8] sm:$0xff]
    %s7897 = scalar_lea.vmem [#allocation7], 6
    %v7898 = vld [vmem:[%s7897] sm:$0x3]
    %v7900 = vlaneseq
    %v7901 = vshrl.u32 %v7900, 7
    %v7902 = vsub.s32 0, %v7901
    %v7903 = vrot.slane %v7898, %v7902
    %v7904 = vlaneseq
    %v7905 = vshrl.u32 %v7904, 7
    %v7906 = vsub.s32 1, %v7905
    %v7907 = vrot.slane %v7898, %v7906
    %v7942 = vunpack.c.l.b16 %v7608
    %v7943 = vunpack.c.l.b16 %v7609
    %v7944 = vunpack.c.l.b16 %v7610
    %v7945 = vunpack.c.l.b16 %v7611
    %v7946 = vunpack.c.l.b16 %v7612
    %v7947 = vunpack.c.l.b16 %v7613
    %v7948 = vunpack.c.l.b16 %v7614
    %v7949 = vunpack.c.l.b16 %v7615
    %v7950 = vunpack.c.l.b16 %v7616
    %v7951 = vunpack.c.l.b16 %v7617
    %v7952 = vunpack.c.l.b16 %v7618
    %v7953 = vunpack.c.l.b16 %v7619
    %v7954 = vunpack.c.l.b16 %v7620
    %v7955 = vunpack.c.l.b16 %v7621
    %v7956 = vunpack.c.l.b16 %v7622
    %v7957 = vunpack.c.l.b16 %v7623
    %v7958 = vunpack.c.l.b16 %v7624
    %v7959 = vunpack.c.l.b16 %v7625
    %v7960 = vunpack.c.l.b16 %v7626
    %v7961 = vunpack.c.l.b16 %v7627
    %v7962 = vunpack.c.l.b16 %v7628
    %v7963 = vunpack.c.l.b16 %v7629
    %v7964 = vunpack.c.l.b16 %v7630
    %v7965 = vunpack.c.l.b16 %v7631
    %v7966 = vunpack.c.l.b16 %v7632
    %v7967 = vunpack.c.l.b16 %v7633
    %v7968 = vunpack.c.l.b16 %v7634
    %v7969 = vunpack.c.l.b16 %v7635
    %v7970 = vunpack.c.l.b16 %v7636
    %v7971 = vunpack.c.l.b16 %v7637
    %v7972 = vunpack.c.l.b16 %v7638
    %v7973 = vunpack.c.l.b16 %v7639
    %v7974 = vsel %vm772, %v7958, %v7942
    %v7975 = vsel %vm772, %v7959, %v7943
    %v7976 = vsel %vm772, %v7960, %v7944
    %v7977 = vsel %vm772, %v7961, %v7945
    %v7978 = vsel %vm772, %v7962, %v7946
    %v7979 = vsel %vm772, %v7963, %v7947
    %v7980 = vsel %vm772, %v7964, %v7948
    %v7981 = vsel %vm772, %v7965, %v7949
    %v7982 = vsel %vm772, %v7966, %v7950
    %v7983 = vsel %vm772, %v7967, %v7951
    %v7984 = vsel %vm772, %v7968, %v7952
    %v7985 = vsel %vm772, %v7969, %v7953
    %v7986 = vsel %vm772, %v7970, %v7954
    %v7987 = vsel %vm772, %v7971, %v7955
    %v7988 = vsel %vm772, %v7972, %v7956
    %v7989 = vsel %vm772, %v7973, %v7957
    %v7990 = vpack.c.b16 %v7974, %v7974
    %v7991 = vpack.c.b16 %v7975, %v7975
    %v7992 = vpack.c.b16 %v7976, %v7976
    %v7993 = vpack.c.b16 %v7977, %v7977
    %v7994 = vpack.c.b16 %v7978, %v7978
    %v7995 = vpack.c.b16 %v7979, %v7979
    %v7996 = vpack.c.b16 %v7980, %v7980
    %v7997 = vpack.c.b16 %v7981, %v7981
    %v7998 = vpack.c.b16 %v7982, %v7982
    %v7999 = vpack.c.b16 %v7983, %v7983
    %v8000 = vpack.c.b16 %v7984, %v7984
    %v8001 = vpack.c.b16 %v7985, %v7985
    %v8002 = vpack.c.b16 %v7986, %v7986
    %v8003 = vpack.c.b16 %v7987, %v7987
    %v8004 = vpack.c.b16 %v7988, %v7988
    %v8005 = vpack.c.b16 %v7989, %v7989
    %v8278 = vunpack.c.l.b16 %v7641
    %v8279 = vunpack.c.h.b16 %v7641
    %v8280 = vunpack.c.l.b16 %v7642
    %v8281 = vunpack.c.h.b16 %v7642
    %v8282 = vunpack.c.l.b16 %v7643
    %v8283 = vunpack.c.h.b16 %v7643
    %v8284 = vunpack.c.l.b16 %v7644
    %v8285 = vunpack.c.h.b16 %v7644
    %v8286 = vunpack.c.l.b16 %v7645
    %v8287 = vunpack.c.h.b16 %v7645
    %v8288 = vunpack.c.l.b16 %v7646
    %v8289 = vunpack.c.h.b16 %v7646
    %v8290 = vunpack.c.l.b16 %v7647
    %v8291 = vunpack.c.h.b16 %v7647
    %v8292 = vunpack.c.l.b16 %v7648
    %v8293 = vunpack.c.h.b16 %v7648
    %v8294 = vunpack.c.l.b16 %v7649
    %v8295 = vunpack.c.h.b16 %v7649
    %v8296 = vunpack.c.l.b16 %v7650
    %v8297 = vunpack.c.h.b16 %v7650
    %v8298 = vunpack.c.l.b16 %v7651
    %v8299 = vunpack.c.h.b16 %v7651
    %v8300 = vunpack.c.l.b16 %v7652
    %v8301 = vunpack.c.h.b16 %v7652
    %v8302 = vunpack.c.l.b16 %v7653
    %v8303 = vunpack.c.h.b16 %v7653
    %v8304 = vunpack.c.l.b16 %v7654
    %v8305 = vunpack.c.h.b16 %v7654
    %v8306 = vunpack.c.l.b16 %v7655
    %v8307 = vunpack.c.h.b16 %v7655
    %v8308 = vunpack.c.l.b16 %v7656
    %v8309 = vunpack.c.h.b16 %v7656
    %v8310 = vunpack.c.l.b16 %v7657
    %v8311 = vunpack.c.h.b16 %v7657
    %v8312 = vunpack.c.l.b16 %v7658
    %v8313 = vunpack.c.h.b16 %v7658
    %v8314 = vunpack.c.l.b16 %v7659
    %v8315 = vunpack.c.h.b16 %v7659
    %v8316 = vunpack.c.l.b16 %v7660
    %v8317 = vunpack.c.h.b16 %v7660
    %v8318 = vunpack.c.l.b16 %v7661
    %v8319 = vunpack.c.h.b16 %v7661
    %v8320 = vunpack.c.l.b16 %v7662
    %v8321 = vunpack.c.h.b16 %v7662
    %v8322 = vunpack.c.l.b16 %v7663
    %v8323 = vunpack.c.h.b16 %v7663
    %v8324 = vunpack.c.l.b16 %v7664
    %v8325 = vunpack.c.h.b16 %v7664
    %v8326 = vunpack.c.l.b16 %v7665
    %v8327 = vunpack.c.h.b16 %v7665
    %v8328 = vunpack.c.l.b16 %v7666
    %v8329 = vunpack.c.h.b16 %v7666
    %v8330 = vunpack.c.l.b16 %v7667
    %v8331 = vunpack.c.h.b16 %v7667
    %v8332 = vunpack.c.l.b16 %v7668
    %v8333 = vunpack.c.h.b16 %v7668
    %v8334 = vunpack.c.l.b16 %v7669
    %v8335 = vunpack.c.h.b16 %v7669
    %v8336 = vunpack.c.l.b16 %v7670
    %v8337 = vunpack.c.h.b16 %v7670
    %v8338 = vunpack.c.l.b16 %v7671
    %v8339 = vunpack.c.h.b16 %v7671
    %v8340 = vunpack.c.l.b16 %v7672
    %v8341 = vunpack.c.h.b16 %v7672
    %v8342 = vunpack.c.l.b16 %v7673
    %v8343 = vunpack.c.h.b16 %v7673
    %v8344 = vunpack.c.l.b16 %v7674
    %v8345 = vunpack.c.h.b16 %v7674
    %v8346 = vunpack.c.l.b16 %v7675
    %v8347 = vunpack.c.h.b16 %v7675
    %v8348 = vunpack.c.l.b16 %v7676
    %v8349 = vunpack.c.h.b16 %v7676
    %v8350 = vunpack.c.l.b16 %v7677
    %v8351 = vunpack.c.h.b16 %v7677
    %v8352 = vunpack.c.l.b16 %v7678
    %v8353 = vunpack.c.h.b16 %v7678
    %v8354 = vunpack.c.l.b16 %v7679
    %v8355 = vunpack.c.h.b16 %v7679
    %v8356 = vunpack.c.l.b16 %v7680
    %v8357 = vunpack.c.h.b16 %v7680
    %v8358 = vunpack.c.l.b16 %v7681
    %v8359 = vunpack.c.h.b16 %v7681
    %v8360 = vunpack.c.l.b16 %v7682
    %v8361 = vunpack.c.h.b16 %v7682
    %v8362 = vunpack.c.l.b16 %v7683
    %v8363 = vunpack.c.h.b16 %v7683
    %v8364 = vunpack.c.l.b16 %v7684
    %v8365 = vunpack.c.h.b16 %v7684
    %v8366 = vunpack.c.l.b16 %v7685
    %v8367 = vunpack.c.h.b16 %v7685
    %v8368 = vunpack.c.l.b16 %v7686
    %v8369 = vunpack.c.h.b16 %v7686
    %v8370 = vunpack.c.l.b16 %v7687
    %v8371 = vunpack.c.h.b16 %v7687
    %v8372 = vunpack.c.l.b16 %v7688
    %v8373 = vunpack.c.h.b16 %v7688
    %v8374 = vunpack.c.l.b16 %v7689
    %v8375 = vunpack.c.h.b16 %v7689
    %v8376 = vunpack.c.l.b16 %v7690
    %v8377 = vunpack.c.h.b16 %v7690
    %v8378 = vunpack.c.l.b16 %v7691
    %v8379 = vunpack.c.h.b16 %v7691
    %v8380 = vunpack.c.l.b16 %v7692
    %v8381 = vunpack.c.h.b16 %v7692
    %v8382 = vunpack.c.l.b16 %v7693
    %v8383 = vunpack.c.h.b16 %v7693
    %v8384 = vunpack.c.l.b16 %v7694
    %v8385 = vunpack.c.h.b16 %v7694
    %v8386 = vunpack.c.l.b16 %v7695
    %v8387 = vunpack.c.h.b16 %v7695
    %v8388 = vunpack.c.l.b16 %v7696
    %v8389 = vunpack.c.h.b16 %v7696
    %v8390 = vunpack.c.l.b16 %v7697
    %v8391 = vunpack.c.h.b16 %v7697
    %v8392 = vunpack.c.l.b16 %v7698
    %v8393 = vunpack.c.h.b16 %v7698
    %v8394 = vunpack.c.l.b16 %v7699
    %v8395 = vunpack.c.h.b16 %v7699
    %v8396 = vunpack.c.l.b16 %v7700
    %v8397 = vunpack.c.h.b16 %v7700
    %v8398 = vunpack.c.l.b16 %v7701
    %v8399 = vunpack.c.h.b16 %v7701
    %v8400 = vunpack.c.l.b16 %v7702
    %v8401 = vunpack.c.h.b16 %v7702
    %v8402 = vunpack.c.l.b16 %v7703
    %v8403 = vunpack.c.h.b16 %v7703
    %v8404 = vunpack.c.l.b16 %v7704
    %v8405 = vunpack.c.h.b16 %v7704
    %v8406 = vunpack.c.l.b16 %v7705
    %v8407 = vunpack.c.h.b16 %v7705
    %v8408 = vunpack.c.l.b16 %v7706
    %v8409 = vunpack.c.h.b16 %v7706
    %v8410 = vunpack.c.l.b16 %v7707
    %v8411 = vunpack.c.h.b16 %v7707
    %v8412 = vunpack.c.l.b16 %v7708
    %v8413 = vunpack.c.h.b16 %v7708
    %v8414 = vunpack.c.l.b16 %v7709
    %v8415 = vunpack.c.h.b16 %v7709
    %v8416 = vunpack.c.l.b16 %v7710
    %v8417 = vunpack.c.h.b16 %v7710
    %v8418 = vunpack.c.l.b16 %v7711
    %v8419 = vunpack.c.h.b16 %v7711
    %v8420 = vunpack.c.l.b16 %v7712
    %v8421 = vunpack.c.h.b16 %v7712
    %v8422 = vunpack.c.l.b16 %v7713
    %v8423 = vunpack.c.h.b16 %v7713
    %v8424 = vunpack.c.l.b16 %v7714
    %v8425 = vunpack.c.h.b16 %v7714
    %v8426 = vunpack.c.l.b16 %v7715
    %v8427 = vunpack.c.h.b16 %v7715
    %v8428 = vunpack.c.l.b16 %v7716
    %v8429 = vunpack.c.h.b16 %v7716
    %v8430 = vunpack.c.l.b16 %v7717
    %v8431 = vunpack.c.h.b16 %v7717
    %v8432 = vunpack.c.l.b16 %v7718
    %v8433 = vunpack.c.h.b16 %v7718
    %v8434 = vunpack.c.l.b16 %v7719
    %v8435 = vunpack.c.h.b16 %v7719
    %v8436 = vunpack.c.l.b16 %v7720
    %v8437 = vunpack.c.h.b16 %v7720
    %v8438 = vunpack.c.l.b16 %v7721
    %v8439 = vunpack.c.h.b16 %v7721
    %v8440 = vunpack.c.l.b16 %v7722
    %v8441 = vunpack.c.h.b16 %v7722
    %v8442 = vunpack.c.l.b16 %v7723
    %v8443 = vunpack.c.h.b16 %v7723
    %v8444 = vunpack.c.l.b16 %v7724
    %v8445 = vunpack.c.h.b16 %v7724
    %v8446 = vunpack.c.l.b16 %v7725
    %v8447 = vunpack.c.h.b16 %v7725
    %v8448 = vunpack.c.l.b16 %v7726
    %v8449 = vunpack.c.h.b16 %v7726
    %v8450 = vunpack.c.l.b16 %v7727
    %v8451 = vunpack.c.h.b16 %v7727
    %v8452 = vunpack.c.l.b16 %v7728
    %v8453 = vunpack.c.h.b16 %v7728
    %v8454 = vunpack.c.l.b16 %v7729
    %v8455 = vunpack.c.h.b16 %v7729
    %v8456 = vunpack.c.l.b16 %v7730
    %v8457 = vunpack.c.h.b16 %v7730
    %v8458 = vunpack.c.l.b16 %v7731
    %v8459 = vunpack.c.h.b16 %v7731
    %v8460 = vunpack.c.l.b16 %v7732
    %v8461 = vunpack.c.h.b16 %v7732
    %v8462 = vunpack.c.l.b16 %v7733
    %v8463 = vunpack.c.h.b16 %v7733
    %v8464 = vunpack.c.l.b16 %v7734
    %v8465 = vunpack.c.h.b16 %v7734
    %v8466 = vunpack.c.l.b16 %v7735
    %v8467 = vunpack.c.h.b16 %v7735
    %v8468 = vunpack.c.l.b16 %v7736
    %v8469 = vunpack.c.h.b16 %v7736
    %v8470 = vunpack.c.l.b16 %v7737
    %v8471 = vunpack.c.h.b16 %v7737
    %v8472 = vunpack.c.l.b16 %v7738
    %v8473 = vunpack.c.h.b16 %v7738
    %v8474 = vunpack.c.l.b16 %v7739
    %v8475 = vunpack.c.h.b16 %v7739
    %v8476 = vunpack.c.l.b16 %v7740
    %v8477 = vunpack.c.h.b16 %v7740
    %v8478 = vunpack.c.l.b16 %v7741
    %v8479 = vunpack.c.h.b16 %v7741
    %v8480 = vunpack.c.l.b16 %v7742
    %v8481 = vunpack.c.h.b16 %v7742
    %v8482 = vunpack.c.l.b16 %v7743
    %v8483 = vunpack.c.h.b16 %v7743
    %v8484 = vunpack.c.l.b16 %v7744
    %v8485 = vunpack.c.h.b16 %v7744
    %v8486 = vunpack.c.l.b16 %v7745
    %v8487 = vunpack.c.h.b16 %v7745
    %v8488 = vunpack.c.l.b16 %v7746
    %v8489 = vunpack.c.h.b16 %v7746
    %v8490 = vunpack.c.l.b16 %v7747
    %v8491 = vunpack.c.h.b16 %v7747
    %v8492 = vunpack.c.l.b16 %v7748
    %v8493 = vunpack.c.h.b16 %v7748
    %v8494 = vunpack.c.l.b16 %v7749
    %v8495 = vunpack.c.h.b16 %v7749
    %v8496 = vunpack.c.l.b16 %v7750
    %v8497 = vunpack.c.h.b16 %v7750
    %v8498 = vunpack.c.l.b16 %v7751
    %v8499 = vunpack.c.h.b16 %v7751
    %v8500 = vunpack.c.l.b16 %v7752
    %v8501 = vunpack.c.h.b16 %v7752
    %v8502 = vunpack.c.l.b16 %v7753
    %v8503 = vunpack.c.h.b16 %v7753
    %v8504 = vunpack.c.l.b16 %v7754
    %v8505 = vunpack.c.h.b16 %v7754
    %v8506 = vunpack.c.l.b16 %v7755
    %v8507 = vunpack.c.h.b16 %v7755
    %v8508 = vunpack.c.l.b16 %v7756
    %v8509 = vunpack.c.h.b16 %v7756
    %v8510 = vunpack.c.l.b16 %v7757
    %v8511 = vunpack.c.h.b16 %v7757
    %v8512 = vunpack.c.l.b16 %v7758
    %v8513 = vunpack.c.h.b16 %v7758
    %v8514 = vunpack.c.l.b16 %v7759
    %v8515 = vunpack.c.h.b16 %v7759
    %v8516 = vunpack.c.l.b16 %v7760
    %v8517 = vunpack.c.h.b16 %v7760
    %v8518 = vunpack.c.l.b16 %v7761
    %v8519 = vunpack.c.h.b16 %v7761
    %v8520 = vunpack.c.l.b16 %v7762
    %v8521 = vunpack.c.h.b16 %v7762
    %v8522 = vunpack.c.l.b16 %v7763
    %v8523 = vunpack.c.h.b16 %v7763
    %v8524 = vunpack.c.l.b16 %v7764
    %v8525 = vunpack.c.h.b16 %v7764
    %v8526 = vunpack.c.l.b16 %v7765
    %v8527 = vunpack.c.h.b16 %v7765
    %v8528 = vunpack.c.l.b16 %v7766
    %v8529 = vunpack.c.h.b16 %v7766
    %v8530 = vunpack.c.l.b16 %v7767
    %v8531 = vunpack.c.h.b16 %v7767
    %v8532 = vunpack.c.l.b16 %v7768
    %v8533 = vunpack.c.h.b16 %v7768
    %v8534 = vunpack.c.l.b16 %v7769
    %v8535 = vunpack.c.h.b16 %v7769
    %v8536 = vunpack.c.l.b16 %v7770
    %v8537 = vunpack.c.h.b16 %v7770
    %v8538 = vunpack.c.l.b16 %v7771
    %v8539 = vunpack.c.h.b16 %v7771
    %v8540 = vunpack.c.l.b16 %v7772
    %v8541 = vunpack.c.h.b16 %v7772
    %v8542 = vunpack.c.l.b16 %v7773
    %v8543 = vunpack.c.h.b16 %v7773
    %v8544 = vunpack.c.l.b16 %v7774
    %v8545 = vunpack.c.h.b16 %v7774
    %v8546 = vunpack.c.l.b16 %v7775
    %v8547 = vunpack.c.h.b16 %v7775
    %v8548 = vunpack.c.l.b16 %v7776
    %v8549 = vunpack.c.h.b16 %v7776
    %v8550 = vunpack.c.l.b16 %v7777
    %v8551 = vunpack.c.h.b16 %v7777
    %v8552 = vunpack.c.l.b16 %v7778
    %v8553 = vunpack.c.h.b16 %v7778
    %v8554 = vunpack.c.l.b16 %v7779
    %v8555 = vunpack.c.h.b16 %v7779
    %v8556 = vunpack.c.l.b16 %v7780
    %v8557 = vunpack.c.h.b16 %v7780
    %v8558 = vunpack.c.l.b16 %v7781
    %v8559 = vunpack.c.h.b16 %v7781
    %v8560 = vunpack.c.l.b16 %v7782
    %v8561 = vunpack.c.h.b16 %v7782
    %v8562 = vunpack.c.l.b16 %v7783
    %v8563 = vunpack.c.h.b16 %v7783
    %v8564 = vunpack.c.l.b16 %v7784
    %v8565 = vunpack.c.h.b16 %v7784
    %v8566 = vunpack.c.l.b16 %v7785
    %v8567 = vunpack.c.h.b16 %v7785
    %v8568 = vunpack.c.l.b16 %v7786
    %v8569 = vunpack.c.h.b16 %v7786
    %v8570 = vunpack.c.l.b16 %v7787
    %v8571 = vunpack.c.h.b16 %v7787
    %v8572 = vunpack.c.l.b16 %v7788
    %v8573 = vunpack.c.h.b16 %v7788
    %v8574 = vunpack.c.l.b16 %v7789
    %v8575 = vunpack.c.h.b16 %v7789
    %v8576 = vunpack.c.l.b16 %v7790
    %v8577 = vunpack.c.h.b16 %v7790
    %v8578 = vunpack.c.l.b16 %v7791
    %v8579 = vunpack.c.h.b16 %v7791
    %v8580 = vunpack.c.l.b16 %v7792
    %v8581 = vunpack.c.h.b16 %v7792
    %v8582 = vunpack.c.l.b16 %v7793
    %v8583 = vunpack.c.h.b16 %v7793
    %v8584 = vunpack.c.l.b16 %v7794
    %v8585 = vunpack.c.h.b16 %v7794
    %v8586 = vunpack.c.l.b16 %v7795
    %v8587 = vunpack.c.h.b16 %v7795
    %v8588 = vunpack.c.l.b16 %v7796
    %v8589 = vunpack.c.h.b16 %v7796
    %v8590 = vunpack.c.l.b16 %v7797
    %v8591 = vunpack.c.h.b16 %v7797
    %v8592 = vunpack.c.l.b16 %v7798
    %v8593 = vunpack.c.h.b16 %v7798
    %v8594 = vunpack.c.l.b16 %v7799
    %v8595 = vunpack.c.h.b16 %v7799
    %v8596 = vunpack.c.l.b16 %v7800
    %v8597 = vunpack.c.h.b16 %v7800
    %v8598 = vunpack.c.l.b16 %v7801
    %v8599 = vunpack.c.h.b16 %v7801
    %v8600 = vunpack.c.l.b16 %v7802
    %v8601 = vunpack.c.h.b16 %v7802
    %v8602 = vunpack.c.l.b16 %v7803
    %v8603 = vunpack.c.h.b16 %v7803
    %v8604 = vunpack.c.l.b16 %v7804
    %v8605 = vunpack.c.h.b16 %v7804
    %v8606 = vunpack.c.l.b16 %v7805
    %v8607 = vunpack.c.h.b16 %v7805
    %v8608 = vunpack.c.l.b16 %v7806
    %v8609 = vunpack.c.h.b16 %v7806
    %v8610 = vunpack.c.l.b16 %v7807
    %v8611 = vunpack.c.h.b16 %v7807
    %v8612 = vunpack.c.l.b16 %v7808
    %v8613 = vunpack.c.h.b16 %v7808
    %v8614 = vunpack.c.l.b16 %v7809
    %v8615 = vunpack.c.h.b16 %v7809
    %v8616 = vunpack.c.l.b16 %v7810
    %v8617 = vunpack.c.h.b16 %v7810
    %v8618 = vunpack.c.l.b16 %v7811
    %v8619 = vunpack.c.h.b16 %v7811
    %v8620 = vunpack.c.l.b16 %v7812
    %v8621 = vunpack.c.h.b16 %v7812
    %v8622 = vunpack.c.l.b16 %v7813
    %v8623 = vunpack.c.h.b16 %v7813
    %v8624 = vunpack.c.l.b16 %v7814
    %v8625 = vunpack.c.h.b16 %v7814
    %v8626 = vunpack.c.l.b16 %v7815
    %v8627 = vunpack.c.h.b16 %v7815
    %v8628 = vunpack.c.l.b16 %v7816
    %v8629 = vunpack.c.h.b16 %v7816
    %v8630 = vunpack.c.l.b16 %v7817
    %v8631 = vunpack.c.h.b16 %v7817
    %v8632 = vunpack.c.l.b16 %v7818
    %v8633 = vunpack.c.h.b16 %v7818
    %v8634 = vunpack.c.l.b16 %v7819
    %v8635 = vunpack.c.h.b16 %v7819
    %v8636 = vunpack.c.l.b16 %v7820
    %v8637 = vunpack.c.h.b16 %v7820
    %v8638 = vunpack.c.l.b16 %v7821
    %v8639 = vunpack.c.h.b16 %v7821
    %v8640 = vunpack.c.l.b16 %v7822
    %v8641 = vunpack.c.h.b16 %v7822
    %v8642 = vunpack.c.l.b16 %v7823
    %v8643 = vunpack.c.h.b16 %v7823
    %v8644 = vunpack.c.l.b16 %v7824
    %v8645 = vunpack.c.h.b16 %v7824
    %v8646 = vunpack.c.l.b16 %v7825
    %v8647 = vunpack.c.h.b16 %v7825
    %v8648 = vunpack.c.l.b16 %v7826
    %v8649 = vunpack.c.h.b16 %v7826
    %v8650 = vunpack.c.l.b16 %v7827
    %v8651 = vunpack.c.h.b16 %v7827
    %v8652 = vunpack.c.l.b16 %v7828
    %v8653 = vunpack.c.h.b16 %v7828
    %v8654 = vunpack.c.l.b16 %v7829
    %v8655 = vunpack.c.h.b16 %v7829
    %v8656 = vunpack.c.l.b16 %v7830
    %v8657 = vunpack.c.h.b16 %v7830
    %v8658 = vunpack.c.l.b16 %v7831
    %v8659 = vunpack.c.h.b16 %v7831
    %v8660 = vunpack.c.l.b16 %v7832
    %v8661 = vunpack.c.h.b16 %v7832
    %v8662 = vunpack.c.l.b16 %v7833
    %v8663 = vunpack.c.h.b16 %v7833
    %v8664 = vunpack.c.l.b16 %v7834
    %v8665 = vunpack.c.h.b16 %v7834
    %v8666 = vunpack.c.l.b16 %v7835
    %v8667 = vunpack.c.h.b16 %v7835
    %v8668 = vunpack.c.l.b16 %v7836
    %v8669 = vunpack.c.h.b16 %v7836
    %v8670 = vunpack.c.l.b16 %v7837
    %v8671 = vunpack.c.h.b16 %v7837
    %v8672 = vunpack.c.l.b16 %v7838
    %v8673 = vunpack.c.h.b16 %v7838
    %v8674 = vunpack.c.l.b16 %v7839
    %v8675 = vunpack.c.h.b16 %v7839
    %v8676 = vunpack.c.l.b16 %v7840
    %v8677 = vunpack.c.h.b16 %v7840
    %v8678 = vunpack.c.l.b16 %v7841
    %v8679 = vunpack.c.h.b16 %v7841
    %v8680 = vunpack.c.l.b16 %v7842
    %v8681 = vunpack.c.h.b16 %v7842
    %v8682 = vunpack.c.l.b16 %v7843
    %v8683 = vunpack.c.h.b16 %v7843
    %v8684 = vunpack.c.l.b16 %v7844
    %v8685 = vunpack.c.h.b16 %v7844
    %v8686 = vunpack.c.l.b16 %v7845
    %v8687 = vunpack.c.h.b16 %v7845
    %v8688 = vunpack.c.l.b16 %v7846
    %v8689 = vunpack.c.h.b16 %v7846
    %v8690 = vunpack.c.l.b16 %v7847
    %v8691 = vunpack.c.h.b16 %v7847
    %v8692 = vunpack.c.l.b16 %v7848
    %v8693 = vunpack.c.h.b16 %v7848
    %v8694 = vunpack.c.l.b16 %v7849
    %v8695 = vunpack.c.h.b16 %v7849
    %v8696 = vunpack.c.l.b16 %v7850
    %v8697 = vunpack.c.h.b16 %v7850
    %v8698 = vunpack.c.l.b16 %v7851
    %v8699 = vunpack.c.h.b16 %v7851
    %v8700 = vunpack.c.l.b16 %v7852
    %v8701 = vunpack.c.h.b16 %v7852
    %v8702 = vunpack.c.l.b16 %v7853
    %v8703 = vunpack.c.h.b16 %v7853
    %v8704 = vunpack.c.l.b16 %v7854
    %v8705 = vunpack.c.h.b16 %v7854
    %v8706 = vunpack.c.l.b16 %v7855
    %v8707 = vunpack.c.h.b16 %v7855
    %v8708 = vunpack.c.l.b16 %v7856
    %v8709 = vunpack.c.h.b16 %v7856
    %v8710 = vunpack.c.l.b16 %v7857
    %v8711 = vunpack.c.h.b16 %v7857
    %v8712 = vunpack.c.l.b16 %v7858
    %v8713 = vunpack.c.h.b16 %v7858
    %v8714 = vunpack.c.l.b16 %v7859
    %v8715 = vunpack.c.h.b16 %v7859
    %v8716 = vunpack.c.l.b16 %v7860
    %v8717 = vunpack.c.h.b16 %v7860
    %v8718 = vunpack.c.l.b16 %v7861
    %v8719 = vunpack.c.h.b16 %v7861
    %v8720 = vunpack.c.l.b16 %v7862
    %v8721 = vunpack.c.h.b16 %v7862
    %v8722 = vunpack.c.l.b16 %v7863
    %v8723 = vunpack.c.h.b16 %v7863
    %v8724 = vunpack.c.l.b16 %v7864
    %v8725 = vunpack.c.h.b16 %v7864
    %v8726 = vunpack.c.l.b16 %v7865
    %v8727 = vunpack.c.h.b16 %v7865
    %v8728 = vunpack.c.l.b16 %v7866
    %v8729 = vunpack.c.h.b16 %v7866
    %v8730 = vunpack.c.l.b16 %v7867
    %v8731 = vunpack.c.h.b16 %v7867
    %v8732 = vunpack.c.l.b16 %v7868
    %v8733 = vunpack.c.h.b16 %v7868
    %v8734 = vunpack.c.l.b16 %v7869
    %v8735 = vunpack.c.h.b16 %v7869
    %v8736 = vunpack.c.l.b16 %v7870
    %v8737 = vunpack.c.h.b16 %v7870
    %v8738 = vunpack.c.l.b16 %v7871
    %v8739 = vunpack.c.h.b16 %v7871
    %v8740 = vunpack.c.l.b16 %v7872
    %v8741 = vunpack.c.h.b16 %v7872
    %v8742 = vunpack.c.l.b16 %v7873
    %v8743 = vunpack.c.h.b16 %v7873
    %v8744 = vunpack.c.l.b16 %v7874
    %v8745 = vunpack.c.h.b16 %v7874
    %v8746 = vunpack.c.l.b16 %v7875
    %v8747 = vunpack.c.h.b16 %v7875
    %v8748 = vunpack.c.l.b16 %v7876
    %v8749 = vunpack.c.h.b16 %v7876
    %v8750 = vunpack.c.l.b16 %v7877
    %v8751 = vunpack.c.h.b16 %v7877
    %v8752 = vunpack.c.l.b16 %v7878
    %v8753 = vunpack.c.h.b16 %v7878
    %v8754 = vunpack.c.l.b16 %v7879
    %v8755 = vunpack.c.h.b16 %v7879
    %v8756 = vunpack.c.l.b16 %v7880
    %v8757 = vunpack.c.h.b16 %v7880
    %v8758 = vunpack.c.l.b16 %v7881
    %v8759 = vunpack.c.h.b16 %v7881
    %v8760 = vunpack.c.l.b16 %v7882
    %v8761 = vunpack.c.h.b16 %v7882
    %v8762 = vunpack.c.l.b16 %v7883
    %v8763 = vunpack.c.h.b16 %v7883
    %v8764 = vunpack.c.l.b16 %v7884
    %v8765 = vunpack.c.h.b16 %v7884
    %v8766 = vunpack.c.l.b16 %v7885
    %v8767 = vunpack.c.h.b16 %v7885
    %v8768 = vunpack.c.l.b16 %v7886
    %v8769 = vunpack.c.h.b16 %v7886
    %v8770 = vunpack.c.l.b16 %v7887
    %v8771 = vunpack.c.h.b16 %v7887
    %v8772 = vunpack.c.l.b16 %v7888
    %v8773 = vunpack.c.h.b16 %v7888
    %v8774 = vunpack.c.l.b16 %v7889
    %v8775 = vunpack.c.h.b16 %v7889
    %v8776 = vunpack.c.l.b16 %v7890
    %v8777 = vunpack.c.h.b16 %v7890
    %v8778 = vunpack.c.l.b16 %v7891
    %v8779 = vunpack.c.h.b16 %v7891
    %v8780 = vunpack.c.l.b16 %v7892
    %v8781 = vunpack.c.h.b16 %v7892
    %v8782 = vunpack.c.l.b16 %v7893
    %v8783 = vunpack.c.h.b16 %v7893
    %v8784 = vunpack.c.l.b16 %v7894
    %v8785 = vunpack.c.h.b16 %v7894
    %v8786 = vunpack.c.l.b16 %v7895
    %v8787 = vunpack.c.h.b16 %v7895
    %v8788 = vunpack.c.l.b16 %v7896
    %v8789 = vunpack.c.h.b16 %v7896
    %v8790 = vpack.c.b16 %v8280, %v8278
    %v8791 = vpack.c.b16 %v8281, %v8279
    %v8792 = vpack.c.b16 %v8284, %v8282
    %v8793 = vpack.c.b16 %v8285, %v8283
    %v8794 = vpack.c.b16 %v8288, %v8286
    %v8795 = vpack.c.b16 %v8289, %v8287
    %v8796 = vpack.c.b16 %v8292, %v8290
    %v8797 = vpack.c.b16 %v8293, %v8291
    %v8798 = vpack.c.b16 %v8296, %v8294
    %v8799 = vpack.c.b16 %v8297, %v8295
    %v8800 = vpack.c.b16 %v8300, %v8298
    %v8801 = vpack.c.b16 %v8301, %v8299
    %v8802 = vpack.c.b16 %v8304, %v8302
    %v8803 = vpack.c.b16 %v8305, %v8303
    %v8804 = vpack.c.b16 %v8308, %v8306
    %v8805 = vpack.c.b16 %v8309, %v8307
    %v8806 = vpack.c.b16 %v8312, %v8310
    %v8807 = vpack.c.b16 %v8313, %v8311
    %v8808 = vpack.c.b16 %v8316, %v8314
    %v8809 = vpack.c.b16 %v8317, %v8315
    %v8810 = vpack.c.b16 %v8320, %v8318
    %v8811 = vpack.c.b16 %v8321, %v8319
    %v8812 = vpack.c.b16 %v8324, %v8322
    %v8813 = vpack.c.b16 %v8325, %v8323
    %v8814 = vpack.c.b16 %v8328, %v8326
    %v8815 = vpack.c.b16 %v8329, %v8327
    %v8816 = vpack.c.b16 %v8332, %v8330
    %v8817 = vpack.c.b16 %v8333, %v8331
    %v8818 = vpack.c.b16 %v8336, %v8334
    %v8819 = vpack.c.b16 %v8337, %v8335
    %v8820 = vpack.c.b16 %v8340, %v8338
    %v8821 = vpack.c.b16 %v8341, %v8339
    %v8822 = vpack.c.b16 %v8344, %v8342
    %v8823 = vpack.c.b16 %v8345, %v8343
    %v8824 = vpack.c.b16 %v8348, %v8346
    %v8825 = vpack.c.b16 %v8349, %v8347
    %v8826 = vpack.c.b16 %v8352, %v8350
    %v8827 = vpack.c.b16 %v8353, %v8351
    %v8828 = vpack.c.b16 %v8356, %v8354
    %v8829 = vpack.c.b16 %v8357, %v8355
    %v8830 = vpack.c.b16 %v8360, %v8358
    %v8831 = vpack.c.b16 %v8361, %v8359
    %v8832 = vpack.c.b16 %v8364, %v8362
    %v8833 = vpack.c.b16 %v8365, %v8363
    %v8834 = vpack.c.b16 %v8368, %v8366
    %v8835 = vpack.c.b16 %v8369, %v8367
    %v8836 = vpack.c.b16 %v8372, %v8370
    %v8837 = vpack.c.b16 %v8373, %v8371
    %v8838 = vpack.c.b16 %v8376, %v8374
    %v8839 = vpack.c.b16 %v8377, %v8375
    %v8840 = vpack.c.b16 %v8380, %v8378
    %v8841 = vpack.c.b16 %v8381, %v8379
    %v8842 = vpack.c.b16 %v8384, %v8382
    %v8843 = vpack.c.b16 %v8385, %v8383
    %v8844 = vpack.c.b16 %v8388, %v8386
    %v8845 = vpack.c.b16 %v8389, %v8387
    %v8846 = vpack.c.b16 %v8392, %v8390
    %v8847 = vpack.c.b16 %v8393, %v8391
    %v8848 = vpack.c.b16 %v8396, %v8394
    %v8849 = vpack.c.b16 %v8397, %v8395
    %v8850 = vpack.c.b16 %v8400, %v8398
    %v8851 = vpack.c.b16 %v8401, %v8399
    %v8852 = vpack.c.b16 %v8404, %v8402
    %v8853 = vpack.c.b16 %v8405, %v8403
    %v8854 = vpack.c.b16 %v8408, %v8406
    %v8855 = vpack.c.b16 %v8409, %v8407
    %v8856 = vpack.c.b16 %v8412, %v8410
    %v8857 = vpack.c.b16 %v8413, %v8411
    %v8858 = vpack.c.b16 %v8416, %v8414
    %v8859 = vpack.c.b16 %v8417, %v8415
    %v8860 = vpack.c.b16 %v8420, %v8418
    %v8861 = vpack.c.b16 %v8421, %v8419
    %v8862 = vpack.c.b16 %v8424, %v8422
    %v8863 = vpack.c.b16 %v8425, %v8423
    %v8864 = vpack.c.b16 %v8428, %v8426
    %v8865 = vpack.c.b16 %v8429, %v8427
    %v8866 = vpack.c.b16 %v8432, %v8430
    %v8867 = vpack.c.b16 %v8433, %v8431
    %v8868 = vpack.c.b16 %v8436, %v8434
    %v8869 = vpack.c.b16 %v8437, %v8435
    %v8870 = vpack.c.b16 %v8440, %v8438
    %v8871 = vpack.c.b16 %v8441, %v8439
    %v8872 = vpack.c.b16 %v8444, %v8442
    %v8873 = vpack.c.b16 %v8445, %v8443
    %v8874 = vpack.c.b16 %v8448, %v8446
    %v8875 = vpack.c.b16 %v8449, %v8447
    %v8876 = vpack.c.b16 %v8452, %v8450
    %v8877 = vpack.c.b16 %v8453, %v8451
    %v8878 = vpack.c.b16 %v8456, %v8454
    %v8879 = vpack.c.b16 %v8457, %v8455
    %v8880 = vpack.c.b16 %v8460, %v8458
    %v8881 = vpack.c.b16 %v8461, %v8459
    %v8882 = vpack.c.b16 %v8464, %v8462
    %v8883 = vpack.c.b16 %v8465, %v8463
    %v8884 = vpack.c.b16 %v8468, %v8466
    %v8885 = vpack.c.b16 %v8469, %v8467
    %v8886 = vpack.c.b16 %v8472, %v8470
    %v8887 = vpack.c.b16 %v8473, %v8471
    %v8888 = vpack.c.b16 %v8476, %v8474
    %v8889 = vpack.c.b16 %v8477, %v8475
    %v8890 = vpack.c.b16 %v8480, %v8478
    %v8891 = vpack.c.b16 %v8481, %v8479
    %v8892 = vpack.c.b16 %v8484, %v8482
    %v8893 = vpack.c.b16 %v8485, %v8483
    %v8894 = vpack.c.b16 %v8488, %v8486
    %v8895 = vpack.c.b16 %v8489, %v8487
    %v8896 = vpack.c.b16 %v8492, %v8490
    %v8897 = vpack.c.b16 %v8493, %v8491
    %v8898 = vpack.c.b16 %v8496, %v8494
    %v8899 = vpack.c.b16 %v8497, %v8495
    %v8900 = vpack.c.b16 %v8500, %v8498
    %v8901 = vpack.c.b16 %v8501, %v8499
    %v8902 = vpack.c.b16 %v8504, %v8502
    %v8903 = vpack.c.b16 %v8505, %v8503
    %v8904 = vpack.c.b16 %v8508, %v8506
    %v8905 = vpack.c.b16 %v8509, %v8507
    %v8906 = vpack.c.b16 %v8512, %v8510
    %v8907 = vpack.c.b16 %v8513, %v8511
    %v8908 = vpack.c.b16 %v8516, %v8514
    %v8909 = vpack.c.b16 %v8517, %v8515
    %v8910 = vpack.c.b16 %v8520, %v8518
    %v8911 = vpack.c.b16 %v8521, %v8519
    %v8912 = vpack.c.b16 %v8524, %v8522
    %v8913 = vpack.c.b16 %v8525, %v8523
    %v8914 = vpack.c.b16 %v8528, %v8526
    %v8915 = vpack.c.b16 %v8529, %v8527
    %v8916 = vpack.c.b16 %v8532, %v8530
    %v8917 = vpack.c.b16 %v8533, %v8531
    %v8918 = vpack.c.b16 %v8536, %v8534
    %v8919 = vpack.c.b16 %v8537, %v8535
    %v8920 = vpack.c.b16 %v8540, %v8538
    %v8921 = vpack.c.b16 %v8541, %v8539
    %v8922 = vpack.c.b16 %v8544, %v8542
    %v8923 = vpack.c.b16 %v8545, %v8543
    %v8924 = vpack.c.b16 %v8548, %v8546
    %v8925 = vpack.c.b16 %v8549, %v8547
    %v8926 = vpack.c.b16 %v8552, %v8550
    %v8927 = vpack.c.b16 %v8553, %v8551
    %v8928 = vpack.c.b16 %v8556, %v8554
    %v8929 = vpack.c.b16 %v8557, %v8555
    %v8930 = vpack.c.b16 %v8560, %v8558
    %v8931 = vpack.c.b16 %v8561, %v8559
    %v8932 = vpack.c.b16 %v8564, %v8562
    %v8933 = vpack.c.b16 %v8565, %v8563
    %v8934 = vpack.c.b16 %v8568, %v8566
    %v8935 = vpack.c.b16 %v8569, %v8567
    %v8936 = vpack.c.b16 %v8572, %v8570
    %v8937 = vpack.c.b16 %v8573, %v8571
    %v8938 = vpack.c.b16 %v8576, %v8574
    %v8939 = vpack.c.b16 %v8577, %v8575
    %v8940 = vpack.c.b16 %v8580, %v8578
    %v8941 = vpack.c.b16 %v8581, %v8579
    %v8942 = vpack.c.b16 %v8584, %v8582
    %v8943 = vpack.c.b16 %v8585, %v8583
    %v8944 = vpack.c.b16 %v8588, %v8586
    %v8945 = vpack.c.b16 %v8589, %v8587
    %v8946 = vpack.c.b16 %v8592, %v8590
    %v8947 = vpack.c.b16 %v8593, %v8591
    %v8948 = vpack.c.b16 %v8596, %v8594
    %v8949 = vpack.c.b16 %v8597, %v8595
    %v8950 = vpack.c.b16 %v8600, %v8598
    %v8951 = vpack.c.b16 %v8601, %v8599
    %v8952 = vpack.c.b16 %v8604, %v8602
    %v8953 = vpack.c.b16 %v8605, %v8603
    %v8954 = vpack.c.b16 %v8608, %v8606
    %v8955 = vpack.c.b16 %v8609, %v8607
    %v8956 = vpack.c.b16 %v8612, %v8610
    %v8957 = vpack.c.b16 %v8613, %v8611
    %v8958 = vpack.c.b16 %v8616, %v8614
    %v8959 = vpack.c.b16 %v8617, %v8615
    %v8960 = vpack.c.b16 %v8620, %v8618
    %v8961 = vpack.c.b16 %v8621, %v8619
    %v8962 = vpack.c.b16 %v8624, %v8622
    %v8963 = vpack.c.b16 %v8625, %v8623
    %v8964 = vpack.c.b16 %v8628, %v8626
    %v8965 = vpack.c.b16 %v8629, %v8627
    %v8966 = vpack.c.b16 %v8632, %v8630
    %v8967 = vpack.c.b16 %v8633, %v8631
    %v8968 = vpack.c.b16 %v8636, %v8634
    %v8969 = vpack.c.b16 %v8637, %v8635
    %v8970 = vpack.c.b16 %v8640, %v8638
    %v8971 = vpack.c.b16 %v8641, %v8639
    %v8972 = vpack.c.b16 %v8644, %v8642
    %v8973 = vpack.c.b16 %v8645, %v8643
    %v8974 = vpack.c.b16 %v8648, %v8646
    %v8975 = vpack.c.b16 %v8649, %v8647
    %v8976 = vpack.c.b16 %v8652, %v8650
    %v8977 = vpack.c.b16 %v8653, %v8651
    %v8978 = vpack.c.b16 %v8656, %v8654
    %v8979 = vpack.c.b16 %v8657, %v8655
    %v8980 = vpack.c.b16 %v8660, %v8658
    %v8981 = vpack.c.b16 %v8661, %v8659
    %v8982 = vpack.c.b16 %v8664, %v8662
    %v8983 = vpack.c.b16 %v8665, %v8663
    %v8984 = vpack.c.b16 %v8668, %v8666
    %v8985 = vpack.c.b16 %v8669, %v8667
    %v8986 = vpack.c.b16 %v8672, %v8670
    %v8987 = vpack.c.b16 %v8673, %v8671
    %v8988 = vpack.c.b16 %v8676, %v8674
    %v8989 = vpack.c.b16 %v8677, %v8675
    %v8990 = vpack.c.b16 %v8680, %v8678
    %v8991 = vpack.c.b16 %v8681, %v8679
    %v8992 = vpack.c.b16 %v8684, %v8682
    %v8993 = vpack.c.b16 %v8685, %v8683
    %v8994 = vpack.c.b16 %v8688, %v8686
    %v8995 = vpack.c.b16 %v8689, %v8687
    %v8996 = vpack.c.b16 %v8692, %v8690
    %v8997 = vpack.c.b16 %v8693, %v8691
    %v8998 = vpack.c.b16 %v8696, %v8694
    %v8999 = vpack.c.b16 %v8697, %v8695
    %v9000 = vpack.c.b16 %v8700, %v8698
    %v9001 = vpack.c.b16 %v8701, %v8699
    %v9002 = vpack.c.b16 %v8704, %v8702
    %v9003 = vpack.c.b16 %v8705, %v8703
    %v9004 = vpack.c.b16 %v8708, %v8706
    %v9005 = vpack.c.b16 %v8709, %v8707
    %v9006 = vpack.c.b16 %v8712, %v8710
    %v9007 = vpack.c.b16 %v8713, %v8711
    %v9008 = vpack.c.b16 %v8716, %v8714
    %v9009 = vpack.c.b16 %v8717, %v8715
    %v9010 = vpack.c.b16 %v8720, %v8718
    %v9011 = vpack.c.b16 %v8721, %v8719
    %v9012 = vpack.c.b16 %v8724, %v8722
    %v9013 = vpack.c.b16 %v8725, %v8723
    %v9014 = vpack.c.b16 %v8728, %v8726
    %v9015 = vpack.c.b16 %v8729, %v8727
    %v9016 = vpack.c.b16 %v8732, %v8730
    %v9017 = vpack.c.b16 %v8733, %v8731
    %v9018 = vpack.c.b16 %v8736, %v8734
    %v9019 = vpack.c.b16 %v8737, %v8735
    %v9020 = vpack.c.b16 %v8740, %v8738
    %v9021 = vpack.c.b16 %v8741, %v8739
    %v9022 = vpack.c.b16 %v8744, %v8742
    %v9023 = vpack.c.b16 %v8745, %v8743
    %v9024 = vpack.c.b16 %v8748, %v8746
    %v9025 = vpack.c.b16 %v8749, %v8747
    %v9026 = vpack.c.b16 %v8752, %v8750
    %v9027 = vpack.c.b16 %v8753, %v8751
    %v9028 = vpack.c.b16 %v8756, %v8754
    %v9029 = vpack.c.b16 %v8757, %v8755
    %v9030 = vpack.c.b16 %v8760, %v8758
    %v9031 = vpack.c.b16 %v8761, %v8759
    %v9032 = vpack.c.b16 %v8764, %v8762
    %v9033 = vpack.c.b16 %v8765, %v8763
    %v9034 = vpack.c.b16 %v8768, %v8766
    %v9035 = vpack.c.b16 %v8769, %v8767
    %v9036 = vpack.c.b16 %v8772, %v8770
    %v9037 = vpack.c.b16 %v8773, %v8771
    %v9038 = vpack.c.b16 %v8776, %v8774
    %v9039 = vpack.c.b16 %v8777, %v8775
    %v9040 = vpack.c.b16 %v8780, %v8778
    %v9041 = vpack.c.b16 %v8781, %v8779
    %v9042 = vpack.c.b16 %v8784, %v8782
    %v9043 = vpack.c.b16 %v8785, %v8783
    %v9044 = vpack.c.b16 %v8788, %v8786
    %v9045 = vpack.c.b16 %v8789, %v8787
    %9302 = vmatprep.subr.bf16.mxu0 %v8791
    %9303 = vmatpush1.bf16.msra.mxu0 %v8790
    %9304 = vmatprep.subr.bf16.mxu0 %v8793
    %9305 = vmatpush1.bf16.msra.mxu0 %v8792
    %9306 = vmatprep.subr.bf16.mxu0 %v8795
    %9307 = vmatpush1.bf16.msra.mxu0 %v8794
    %9308 = vmatprep.subr.bf16.mxu0 %v8797
    %9309 = vmatpush1.bf16.msra.mxu0 %v8796
    %9310 = vmatprep.subr.bf16.mxu0 %v8799
    %9311 = vmatpush1.bf16.msra.mxu0 %v8798
    %9312 = vmatprep.subr.bf16.mxu0 %v8801
    %9313 = vmatpush1.bf16.msra.mxu0 %v8800
    %9314 = vmatprep.subr.bf16.mxu0 %v8803
    %9315 = vmatpush1.bf16.msra.mxu0 %v8802
    %9316 = vmatprep.subr.bf16.mxu0 %v8805
    %9317 = vmatpush1.bf16.msra.mxu0 %v8804
    %9318 = vmatprep.subr.bf16.mxu0 %v8807
    %9319 = vmatpush1.bf16.msra.mxu0 %v8806
    %9320 = vmatprep.subr.bf16.mxu0 %v8809
    %9321 = vmatpush1.bf16.msra.mxu0 %v8808
    %9322 = vmatprep.subr.bf16.mxu0 %v8811
    %9323 = vmatpush1.bf16.msra.mxu0 %v8810
    %9324 = vmatprep.subr.bf16.mxu0 %v8813
    %9325 = vmatpush1.bf16.msra.mxu0 %v8812
    %9326 = vmatprep.subr.bf16.mxu0 %v8815
    %9327 = vmatpush1.bf16.msra.mxu0 %v8814
    %9328 = vmatprep.subr.bf16.mxu0 %v8817
    %9329 = vmatpush1.bf16.msra.mxu0 %v8816
    %9330 = vmatprep.subr.bf16.mxu0 %v8819
    %9331 = vmatpush1.bf16.msra.mxu0 %v8818
    %9332 = vmatprep.subr.bf16.mxu0 %v8821
    %9333 = vmatpush1.bf16.msra.mxu0 %v8820
    %9334 = vmatprep.mubr.bf16.mxu0 %v7991
    %9335 = vmatmul.mubr.bf16.gmra.mrb[0].mxu0 %v7990
    %v9336 = vpop.f32.mrb[0].mxu0
    %v9337 = vadd.f32 %v7903, %v9336
    %v9338 = vpop.f32.mrb[0].mxu0
    %v9339 = vadd.f32 %v7907, %v9338
    %v9340 = vpop.f32.mrb[0].mxu0
    %v9341 = vpop.f32.mrb[0].mxu0
    %9342 = vdwg.mxu0
    %9343 = vmatprep.subr.bf16.mxu0 %v8823
    %9344 = vmatpush1.bf16.msra.mxu0 %v8822
    %9345 = vmatprep.subr.bf16.mxu0 %v8825
    %9346 = vmatpush1.bf16.msra.mxu0 %v8824
    %9347 = vmatprep.subr.bf16.mxu0 %v8827
    %9348 = vmatpush1.bf16.msra.mxu0 %v8826
    %9349 = vmatprep.subr.bf16.mxu0 %v8829
    %9350 = vmatpush1.bf16.msra.mxu0 %v8828
    %9351 = vmatprep.subr.bf16.mxu0 %v8831
    %9352 = vmatpush1.bf16.msra.mxu0 %v8830
    %9353 = vmatprep.subr.bf16.mxu0 %v8833
    %9354 = vmatpush1.bf16.msra.mxu0 %v8832
    %9355 = vmatprep.subr.bf16.mxu0 %v8835
    %9356 = vmatpush1.bf16.msra.mxu0 %v8834
    %9357 = vmatprep.subr.bf16.mxu0 %v8837
    %9358 = vmatpush1.bf16.msra.mxu0 %v8836
    %9359 = vmatprep.subr.bf16.mxu0 %v8839
    %9360 = vmatpush1.bf16.msra.mxu0 %v8838
    %9361 = vmatprep.subr.bf16.mxu0 %v8841
    %9362 = vmatpush1.bf16.msra.mxu0 %v8840
    %9363 = vmatprep.subr.bf16.mxu0 %v8843
    %9364 = vmatpush1.bf16.msra.mxu0 %v8842
    %9365 = vmatprep.subr.bf16.mxu0 %v8845
    %9366 = vmatpush1.bf16.msra.mxu0 %v8844
    %9367 = vmatprep.subr.bf16.mxu0 %v8847
    %9368 = vmatpush1.bf16.msra.mxu0 %v8846
    %9369 = vmatprep.subr.bf16.mxu0 %v8849
    %9370 = vmatpush1.bf16.msra.mxu0 %v8848
    %9371 = vmatprep.subr.bf16.mxu0 %v8851
    %9372 = vmatpush1.bf16.msra.mxu0 %v8850
    %9373 = vmatprep.subr.bf16.mxu0 %v8853
    %9374 = vmatpush1.bf16.msra.mxu0 %v8852
    %9375 = vmatprep.mubr.bf16.mxu0 %v7993
    %9376 = vmatmul.mubr.bf16.gmra.mrb[0].mxu0 %v7992
    %v9377 = vpop.f32.mrb[0].mxu0
    %v9378 = vadd.f32 %v9337, %v9377
    %v9379 = vpop.f32.mrb[0].mxu0
    %v9380 = vadd.f32 %v9339, %v9379
    %v9381 = vpop.f32.mrb[0].mxu0
    %v9382 = vpop.f32.mrb[0].mxu0
    %9383 = vdwg.mxu0
    %9384 = vmatprep.subr.bf16.mxu0 %v8855
    %9385 = vmatpush1.bf16.msra.mxu0 %v8854
    %9386 = vmatprep.subr.bf16.mxu0 %v8857
    %9387 = vmatpush1.bf16.msra.mxu0 %v8856
    %9388 = vmatprep.subr.bf16.mxu0 %v8859
    %9389 = vmatpush1.bf16.msra.mxu0 %v8858
    %9390 = vmatprep.subr.bf16.mxu0 %v8861
    %9391 = vmatpush1.bf16.msra.mxu0 %v8860
    %9392 = vmatprep.subr.bf16.mxu0 %v8863
    %9393 = vmatpush1.bf16.msra.mxu0 %v8862
    %9394 = vmatprep.subr.bf16.mxu0 %v8865
    %9395 = vmatpush1.bf16.msra.mxu0 %v8864
    %9396 = vmatprep.subr.bf16.mxu0 %v8867
    %9397 = vmatpush1.bf16.msra.mxu0 %v8866
    %9398 = vmatprep.subr.bf16.mxu0 %v8869
    %9399 = vmatpush1.bf16.msra.mxu0 %v8868
    %9400 = vmatprep.subr.bf16.mxu0 %v8871
    %9401 = vmatpush1.bf16.msra.mxu0 %v8870
    %9402 = vmatprep.subr.bf16.mxu0 %v8873
    %9403 = vmatpush1.bf16.msra.mxu0 %v8872
    %9404 = vmatprep.subr.bf16.mxu0 %v8875
    %9405 = vmatpush1.bf16.msra.mxu0 %v8874
    %9406 = vmatprep.subr.bf16.mxu0 %v8877
    %9407 = vmatpush1.bf16.msra.mxu0 %v8876
    %9408 = vmatprep.subr.bf16.mxu0 %v8879
    %9409 = vmatpush1.bf16.msra.mxu0 %v8878
    %9410 = vmatprep.subr.bf16.mxu0 %v8881
    %9411 = vmatpush1.bf16.msra.mxu0 %v8880
    %9412 = vmatprep.subr.bf16.mxu0 %v8883
    %9413 = vmatpush1.bf16.msra.mxu0 %v8882
    %9414 = vmatprep.subr.bf16.mxu0 %v8885
    %9415 = vmatpush1.bf16.msra.mxu0 %v8884
    %9416 = vmatprep.mubr.bf16.mxu0 %v7995
    %9417 = vmatmul.mubr.bf16.gmra.mrb[0].mxu0 %v7994
    %v9418 = vpop.f32.mrb[0].mxu0
    %v9419 = vadd.f32 %v9378, %v9418
    %v9420 = vpop.f32.mrb[0].mxu0
    %v9421 = vadd.f32 %v9380, %v9420
    %v9422 = vpop.f32.mrb[0].mxu0
    %v9423 = vpop.f32.mrb[0].mxu0
    %9424 = vdwg.mxu0
    %9425 = vmatprep.subr.bf16.mxu0 %v8887
    %9426 = vmatpush1.bf16.msra.mxu0 %v8886
    %9427 = vmatprep.subr.bf16.mxu0 %v8889
    %9428 = vmatpush1.bf16.msra.mxu0 %v8888
    %9429 = vmatprep.subr.bf16.mxu0 %v8891
    %9430 = vmatpush1.bf16.msra.mxu0 %v8890
    %9431 = vmatprep.subr.bf16.mxu0 %v8893
    %9432 = vmatpush1.bf16.msra.mxu0 %v8892
    %9433 = vmatprep.subr.bf16.mxu0 %v8895
    %9434 = vmatpush1.bf16.msra.mxu0 %v8894
    %9435 = vmatprep.subr.bf16.mxu0 %v8897
    %9436 = vmatpush1.bf16.msra.mxu0 %v8896
    %9437 = vmatprep.subr.bf16.mxu0 %v8899
    %9438 = vmatpush1.bf16.msra.mxu0 %v8898
    %9439 = vmatprep.subr.bf16.mxu0 %v8901
    %9440 = vmatpush1.bf16.msra.mxu0 %v8900
    %9441 = vmatprep.subr.bf16.mxu0 %v8903
    %9442 = vmatpush1.bf16.msra.mxu0 %v8902
    %9443 = vmatprep.subr.bf16.mxu0 %v8905
    %9444 = vmatpush1.bf16.msra.mxu0 %v8904
    %9445 = vmatprep.subr.bf16.mxu0 %v8907
    %9446 = vmatpush1.bf16.msra.mxu0 %v8906
    %9447 = vmatprep.subr.bf16.mxu0 %v8909
    %9448 = vmatpush1.bf16.msra.mxu0 %v8908
    %9449 = vmatprep.subr.bf16.mxu0 %v8911
    %9450 = vmatpush1.bf16.msra.mxu0 %v8910
    %9451 = vmatprep.subr.bf16.mxu0 %v8913
    %9452 = vmatpush1.bf16.msra.mxu0 %v8912
    %9453 = vmatprep.subr.bf16.mxu0 %v8915
    %9454 = vmatpush1.bf16.msra.mxu0 %v8914
    %9455 = vmatprep.subr.bf16.mxu0 %v8917
    %9456 = vmatpush1.bf16.msra.mxu0 %v8916
    %9457 = vmatprep.mubr.bf16.mxu0 %v7997
    %9458 = vmatmul.mubr.bf16.gmra.mrb[0].mxu0 %v7996
    %v9459 = vpop.f32.mrb[0].mxu0
    %v9460 = vadd.f32 %v9419, %v9459
    %v9461 = vpop.f32.mrb[0].mxu0
    %v9462 = vadd.f32 %v9421, %v9461
    %v9463 = vpop.f32.mrb[0].mxu0
    %v9464 = vpop.f32.mrb[0].mxu0
    %9465 = vdwg.mxu0
    %9466 = vmatprep.subr.bf16.mxu0 %v8919
    %9467 = vmatpush1.bf16.msra.mxu0 %v8918
    %9468 = vmatprep.subr.bf16.mxu0 %v8921
    %9469 = vmatpush1.bf16.msra.mxu0 %v8920
    %9470 = vmatprep.subr.bf16.mxu0 %v8923
    %9471 = vmatpush1.bf16.msra.mxu0 %v8922
    %9472 = vmatprep.subr.bf16.mxu0 %v8925
    %9473 = vmatpush1.bf16.msra.mxu0 %v8924
    %9474 = vmatprep.subr.bf16.mxu0 %v8927
    %9475 = vmatpush1.bf16.msra.mxu0 %v8926
    %9476 = vmatprep.subr.bf16.mxu0 %v8929
    %9477 = vmatpush1.bf16.msra.mxu0 %v8928
    %9478 = vmatprep.subr.bf16.mxu0 %v8931
    %9479 = vmatpush1.bf16.msra.mxu0 %v8930
    %9480 = vmatprep.subr.bf16.mxu0 %v8933
    %9481 = vmatpush1.bf16.msra.mxu0 %v8932
    %9482 = vmatprep.subr.bf16.mxu0 %v8935
    %9483 = vmatpush1.bf16.msra.mxu0 %v8934
    %9484 = vmatprep.subr.bf16.mxu0 %v8937
    %9485 = vmatpush1.bf16.msra.mxu0 %v8936
    %9486 = vmatprep.subr.bf16.mxu0 %v8939
    %9487 = vmatpush1.bf16.msra.mxu0 %v8938
    %9488 = vmatprep.subr.bf16.mxu0 %v8941
    %9489 = vmatpush1.bf16.msra.mxu0 %v8940
    %9490 = vmatprep.subr.bf16.mxu0 %v8943
    %9491 = vmatpush1.bf16.msra.mxu0 %v8942
    %9492 = vmatprep.subr.bf16.mxu0 %v8945
    %9493 = vmatpush1.bf16.msra.mxu0 %v8944
    %9494 = vmatprep.subr.bf16.mxu0 %v8947
    %9495 = vmatpush1.bf16.msra.mxu0 %v8946
    %9496 = vmatprep.subr.bf16.mxu0 %v8949
    %9497 = vmatpush1.bf16.msra.mxu0 %v8948
    %9498 = vmatprep.mubr.bf16.mxu0 %v7999
    %9499 = vmatmul.mubr.bf16.gmra.mrb[0].mxu0 %v7998
    %v9500 = vpop.f32.mrb[0].mxu0
    %v9501 = vadd.f32 %v9460, %v9500
    %v9502 = vpop.f32.mrb[0].mxu0
    %v9503 = vadd.f32 %v9462, %v9502
    %v9504 = vpop.f32.mrb[0].mxu0
    %v9505 = vpop.f32.mrb[0].mxu0
    %9506 = vdwg.mxu0
    %9507 = vmatprep.subr.bf16.mxu0 %v8951
    %9508 = vmatpush1.bf16.msra.mxu0 %v8950
    %9509 = vmatprep.subr.bf16.mxu0 %v8953
    %9510 = vmatpush1.bf16.msra.mxu0 %v8952
    %9511 = vmatprep.subr.bf16.mxu0 %v8955
    %9512 = vmatpush1.bf16.msra.mxu0 %v8954
    %9513 = vmatprep.subr.bf16.mxu0 %v8957
    %9514 = vmatpush1.bf16.msra.mxu0 %v8956
    %9515 = vmatprep.subr.bf16.mxu0 %v8959
    %9516 = vmatpush1.bf16.msra.mxu0 %v8958
    %9517 = vmatprep.subr.bf16.mxu0 %v8961
    %9518 = vmatpush1.bf16.msra.mxu0 %v8960
    %9519 = vmatprep.subr.bf16.mxu0 %v8963
    %9520 = vmatpush1.bf16.msra.mxu0 %v8962
    %9521 = vmatprep.subr.bf16.mxu0 %v8965
    %9522 = vmatpush1.bf16.msra.mxu0 %v8964
    %9523 = vmatprep.subr.bf16.mxu0 %v8967
    %9524 = vmatpush1.bf16.msra.mxu0 %v8966
    %9525 = vmatprep.subr.bf16.mxu0 %v8969
    %9526 = vmatpush1.bf16.msra.mxu0 %v8968
    %9527 = vmatprep.subr.bf16.mxu0 %v8971
    %9528 = vmatpush1.bf16.msra.mxu0 %v8970
    %9529 = vmatprep.subr.bf16.mxu0 %v8973
    %9530 = vmatpush1.bf16.msra.mxu0 %v8972
    %9531 = vmatprep.subr.bf16.mxu0 %v8975
    %9532 = vmatpush1.bf16.msra.mxu0 %v8974
    %9533 = vmatprep.subr.bf16.mxu0 %v8977
    %9534 = vmatpush1.bf16.msra.mxu0 %v8976
    %9535 = vmatprep.subr.bf16.mxu0 %v8979
    %9536 = vmatpush1.bf16.msra.mxu0 %v8978
    %9537 = vmatprep.subr.bf16.mxu0 %v8981
    %9538 = vmatpush1.bf16.msra.mxu0 %v8980
    %9539 = vmatprep.mubr.bf16.mxu0 %v8001
    %9540 = vmatmul.mubr.bf16.gmra.mrb[0].mxu0 %v8000
    %v9541 = vpop.f32.mrb[0].mxu0
    %v9542 = vadd.f32 %v9501, %v9541
    %v9543 = vpop.f32.mrb[0].mxu0
    %v9544 = vadd.f32 %v9503, %v9543
    %v9545 = vpop.f32.mrb[0].mxu0
    %v9546 = vpop.f32.mrb[0].mxu0
    %9547 = vdwg.mxu0
    %9548 = vmatprep.subr.bf16.mxu0 %v8983
    %9549 = vmatpush1.bf16.msra.mxu0 %v8982
    %9550 = vmatprep.subr.bf16.mxu0 %v8985
    %9551 = vmatpush1.bf16.msra.mxu0 %v8984
    %9552 = vmatprep.subr.bf16.mxu0 %v8987
    %9553 = vmatpush1.bf16.msra.mxu0 %v8986
    %9554 = vmatprep.subr.bf16.mxu0 %v8989
    %9555 = vmatpush1.bf16.msra.mxu0 %v8988
    %9556 = vmatprep.subr.bf16.mxu0 %v8991
    %9557 = vmatpush1.bf16.msra.mxu0 %v8990
    %9558 = vmatprep.subr.bf16.mxu0 %v8993
    %9559 = vmatpush1.bf16.msra.mxu0 %v8992
    %9560 = vmatprep.subr.bf16.mxu0 %v8995
    %9561 = vmatpush1.bf16.msra.mxu0 %v8994
    %9562 = vmatprep.subr.bf16.mxu0 %v8997
    %9563 = vmatpush1.bf16.msra.mxu0 %v8996
    %9564 = vmatprep.subr.bf16.mxu0 %v8999
    %9565 = vmatpush1.bf16.msra.mxu0 %v8998
    %9566 = vmatprep.subr.bf16.mxu0 %v9001
    %9567 = vmatpush1.bf16.msra.mxu0 %v9000
    %9568 = vmatprep.subr.bf16.mxu0 %v9003
    %9569 = vmatpush1.bf16.msra.mxu0 %v9002
    %9570 = vmatprep.subr.bf16.mxu0 %v9005
    %9571 = vmatpush1.bf16.msra.mxu0 %v9004
    %9572 = vmatprep.subr.bf16.mxu0 %v9007
    %9573 = vmatpush1.bf16.msra.mxu0 %v9006
    %9574 = vmatprep.subr.bf16.mxu0 %v9009
    %9575 = vmatpush1.bf16.msra.mxu0 %v9008
    %9576 = vmatprep.subr.bf16.mxu0 %v9011
    %9577 = vmatpush1.bf16.msra.mxu0 %v9010
    %9578 = vmatprep.subr.bf16.mxu0 %v9013
    %9579 = vmatpush1.bf16.msra.mxu0 %v9012
    %9580 = vmatprep.mubr.bf16.mxu0 %v8003
    %9581 = vmatmul.mubr.bf16.gmra.mrb[0].mxu0 %v8002
    %v9582 = vpop.f32.mrb[0].mxu0
    %v9583 = vadd.f32 %v9542, %v9582
    %v9584 = vpop.f32.mrb[0].mxu0
    %v9585 = vadd.f32 %v9544, %v9584
    %v9586 = vpop.f32.mrb[0].mxu0
    %v9587 = vpop.f32.mrb[0].mxu0
    %9588 = vdwg.mxu0
    %9589 = vmatprep.subr.bf16.mxu0 %v9015
    %9590 = vmatpush1.bf16.msra.mxu0 %v9014
    %9591 = vmatprep.subr.bf16.mxu0 %v9017
    %9592 = vmatpush1.bf16.msra.mxu0 %v9016
    %9593 = vmatprep.subr.bf16.mxu0 %v9019
    %9594 = vmatpush1.bf16.msra.mxu0 %v9018
    %9595 = vmatprep.subr.bf16.mxu0 %v9021
    %9596 = vmatpush1.bf16.msra.mxu0 %v9020
    %9597 = vmatprep.subr.bf16.mxu0 %v9023
    %9598 = vmatpush1.bf16.msra.mxu0 %v9022
    %9599 = vmatprep.subr.bf16.mxu0 %v9025
    %9600 = vmatpush1.bf16.msra.mxu0 %v9024
    %9601 = vmatprep.subr.bf16.mxu0 %v9027
    %9602 = vmatpush1.bf16.msra.mxu0 %v9026
    %9603 = vmatprep.subr.bf16.mxu0 %v9029
    %9604 = vmatpush1.bf16.msra.mxu0 %v9028
    %9605 = vmatprep.subr.bf16.mxu0 %v9031
    %9606 = vmatpush1.bf16.msra.mxu0 %v9030
    %9607 = vmatprep.subr.bf16.mxu0 %v9033
    %9608 = vmatpush1.bf16.msra.mxu0 %v9032
    %9609 = vmatprep.subr.bf16.mxu0 %v9035
    %9610 = vmatpush1.bf16.msra.mxu0 %v9034
    %9611 = vmatprep.subr.bf16.mxu0 %v9037
    %9612 = vmatpush1.bf16.msra.mxu0 %v9036
    %9613 = vmatprep.subr.bf16.mxu0 %v9039
    %9614 = vmatpush1.bf16.msra.mxu0 %v9038
    %9615 = vmatprep.subr.bf16.mxu0 %v9041
    %9616 = vmatpush1.bf16.msra.mxu0 %v9040
    %9617 = vmatprep.subr.bf16.mxu0 %v9043
    %9618 = vmatpush1.bf16.msra.mxu0 %v9042
    %9619 = vmatprep.subr.bf16.mxu0 %v9045
    %9620 = vmatpush1.bf16.msra.mxu0 %v9044
    %9621 = vmatprep.mubr.bf16.mxu0 %v8005
    %9622 = vmatmul.mubr.bf16.gmra.mrb[0].mxu0 %v8004
    %v9623 = vpop.f32.mrb[0].mxu0
    %v9624 = vadd.f32 %v9583, %v9623
    %v9625 = vpop.f32.mrb[0].mxu0
    %v9626 = vadd.f32 %v9585, %v9625
    %v9627 = vpop.f32.mrb[0].mxu0
    %v9628 = vpop.f32.mrb[0].mxu0
    %9629 = vdwg.mxu0
    %v9630 = vmax.f32 %v9624, 0.0
    %v9631 = vmax.f32 %v9626, 0.0
    %v9632 = vmul.f32 %v9630, %v9630
    %v9633 = vmul.f32 %v9631, %v9631
    %v9634 = vsel %vm2433, %v9632, 0.0
    %v9635 = vsel %vm2433, %v9633, 0.0
    %v9636 = vadd.f32 %v9634, %v9635
    %9637 = vadd.xlane.f32.xlu0 %v9636
    %v9638 = vpop.xlane.xlu0 %9637
    %v9639 = vmax.f32 %v9638, 1e-24
    %v9640 = vrsqrt.pop %v9639
    %v9641 = vmul.f32 %v9640, 10.0
    %v9642 = vmul.f32 %v9630, %v9641
    %v9643 = vmul.f32 %v9631, %v9641
    %v9646 = vcombine.low %v9642, %v9643
    %v9648 = vunpack.c.l.s4 1983009808
    %v9649 = vunpack.c.0.s8 %v9648
    %v9650 = vlaneseq
    %v9651 = vshrl.u32 %v9650, 7
    %v9652 = vsub.s32 %v9649, %v9651
    %v9653 = vrot.slane %v9646, %v9652
    %9655 = vst [vmem:[#allocation8 + $0xc] sm:$0xf] %v9653
    %v9656 = vld [vmem:[#allocation2 + $0x200] sm:$0xff]
    %v9657 = vld [vmem:[#allocation2 + $0x208] sm:$0xff]
    %v9658 = vld [vmem:[#allocation2 + $0x210] sm:$0xff]
    %v9659 = vld [vmem:[#allocation2 + $0x218] sm:$0xff]
    %v9660 = vld [vmem:[#allocation2 + $0x220] sm:$0xff]
    %v9661 = vld [vmem:[#allocation2 + $0x228] sm:$0xff]
    %v9662 = vld [vmem:[#allocation2 + $0x230] sm:$0xff]
    %v9663 = vld [vmem:[#allocation2 + $0x238] sm:$0xff]
    %v9664 = vld [vmem:[#allocation2 + $0x240] sm:$0xff]
    %v9665 = vld [vmem:[#allocation2 + $0x248] sm:$0xff]
    %v9666 = vld [vmem:[#allocation2 + $0x250] sm:$0xff]
    %v9667 = vld [vmem:[#allocation2 + $0x258] sm:$0xff]
    %v9668 = vld [vmem:[#allocation2 + $0x260] sm:$0xff]
    %v9669 = vld [vmem:[#allocation2 + $0x268] sm:$0xff]
    %v9670 = vld [vmem:[#allocation2 + $0x270] sm:$0xff]
    %v9671 = vld [vmem:[#allocation2 + $0x278] sm:$0xff]
    %v9672 = vld [vmem:[#allocation2 + $0x500] sm:$0xff]
    %v9673 = vld [vmem:[#allocation2 + $0x508] sm:$0xff]
    %v9674 = vld [vmem:[#allocation2 + $0x510] sm:$0xff]
    %v9675 = vld [vmem:[#allocation2 + $0x518] sm:$0xff]
    %v9676 = vld [vmem:[#allocation2 + $0x520] sm:$0xff]
    %v9677 = vld [vmem:[#allocation2 + $0x528] sm:$0xff]
    %v9678 = vld [vmem:[#allocation2 + $0x530] sm:$0xff]
    %v9679 = vld [vmem:[#allocation2 + $0x538] sm:$0xff]
    %v9680 = vld [vmem:[#allocation2 + $0x540] sm:$0xff]
    %v9681 = vld [vmem:[#allocation2 + $0x548] sm:$0xff]
    %v9682 = vld [vmem:[#allocation2 + $0x550] sm:$0xff]
    %v9683 = vld [vmem:[#allocation2 + $0x558] sm:$0xff]
    %v9684 = vld [vmem:[#allocation2 + $0x560] sm:$0xff]
    %v9685 = vld [vmem:[#allocation2 + $0x568] sm:$0xff]
    %v9686 = vld [vmem:[#allocation2 + $0x570] sm:$0xff]
    %v9687 = vld [vmem:[#allocation2 + $0x578] sm:$0xff]
    %v9688 = vunpack.c.l.bf16 %v9656
    %v9689 = vunpack.c.h.bf16 %v9656
    %v9690 = vunpack.c.l.bf16 %v9657
    %v9691 = vunpack.c.h.bf16 %v9657
    %v9692 = vunpack.c.l.bf16 %v9658
    %v9693 = vunpack.c.h.bf16 %v9658
    %v9694 = vunpack.c.l.bf16 %v9659
    %v9695 = vunpack.c.h.bf16 %v9659
    %v9696 = vunpack.c.l.bf16 %v9660
    %v9697 = vunpack.c.h.bf16 %v9660
    %v9698 = vunpack.c.l.bf16 %v9661
    %v9699 = vunpack.c.h.bf16 %v9661
    %v9700 = vunpack.c.l.bf16 %v9662
    %v9701 = vunpack.c.h.bf16 %v9662
    %v9702 = vunpack.c.l.bf16 %v9663
    %v9703 = vunpack.c.h.bf16 %v9663
    %v9704 = vunpack.c.l.bf16 %v9664
    %v9705 = vunpack.c.h.bf16 %v9664
    %v9706 = vunpack.c.l.bf16 %v9665
    %v9707 = vunpack.c.h.bf16 %v9665
    %v9708 = vunpack.c.l.bf16 %v9666
    %v9709 = vunpack.c.h.bf16 %v9666
    %v9710 = vunpack.c.l.bf16 %v9667
    %v9711 = vunpack.c.h.bf16 %v9667
    %v9712 = vunpack.c.l.bf16 %v9668
    %v9713 = vunpack.c.h.bf16 %v9668
    %v9714 = vunpack.c.l.bf16 %v9669
    %v9715 = vunpack.c.h.bf16 %v9669
    %v9716 = vunpack.c.l.bf16 %v9670
    %v9717 = vunpack.c.h.bf16 %v9670
    %v9718 = vunpack.c.l.bf16 %v9671
    %v9719 = vunpack.c.h.bf16 %v9671
    %v9720 = vunpack.c.l.bf16 %v9672
    %v9721 = vunpack.c.h.bf16 %v9672
    %v9722 = vunpack.c.l.bf16 %v9673
    %v9723 = vunpack.c.h.bf16 %v9673
    %v9724 = vunpack.c.l.bf16 %v9674
    %v9725 = vunpack.c.h.bf16 %v9674
    %v9726 = vunpack.c.l.bf16 %v9675
    %v9727 = vunpack.c.h.bf16 %v9675
    %v9728 = vunpack.c.l.bf16 %v9676
    %v9729 = vunpack.c.h.bf16 %v9676
    %v9730 = vunpack.c.l.bf16 %v9677
    %v9731 = vunpack.c.h.bf16 %v9677
    %v9732 = vunpack.c.l.bf16 %v9678
    %v9733 = vunpack.c.h.bf16 %v9678
    %v9734 = vunpack.c.l.bf16 %v9679
    %v9735 = vunpack.c.h.bf16 %v9679
    %v9736 = vunpack.c.l.bf16 %v9680
    %v9737 = vunpack.c.h.bf16 %v9680
    %v9738 = vunpack.c.l.bf16 %v9681
    %v9739 = vunpack.c.h.bf16 %v9681
    %v9740 = vunpack.c.l.bf16 %v9682
    %v9741 = vunpack.c.h.bf16 %v9682
    %v9742 = vunpack.c.l.bf16 %v9683
    %v9743 = vunpack.c.h.bf16 %v9683
    %v9744 = vunpack.c.l.bf16 %v9684
    %v9745 = vunpack.c.h.bf16 %v9684
    %v9746 = vunpack.c.l.bf16 %v9685
    %v9747 = vunpack.c.h.bf16 %v9685
    %v9748 = vunpack.c.l.bf16 %v9686
    %v9749 = vunpack.c.h.bf16 %v9686
    %v9750 = vunpack.c.l.bf16 %v9687
    %v9751 = vunpack.c.h.bf16 %v9687
    %v9752 = vadd.f32 %v9688, %v9704
    %v9753 = vrot.slane %v9752, 4
    %v9754 = vadd.f32 %v9752, %v9753
    %v9755 = vrot.slane %v9754, 2
    %v9756 = vadd.f32 %v9754, %v9755
    %v9757 = vrot.slane %v9756, 1
    %v9758 = vadd.f32 %v9756, %v9757
    %v9759 = vadd.f32 %v9689, %v9705
    %v9760 = vrot.slane %v9759, 4
    %v9761 = vadd.f32 %v9759, %v9760
    %v9762 = vrot.slane %v9761, 2
    %v9763 = vadd.f32 %v9761, %v9762
    %v9764 = vrot.slane %v9763, 1
    %v9765 = vadd.f32 %v9763, %v9764
    %v9766 = vadd.f32 %v9690, %v9706
    %v9767 = vrot.slane %v9766, 4
    %v9768 = vadd.f32 %v9766, %v9767
    %v9769 = vrot.slane %v9768, 2
    %v9770 = vadd.f32 %v9768, %v9769
    %v9771 = vrot.slane %v9770, 1
    %v9772 = vadd.f32 %v9770, %v9771
    %v9773 = vadd.f32 %v9691, %v9707
    %v9774 = vrot.slane %v9773, 4
    %v9775 = vadd.f32 %v9773, %v9774
    %v9776 = vrot.slane %v9775, 2
    %v9777 = vadd.f32 %v9775, %v9776
    %v9778 = vrot.slane %v9777, 1
    %v9779 = vadd.f32 %v9777, %v9778
    %v9780 = vadd.f32 %v9692, %v9708
    %v9781 = vrot.slane %v9780, 4
    %v9782 = vadd.f32 %v9780, %v9781
    %v9783 = vrot.slane %v9782, 2
    %v9784 = vadd.f32 %v9782, %v9783
    %v9785 = vrot.slane %v9784, 1
    %v9786 = vadd.f32 %v9784, %v9785
    %v9787 = vadd.f32 %v9693, %v9709
    %v9788 = vrot.slane %v9787, 4
    %v9789 = vadd.f32 %v9787, %v9788
    %v9790 = vrot.slane %v9789, 2
    %v9791 = vadd.f32 %v9789, %v9790
    %v9792 = vrot.slane %v9791, 1
    %v9793 = vadd.f32 %v9791, %v9792
    %v9794 = vadd.f32 %v9694, %v9710
    %v9795 = vrot.slane %v9794, 4
    %v9796 = vadd.f32 %v9794, %v9795
    %v9797 = vrot.slane %v9796, 2
    %v9798 = vadd.f32 %v9796, %v9797
    %v9799 = vrot.slane %v9798, 1
    %v9800 = vadd.f32 %v9798, %v9799
    %v9801 = vadd.f32 %v9695, %v9711
    %v9802 = vrot.slane %v9801, 4
    %v9803 = vadd.f32 %v9801, %v9802
    %v9804 = vrot.slane %v9803, 2
    %v9805 = vadd.f32 %v9803, %v9804
    %v9806 = vrot.slane %v9805, 1
    %v9807 = vadd.f32 %v9805, %v9806
    %v9808 = vadd.f32 %v9696, %v9712
    %v9809 = vrot.slane %v9808, 4
    %v9810 = vadd.f32 %v9808, %v9809
    %v9811 = vrot.slane %v9810, 2
    %v9812 = vadd.f32 %v9810, %v9811
    %v9813 = vrot.slane %v9812, 1
    %v9814 = vadd.f32 %v9812, %v9813
    %v9815 = vadd.f32 %v9697, %v9713
    %v9816 = vrot.slane %v9815, 4
    %v9817 = vadd.f32 %v9815, %v9816
    %v9818 = vrot.slane %v9817, 2
    %v9819 = vadd.f32 %v9817, %v9818
    %v9820 = vrot.slane %v9819, 1
    %v9821 = vadd.f32 %v9819, %v9820
    %v9822 = vadd.f32 %v9698, %v9714
    %v9823 = vrot.slane %v9822, 4
    %v9824 = vadd.f32 %v9822, %v9823
    %v9825 = vrot.slane %v9824, 2
    %v9826 = vadd.f32 %v9824, %v9825
    %v9827 = vrot.slane %v9826, 1
    %v9828 = vadd.f32 %v9826, %v9827
    %v9829 = vadd.f32 %v9699, %v9715
    %v9830 = vrot.slane %v9829, 4
    %v9831 = vadd.f32 %v9829, %v9830
    %v9832 = vrot.slane %v9831, 2
    %v9833 = vadd.f32 %v9831, %v9832
    %v9834 = vrot.slane %v9833, 1
    %v9835 = vadd.f32 %v9833, %v9834
    %v9836 = vadd.f32 %v9700, %v9716
    %v9837 = vrot.slane %v9836, 4
    %v9838 = vadd.f32 %v9836, %v9837
    %v9839 = vrot.slane %v9838, 2
    %v9840 = vadd.f32 %v9838, %v9839
    %v9841 = vrot.slane %v9840, 1
    %v9842 = vadd.f32 %v9840, %v9841
    %v9843 = vadd.f32 %v9701, %v9717
    %v9844 = vrot.slane %v9843, 4
    %v9845 = vadd.f32 %v9843, %v9844
    %v9846 = vrot.slane %v9845, 2
    %v9847 = vadd.f32 %v9845, %v9846
    %v9848 = vrot.slane %v9847, 1
    %v9849 = vadd.f32 %v9847, %v9848
    %v9850 = vadd.f32 %v9702, %v9718
    %v9851 = vrot.slane %v9850, 4
    %v9852 = vadd.f32 %v9850, %v9851
    %v9853 = vrot.slane %v9852, 2
    %v9854 = vadd.f32 %v9852, %v9853
    %v9855 = vrot.slane %v9854, 1
    %v9856 = vadd.f32 %v9854, %v9855
    %v9857 = vadd.f32 %v9703, %v9719
    %v9858 = vrot.slane %v9857, 4
    %v9859 = vadd.f32 %v9857, %v9858
    %v9860 = vrot.slane %v9859, 2
    %v9861 = vadd.f32 %v9859, %v9860
    %v9862 = vrot.slane %v9861, 1
    %v9863 = vadd.f32 %v9861, %v9862
    %v9864 = vadd.f32 %v9720, %v9736
    %v9865 = vrot.slane %v9864, 4
    %v9866 = vadd.f32 %v9864, %v9865
    %v9867 = vrot.slane %v9866, 2
    %v9868 = vadd.f32 %v9866, %v9867
    %v9869 = vrot.slane %v9868, 1
    %v9870 = vadd.f32 %v9868, %v9869
    %v9871 = vadd.f32 %v9721, %v9737
    %v9872 = vrot.slane %v9871, 4
    %v9873 = vadd.f32 %v9871, %v9872
    %v9874 = vrot.slane %v9873, 2
    %v9875 = vadd.f32 %v9873, %v9874
    %v9876 = vrot.slane %v9875, 1
    %v9877 = vadd.f32 %v9875, %v9876
    %v9878 = vadd.f32 %v9722, %v9738
    %v9879 = vrot.slane %v9878, 4
    %v9880 = vadd.f32 %v9878, %v9879
    %v9881 = vrot.slane %v9880, 2
    %v9882 = vadd.f32 %v9880, %v9881
    %v9883 = vrot.slane %v9882, 1
    %v9884 = vadd.f32 %v9882, %v9883
    %v9885 = vadd.f32 %v9723, %v9739
    %v9886 = vrot.slane %v9885, 4
    %v9887 = vadd.f32 %v9885, %v9886
    %v9888 = vrot.slane %v9887, 2
    %v9889 = vadd.f32 %v9887, %v9888
    %v9890 = vrot.slane %v9889, 1
    %v9891 = vadd.f32 %v9889, %v9890
    %v9892 = vadd.f32 %v9724, %v9740
    %v9893 = vrot.slane %v9892, 4
    %v9894 = vadd.f32 %v9892, %v9893
    %v9895 = vrot.slane %v9894, 2
    %v9896 = vadd.f32 %v9894, %v9895
    %v9897 = vrot.slane %v9896, 1
    %v9898 = vadd.f32 %v9896, %v9897
    %v9899 = vadd.f32 %v9725, %v9741
    %v9900 = vrot.slane %v9899, 4
    %v9901 = vadd.f32 %v9899, %v9900
    %v9902 = vrot.slane %v9901, 2
    %v9903 = vadd.f32 %v9901, %v9902
    %v9904 = vrot.slane %v9903, 1
    %v9905 = vadd.f32 %v9903, %v9904
    %v9906 = vadd.f32 %v9726, %v9742
    %v9907 = vrot.slane %v9906, 4
    %v9908 = vadd.f32 %v9906, %v9907
    %v9909 = vrot.slane %v9908, 2
    %v9910 = vadd.f32 %v9908, %v9909
    %v9911 = vrot.slane %v9910, 1
    %v9912 = vadd.f32 %v9910, %v9911
    %v9913 = vadd.f32 %v9727, %v9743
    %v9914 = vrot.slane %v9913, 4
    %v9915 = vadd.f32 %v9913, %v9914
    %v9916 = vrot.slane %v9915, 2
    %v9917 = vadd.f32 %v9915, %v9916
    %v9918 = vrot.slane %v9917, 1
    %v9919 = vadd.f32 %v9917, %v9918
    %v9920 = vadd.f32 %v9728, %v9744
    %v9921 = vrot.slane %v9920, 4
    %v9922 = vadd.f32 %v9920, %v9921
    %v9923 = vrot.slane %v9922, 2
    %v9924 = vadd.f32 %v9922, %v9923
    %v9925 = vrot.slane %v9924, 1
    %v9926 = vadd.f32 %v9924, %v9925
    %v9927 = vadd.f32 %v9729, %v9745
    %v9928 = vrot.slane %v9927, 4
    %v9929 = vadd.f32 %v9927, %v9928
    %v9930 = vrot.slane %v9929, 2
    %v9931 = vadd.f32 %v9929, %v9930
    %v9932 = vrot.slane %v9931, 1
    %v9933 = vadd.f32 %v9931, %v9932
    %v9934 = vadd.f32 %v9730, %v9746
    %v9935 = vrot.slane %v9934, 4
    %v9936 = vadd.f32 %v9934, %v9935
    %v9937 = vrot.slane %v9936, 2
    %v9938 = vadd.f32 %v9936, %v9937
    %v9939 = vrot.slane %v9938, 1
    %v9940 = vadd.f32 %v9938, %v9939
    %v9941 = vadd.f32 %v9731, %v9747
    %v9942 = vrot.slane %v9941, 4
    %v9943 = vadd.f32 %v9941, %v9942
    %v9944 = vrot.slane %v9943, 2
    %v9945 = vadd.f32 %v9943, %v9944
    %v9946 = vrot.slane %v9945, 1
    %v9947 = vadd.f32 %v9945, %v9946
    %v9948 = vadd.f32 %v9732, %v9748
    %v9949 = vrot.slane %v9948, 4
    %v9950 = vadd.f32 %v9948, %v9949
    %v9951 = vrot.slane %v9950, 2
    %v9952 = vadd.f32 %v9950, %v9951
    %v9953 = vrot.slane %v9952, 1
    %v9954 = vadd.f32 %v9952, %v9953
    %v9955 = vadd.f32 %v9733, %v9749
    %v9956 = vrot.slane %v9955, 4
    %v9957 = vadd.f32 %v9955, %v9956
    %v9958 = vrot.slane %v9957, 2
    %v9959 = vadd.f32 %v9957, %v9958
    %v9960 = vrot.slane %v9959, 1
    %v9961 = vadd.f32 %v9959, %v9960
    %v9962 = vadd.f32 %v9734, %v9750
    %v9963 = vrot.slane %v9962, 4
    %v9964 = vadd.f32 %v9962, %v9963
    %v9965 = vrot.slane %v9964, 2
    %v9966 = vadd.f32 %v9964, %v9965
    %v9967 = vrot.slane %v9966, 1
    %v9968 = vadd.f32 %v9966, %v9967
    %v9969 = vadd.f32 %v9735, %v9751
    %v9970 = vrot.slane %v9969, 4
    %v9971 = vadd.f32 %v9969, %v9970
    %v9972 = vrot.slane %v9971, 2
    %v9973 = vadd.f32 %v9971, %v9972
    %v9974 = vrot.slane %v9973, 1
    %v9975 = vadd.f32 %v9973, %v9974
    %v9976 = vmul.f32 %v9758, 0.0625
    %v9977 = vmul.f32 %v9765, 0.0625
    %v9978 = vmul.f32 %v9772, 0.0625
    %v9979 = vmul.f32 %v9779, 0.0625
    %v9980 = vmul.f32 %v9786, 0.0625
    %v9981 = vmul.f32 %v9793, 0.0625
    %v9982 = vmul.f32 %v9800, 0.0625
    %v9983 = vmul.f32 %v9807, 0.0625
    %v9984 = vmul.f32 %v9814, 0.0625
    %v9985 = vmul.f32 %v9821, 0.0625
    %v9986 = vmul.f32 %v9828, 0.0625
    %v9987 = vmul.f32 %v9835, 0.0625
    %v9988 = vmul.f32 %v9842, 0.0625
    %v9989 = vmul.f32 %v9849, 0.0625
    %v9990 = vmul.f32 %v9856, 0.0625
    %v9991 = vmul.f32 %v9863, 0.0625
    %v9992 = vmul.f32 %v9870, 0.0625
    %v9993 = vmul.f32 %v9877, 0.0625
    %v9994 = vmul.f32 %v9884, 0.0625
    %v9995 = vmul.f32 %v9891, 0.0625
    %v9996 = vmul.f32 %v9898, 0.0625
    %v9997 = vmul.f32 %v9905, 0.0625
    %v9998 = vmul.f32 %v9912, 0.0625
    %v9999 = vmul.f32 %v9919, 0.0625
    %v10000 = vmul.f32 %v9926, 0.0625
    %v10001 = vmul.f32 %v9933, 0.0625
    %v10002 = vmul.f32 %v9940, 0.0625
    %v10003 = vmul.f32 %v9947, 0.0625
    %v10004 = vmul.f32 %v9954, 0.0625
    %v10005 = vmul.f32 %v9961, 0.0625
    %v10006 = vmul.f32 %v9968, 0.0625
    %v10007 = vmul.f32 %v9975, 0.0625
    %v10008 = vpack.c.bf16 %v9976, %v9976
    %v10009 = vpack.c.bf16 %v9977, %v9977
    %v10010 = vpack.c.bf16 %v9978, %v9978
    %v10011 = vpack.c.bf16 %v9979, %v9979
    %v10012 = vpack.c.bf16 %v9980, %v9980
    %v10013 = vpack.c.bf16 %v9981, %v9981
    %v10014 = vpack.c.bf16 %v9982, %v9982
    %v10015 = vpack.c.bf16 %v9983, %v9983
    %v10016 = vpack.c.bf16 %v9984, %v9984
    %v10017 = vpack.c.bf16 %v9985, %v9985
    %v10018 = vpack.c.bf16 %v9986, %v9986
    %v10019 = vpack.c.bf16 %v9987, %v9987
    %v10020 = vpack.c.bf16 %v9988, %v9988
    %v10021 = vpack.c.bf16 %v9989, %v9989
    %v10022 = vpack.c.bf16 %v9990, %v9990
    %v10023 = vpack.c.bf16 %v9991, %v9991
    %v10024 = vpack.c.bf16 %v9992, %v9992
    %v10025 = vpack.c.bf16 %v9993, %v9993
    %v10026 = vpack.c.bf16 %v9994, %v9994
    %v10027 = vpack.c.bf16 %v9995, %v9995
    %v10028 = vpack.c.bf16 %v9996, %v9996
    %v10029 = vpack.c.bf16 %v9997, %v9997
    %v10030 = vpack.c.bf16 %v9998, %v9998
    %v10031 = vpack.c.bf16 %v9999, %v9999
    %v10032 = vpack.c.bf16 %v10000, %v10000
    %v10033 = vpack.c.bf16 %v10001, %v10001
    %v10034 = vpack.c.bf16 %v10002, %v10002
    %v10035 = vpack.c.bf16 %v10003, %v10003
    %v10036 = vpack.c.bf16 %v10004, %v10004
    %v10037 = vpack.c.bf16 %v10005, %v10005
    %v10038 = vpack.c.bf16 %v10006, %v10006
    %v10039 = vpack.c.bf16 %v10007, %v10007
    %s10040 = scalar_lea.vmem [#allocation5], 8192
    %v10041 = vld [vmem:[%s10040] sm:$0xff]
    %v10042 = vld [vmem:[%s10040 + $0x8] sm:$0xff]
    %v10043 = vld [vmem:[%s10040 + $0x10] sm:$0xff]
    %v10044 = vld [vmem:[%s10040 + $0x18] sm:$0xff]
    %v10045 = vld [vmem:[%s10040 + $0x20] sm:$0xff]
    %v10046 = vld [vmem:[%s10040 + $0x28] sm:$0xff]
    %v10047 = vld [vmem:[%s10040 + $0x30] sm:$0xff]
    %v10048 = vld [vmem:[%s10040 + $0x38] sm:$0xff]
    %v10049 = vld [vmem:[%s10040 + $0x40] sm:$0xff]
    %v10050 = vld [vmem:[%s10040 + $0x48] sm:$0xff]
    %v10051 = vld [vmem:[%s10040 + $0x50] sm:$0xff]
    %v10052 = vld [vmem:[%s10040 + $0x58] sm:$0xff]
    %v10053 = vld [vmem:[%s10040 + $0x60] sm:$0xff]
    %v10054 = vld [vmem:[%s10040 + $0x68] sm:$0xff]
    %v10055 = vld [vmem:[%s10040 + $0x70] sm:$0xff]
    %v10056 = vld [vmem:[%s10040 + $0x78] sm:$0xff]
    %v10057 = vld [vmem:[%s10040 + $0x80] sm:$0xff]
    %v10058 = vld [vmem:[%s10040 + $0x88] sm:$0xff]
    %v10059 = vld [vmem:[%s10040 + $0x90] sm:$0xff]
    %v10060 = vld [vmem:[%s10040 + $0x98] sm:$0xff]
    %v10061 = vld [vmem:[%s10040 + $0xa0] sm:$0xff]
    %v10062 = vld [vmem:[%s10040 + $0xa8] sm:$0xff]
    %v10063 = vld [vmem:[%s10040 + $0xb0] sm:$0xff]
    %v10064 = vld [vmem:[%s10040 + $0xb8] sm:$0xff]
    %v10065 = vld [vmem:[%s10040 + $0xc0] sm:$0xff]
    %v10066 = vld [vmem:[%s10040 + $0xc8] sm:$0xff]
    %v10067 = vld [vmem:[%s10040 + $0xd0] sm:$0xff]
    %v10068 = vld [vmem:[%s10040 + $0xd8] sm:$0xff]
    %v10069 = vld [vmem:[%s10040 + $0xe0] sm:$0xff]
    %v10070 = vld [vmem:[%s10040 + $0xe8] sm:$0xff]
    %v10071 = vld [vmem:[%s10040 + $0xf0] sm:$0xff]
    %v10072 = vld [vmem:[%s10040 + $0xf8] sm:$0xff]
    %v10073 = vld [vmem:[%s10040 + $0x100] sm:$0xff]
    %v10074 = vld [vmem:[%s10040 + $0x108] sm:$0xff]
    %v10075 = vld [vmem:[%s10040 + $0x110] sm:$0xff]
    %v10076 = vld [vmem:[%s10040 + $0x118] sm:$0xff]
    %v10077 = vld [vmem:[%s10040 + $0x120] sm:$0xff]
    %v10078 = vld [vmem:[%s10040 + $0x128] sm:$0xff]
    %v10079 = vld [vmem:[%s10040 + $0x130] sm:$0xff]
    %v10080 = vld [vmem:[%s10040 + $0x138] sm:$0xff]
    %v10081 = vld [vmem:[%s10040 + $0x140] sm:$0xff]
    %v10082 = vld [vmem:[%s10040 + $0x148] sm:$0xff]
    %v10083 = vld [vmem:[%s10040 + $0x150] sm:$0xff]
    %v10084 = vld [vmem:[%s10040 + $0x158] sm:$0xff]
    %v10085 = vld [vmem:[%s10040 + $0x160] sm:$0xff]
    %v10086 = vld [vmem:[%s10040 + $0x168] sm:$0xff]
    %v10087 = vld [vmem:[%s10040 + $0x170] sm:$0xff]
    %v10088 = vld [vmem:[%s10040 + $0x178] sm:$0xff]
    %v10089 = vld [vmem:[%s10040 + $0x180] sm:$0xff]
    %v10090 = vld [vmem:[%s10040 + $0x188] sm:$0xff]
    %v10091 = vld [vmem:[%s10040 + $0x190] sm:$0xff]
    %v10092 = vld [vmem:[%s10040 + $0x198] sm:$0xff]
    %v10093 = vld [vmem:[%s10040 + $0x1a0] sm:$0xff]
    %v10094 = vld [vmem:[%s10040 + $0x1a8] sm:$0xff]
    %v10095 = vld [vmem:[%s10040 + $0x1b0] sm:$0xff]
    %v10096 = vld [vmem:[%s10040 + $0x1b8] sm:$0xff]
    %v10097 = vld [vmem:[%s10040 + $0x1c0] sm:$0xff]
    %v10098 = vld [vmem:[%s10040 + $0x1c8] sm:$0xff]
    %v10099 = vld [vmem:[%s10040 + $0x1d0] sm:$0xff]
    %v10100 = vld [vmem:[%s10040 + $0x1d8] sm:$0xff]
    %v10101 = vld [vmem:[%s10040 + $0x1e0] sm:$0xff]
    %v10102 = vld [vmem:[%s10040 + $0x1e8] sm:$0xff]
    %v10103 = vld [vmem:[%s10040 + $0x1f0] sm:$0xff]
    %v10104 = vld [vmem:[%s10040 + $0x1f8] sm:$0xff]
    %v10105 = vld [vmem:[%s10040 + $0x200] sm:$0xff]
    %v10106 = vld [vmem:[%s10040 + $0x208] sm:$0xff]
    %v10107 = vld [vmem:[%s10040 + $0x210] sm:$0xff]
    %v10108 = vld [vmem:[%s10040 + $0x218] sm:$0xff]
    %v10109 = vld [vmem:[%s10040 + $0x220] sm:$0xff]
    %v10110 = vld [vmem:[%s10040 + $0x228] sm:$0xff]
    %v10111 = vld [vmem:[%s10040 + $0x230] sm:$0xff]
    %v10112 = vld [vmem:[%s10040 + $0x238] sm:$0xff]
    %v10113 = vld [vmem:[%s10040 + $0x240] sm:$0xff]
    %v10114 = vld [vmem:[%s10040 + $0x248] sm:$0xff]
    %v10115 = vld [vmem:[%s10040 + $0x250] sm:$0xff]
    %v10116 = vld [vmem:[%s10040 + $0x258] sm:$0xff]
    %v10117 = vld [vmem:[%s10040 + $0x260] sm:$0xff]
    %v10118 = vld [vmem:[%s10040 + $0x268] sm:$0xff]
    %v10119 = vld [vmem:[%s10040 + $0x270] sm:$0xff]
    %v10120 = vld [vmem:[%s10040 + $0x278] sm:$0xff]
    %v10121 = vld [vmem:[%s10040 + $0x280] sm:$0xff]
    %v10122 = vld [vmem:[%s10040 + $0x288] sm:$0xff]
    %v10123 = vld [vmem:[%s10040 + $0x290] sm:$0xff]
    %v10124 = vld [vmem:[%s10040 + $0x298] sm:$0xff]
    %v10125 = vld [vmem:[%s10040 + $0x2a0] sm:$0xff]
    %v10126 = vld [vmem:[%s10040 + $0x2a8] sm:$0xff]
    %v10127 = vld [vmem:[%s10040 + $0x2b0] sm:$0xff]
    %v10128 = vld [vmem:[%s10040 + $0x2b8] sm:$0xff]
    %v10129 = vld [vmem:[%s10040 + $0x2c0] sm:$0xff]
    %v10130 = vld [vmem:[%s10040 + $0x2c8] sm:$0xff]
    %v10131 = vld [vmem:[%s10040 + $0x2d0] sm:$0xff]
    %v10132 = vld [vmem:[%s10040 + $0x2d8] sm:$0xff]
    %v10133 = vld [vmem:[%s10040 + $0x2e0] sm:$0xff]
    %v10134 = vld [vmem:[%s10040 + $0x2e8] sm:$0xff]
    %v10135 = vld [vmem:[%s10040 + $0x2f0] sm:$0xff]
    %v10136 = vld [vmem:[%s10040 + $0x2f8] sm:$0xff]
    %v10137 = vld [vmem:[%s10040 + $0x300] sm:$0xff]
    %v10138 = vld [vmem:[%s10040 + $0x308] sm:$0xff]
    %v10139 = vld [vmem:[%s10040 + $0x310] sm:$0xff]
    %v10140 = vld [vmem:[%s10040 + $0x318] sm:$0xff]
    %v10141 = vld [vmem:[%s10040 + $0x320] sm:$0xff]
    %v10142 = vld [vmem:[%s10040 + $0x328] sm:$0xff]
    %v10143 = vld [vmem:[%s10040 + $0x330] sm:$0xff]
    %v10144 = vld [vmem:[%s10040 + $0x338] sm:$0xff]
    %v10145 = vld [vmem:[%s10040 + $0x340] sm:$0xff]
    %v10146 = vld [vmem:[%s10040 + $0x348] sm:$0xff]
    %v10147 = vld [vmem:[%s10040 + $0x350] sm:$0xff]
    %v10148 = vld [vmem:[%s10040 + $0x358] sm:$0xff]
    %v10149 = vld [vmem:[%s10040 + $0x360] sm:$0xff]
    %v10150 = vld [vmem:[%s10040 + $0x368] sm:$0xff]
    %v10151 = vld [vmem:[%s10040 + $0x370] sm:$0xff]
    %v10152 = vld [vmem:[%s10040 + $0x378] sm:$0xff]
    %v10153 = vld [vmem:[%s10040 + $0x380] sm:$0xff]
    %v10154 = vld [vmem:[%s10040 + $0x388] sm:$0xff]
    %v10155 = vld [vmem:[%s10040 + $0x390] sm:$0xff]
    %v10156 = vld [vmem:[%s10040 + $0x398] sm:$0xff]
    %v10157 = vld [vmem:[%s10040 + $0x3a0] sm:$0xff]
    %v10158 = vld [vmem:[%s10040 + $0x3a8] sm:$0xff]
    %v10159 = vld [vmem:[%s10040 + $0x3b0] sm:$0xff]
    %v10160 = vld [vmem:[%s10040 + $0x3b8] sm:$0xff]
    %v10161 = vld [vmem:[%s10040 + $0x3c0] sm:$0xff]
    %v10162 = vld [vmem:[%s10040 + $0x3c8] sm:$0xff]
    %v10163 = vld [vmem:[%s10040 + $0x3d0] sm:$0xff]
    %v10164 = vld [vmem:[%s10040 + $0x3d8] sm:$0xff]
    %v10165 = vld [vmem:[%s10040 + $0x3e0] sm:$0xff]
    %v10166 = vld [vmem:[%s10040 + $0x3e8] sm:$0xff]
    %v10167 = vld [vmem:[%s10040 + $0x3f0] sm:$0xff]
    %v10168 = vld [vmem:[%s10040 + $0x3f8] sm:$0xff]
    %v10169 = vld [vmem:[%s10040 + $0x400] sm:$0xff]
    %v10170 = vld [vmem:[%s10040 + $0x408] sm:$0xff]
    %v10171 = vld [vmem:[%s10040 + $0x410] sm:$0xff]
    %v10172 = vld [vmem:[%s10040 + $0x418] sm:$0xff]
    %v10173 = vld [vmem:[%s10040 + $0x420] sm:$0xff]
    %v10174 = vld [vmem:[%s10040 + $0x428] sm:$0xff]
    %v10175 = vld [vmem:[%s10040 + $0x430] sm:$0xff]
    %v10176 = vld [vmem:[%s10040 + $0x438] sm:$0xff]
    %v10177 = vld [vmem:[%s10040 + $0x440] sm:$0xff]
    %v10178 = vld [vmem:[%s10040 + $0x448] sm:$0xff]
    %v10179 = vld [vmem:[%s10040 + $0x450] sm:$0xff]
    %v10180 = vld [vmem:[%s10040 + $0x458] sm:$0xff]
    %v10181 = vld [vmem:[%s10040 + $0x460] sm:$0xff]
    %v10182 = vld [vmem:[%s10040 + $0x468] sm:$0xff]
    %v10183 = vld [vmem:[%s10040 + $0x470] sm:$0xff]
    %v10184 = vld [vmem:[%s10040 + $0x478] sm:$0xff]
    %v10185 = vld [vmem:[%s10040 + $0x480] sm:$0xff]
    %v10186 = vld [vmem:[%s10040 + $0x488] sm:$0xff]
    %v10187 = vld [vmem:[%s10040 + $0x490] sm:$0xff]
    %v10188 = vld [vmem:[%s10040 + $0x498] sm:$0xff]
    %v10189 = vld [vmem:[%s10040 + $0x4a0] sm:$0xff]
    %v10190 = vld [vmem:[%s10040 + $0x4a8] sm:$0xff]
    %v10191 = vld [vmem:[%s10040 + $0x4b0] sm:$0xff]
    %v10192 = vld [vmem:[%s10040 + $0x4b8] sm:$0xff]
    %v10193 = vld [vmem:[%s10040 + $0x4c0] sm:$0xff]
    %v10194 = vld [vmem:[%s10040 + $0x4c8] sm:$0xff]
    %v10195 = vld [vmem:[%s10040 + $0x4d0] sm:$0xff]
    %v10196 = vld [vmem:[%s10040 + $0x4d8] sm:$0xff]
    %v10197 = vld [vmem:[%s10040 + $0x4e0] sm:$0xff]
    %v10198 = vld [vmem:[%s10040 + $0x4e8] sm:$0xff]
    %v10199 = vld [vmem:[%s10040 + $0x4f0] sm:$0xff]
    %v10200 = vld [vmem:[%s10040 + $0x4f8] sm:$0xff]
    %v10201 = vld [vmem:[%s10040 + $0x500] sm:$0xff]
    %v10202 = vld [vmem:[%s10040 + $0x508] sm:$0xff]
    %v10203 = vld [vmem:[%s10040 + $0x510] sm:$0xff]
    %v10204 = vld [vmem:[%s10040 + $0x518] sm:$0xff]
    %v10205 = vld [vmem:[%s10040 + $0x520] sm:$0xff]
    %v10206 = vld [vmem:[%s10040 + $0x528] sm:$0xff]
    %v10207 = vld [vmem:[%s10040 + $0x530] sm:$0xff]
    %v10208 = vld [vmem:[%s10040 + $0x538] sm:$0xff]
    %v10209 = vld [vmem:[%s10040 + $0x540] sm:$0xff]
    %v10210 = vld [vmem:[%s10040 + $0x548] sm:$0xff]
    %v10211 = vld [vmem:[%s10040 + $0x550] sm:$0xff]
    %v10212 = vld [vmem:[%s10040 + $0x558] sm:$0xff]
    %v10213 = vld [vmem:[%s10040 + $0x560] sm:$0xff]
    %v10214 = vld [vmem:[%s10040 + $0x568] sm:$0xff]
    %v10215 = vld [vmem:[%s10040 + $0x570] sm:$0xff]
    %v10216 = vld [vmem:[%s10040 + $0x578] sm:$0xff]
    %v10217 = vld [vmem:[%s10040 + $0x580] sm:$0xff]
    %v10218 = vld [vmem:[%s10040 + $0x588] sm:$0xff]
    %v10219 = vld [vmem:[%s10040 + $0x590] sm:$0xff]
    %v10220 = vld [vmem:[%s10040 + $0x598] sm:$0xff]
    %v10221 = vld [vmem:[%s10040 + $0x5a0] sm:$0xff]
    %v10222 = vld [vmem:[%s10040 + $0x5a8] sm:$0xff]
    %v10223 = vld [vmem:[%s10040 + $0x5b0] sm:$0xff]
    %v10224 = vld [vmem:[%s10040 + $0x5b8] sm:$0xff]
    %v10225 = vld [vmem:[%s10040 + $0x5c0] sm:$0xff]
    %v10226 = vld [vmem:[%s10040 + $0x5c8] sm:$0xff]
    %v10227 = vld [vmem:[%s10040 + $0x5d0] sm:$0xff]
    %v10228 = vld [vmem:[%s10040 + $0x5d8] sm:$0xff]
    %v10229 = vld [vmem:[%s10040 + $0x5e0] sm:$0xff]
    %v10230 = vld [vmem:[%s10040 + $0x5e8] sm:$0xff]
    %v10231 = vld [vmem:[%s10040 + $0x5f0] sm:$0xff]
    %v10232 = vld [vmem:[%s10040 + $0x5f8] sm:$0xff]
    %v10233 = vld [vmem:[%s10040 + $0x600] sm:$0xff]
    %v10234 = vld [vmem:[%s10040 + $0x608] sm:$0xff]
    %v10235 = vld [vmem:[%s10040 + $0x610] sm:$0xff]
    %v10236 = vld [vmem:[%s10040 + $0x618] sm:$0xff]
    %v10237 = vld [vmem:[%s10040 + $0x620] sm:$0xff]
    %v10238 = vld [vmem:[%s10040 + $0x628] sm:$0xff]
    %v10239 = vld [vmem:[%s10040 + $0x630] sm:$0xff]
    %v10240 = vld [vmem:[%s10040 + $0x638] sm:$0xff]
    %v10241 = vld [vmem:[%s10040 + $0x640] sm:$0xff]
    %v10242 = vld [vmem:[%s10040 + $0x648] sm:$0xff]
    %v10243 = vld [vmem:[%s10040 + $0x650] sm:$0xff]
    %v10244 = vld [vmem:[%s10040 + $0x658] sm:$0xff]
    %v10245 = vld [vmem:[%s10040 + $0x660] sm:$0xff]
    %v10246 = vld [vmem:[%s10040 + $0x668] sm:$0xff]
    %v10247 = vld [vmem:[%s10040 + $0x670] sm:$0xff]
    %v10248 = vld [vmem:[%s10040 + $0x678] sm:$0xff]
    %v10249 = vld [vmem:[%s10040 + $0x680] sm:$0xff]
    %v10250 = vld [vmem:[%s10040 + $0x688] sm:$0xff]
    %v10251 = vld [vmem:[%s10040 + $0x690] sm:$0xff]
    %v10252 = vld [vmem:[%s10040 + $0x698] sm:$0xff]
    %v10253 = vld [vmem:[%s10040 + $0x6a0] sm:$0xff]
    %v10254 = vld [vmem:[%s10040 + $0x6a8] sm:$0xff]
    %v10255 = vld [vmem:[%s10040 + $0x6b0] sm:$0xff]
    %v10256 = vld [vmem:[%s10040 + $0x6b8] sm:$0xff]
    %v10257 = vld [vmem:[%s10040 + $0x6c0] sm:$0xff]
    %v10258 = vld [vmem:[%s10040 + $0x6c8] sm:$0xff]
    %v10259 = vld [vmem:[%s10040 + $0x6d0] sm:$0xff]
    %v10260 = vld [vmem:[%s10040 + $0x6d8] sm:$0xff]
    %v10261 = vld [vmem:[%s10040 + $0x6e0] sm:$0xff]
    %v10262 = vld [vmem:[%s10040 + $0x6e8] sm:$0xff]
    %v10263 = vld [vmem:[%s10040 + $0x6f0] sm:$0xff]
    %v10264 = vld [vmem:[%s10040 + $0x6f8] sm:$0xff]
    %v10265 = vld [vmem:[%s10040 + $0x700] sm:$0xff]
    %v10266 = vld [vmem:[%s10040 + $0x708] sm:$0xff]
    %v10267 = vld [vmem:[%s10040 + $0x710] sm:$0xff]
    %v10268 = vld [vmem:[%s10040 + $0x718] sm:$0xff]
    %v10269 = vld [vmem:[%s10040 + $0x720] sm:$0xff]
    %v10270 = vld [vmem:[%s10040 + $0x728] sm:$0xff]
    %v10271 = vld [vmem:[%s10040 + $0x730] sm:$0xff]
    %v10272 = vld [vmem:[%s10040 + $0x738] sm:$0xff]
    %v10273 = vld [vmem:[%s10040 + $0x740] sm:$0xff]
    %v10274 = vld [vmem:[%s10040 + $0x748] sm:$0xff]
    %v10275 = vld [vmem:[%s10040 + $0x750] sm:$0xff]
    %v10276 = vld [vmem:[%s10040 + $0x758] sm:$0xff]
    %v10277 = vld [vmem:[%s10040 + $0x760] sm:$0xff]
    %v10278 = vld [vmem:[%s10040 + $0x768] sm:$0xff]
    %v10279 = vld [vmem:[%s10040 + $0x770] sm:$0xff]
    %v10280 = vld [vmem:[%s10040 + $0x778] sm:$0xff]
    %v10281 = vld [vmem:[%s10040 + $0x780] sm:$0xff]
    %v10282 = vld [vmem:[%s10040 + $0x788] sm:$0xff]
    %v10283 = vld [vmem:[%s10040 + $0x790] sm:$0xff]
    %v10284 = vld [vmem:[%s10040 + $0x798] sm:$0xff]
    %v10285 = vld [vmem:[%s10040 + $0x7a0] sm:$0xff]
    %v10286 = vld [vmem:[%s10040 + $0x7a8] sm:$0xff]
    %v10287 = vld [vmem:[%s10040 + $0x7b0] sm:$0xff]
    %v10288 = vld [vmem:[%s10040 + $0x7b8] sm:$0xff]
    %v10289 = vld [vmem:[%s10040 + $0x7c0] sm:$0xff]
    %v10290 = vld [vmem:[%s10040 + $0x7c8] sm:$0xff]
    %v10291 = vld [vmem:[%s10040 + $0x7d0] sm:$0xff]
    %v10292 = vld [vmem:[%s10040 + $0x7d8] sm:$0xff]
    %v10293 = vld [vmem:[%s10040 + $0x7e0] sm:$0xff]
    %v10294 = vld [vmem:[%s10040 + $0x7e8] sm:$0xff]
    %v10295 = vld [vmem:[%s10040 + $0x7f0] sm:$0xff]
    %v10296 = vld [vmem:[%s10040 + $0x7f8] sm:$0xff]
    %s10297 = scalar_lea.vmem [#allocation7], 8
    %v10298 = vld [vmem:[%s10297] sm:$0x3]
    %v10300 = vlaneseq
    %v10301 = vshrl.u32 %v10300, 7
    %v10302 = vsub.s32 0, %v10301
    %v10303 = vrot.slane %v10298, %v10302
    %v10304 = vlaneseq
    %v10305 = vshrl.u32 %v10304, 7
    %v10306 = vsub.s32 1, %v10305
    %v10307 = vrot.slane %v10298, %v10306
    %v10342 = vunpack.c.l.b16 %v10008
    %v10343 = vunpack.c.l.b16 %v10009
    %v10344 = vunpack.c.l.b16 %v10010
    %v10345 = vunpack.c.l.b16 %v10011
    %v10346 = vunpack.c.l.b16 %v10012
    %v10347 = vunpack.c.l.b16 %v10013
    %v10348 = vunpack.c.l.b16 %v10014
    %v10349 = vunpack.c.l.b16 %v10015
    %v10350 = vunpack.c.l.b16 %v10016
    %v10351 = vunpack.c.l.b16 %v10017
    %v10352 = vunpack.c.l.b16 %v10018
    %v10353 = vunpack.c.l.b16 %v10019
    %v10354 = vunpack.c.l.b16 %v10020
    %v10355 = vunpack.c.l.b16 %v10021
    %v10356 = vunpack.c.l.b16 %v10022
    %v10357 = vunpack.c.l.b16 %v10023
    %v10358 = vunpack.c.l.b16 %v10024
    %v10359 = vunpack.c.l.b16 %v10025
    %v10360 = vunpack.c.l.b16 %v10026
    %v10361 = vunpack.c.l.b16 %v10027
    %v10362 = vunpack.c.l.b16 %v10028
    %v10363 = vunpack.c.l.b16 %v10029
    %v10364 = vunpack.c.l.b16 %v10030
    %v10365 = vunpack.c.l.b16 %v10031
    %v10366 = vunpack.c.l.b16 %v10032
    %v10367 = vunpack.c.l.b16 %v10033
    %v10368 = vunpack.c.l.b16 %v10034
    %v10369 = vunpack.c.l.b16 %v10035
    %v10370 = vunpack.c.l.b16 %v10036
    %v10371 = vunpack.c.l.b16 %v10037
    %v10372 = vunpack.c.l.b16 %v10038
    %v10373 = vunpack.c.l.b16 %v10039
    %v10374 = vsel %vm772, %v10358, %v10342
    %v10375 = vsel %vm772, %v10359, %v10343
    %v10376 = vsel %vm772, %v10360, %v10344
    %v10377 = vsel %vm772, %v10361, %v10345
    %v10378 = vsel %vm772, %v10362, %v10346
    %v10379 = vsel %vm772, %v10363, %v10347
    %v10380 = vsel %vm772, %v10364, %v10348
    %v10381 = vsel %vm772, %v10365, %v10349
    %v10382 = vsel %vm772, %v10366, %v10350
    %v10383 = vsel %vm772, %v10367, %v10351
    %v10384 = vsel %vm772, %v10368, %v10352
    %v10385 = vsel %vm772, %v10369, %v10353
    %v10386 = vsel %vm772, %v10370, %v10354
    %v10387 = vsel %vm772, %v10371, %v10355
    %v10388 = vsel %vm772, %v10372, %v10356
    %v10389 = vsel %vm772, %v10373, %v10357
    %v10390 = vpack.c.b16 %v10374, %v10374
    %v10391 = vpack.c.b16 %v10375, %v10375
    %v10392 = vpack.c.b16 %v10376, %v10376
    %v10393 = vpack.c.b16 %v10377, %v10377
    %v10394 = vpack.c.b16 %v10378, %v10378
    %v10395 = vpack.c.b16 %v10379, %v10379
    %v10396 = vpack.c.b16 %v10380, %v10380
    %v10397 = vpack.c.b16 %v10381, %v10381
    %v10398 = vpack.c.b16 %v10382, %v10382
    %v10399 = vpack.c.b16 %v10383, %v10383
    %v10400 = vpack.c.b16 %v10384, %v10384
    %v10401 = vpack.c.b16 %v10385, %v10385
    %v10402 = vpack.c.b16 %v10386, %v10386
    %v10403 = vpack.c.b16 %v10387, %v10387
    %v10404 = vpack.c.b16 %v10388, %v10388
    %v10405 = vpack.c.b16 %v10389, %v10389
    %v10678 = vunpack.c.l.b16 %v10041
    %v10679 = vunpack.c.h.b16 %v10041
    %v10680 = vunpack.c.l.b16 %v10042
    %v10681 = vunpack.c.h.b16 %v10042
    %v10682 = vunpack.c.l.b16 %v10043
    %v10683 = vunpack.c.h.b16 %v10043
    %v10684 = vunpack.c.l.b16 %v10044
    %v10685 = vunpack.c.h.b16 %v10044
    %v10686 = vunpack.c.l.b16 %v10045
    %v10687 = vunpack.c.h.b16 %v10045
    %v10688 = vunpack.c.l.b16 %v10046
    %v10689 = vunpack.c.h.b16 %v10046
    %v10690 = vunpack.c.l.b16 %v10047
    %v10691 = vunpack.c.h.b16 %v10047
    %v10692 = vunpack.c.l.b16 %v10048
    %v10693 = vunpack.c.h.b16 %v10048
    %v10694 = vunpack.c.l.b16 %v10049
    %v10695 = vunpack.c.h.b16 %v10049
    %v10696 = vunpack.c.l.b16 %v10050
    %v10697 = vunpack.c.h.b16 %v10050
    %v10698 = vunpack.c.l.b16 %v10051
    %v10699 = vunpack.c.h.b16 %v10051
    %v10700 = vunpack.c.l.b16 %v10052
    %v10701 = vunpack.c.h.b16 %v10052
    %v10702 = vunpack.c.l.b16 %v10053
    %v10703 = vunpack.c.h.b16 %v10053
    %v10704 = vunpack.c.l.b16 %v10054
    %v10705 = vunpack.c.h.b16 %v10054
    %v10706 = vunpack.c.l.b16 %v10055
    %v10707 = vunpack.c.h.b16 %v10055
    %v10708 = vunpack.c.l.b16 %v10056
    %v10709 = vunpack.c.h.b16 %v10056
    %v10710 = vunpack.c.l.b16 %v10057
    %v10711 = vunpack.c.h.b16 %v10057
    %v10712 = vunpack.c.l.b16 %v10058
    %v10713 = vunpack.c.h.b16 %v10058
    %v10714 = vunpack.c.l.b16 %v10059
    %v10715 = vunpack.c.h.b16 %v10059
    %v10716 = vunpack.c.l.b16 %v10060
    %v10717 = vunpack.c.h.b16 %v10060
    %v10718 = vunpack.c.l.b16 %v10061
    %v10719 = vunpack.c.h.b16 %v10061
    %v10720 = vunpack.c.l.b16 %v10062
    %v10721 = vunpack.c.h.b16 %v10062
    %v10722 = vunpack.c.l.b16 %v10063
    %v10723 = vunpack.c.h.b16 %v10063
    %v10724 = vunpack.c.l.b16 %v10064
    %v10725 = vunpack.c.h.b16 %v10064
    %v10726 = vunpack.c.l.b16 %v10065
    %v10727 = vunpack.c.h.b16 %v10065
    %v10728 = vunpack.c.l.b16 %v10066
    %v10729 = vunpack.c.h.b16 %v10066
    %v10730 = vunpack.c.l.b16 %v10067
    %v10731 = vunpack.c.h.b16 %v10067
    %v10732 = vunpack.c.l.b16 %v10068
    %v10733 = vunpack.c.h.b16 %v10068
    %v10734 = vunpack.c.l.b16 %v10069
    %v10735 = vunpack.c.h.b16 %v10069
    %v10736 = vunpack.c.l.b16 %v10070
    %v10737 = vunpack.c.h.b16 %v10070
    %v10738 = vunpack.c.l.b16 %v10071
    %v10739 = vunpack.c.h.b16 %v10071
    %v10740 = vunpack.c.l.b16 %v10072
    %v10741 = vunpack.c.h.b16 %v10072
    %v10742 = vunpack.c.l.b16 %v10073
    %v10743 = vunpack.c.h.b16 %v10073
    %v10744 = vunpack.c.l.b16 %v10074
    %v10745 = vunpack.c.h.b16 %v10074
    %v10746 = vunpack.c.l.b16 %v10075
    %v10747 = vunpack.c.h.b16 %v10075
    %v10748 = vunpack.c.l.b16 %v10076
    %v10749 = vunpack.c.h.b16 %v10076
    %v10750 = vunpack.c.l.b16 %v10077
    %v10751 = vunpack.c.h.b16 %v10077
    %v10752 = vunpack.c.l.b16 %v10078
    %v10753 = vunpack.c.h.b16 %v10078
    %v10754 = vunpack.c.l.b16 %v10079
    %v10755 = vunpack.c.h.b16 %v10079
    %v10756 = vunpack.c.l.b16 %v10080
    %v10757 = vunpack.c.h.b16 %v10080
    %v10758 = vunpack.c.l.b16 %v10081
    %v10759 = vunpack.c.h.b16 %v10081
    %v10760 = vunpack.c.l.b16 %v10082
    %v10761 = vunpack.c.h.b16 %v10082
    %v10762 = vunpack.c.l.b16 %v10083
    %v10763 = vunpack.c.h.b16 %v10083
    %v10764 = vunpack.c.l.b16 %v10084
    %v10765 = vunpack.c.h.b16 %v10084
    %v10766 = vunpack.c.l.b16 %v10085
    %v10767 = vunpack.c.h.b16 %v10085
    %v10768 = vunpack.c.l.b16 %v10086
    %v10769 = vunpack.c.h.b16 %v10086
    %v10770 = vunpack.c.l.b16 %v10087
    %v10771 = vunpack.c.h.b16 %v10087
    %v10772 = vunpack.c.l.b16 %v10088
    %v10773 = vunpack.c.h.b16 %v10088
    %v10774 = vunpack.c.l.b16 %v10089
    %v10775 = vunpack.c.h.b16 %v10089
    %v10776 = vunpack.c.l.b16 %v10090
    %v10777 = vunpack.c.h.b16 %v10090
    %v10778 = vunpack.c.l.b16 %v10091
    %v10779 = vunpack.c.h.b16 %v10091
    %v10780 = vunpack.c.l.b16 %v10092
    %v10781 = vunpack.c.h.b16 %v10092
    %v10782 = vunpack.c.l.b16 %v10093
    %v10783 = vunpack.c.h.b16 %v10093
    %v10784 = vunpack.c.l.b16 %v10094
    %v10785 = vunpack.c.h.b16 %v10094
    %v10786 = vunpack.c.l.b16 %v10095
    %v10787 = vunpack.c.h.b16 %v10095
    %v10788 = vunpack.c.l.b16 %v10096
    %v10789 = vunpack.c.h.b16 %v10096
    %v10790 = vunpack.c.l.b16 %v10097
    %v10791 = vunpack.c.h.b16 %v10097
    %v10792 = vunpack.c.l.b16 %v10098
    %v10793 = vunpack.c.h.b16 %v10098
    %v10794 = vunpack.c.l.b16 %v10099
    %v10795 = vunpack.c.h.b16 %v10099
    %v10796 = vunpack.c.l.b16 %v10100
    %v10797 = vunpack.c.h.b16 %v10100
    %v10798 = vunpack.c.l.b16 %v10101
    %v10799 = vunpack.c.h.b16 %v10101
    %v10800 = vunpack.c.l.b16 %v10102
    %v10801 = vunpack.c.h.b16 %v10102
    %v10802 = vunpack.c.l.b16 %v10103
    %v10803 = vunpack.c.h.b16 %v10103
    %v10804 = vunpack.c.l.b16 %v10104
    %v10805 = vunpack.c.h.b16 %v10104
    %v10806 = vunpack.c.l.b16 %v10105
    %v10807 = vunpack.c.h.b16 %v10105
    %v10808 = vunpack.c.l.b16 %v10106
    %v10809 = vunpack.c.h.b16 %v10106
    %v10810 = vunpack.c.l.b16 %v10107
    %v10811 = vunpack.c.h.b16 %v10107
    %v10812 = vunpack.c.l.b16 %v10108
    %v10813 = vunpack.c.h.b16 %v10108
    %v10814 = vunpack.c.l.b16 %v10109
    %v10815 = vunpack.c.h.b16 %v10109
    %v10816 = vunpack.c.l.b16 %v10110
    %v10817 = vunpack.c.h.b16 %v10110
    %v10818 = vunpack.c.l.b16 %v10111
    %v10819 = vunpack.c.h.b16 %v10111
    %v10820 = vunpack.c.l.b16 %v10112
    %v10821 = vunpack.c.h.b16 %v10112
    %v10822 = vunpack.c.l.b16 %v10113
    %v10823 = vunpack.c.h.b16 %v10113
    %v10824 = vunpack.c.l.b16 %v10114
    %v10825 = vunpack.c.h.b16 %v10114
    %v10826 = vunpack.c.l.b16 %v10115
    %v10827 = vunpack.c.h.b16 %v10115
    %v10828 = vunpack.c.l.b16 %v10116
    %v10829 = vunpack.c.h.b16 %v10116
    %v10830 = vunpack.c.l.b16 %v10117
    %v10831 = vunpack.c.h.b16 %v10117
    %v10832 = vunpack.c.l.b16 %v10118
    %v10833 = vunpack.c.h.b16 %v10118
    %v10834 = vunpack.c.l.b16 %v10119
    %v10835 = vunpack.c.h.b16 %v10119
    %v10836 = vunpack.c.l.b16 %v10120
    %v10837 = vunpack.c.h.b16 %v10120
    %v10838 = vunpack.c.l.b16 %v10121
    %v10839 = vunpack.c.h.b16 %v10121
    %v10840 = vunpack.c.l.b16 %v10122
    %v10841 = vunpack.c.h.b16 %v10122
    %v10842 = vunpack.c.l.b16 %v10123
    %v10843 = vunpack.c.h.b16 %v10123
    %v10844 = vunpack.c.l.b16 %v10124
    %v10845 = vunpack.c.h.b16 %v10124
    %v10846 = vunpack.c.l.b16 %v10125
    %v10847 = vunpack.c.h.b16 %v10125
    %v10848 = vunpack.c.l.b16 %v10126
    %v10849 = vunpack.c.h.b16 %v10126
    %v10850 = vunpack.c.l.b16 %v10127
    %v10851 = vunpack.c.h.b16 %v10127
    %v10852 = vunpack.c.l.b16 %v10128
    %v10853 = vunpack.c.h.b16 %v10128
    %v10854 = vunpack.c.l.b16 %v10129
    %v10855 = vunpack.c.h.b16 %v10129
    %v10856 = vunpack.c.l.b16 %v10130
    %v10857 = vunpack.c.h.b16 %v10130
    %v10858 = vunpack.c.l.b16 %v10131
    %v10859 = vunpack.c.h.b16 %v10131
    %v10860 = vunpack.c.l.b16 %v10132
    %v10861 = vunpack.c.h.b16 %v10132
    %v10862 = vunpack.c.l.b16 %v10133
    %v10863 = vunpack.c.h.b16 %v10133
    %v10864 = vunpack.c.l.b16 %v10134
    %v10865 = vunpack.c.h.b16 %v10134
    %v10866 = vunpack.c.l.b16 %v10135
    %v10867 = vunpack.c.h.b16 %v10135
    %v10868 = vunpack.c.l.b16 %v10136
    %v10869 = vunpack.c.h.b16 %v10136
    %v10870 = vunpack.c.l.b16 %v10137
    %v10871 = vunpack.c.h.b16 %v10137
    %v10872 = vunpack.c.l.b16 %v10138
    %v10873 = vunpack.c.h.b16 %v10138
    %v10874 = vunpack.c.l.b16 %v10139
    %v10875 = vunpack.c.h.b16 %v10139
    %v10876 = vunpack.c.l.b16 %v10140
    %v10877 = vunpack.c.h.b16 %v10140
    %v10878 = vunpack.c.l.b16 %v10141
    %v10879 = vunpack.c.h.b16 %v10141
    %v10880 = vunpack.c.l.b16 %v10142
    %v10881 = vunpack.c.h.b16 %v10142
    %v10882 = vunpack.c.l.b16 %v10143
    %v10883 = vunpack.c.h.b16 %v10143
    %v10884 = vunpack.c.l.b16 %v10144
    %v10885 = vunpack.c.h.b16 %v10144
    %v10886 = vunpack.c.l.b16 %v10145
    %v10887 = vunpack.c.h.b16 %v10145
    %v10888 = vunpack.c.l.b16 %v10146
    %v10889 = vunpack.c.h.b16 %v10146
    %v10890 = vunpack.c.l.b16 %v10147
    %v10891 = vunpack.c.h.b16 %v10147
    %v10892 = vunpack.c.l.b16 %v10148
    %v10893 = vunpack.c.h.b16 %v10148
    %v10894 = vunpack.c.l.b16 %v10149
    %v10895 = vunpack.c.h.b16 %v10149
    %v10896 = vunpack.c.l.b16 %v10150
    %v10897 = vunpack.c.h.b16 %v10150
    %v10898 = vunpack.c.l.b16 %v10151
    %v10899 = vunpack.c.h.b16 %v10151
    %v10900 = vunpack.c.l.b16 %v10152
    %v10901 = vunpack.c.h.b16 %v10152
    %v10902 = vunpack.c.l.b16 %v10153
    %v10903 = vunpack.c.h.b16 %v10153
    %v10904 = vunpack.c.l.b16 %v10154
    %v10905 = vunpack.c.h.b16 %v10154
    %v10906 = vunpack.c.l.b16 %v10155
    %v10907 = vunpack.c.h.b16 %v10155
    %v10908 = vunpack.c.l.b16 %v10156
    %v10909 = vunpack.c.h.b16 %v10156
    %v10910 = vunpack.c.l.b16 %v10157
    %v10911 = vunpack.c.h.b16 %v10157
    %v10912 = vunpack.c.l.b16 %v10158
    %v10913 = vunpack.c.h.b16 %v10158
    %v10914 = vunpack.c.l.b16 %v10159
    %v10915 = vunpack.c.h.b16 %v10159
    %v10916 = vunpack.c.l.b16 %v10160
    %v10917 = vunpack.c.h.b16 %v10160
    %v10918 = vunpack.c.l.b16 %v10161
    %v10919 = vunpack.c.h.b16 %v10161
    %v10920 = vunpack.c.l.b16 %v10162
    %v10921 = vunpack.c.h.b16 %v10162
    %v10922 = vunpack.c.l.b16 %v10163
    %v10923 = vunpack.c.h.b16 %v10163
    %v10924 = vunpack.c.l.b16 %v10164
    %v10925 = vunpack.c.h.b16 %v10164
    %v10926 = vunpack.c.l.b16 %v10165
    %v10927 = vunpack.c.h.b16 %v10165
    %v10928 = vunpack.c.l.b16 %v10166
    %v10929 = vunpack.c.h.b16 %v10166
    %v10930 = vunpack.c.l.b16 %v10167
    %v10931 = vunpack.c.h.b16 %v10167
    %v10932 = vunpack.c.l.b16 %v10168
    %v10933 = vunpack.c.h.b16 %v10168
    %v10934 = vunpack.c.l.b16 %v10169
    %v10935 = vunpack.c.h.b16 %v10169
    %v10936 = vunpack.c.l.b16 %v10170
    %v10937 = vunpack.c.h.b16 %v10170
    %v10938 = vunpack.c.l.b16 %v10171
    %v10939 = vunpack.c.h.b16 %v10171
    %v10940 = vunpack.c.l.b16 %v10172
    %v10941 = vunpack.c.h.b16 %v10172
    %v10942 = vunpack.c.l.b16 %v10173
    %v10943 = vunpack.c.h.b16 %v10173
    %v10944 = vunpack.c.l.b16 %v10174
    %v10945 = vunpack.c.h.b16 %v10174
    %v10946 = vunpack.c.l.b16 %v10175
    %v10947 = vunpack.c.h.b16 %v10175
    %v10948 = vunpack.c.l.b16 %v10176
    %v10949 = vunpack.c.h.b16 %v10176
    %v10950 = vunpack.c.l.b16 %v10177
    %v10951 = vunpack.c.h.b16 %v10177
    %v10952 = vunpack.c.l.b16 %v10178
    %v10953 = vunpack.c.h.b16 %v10178
    %v10954 = vunpack.c.l.b16 %v10179
    %v10955 = vunpack.c.h.b16 %v10179
    %v10956 = vunpack.c.l.b16 %v10180
    %v10957 = vunpack.c.h.b16 %v10180
    %v10958 = vunpack.c.l.b16 %v10181
    %v10959 = vunpack.c.h.b16 %v10181
    %v10960 = vunpack.c.l.b16 %v10182
    %v10961 = vunpack.c.h.b16 %v10182
    %v10962 = vunpack.c.l.b16 %v10183
    %v10963 = vunpack.c.h.b16 %v10183
    %v10964 = vunpack.c.l.b16 %v10184
    %v10965 = vunpack.c.h.b16 %v10184
    %v10966 = vunpack.c.l.b16 %v10185
    %v10967 = vunpack.c.h.b16 %v10185
    %v10968 = vunpack.c.l.b16 %v10186
    %v10969 = vunpack.c.h.b16 %v10186
    %v10970 = vunpack.c.l.b16 %v10187
    %v10971 = vunpack.c.h.b16 %v10187
    %v10972 = vunpack.c.l.b16 %v10188
    %v10973 = vunpack.c.h.b16 %v10188
    %v10974 = vunpack.c.l.b16 %v10189
    %v10975 = vunpack.c.h.b16 %v10189
    %v10976 = vunpack.c.l.b16 %v10190
    %v10977 = vunpack.c.h.b16 %v10190
    %v10978 = vunpack.c.l.b16 %v10191
    %v10979 = vunpack.c.h.b16 %v10191
    %v10980 = vunpack.c.l.b16 %v10192
    %v10981 = vunpack.c.h.b16 %v10192
    %v10982 = vunpack.c.l.b16 %v10193
    %v10983 = vunpack.c.h.b16 %v10193
    %v10984 = vunpack.c.l.b16 %v10194
    %v10985 = vunpack.c.h.b16 %v10194
    %v10986 = vunpack.c.l.b16 %v10195
    %v10987 = vunpack.c.h.b16 %v10195
    %v10988 = vunpack.c.l.b16 %v10196
    %v10989 = vunpack.c.h.b16 %v10196
    %v10990 = vunpack.c.l.b16 %v10197
    %v10991 = vunpack.c.h.b16 %v10197
    %v10992 = vunpack.c.l.b16 %v10198
    %v10993 = vunpack.c.h.b16 %v10198
    %v10994 = vunpack.c.l.b16 %v10199
    %v10995 = vunpack.c.h.b16 %v10199
    %v10996 = vunpack.c.l.b16 %v10200
    %v10997 = vunpack.c.h.b16 %v10200
    %v10998 = vunpack.c.l.b16 %v10201
    %v10999 = vunpack.c.h.b16 %v10201
    %v11000 = vunpack.c.l.b16 %v10202
    %v11001 = vunpack.c.h.b16 %v10202
    %v11002 = vunpack.c.l.b16 %v10203
    %v11003 = vunpack.c.h.b16 %v10203
    %v11004 = vunpack.c.l.b16 %v10204
    %v11005 = vunpack.c.h.b16 %v10204
    %v11006 = vunpack.c.l.b16 %v10205
    %v11007 = vunpack.c.h.b16 %v10205
    %v11008 = vunpack.c.l.b16 %v10206
    %v11009 = vunpack.c.h.b16 %v10206
    %v11010 = vunpack.c.l.b16 %v10207
    %v11011 = vunpack.c.h.b16 %v10207
    %v11012 = vunpack.c.l.b16 %v10208
    %v11013 = vunpack.c.h.b16 %v10208
    %v11014 = vunpack.c.l.b16 %v10209
    %v11015 = vunpack.c.h.b16 %v10209
    %v11016 = vunpack.c.l.b16 %v10210
    %v11017 = vunpack.c.h.b16 %v10210
    %v11018 = vunpack.c.l.b16 %v10211
    %v11019 = vunpack.c.h.b16 %v10211
    %v11020 = vunpack.c.l.b16 %v10212
    %v11021 = vunpack.c.h.b16 %v10212
    %v11022 = vunpack.c.l.b16 %v10213
    %v11023 = vunpack.c.h.b16 %v10213
    %v11024 = vunpack.c.l.b16 %v10214
    %v11025 = vunpack.c.h.b16 %v10214
    %v11026 = vunpack.c.l.b16 %v10215
    %v11027 = vunpack.c.h.b16 %v10215
    %v11028 = vunpack.c.l.b16 %v10216
    %v11029 = vunpack.c.h.b16 %v10216
    %v11030 = vunpack.c.l.b16 %v10217
    %v11031 = vunpack.c.h.b16 %v10217
    %v11032 = vunpack.c.l.b16 %v10218
    %v11033 = vunpack.c.h.b16 %v10218
    %v11034 = vunpack.c.l.b16 %v10219
    %v11035 = vunpack.c.h.b16 %v10219
    %v11036 = vunpack.c.l.b16 %v10220
    %v11037 = vunpack.c.h.b16 %v10220
    %v11038 = vunpack.c.l.b16 %v10221
    %v11039 = vunpack.c.h.b16 %v10221
    %v11040 = vunpack.c.l.b16 %v10222
    %v11041 = vunpack.c.h.b16 %v10222
    %v11042 = vunpack.c.l.b16 %v10223
    %v11043 = vunpack.c.h.b16 %v10223
    %v11044 = vunpack.c.l.b16 %v10224
    %v11045 = vunpack.c.h.b16 %v10224
    %v11046 = vunpack.c.l.b16 %v10225
    %v11047 = vunpack.c.h.b16 %v10225
    %v11048 = vunpack.c.l.b16 %v10226
    %v11049 = vunpack.c.h.b16 %v10226
    %v11050 = vunpack.c.l.b16 %v10227
    %v11051 = vunpack.c.h.b16 %v10227
    %v11052 = vunpack.c.l.b16 %v10228
    %v11053 = vunpack.c.h.b16 %v10228
    %v11054 = vunpack.c.l.b16 %v10229
    %v11055 = vunpack.c.h.b16 %v10229
    %v11056 = vunpack.c.l.b16 %v10230
    %v11057 = vunpack.c.h.b16 %v10230
    %v11058 = vunpack.c.l.b16 %v10231
    %v11059 = vunpack.c.h.b16 %v10231
    %v11060 = vunpack.c.l.b16 %v10232
    %v11061 = vunpack.c.h.b16 %v10232
    %v11062 = vunpack.c.l.b16 %v10233
    %v11063 = vunpack.c.h.b16 %v10233
    %v11064 = vunpack.c.l.b16 %v10234
    %v11065 = vunpack.c.h.b16 %v10234
    %v11066 = vunpack.c.l.b16 %v10235
    %v11067 = vunpack.c.h.b16 %v10235
    %v11068 = vunpack.c.l.b16 %v10236
    %v11069 = vunpack.c.h.b16 %v10236
    %v11070 = vunpack.c.l.b16 %v10237
    %v11071 = vunpack.c.h.b16 %v10237
    %v11072 = vunpack.c.l.b16 %v10238
    %v11073 = vunpack.c.h.b16 %v10238
    %v11074 = vunpack.c.l.b16 %v10239
    %v11075 = vunpack.c.h.b16 %v10239
    %v11076 = vunpack.c.l.b16 %v10240
    %v11077 = vunpack.c.h.b16 %v10240
    %v11078 = vunpack.c.l.b16 %v10241
    %v11079 = vunpack.c.h.b16 %v10241
    %v11080 = vunpack.c.l.b16 %v10242
    %v11081 = vunpack.c.h.b16 %v10242
    %v11082 = vunpack.c.l.b16 %v10243
    %v11083 = vunpack.c.h.b16 %v10243
    %v11084 = vunpack.c.l.b16 %v10244
    %v11085 = vunpack.c.h.b16 %v10244
    %v11086 = vunpack.c.l.b16 %v10245
    %v11087 = vunpack.c.h.b16 %v10245
    %v11088 = vunpack.c.l.b16 %v10246
    %v11089 = vunpack.c.h.b16 %v10246
    %v11090 = vunpack.c.l.b16 %v10247
    %v11091 = vunpack.c.h.b16 %v10247
    %v11092 = vunpack.c.l.b16 %v10248
    %v11093 = vunpack.c.h.b16 %v10248
    %v11094 = vunpack.c.l.b16 %v10249
    %v11095 = vunpack.c.h.b16 %v10249
    %v11096 = vunpack.c.l.b16 %v10250
    %v11097 = vunpack.c.h.b16 %v10250
    %v11098 = vunpack.c.l.b16 %v10251
    %v11099 = vunpack.c.h.b16 %v10251
    %v11100 = vunpack.c.l.b16 %v10252
    %v11101 = vunpack.c.h.b16 %v10252
    %v11102 = vunpack.c.l.b16 %v10253
    %v11103 = vunpack.c.h.b16 %v10253
    %v11104 = vunpack.c.l.b16 %v10254
    %v11105 = vunpack.c.h.b16 %v10254
    %v11106 = vunpack.c.l.b16 %v10255
    %v11107 = vunpack.c.h.b16 %v10255
    %v11108 = vunpack.c.l.b16 %v10256
    %v11109 = vunpack.c.h.b16 %v10256
    %v11110 = vunpack.c.l.b16 %v10257
    %v11111 = vunpack.c.h.b16 %v10257
    %v11112 = vunpack.c.l.b16 %v10258
    %v11113 = vunpack.c.h.b16 %v10258
    %v11114 = vunpack.c.l.b16 %v10259
    %v11115 = vunpack.c.h.b16 %v10259
    %v11116 = vunpack.c.l.b16 %v10260
    %v11117 = vunpack.c.h.b16 %v10260
    %v11118 = vunpack.c.l.b16 %v10261
    %v11119 = vunpack.c.h.b16 %v10261
    %v11120 = vunpack.c.l.b16 %v10262
    %v11121 = vunpack.c.h.b16 %v10262
    %v11122 = vunpack.c.l.b16 %v10263
    %v11123 = vunpack.c.h.b16 %v10263
    %v11124 = vunpack.c.l.b16 %v10264
    %v11125 = vunpack.c.h.b16 %v10264
    %v11126 = vunpack.c.l.b16 %v10265
    %v11127 = vunpack.c.h.b16 %v10265
    %v11128 = vunpack.c.l.b16 %v10266
    %v11129 = vunpack.c.h.b16 %v10266
    %v11130 = vunpack.c.l.b16 %v10267
    %v11131 = vunpack.c.h.b16 %v10267
    %v11132 = vunpack.c.l.b16 %v10268
    %v11133 = vunpack.c.h.b16 %v10268
    %v11134 = vunpack.c.l.b16 %v10269
    %v11135 = vunpack.c.h.b16 %v10269
    %v11136 = vunpack.c.l.b16 %v10270
    %v11137 = vunpack.c.h.b16 %v10270
    %v11138 = vunpack.c.l.b16 %v10271
    %v11139 = vunpack.c.h.b16 %v10271
    %v11140 = vunpack.c.l.b16 %v10272
    %v11141 = vunpack.c.h.b16 %v10272
    %v11142 = vunpack.c.l.b16 %v10273
    %v11143 = vunpack.c.h.b16 %v10273
    %v11144 = vunpack.c.l.b16 %v10274
    %v11145 = vunpack.c.h.b16 %v10274
    %v11146 = vunpack.c.l.b16 %v10275
    %v11147 = vunpack.c.h.b16 %v10275
    %v11148 = vunpack.c.l.b16 %v10276
    %v11149 = vunpack.c.h.b16 %v10276
    %v11150 = vunpack.c.l.b16 %v10277
    %v11151 = vunpack.c.h.b16 %v10277
    %v11152 = vunpack.c.l.b16 %v10278
    %v11153 = vunpack.c.h.b16 %v10278
    %v11154 = vunpack.c.l.b16 %v10279
    %v11155 = vunpack.c.h.b16 %v10279
    %v11156 = vunpack.c.l.b16 %v10280
    %v11157 = vunpack.c.h.b16 %v10280
    %v11158 = vunpack.c.l.b16 %v10281
    %v11159 = vunpack.c.h.b16 %v10281
    %v11160 = vunpack.c.l.b16 %v10282
    %v11161 = vunpack.c.h.b16 %v10282
    %v11162 = vunpack.c.l.b16 %v10283
    %v11163 = vunpack.c.h.b16 %v10283
    %v11164 = vunpack.c.l.b16 %v10284
    %v11165 = vunpack.c.h.b16 %v10284
    %v11166 = vunpack.c.l.b16 %v10285
    %v11167 = vunpack.c.h.b16 %v10285
    %v11168 = vunpack.c.l.b16 %v10286
    %v11169 = vunpack.c.h.b16 %v10286
    %v11170 = vunpack.c.l.b16 %v10287
    %v11171 = vunpack.c.h.b16 %v10287
    %v11172 = vunpack.c.l.b16 %v10288
    %v11173 = vunpack.c.h.b16 %v10288
    %v11174 = vunpack.c.l.b16 %v10289
    %v11175 = vunpack.c.h.b16 %v10289
    %v11176 = vunpack.c.l.b16 %v10290
    %v11177 = vunpack.c.h.b16 %v10290
    %v11178 = vunpack.c.l.b16 %v10291
    %v11179 = vunpack.c.h.b16 %v10291
    %v11180 = vunpack.c.l.b16 %v10292
    %v11181 = vunpack.c.h.b16 %v10292
    %v11182 = vunpack.c.l.b16 %v10293
    %v11183 = vunpack.c.h.b16 %v10293
    %v11184 = vunpack.c.l.b16 %v10294
    %v11185 = vunpack.c.h.b16 %v10294
    %v11186 = vunpack.c.l.b16 %v10295
    %v11187 = vunpack.c.h.b16 %v10295
    %v11188 = vunpack.c.l.b16 %v10296
    %v11189 = vunpack.c.h.b16 %v10296
    %v11190 = vpack.c.b16 %v10680, %v10678
    %v11191 = vpack.c.b16 %v10681, %v10679
    %v11192 = vpack.c.b16 %v10684, %v10682
    %v11193 = vpack.c.b16 %v10685, %v10683
    %v11194 = vpack.c.b16 %v10688, %v10686
    %v11195 = vpack.c.b16 %v10689, %v10687
    %v11196 = vpack.c.b16 %v10692, %v10690
    %v11197 = vpack.c.b16 %v10693, %v10691
    %v11198 = vpack.c.b16 %v10696, %v10694
    %v11199 = vpack.c.b16 %v10697, %v10695
    %v11200 = vpack.c.b16 %v10700, %v10698
    %v11201 = vpack.c.b16 %v10701, %v10699
    %v11202 = vpack.c.b16 %v10704, %v10702
    %v11203 = vpack.c.b16 %v10705, %v10703
    %v11204 = vpack.c.b16 %v10708, %v10706
    %v11205 = vpack.c.b16 %v10709, %v10707
    %v11206 = vpack.c.b16 %v10712, %v10710
    %v11207 = vpack.c.b16 %v10713, %v10711
    %v11208 = vpack.c.b16 %v10716, %v10714
    %v11209 = vpack.c.b16 %v10717, %v10715
    %v11210 = vpack.c.b16 %v10720, %v10718
    %v11211 = vpack.c.b16 %v10721, %v10719
    %v11212 = vpack.c.b16 %v10724, %v10722
    %v11213 = vpack.c.b16 %v10725, %v10723
    %v11214 = vpack.c.b16 %v10728, %v10726
    %v11215 = vpack.c.b16 %v10729, %v10727
    %v11216 = vpack.c.b16 %v10732, %v10730
    %v11217 = vpack.c.b16 %v10733, %v10731
    %v11218 = vpack.c.b16 %v10736, %v10734
    %v11219 = vpack.c.b16 %v10737, %v10735
    %v11220 = vpack.c.b16 %v10740, %v10738
    %v11221 = vpack.c.b16 %v10741, %v10739
    %v11222 = vpack.c.b16 %v10744, %v10742
    %v11223 = vpack.c.b16 %v10745, %v10743
    %v11224 = vpack.c.b16 %v10748, %v10746
    %v11225 = vpack.c.b16 %v10749, %v10747
    %v11226 = vpack.c.b16 %v10752, %v10750
    %v11227 = vpack.c.b16 %v10753, %v10751
    %v11228 = vpack.c.b16 %v10756, %v10754
    %v11229 = vpack.c.b16 %v10757, %v10755
    %v11230 = vpack.c.b16 %v10760, %v10758
    %v11231 = vpack.c.b16 %v10761, %v10759
    %v11232 = vpack.c.b16 %v10764, %v10762
    %v11233 = vpack.c.b16 %v10765, %v10763
    %v11234 = vpack.c.b16 %v10768, %v10766
    %v11235 = vpack.c.b16 %v10769, %v10767
    %v11236 = vpack.c.b16 %v10772, %v10770
    %v11237 = vpack.c.b16 %v10773, %v10771
    %v11238 = vpack.c.b16 %v10776, %v10774
    %v11239 = vpack.c.b16 %v10777, %v10775
    %v11240 = vpack.c.b16 %v10780, %v10778
    %v11241 = vpack.c.b16 %v10781, %v10779
    %v11242 = vpack.c.b16 %v10784, %v10782
    %v11243 = vpack.c.b16 %v10785, %v10783
    %v11244 = vpack.c.b16 %v10788, %v10786
    %v11245 = vpack.c.b16 %v10789, %v10787
    %v11246 = vpack.c.b16 %v10792, %v10790
    %v11247 = vpack.c.b16 %v10793, %v10791
    %v11248 = vpack.c.b16 %v10796, %v10794
    %v11249 = vpack.c.b16 %v10797, %v10795
    %v11250 = vpack.c.b16 %v10800, %v10798
    %v11251 = vpack.c.b16 %v10801, %v10799
    %v11252 = vpack.c.b16 %v10804, %v10802
    %v11253 = vpack.c.b16 %v10805, %v10803
    %v11254 = vpack.c.b16 %v10808, %v10806
    %v11255 = vpack.c.b16 %v10809, %v10807
    %v11256 = vpack.c.b16 %v10812, %v10810
    %v11257 = vpack.c.b16 %v10813, %v10811
    %v11258 = vpack.c.b16 %v10816, %v10814
    %v11259 = vpack.c.b16 %v10817, %v10815
    %v11260 = vpack.c.b16 %v10820, %v10818
    %v11261 = vpack.c.b16 %v10821, %v10819
    %v11262 = vpack.c.b16 %v10824, %v10822
    %v11263 = vpack.c.b16 %v10825, %v10823
    %v11264 = vpack.c.b16 %v10828, %v10826
    %v11265 = vpack.c.b16 %v10829, %v10827
    %v11266 = vpack.c.b16 %v10832, %v10830
    %v11267 = vpack.c.b16 %v10833, %v10831
    %v11268 = vpack.c.b16 %v10836, %v10834
    %v11269 = vpack.c.b16 %v10837, %v10835
    %v11270 = vpack.c.b16 %v10840, %v10838
    %v11271 = vpack.c.b16 %v10841, %v10839
    %v11272 = vpack.c.b16 %v10844, %v10842
    %v11273 = vpack.c.b16 %v10845, %v10843
    %v11274 = vpack.c.b16 %v10848, %v10846
    %v11275 = vpack.c.b16 %v10849, %v10847
    %v11276 = vpack.c.b16 %v10852, %v10850
    %v11277 = vpack.c.b16 %v10853, %v10851
    %v11278 = vpack.c.b16 %v10856, %v10854
    %v11279 = vpack.c.b16 %v10857, %v10855
    %v11280 = vpack.c.b16 %v10860, %v10858
    %v11281 = vpack.c.b16 %v10861, %v10859
    %v11282 = vpack.c.b16 %v10864, %v10862
    %v11283 = vpack.c.b16 %v10865, %v10863
    %v11284 = vpack.c.b16 %v10868, %v10866
    %v11285 = vpack.c.b16 %v10869, %v10867
    %v11286 = vpack.c.b16 %v10872, %v10870
    %v11287 = vpack.c.b16 %v10873, %v10871
    %v11288 = vpack.c.b16 %v10876, %v10874
    %v11289 = vpack.c.b16 %v10877, %v10875
    %v11290 = vpack.c.b16 %v10880, %v10878
    %v11291 = vpack.c.b16 %v10881, %v10879
    %v11292 = vpack.c.b16 %v10884, %v10882
    %v11293 = vpack.c.b16 %v10885, %v10883
    %v11294 = vpack.c.b16 %v10888, %v10886
    %v11295 = vpack.c.b16 %v10889, %v10887
    %v11296 = vpack.c.b16 %v10892, %v10890
    %v11297 = vpack.c.b16 %v10893, %v10891
    %v11298 = vpack.c.b16 %v10896, %v10894
    %v11299 = vpack.c.b16 %v10897, %v10895
    %v11300 = vpack.c.b16 %v10900, %v10898
    %v11301 = vpack.c.b16 %v10901, %v10899
    %v11302 = vpack.c.b16 %v10904, %v10902
    %v11303 = vpack.c.b16 %v10905, %v10903
    %v11304 = vpack.c.b16 %v10908, %v10906
    %v11305 = vpack.c.b16 %v10909, %v10907
    %v11306 = vpack.c.b16 %v10912, %v10910
    %v11307 = vpack.c.b16 %v10913, %v10911
    %v11308 = vpack.c.b16 %v10916, %v10914
    %v11309 = vpack.c.b16 %v10917, %v10915
    %v11310 = vpack.c.b16 %v10920, %v10918
    %v11311 = vpack.c.b16 %v10921, %v10919
    %v11312 = vpack.c.b16 %v10924, %v10922
    %v11313 = vpack.c.b16 %v10925, %v10923
    %v11314 = vpack.c.b16 %v10928, %v10926
    %v11315 = vpack.c.b16 %v10929, %v10927
    %v11316 = vpack.c.b16 %v10932, %v10930
    %v11317 = vpack.c.b16 %v10933, %v10931
    %v11318 = vpack.c.b16 %v10936, %v10934
    %v11319 = vpack.c.b16 %v10937, %v10935
    %v11320 = vpack.c.b16 %v10940, %v10938
    %v11321 = vpack.c.b16 %v10941, %v10939
    %v11322 = vpack.c.b16 %v10944, %v10942
    %v11323 = vpack.c.b16 %v10945, %v10943
    %v11324 = vpack.c.b16 %v10948, %v10946
    %v11325 = vpack.c.b16 %v10949, %v10947
    %v11326 = vpack.c.b16 %v10952, %v10950
    %v11327 = vpack.c.b16 %v10953, %v10951
    %v11328 = vpack.c.b16 %v10956, %v10954
    %v11329 = vpack.c.b16 %v10957, %v10955
    %v11330 = vpack.c.b16 %v10960, %v10958
    %v11331 = vpack.c.b16 %v10961, %v10959
    %v11332 = vpack.c.b16 %v10964, %v10962
    %v11333 = vpack.c.b16 %v10965, %v10963
    %v11334 = vpack.c.b16 %v10968, %v10966
    %v11335 = vpack.c.b16 %v10969, %v10967
    %v11336 = vpack.c.b16 %v10972, %v10970
    %v11337 = vpack.c.b16 %v10973, %v10971
    %v11338 = vpack.c.b16 %v10976, %v10974
    %v11339 = vpack.c.b16 %v10977, %v10975
    %v11340 = vpack.c.b16 %v10980, %v10978
    %v11341 = vpack.c.b16 %v10981, %v10979
    %v11342 = vpack.c.b16 %v10984, %v10982
    %v11343 = vpack.c.b16 %v10985, %v10983
    %v11344 = vpack.c.b16 %v10988, %v10986
    %v11345 = vpack.c.b16 %v10989, %v10987
    %v11346 = vpack.c.b16 %v10992, %v10990
    %v11347 = vpack.c.b16 %v10993, %v10991
    %v11348 = vpack.c.b16 %v10996, %v10994
    %v11349 = vpack.c.b16 %v10997, %v10995
    %v11350 = vpack.c.b16 %v11000, %v10998
    %v11351 = vpack.c.b16 %v11001, %v10999
    %v11352 = vpack.c.b16 %v11004, %v11002
    %v11353 = vpack.c.b16 %v11005, %v11003
    %v11354 = vpack.c.b16 %v11008, %v11006
    %v11355 = vpack.c.b16 %v11009, %v11007
    %v11356 = vpack.c.b16 %v11012, %v11010
    %v11357 = vpack.c.b16 %v11013, %v11011
    %v11358 = vpack.c.b16 %v11016, %v11014
    %v11359 = vpack.c.b16 %v11017, %v11015
    %v11360 = vpack.c.b16 %v11020, %v11018
    %v11361 = vpack.c.b16 %v11021, %v11019
    %v11362 = vpack.c.b16 %v11024, %v11022
    %v11363 = vpack.c.b16 %v11025, %v11023
    %v11364 = vpack.c.b16 %v11028, %v11026
    %v11365 = vpack.c.b16 %v11029, %v11027
    %v11366 = vpack.c.b16 %v11032, %v11030
    %v11367 = vpack.c.b16 %v11033, %v11031
    %v11368 = vpack.c.b16 %v11036, %v11034
    %v11369 = vpack.c.b16 %v11037, %v11035
    %v11370 = vpack.c.b16 %v11040, %v11038
    %v11371 = vpack.c.b16 %v11041, %v11039
    %v11372 = vpack.c.b16 %v11044, %v11042
    %v11373 = vpack.c.b16 %v11045, %v11043
    %v11374 = vpack.c.b16 %v11048, %v11046
    %v11375 = vpack.c.b16 %v11049, %v11047
    %v11376 = vpack.c.b16 %v11052, %v11050
    %v11377 = vpack.c.b16 %v11053, %v11051
    %v11378 = vpack.c.b16 %v11056, %v11054
    %v11379 = vpack.c.b16 %v11057, %v11055
    %v11380 = vpack.c.b16 %v11060, %v11058
    %v11381 = vpack.c.b16 %v11061, %v11059
    %v11382 = vpack.c.b16 %v11064, %v11062
    %v11383 = vpack.c.b16 %v11065, %v11063
    %v11384 = vpack.c.b16 %v11068, %v11066
    %v11385 = vpack.c.b16 %v11069, %v11067
    %v11386 = vpack.c.b16 %v11072, %v11070
    %v11387 = vpack.c.b16 %v11073, %v11071
    %v11388 = vpack.c.b16 %v11076, %v11074
    %v11389 = vpack.c.b16 %v11077, %v11075
    %v11390 = vpack.c.b16 %v11080, %v11078
    %v11391 = vpack.c.b16 %v11081, %v11079
    %v11392 = vpack.c.b16 %v11084, %v11082
    %v11393 = vpack.c.b16 %v11085, %v11083
    %v11394 = vpack.c.b16 %v11088, %v11086
    %v11395 = vpack.c.b16 %v11089, %v11087
    %v11396 = vpack.c.b16 %v11092, %v11090
    %v11397 = vpack.c.b16 %v11093, %v11091
    %v11398 = vpack.c.b16 %v11096, %v11094
    %v11399 = vpack.c.b16 %v11097, %v11095
    %v11400 = vpack.c.b16 %v11100, %v11098
    %v11401 = vpack.c.b16 %v11101, %v11099
    %v11402 = vpack.c.b16 %v11104, %v11102
    %v11403 = vpack.c.b16 %v11105, %v11103
    %v11404 = vpack.c.b16 %v11108, %v11106
    %v11405 = vpack.c.b16 %v11109, %v11107
    %v11406 = vpack.c.b16 %v11112, %v11110
    %v11407 = vpack.c.b16 %v11113, %v11111
    %v11408 = vpack.c.b16 %v11116, %v11114
    %v11409 = vpack.c.b16 %v11117, %v11115
    %v11410 = vpack.c.b16 %v11120, %v11118
    %v11411 = vpack.c.b16 %v11121, %v11119
    %v11412 = vpack.c.b16 %v11124, %v11122
    %v11413 = vpack.c.b16 %v11125, %v11123
    %v11414 = vpack.c.b16 %v11128, %v11126
    %v11415 = vpack.c.b16 %v11129, %v11127
    %v11416 = vpack.c.b16 %v11132, %v11130
    %v11417 = vpack.c.b16 %v11133, %v11131
    %v11418 = vpack.c.b16 %v11136, %v11134
    %v11419 = vpack.c.b16 %v11137, %v11135
    %v11420 = vpack.c.b16 %v11140, %v11138
    %v11421 = vpack.c.b16 %v11141, %v11139
    %v11422 = vpack.c.b16 %v11144, %v11142
    %v11423 = vpack.c.b16 %v11145, %v11143
    %v11424 = vpack.c.b16 %v11148, %v11146
    %v11425 = vpack.c.b16 %v11149, %v11147
    %v11426 = vpack.c.b16 %v11152, %v11150
    %v11427 = vpack.c.b16 %v11153, %v11151
    %v11428 = vpack.c.b16 %v11156, %v11154
    %v11429 = vpack.c.b16 %v11157, %v11155
    %v11430 = vpack.c.b16 %v11160, %v11158
    %v11431 = vpack.c.b16 %v11161, %v11159
    %v11432 = vpack.c.b16 %v11164, %v11162
    %v11433 = vpack.c.b16 %v11165, %v11163
    %v11434 = vpack.c.b16 %v11168, %v11166
    %v11435 = vpack.c.b16 %v11169, %v11167
    %v11436 = vpack.c.b16 %v11172, %v11170
    %v11437 = vpack.c.b16 %v11173, %v11171
    %v11438 = vpack.c.b16 %v11176, %v11174
    %v11439 = vpack.c.b16 %v11177, %v11175
    %v11440 = vpack.c.b16 %v11180, %v11178
    %v11441 = vpack.c.b16 %v11181, %v11179
    %v11442 = vpack.c.b16 %v11184, %v11182
    %v11443 = vpack.c.b16 %v11185, %v11183
    %v11444 = vpack.c.b16 %v11188, %v11186
    %v11445 = vpack.c.b16 %v11189, %v11187
    %11702 = vmatprep.subr.bf16.mxu0 %v11191
    %11703 = vmatpush1.bf16.msra.mxu0 %v11190
    %11704 = vmatprep.subr.bf16.mxu0 %v11193
    %11705 = vmatpush1.bf16.msra.mxu0 %v11192
    %11706 = vmatprep.subr.bf16.mxu0 %v11195
    %11707 = vmatpush1.bf16.msra.mxu0 %v11194
    %11708 = vmatprep.subr.bf16.mxu0 %v11197
    %11709 = vmatpush1.bf16.msra.mxu0 %v11196
    %11710 = vmatprep.subr.bf16.mxu0 %v11199
    %11711 = vmatpush1.bf16.msra.mxu0 %v11198
    %11712 = vmatprep.subr.bf16.mxu0 %v11201
    %11713 = vmatpush1.bf16.msra.mxu0 %v11200
    %11714 = vmatprep.subr.bf16.mxu0 %v11203
    %11715 = vmatpush1.bf16.msra.mxu0 %v11202
    %11716 = vmatprep.subr.bf16.mxu0 %v11205
    %11717 = vmatpush1.bf16.msra.mxu0 %v11204
    %11718 = vmatprep.subr.bf16.mxu0 %v11207
    %11719 = vmatpush1.bf16.msra.mxu0 %v11206
    %11720 = vmatprep.subr.bf16.mxu0 %v11209
    %11721 = vmatpush1.bf16.msra.mxu0 %v11208
    %11722 = vmatprep.subr.bf16.mxu0 %v11211
    %11723 = vmatpush1.bf16.msra.mxu0 %v11210
    %11724 = vmatprep.subr.bf16.mxu0 %v11213
    %11725 = vmatpush1.bf16.msra.mxu0 %v11212
    %11726 = vmatprep.subr.bf16.mxu0 %v11215
    %11727 = vmatpush1.bf16.msra.mxu0 %v11214
    %11728 = vmatprep.subr.bf16.mxu0 %v11217
    %11729 = vmatpush1.bf16.msra.mxu0 %v11216
    %11730 = vmatprep.subr.bf16.mxu0 %v11219
    %11731 = vmatpush1.bf16.msra.mxu0 %v11218
    %11732 = vmatprep.subr.bf16.mxu0 %v11221
    %11733 = vmatpush1.bf16.msra.mxu0 %v11220
    %11734 = vmatprep.mubr.bf16.mxu0 %v10391
    %11735 = vmatmul.mubr.bf16.gmra.mrb[0].mxu0 %v10390
    %v11736 = vpop.f32.mrb[0].mxu0
    %v11737 = vadd.f32 %v10303, %v11736
    %v11738 = vpop.f32.mrb[0].mxu0
    %v11739 = vadd.f32 %v10307, %v11738
    %v11740 = vpop.f32.mrb[0].mxu0
    %v11741 = vpop.f32.mrb[0].mxu0
    %11742 = vdwg.mxu0
    %11743 = vmatprep.subr.bf16.mxu0 %v11223
    %11744 = vmatpush1.bf16.msra.mxu0 %v11222
    %11745 = vmatprep.subr.bf16.mxu0 %v11225
    %11746 = vmatpush1.bf16.msra.mxu0 %v11224
    %11747 = vmatprep.subr.bf16.mxu0 %v11227
    %11748 = vmatpush1.bf16.msra.mxu0 %v11226
    %11749 = vmatprep.subr.bf16.mxu0 %v11229
    %11750 = vmatpush1.bf16.msra.mxu0 %v11228
    %11751 = vmatprep.subr.bf16.mxu0 %v11231
    %11752 = vmatpush1.bf16.msra.mxu0 %v11230
    %11753 = vmatprep.subr.bf16.mxu0 %v11233
    %11754 = vmatpush1.bf16.msra.mxu0 %v11232
    %11755 = vmatprep.subr.bf16.mxu0 %v11235
    %11756 = vmatpush1.bf16.msra.mxu0 %v11234
    %11757 = vmatprep.subr.bf16.mxu0 %v11237
    %11758 = vmatpush1.bf16.msra.mxu0 %v11236
    %11759 = vmatprep.subr.bf16.mxu0 %v11239
    %11760 = vmatpush1.bf16.msra.mxu0 %v11238
    %11761 = vmatprep.subr.bf16.mxu0 %v11241
    %11762 = vmatpush1.bf16.msra.mxu0 %v11240
    %11763 = vmatprep.subr.bf16.mxu0 %v11243
    %11764 = vmatpush1.bf16.msra.mxu0 %v11242
    %11765 = vmatprep.subr.bf16.mxu0 %v11245
    %11766 = vmatpush1.bf16.msra.mxu0 %v11244
    %11767 = vmatprep.subr.bf16.mxu0 %v11247
    %11768 = vmatpush1.bf16.msra.mxu0 %v11246
    %11769 = vmatprep.subr.bf16.mxu0 %v11249
    %11770 = vmatpush1.bf16.msra.mxu0 %v11248
    %11771 = vmatprep.subr.bf16.mxu0 %v11251
    %11772 = vmatpush1.bf16.msra.mxu0 %v11250
    %11773 = vmatprep.subr.bf16.mxu0 %v11253
    %11774 = vmatpush1.bf16.msra.mxu0 %v11252
    %11775 = vmatprep.mubr.bf16.mxu0 %v10393
    %11776 = vmatmul.mubr.bf16.gmra.mrb[0].mxu0 %v10392
    %v11777 = vpop.f32.mrb[0].mxu0
    %v11778 = vadd.f32 %v11737, %v11777
    %v11779 = vpop.f32.mrb[0].mxu0
    %v11780 = vadd.f32 %v11739, %v11779
    %v11781 = vpop.f32.mrb[0].mxu0
    %v11782 = vpop.f32.mrb[0].mxu0
    %11783 = vdwg.mxu0
    %11784 = vmatprep.subr.bf16.mxu0 %v11255
    %11785 = vmatpush1.bf16.msra.mxu0 %v11254
    %11786 = vmatprep.subr.bf16.mxu0 %v11257
    %11787 = vmatpush1.bf16.msra.mxu0 %v11256
    %11788 = vmatprep.subr.bf16.mxu0 %v11259
    %11789 = vmatpush1.bf16.msra.mxu0 %v11258
    %11790 = vmatprep.subr.bf16.mxu0 %v11261
    %11791 = vmatpush1.bf16.msra.mxu0 %v11260
    %11792 = vmatprep.subr.bf16.mxu0 %v11263
    %11793 = vmatpush1.bf16.msra.mxu0 %v11262
    %11794 = vmatprep.subr.bf16.mxu0 %v11265
    %11795 = vmatpush1.bf16.msra.mxu0 %v11264
    %11796 = vmatprep.subr.bf16.mxu0 %v11267
    %11797 = vmatpush1.bf16.msra.mxu0 %v11266
    %11798 = vmatprep.subr.bf16.mxu0 %v11269
    %11799 = vmatpush1.bf16.msra.mxu0 %v11268
    %11800 = vmatprep.subr.bf16.mxu0 %v11271
    %11801 = vmatpush1.bf16.msra.mxu0 %v11270
    %11802 = vmatprep.subr.bf16.mxu0 %v11273
    %11803 = vmatpush1.bf16.msra.mxu0 %v11272
    %11804 = vmatprep.subr.bf16.mxu0 %v11275
    %11805 = vmatpush1.bf16.msra.mxu0 %v11274
    %11806 = vmatprep.subr.bf16.mxu0 %v11277
    %11807 = vmatpush1.bf16.msra.mxu0 %v11276
    %11808 = vmatprep.subr.bf16.mxu0 %v11279
    %11809 = vmatpush1.bf16.msra.mxu0 %v11278
    %11810 = vmatprep.subr.bf16.mxu0 %v11281
    %11811 = vmatpush1.bf16.msra.mxu0 %v11280
    %11812 = vmatprep.subr.bf16.mxu0 %v11283
    %11813 = vmatpush1.bf16.msra.mxu0 %v11282
    %11814 = vmatprep.subr.bf16.mxu0 %v11285
    %11815 = vmatpush1.bf16.msra.mxu0 %v11284
    %11816 = vmatprep.mubr.bf16.mxu0 %v10395
    %11817 = vmatmul.mubr.bf16.gmra.mrb[0].mxu0 %v10394
    %v11818 = vpop.f32.mrb[0].mxu0
    %v11819 = vadd.f32 %v11778, %v11818
    %v11820 = vpop.f32.mrb[0].mxu0
    %v11821 = vadd.f32 %v11780, %v11820
    %v11822 = vpop.f32.mrb[0].mxu0
    %v11823 = vpop.f32.mrb[0].mxu0
    %11824 = vdwg.mxu0
    %11825 = vmatprep.subr.bf16.mxu0 %v11287
    %11826 = vmatpush1.bf16.msra.mxu0 %v11286
    %11827 = vmatprep.subr.bf16.mxu0 %v11289
    %11828 = vmatpush1.bf16.msra.mxu0 %v11288
    %11829 = vmatprep.subr.bf16.mxu0 %v11291
    %11830 = vmatpush1.bf16.msra.mxu0 %v11290
    %11831 = vmatprep.subr.bf16.mxu0 %v11293
    %11832 = vmatpush1.bf16.msra.mxu0 %v11292
    %11833 = vmatprep.subr.bf16.mxu0 %v11295
    %11834 = vmatpush1.bf16.msra.mxu0 %v11294
    %11835 = vmatprep.subr.bf16.mxu0 %v11297
    %11836 = vmatpush1.bf16.msra.mxu0 %v11296
    %11837 = vmatprep.subr.bf16.mxu0 %v11299
    %11838 = vmatpush1.bf16.msra.mxu0 %v11298
    %11839 = vmatprep.subr.bf16.mxu0 %v11301
    %11840 = vmatpush1.bf16.msra.mxu0 %v11300
    %11841 = vmatprep.subr.bf16.mxu0 %v11303
    %11842 = vmatpush1.bf16.msra.mxu0 %v11302
    %11843 = vmatprep.subr.bf16.mxu0 %v11305
    %11844 = vmatpush1.bf16.msra.mxu0 %v11304
    %11845 = vmatprep.subr.bf16.mxu0 %v11307
    %11846 = vmatpush1.bf16.msra.mxu0 %v11306
    %11847 = vmatprep.subr.bf16.mxu0 %v11309
    %11848 = vmatpush1.bf16.msra.mxu0 %v11308
    %11849 = vmatprep.subr.bf16.mxu0 %v11311
    %11850 = vmatpush1.bf16.msra.mxu0 %v11310
    %11851 = vmatprep.subr.bf16.mxu0 %v11313
    %11852 = vmatpush1.bf16.msra.mxu0 %v11312
    %11853 = vmatprep.subr.bf16.mxu0 %v11315
    %11854 = vmatpush1.bf16.msra.mxu0 %v11314
    %11855 = vmatprep.subr.bf16.mxu0 %v11317
    %11856 = vmatpush1.bf16.msra.mxu0 %v11316
    %11857 = vmatprep.mubr.bf16.mxu0 %v10397
    %11858 = vmatmul.mubr.bf16.gmra.mrb[0].mxu0 %v10396
    %v11859 = vpop.f32.mrb[0].mxu0
    %v11860 = vadd.f32 %v11819, %v11859
    %v11861 = vpop.f32.mrb[0].mxu0
    %v11862 = vadd.f32 %v11821, %v11861
    %v11863 = vpop.f32.mrb[0].mxu0
    %v11864 = vpop.f32.mrb[0].mxu0
    %11865 = vdwg.mxu0
    %11866 = vmatprep.subr.bf16.mxu0 %v11319
    %11867 = vmatpush1.bf16.msra.mxu0 %v11318
    %11868 = vmatprep.subr.bf16.mxu0 %v11321
    %11869 = vmatpush1.bf16.msra.mxu0 %v11320
    %11870 = vmatprep.subr.bf16.mxu0 %v11323
    %11871 = vmatpush1.bf16.msra.mxu0 %v11322
    %11872 = vmatprep.subr.bf16.mxu0 %v11325
    %11873 = vmatpush1.bf16.msra.mxu0 %v11324
    %11874 = vmatprep.subr.bf16.mxu0 %v11327
    %11875 = vmatpush1.bf16.msra.mxu0 %v11326
    %11876 = vmatprep.subr.bf16.mxu0 %v11329
    %11877 = vmatpush1.bf16.msra.mxu0 %v11328
    %11878 = vmatprep.subr.bf16.mxu0 %v11331
    %11879 = vmatpush1.bf16.msra.mxu0 %v11330
    %11880 = vmatprep.subr.bf16.mxu0 %v11333
    %11881 = vmatpush1.bf16.msra.mxu0 %v11332
    %11882 = vmatprep.subr.bf16.mxu0 %v11335
    %11883 = vmatpush1.bf16.msra.mxu0 %v11334
    %11884 = vmatprep.subr.bf16.mxu0 %v11337
    %11885 = vmatpush1.bf16.msra.mxu0 %v11336
    %11886 = vmatprep.subr.bf16.mxu0 %v11339
    %11887 = vmatpush1.bf16.msra.mxu0 %v11338
    %11888 = vmatprep.subr.bf16.mxu0 %v11341
    %11889 = vmatpush1.bf16.msra.mxu0 %v11340
    %11890 = vmatprep.subr.bf16.mxu0 %v11343
    %11891 = vmatpush1.bf16.msra.mxu0 %v11342
    %11892 = vmatprep.subr.bf16.mxu0 %v11345
    %11893 = vmatpush1.bf16.msra.mxu0 %v11344
    %11894 = vmatprep.subr.bf16.mxu0 %v11347
    %11895 = vmatpush1.bf16.msra.mxu0 %v11346
    %11896 = vmatprep.subr.bf16.mxu0 %v11349
    %11897 = vmatpush1.bf16.msra.mxu0 %v11348
    %11898 = vmatprep.mubr.bf16.mxu0 %v10399
    %11899 = vmatmul.mubr.bf16.gmra.mrb[0].mxu0 %v10398
    %v11900 = vpop.f32.mrb[0].mxu0
    %v11901 = vadd.f32 %v11860, %v11900
    %v11902 = vpop.f32.mrb[0].mxu0
    %v11903 = vadd.f32 %v11862, %v11902
    %v11904 = vpop.f32.mrb[0].mxu0
    %v11905 = vpop.f32.mrb[0].mxu0
    %11906 = vdwg.mxu0
    %11907 = vmatprep.subr.bf16.mxu0 %v11351
    %11908 = vmatpush1.bf16.msra.mxu0 %v11350
    %11909 = vmatprep.subr.bf16.mxu0 %v11353
    %11910 = vmatpush1.bf16.msra.mxu0 %v11352
    %11911 = vmatprep.subr.bf16.mxu0 %v11355
    %11912 = vmatpush1.bf16.msra.mxu0 %v11354
    %11913 = vmatprep.subr.bf16.mxu0 %v11357
    %11914 = vmatpush1.bf16.msra.mxu0 %v11356
    %11915 = vmatprep.subr.bf16.mxu0 %v11359
    %11916 = vmatpush1.bf16.msra.mxu0 %v11358
    %11917 = vmatprep.subr.bf16.mxu0 %v11361
    %11918 = vmatpush1.bf16.msra.mxu0 %v11360
    %11919 = vmatprep.subr.bf16.mxu0 %v11363
    %11920 = vmatpush1.bf16.msra.mxu0 %v11362
    %11921 = vmatprep.subr.bf16.mxu0 %v11365
    %11922 = vmatpush1.bf16.msra.mxu0 %v11364
    %11923 = vmatprep.subr.bf16.mxu0 %v11367
    %11924 = vmatpush1.bf16.msra.mxu0 %v11366
    %11925 = vmatprep.subr.bf16.mxu0 %v11369
    %11926 = vmatpush1.bf16.msra.mxu0 %v11368
    %11927 = vmatprep.subr.bf16.mxu0 %v11371
    %11928 = vmatpush1.bf16.msra.mxu0 %v11370
    %11929 = vmatprep.subr.bf16.mxu0 %v11373
    %11930 = vmatpush1.bf16.msra.mxu0 %v11372
    %11931 = vmatprep.subr.bf16.mxu0 %v11375
    %11932 = vmatpush1.bf16.msra.mxu0 %v11374
    %11933 = vmatprep.subr.bf16.mxu0 %v11377
    %11934 = vmatpush1.bf16.msra.mxu0 %v11376
    %11935 = vmatprep.subr.bf16.mxu0 %v11379
    %11936 = vmatpush1.bf16.msra.mxu0 %v11378
    %11937 = vmatprep.subr.bf16.mxu0 %v11381
    %11938 = vmatpush1.bf16.msra.mxu0 %v11380
    %11939 = vmatprep.mubr.bf16.mxu0 %v10401
    %11940 = vmatmul.mubr.bf16.gmra.mrb[0].mxu0 %v10400
    %v11941 = vpop.f32.mrb[0].mxu0
    %v11942 = vadd.f32 %v11901, %v11941
    %v11943 = vpop.f32.mrb[0].mxu0
    %v11944 = vadd.f32 %v11903, %v11943
    %v11945 = vpop.f32.mrb[0].mxu0
    %v11946 = vpop.f32.mrb[0].mxu0
    %11947 = vdwg.mxu0
    %11948 = vmatprep.subr.bf16.mxu0 %v11383
    %11949 = vmatpush1.bf16.msra.mxu0 %v11382
    %11950 = vmatprep.subr.bf16.mxu0 %v11385
    %11951 = vmatpush1.bf16.msra.mxu0 %v11384
    %11952 = vmatprep.subr.bf16.mxu0 %v11387
    %11953 = vmatpush1.bf16.msra.mxu0 %v11386
    %11954 = vmatprep.subr.bf16.mxu0 %v11389
    %11955 = vmatpush1.bf16.msra.mxu0 %v11388
    %11956 = vmatprep.subr.bf16.mxu0 %v11391
    %11957 = vmatpush1.bf16.msra.mxu0 %v11390
    %11958 = vmatprep.subr.bf16.mxu0 %v11393
    %11959 = vmatpush1.bf16.msra.mxu0 %v11392
    %11960 = vmatprep.subr.bf16.mxu0 %v11395
    %11961 = vmatpush1.bf16.msra.mxu0 %v11394
    %11962 = vmatprep.subr.bf16.mxu0 %v11397
    %11963 = vmatpush1.bf16.msra.mxu0 %v11396
    %11964 = vmatprep.subr.bf16.mxu0 %v11399
    %11965 = vmatpush1.bf16.msra.mxu0 %v11398
    %11966 = vmatprep.subr.bf16.mxu0 %v11401
    %11967 = vmatpush1.bf16.msra.mxu0 %v11400
    %11968 = vmatprep.subr.bf16.mxu0 %v11403
    %11969 = vmatpush1.bf16.msra.mxu0 %v11402
    %11970 = vmatprep.subr.bf16.mxu0 %v11405
    %11971 = vmatpush1.bf16.msra.mxu0 %v11404
    %11972 = vmatprep.subr.bf16.mxu0 %v11407
    %11973 = vmatpush1.bf16.msra.mxu0 %v11406
    %11974 = vmatprep.subr.bf16.mxu0 %v11409
    %11975 = vmatpush1.bf16.msra.mxu0 %v11408
    %11976 = vmatprep.subr.bf16.mxu0 %v11411
    %11977 = vmatpush1.bf16.msra.mxu0 %v11410
    %11978 = vmatprep.subr.bf16.mxu0 %v11413
    %11979 = vmatpush1.bf16.msra.mxu0 %v11412
    %11980 = vmatprep.mubr.bf16.mxu0 %v10403
    %11981 = vmatmul.mubr.bf16.gmra.mrb[0].mxu0 %v10402
    %v11982 = vpop.f32.mrb[0].mxu0
    %v11983 = vadd.f32 %v11942, %v11982
    %v11984 = vpop.f32.mrb[0].mxu0
    %v11985 = vadd.f32 %v11944, %v11984
    %v11986 = vpop.f32.mrb[0].mxu0
    %v11987 = vpop.f32.mrb[0].mxu0
    %11988 = vdwg.mxu0
    %11989 = vmatprep.subr.bf16.mxu0 %v11415
    %11990 = vmatpush1.bf16.msra.mxu0 %v11414
    %11991 = vmatprep.subr.bf16.mxu0 %v11417
    %11992 = vmatpush1.bf16.msra.mxu0 %v11416
    %11993 = vmatprep.subr.bf16.mxu0 %v11419
    %11994 = vmatpush1.bf16.msra.mxu0 %v11418
    %11995 = vmatprep.subr.bf16.mxu0 %v11421
    %11996 = vmatpush1.bf16.msra.mxu0 %v11420
    %11997 = vmatprep.subr.bf16.mxu0 %v11423
    %11998 = vmatpush1.bf16.msra.mxu0 %v11422
    %11999 = vmatprep.subr.bf16.mxu0 %v11425
    %12000 = vmatpush1.bf16.msra.mxu0 %v11424
    %12001 = vmatprep.subr.bf16.mxu0 %v11427
    %12002 = vmatpush1.bf16.msra.mxu0 %v11426
    %12003 = vmatprep.subr.bf16.mxu0 %v11429
    %12004 = vmatpush1.bf16.msra.mxu0 %v11428
    %12005 = vmatprep.subr.bf16.mxu0 %v11431
    %12006 = vmatpush1.bf16.msra.mxu0 %v11430
    %12007 = vmatprep.subr.bf16.mxu0 %v11433
    %12008 = vmatpush1.bf16.msra.mxu0 %v11432
    %12009 = vmatprep.subr.bf16.mxu0 %v11435
    %12010 = vmatpush1.bf16.msra.mxu0 %v11434
    %12011 = vmatprep.subr.bf16.mxu0 %v11437
    %12012 = vmatpush1.bf16.msra.mxu0 %v11436
    %12013 = vmatprep.subr.bf16.mxu0 %v11439
    %12014 = vmatpush1.bf16.msra.mxu0 %v11438
    %12015 = vmatprep.subr.bf16.mxu0 %v11441
    %12016 = vmatpush1.bf16.msra.mxu0 %v11440
    %12017 = vmatprep.subr.bf16.mxu0 %v11443
    %12018 = vmatpush1.bf16.msra.mxu0 %v11442
    %12019 = vmatprep.subr.bf16.mxu0 %v11445
    %12020 = vmatpush1.bf16.msra.mxu0 %v11444
    %12021 = vmatprep.mubr.bf16.mxu0 %v10405
    %12022 = vmatmul.mubr.bf16.gmra.mrb[0].mxu0 %v10404
    %v12023 = vpop.f32.mrb[0].mxu0
    %v12024 = vadd.f32 %v11983, %v12023
    %v12025 = vpop.f32.mrb[0].mxu0
    %v12026 = vadd.f32 %v11985, %v12025
    %v12027 = vpop.f32.mrb[0].mxu0
    %v12028 = vpop.f32.mrb[0].mxu0
    %12029 = vdwg.mxu0
    %v12030 = vmax.f32 %v12024, 0.0
    %v12031 = vmax.f32 %v12026, 0.0
    %v12032 = vmul.f32 %v12030, %v12030
    %v12033 = vmul.f32 %v12031, %v12031
    %v12034 = vsel %vm2433, %v12032, 0.0
    %v12035 = vsel %vm2433, %v12033, 0.0
    %v12036 = vadd.f32 %v12034, %v12035
    %12037 = vadd.xlane.f32.xlu0 %v12036
    %v12038 = vpop.xlane.xlu0 %12037
    %v12039 = vmax.f32 %v12038, 1e-24
    %v12040 = vrsqrt.pop %v12039
    %v12041 = vmul.f32 %v12040, 10.0
    %v12042 = vmul.f32 %v12030, %v12041
    %v12043 = vmul.f32 %v12031, %v12041
    %v12046 = vcombine.low %v12042, %v12043
    %v12048 = vunpack.c.l.s4 1983009808
    %v12049 = vunpack.c.0.s8 %v12048
    %v12050 = vlaneseq
    %v12051 = vshrl.u32 %v12050, 7
    %v12052 = vsub.s32 %v12049, %v12051
    %v12053 = vrot.slane %v12046, %v12052
    %12055 = vst [vmem:[#allocation8 + $0x10] sm:$0xf] %v12053
    %v12056 = vld [vmem:[#allocation2 + $0x280] sm:$0xff]
    %v12057 = vld [vmem:[#allocation2 + $0x288] sm:$0xff]
    %v12058 = vld [vmem:[#allocation2 + $0x290] sm:$0xff]
    %v12059 = vld [vmem:[#allocation2 + $0x298] sm:$0xff]
    %v12060 = vld [vmem:[#allocation2 + $0x2a0] sm:$0xff]
    %v12061 = vld [vmem:[#allocation2 + $0x2a8] sm:$0xff]
    %v12062 = vld [vmem:[#allocation2 + $0x2b0] sm:$0xff]
    %v12063 = vld [vmem:[#allocation2 + $0x2b8] sm:$0xff]
    %v12064 = vld [vmem:[#allocation2 + $0x2c0] sm:$0xff]
    %v12065 = vld [vmem:[#allocation2 + $0x2c8] sm:$0xff]
    %v12066 = vld [vmem:[#allocation2 + $0x2d0] sm:$0xff]
    %v12067 = vld [vmem:[#allocation2 + $0x2d8] sm:$0xff]
    %v12068 = vld [vmem:[#allocation2 + $0x2e0] sm:$0xff]
    %v12069 = vld [vmem:[#allocation2 + $0x2e8] sm:$0xff]
    %v12070 = vld [vmem:[#allocation2 + $0x2f0] sm:$0xff]
    %v12071 = vld [vmem:[#allocation2 + $0x2f8] sm:$0xff]
    %v12072 = vld [vmem:[#allocation2 + $0x580] sm:$0xff]
    %v12073 = vld [vmem:[#allocation2 + $0x588] sm:$0xff]
    %v12074 = vld [vmem:[#allocation2 + $0x590] sm:$0xff]
    %v12075 = vld [vmem:[#allocation2 + $0x598] sm:$0xff]
    %v12076 = vld [vmem:[#allocation2 + $0x5a0] sm:$0xff]
    %v12077 = vld [vmem:[#allocation2 + $0x5a8] sm:$0xff]
    %v12078 = vld [vmem:[#allocation2 + $0x5b0] sm:$0xff]
    %v12079 = vld [vmem:[#allocation2 + $0x5b8] sm:$0xff]
    %v12080 = vld [vmem:[#allocation2 + $0x5c0] sm:$0xff]
    %v12081 = vld [vmem:[#allocation2 + $0x5c8] sm:$0xff]
    %v12082 = vld [vmem:[#allocation2 + $0x5d0] sm:$0xff]
    %v12083 = vld [vmem:[#allocation2 + $0x5d8] sm:$0xff]
    %v12084 = vld [vmem:[#allocation2 + $0x5e0] sm:$0xff]
    %v12085 = vld [vmem:[#allocation2 + $0x5e8] sm:$0xff]
    %v12086 = vld [vmem:[#allocation2 + $0x5f0] sm:$0xff]
    %v12087 = vld [vmem:[#allocation2 + $0x5f8] sm:$0xff]
    %v12088 = vunpack.c.l.bf16 %v12056
    %v12089 = vunpack.c.h.bf16 %v12056
    %v12090 = vunpack.c.l.bf16 %v12057
    %v12091 = vunpack.c.h.bf16 %v12057
    %v12092 = vunpack.c.l.bf16 %v12058
    %v12093 = vunpack.c.h.bf16 %v12058
    %v12094 = vunpack.c.l.bf16 %v12059
    %v12095 = vunpack.c.h.bf16 %v12059
    %v12096 = vunpack.c.l.bf16 %v12060
    %v12097 = vunpack.c.h.bf16 %v12060
    %v12098 = vunpack.c.l.bf16 %v12061
    %v12099 = vunpack.c.h.bf16 %v12061
    %v12100 = vunpack.c.l.bf16 %v12062
    %v12101 = vunpack.c.h.bf16 %v12062
    %v12102 = vunpack.c.l.bf16 %v12063
    %v12103 = vunpack.c.h.bf16 %v12063
    %v12104 = vunpack.c.l.bf16 %v12064
    %v12105 = vunpack.c.h.bf16 %v12064
    %v12106 = vunpack.c.l.bf16 %v12065
    %v12107 = vunpack.c.h.bf16 %v12065
    %v12108 = vunpack.c.l.bf16 %v12066
    %v12109 = vunpack.c.h.bf16 %v12066
    %v12110 = vunpack.c.l.bf16 %v12067
    %v12111 = vunpack.c.h.bf16 %v12067
    %v12112 = vunpack.c.l.bf16 %v12068
    %v12113 = vunpack.c.h.bf16 %v12068
    %v12114 = vunpack.c.l.bf16 %v12069
    %v12115 = vunpack.c.h.bf16 %v12069
    %v12116 = vunpack.c.l.bf16 %v12070
    %v12117 = vunpack.c.h.bf16 %v12070
    %v12118 = vunpack.c.l.bf16 %v12071
    %v12119 = vunpack.c.h.bf16 %v12071
    %v12120 = vunpack.c.l.bf16 %v12072
    %v12121 = vunpack.c.h.bf16 %v12072
    %v12122 = vunpack.c.l.bf16 %v12073
    %v12123 = vunpack.c.h.bf16 %v12073
    %v12124 = vunpack.c.l.bf16 %v12074
    %v12125 = vunpack.c.h.bf16 %v12074
    %v12126 = vunpack.c.l.bf16 %v12075
    %v12127 = vunpack.c.h.bf16 %v12075
    %v12128 = vunpack.c.l.bf16 %v12076
    %v12129 = vunpack.c.h.bf16 %v12076
    %v12130 = vunpack.c.l.bf16 %v12077
    %v12131 = vunpack.c.h.bf16 %v12077
    %v12132 = vunpack.c.l.bf16 %v12078
    %v12133 = vunpack.c.h.bf16 %v12078
    %v12134 = vunpack.c.l.bf16 %v12079
    %v12135 = vunpack.c.h.bf16 %v12079
    %v12136 = vunpack.c.l.bf16 %v12080
    %v12137 = vunpack.c.h.bf16 %v12080
    %v12138 = vunpack.c.l.bf16 %v12081
    %v12139 = vunpack.c.h.bf16 %v12081
    %v12140 = vunpack.c.l.bf16 %v12082
    %v12141 = vunpack.c.h.bf16 %v12082
    %v12142 = vunpack.c.l.bf16 %v12083
    %v12143 = vunpack.c.h.bf16 %v12083
    %v12144 = vunpack.c.l.bf16 %v12084
    %v12145 = vunpack.c.h.bf16 %v12084
    %v12146 = vunpack.c.l.bf16 %v12085
    %v12147 = vunpack.c.h.bf16 %v12085
    %v12148 = vunpack.c.l.bf16 %v12086
    %v12149 = vunpack.c.h.bf16 %v12086
    %v12150 = vunpack.c.l.bf16 %v12087
    %v12151 = vunpack.c.h.bf16 %v12087
    %v12152 = vadd.f32 %v12088, %v12104
    %v12153 = vrot.slane %v12152, 4
    %v12154 = vadd.f32 %v12152, %v12153
    %v12155 = vrot.slane %v12154, 2
    %v12156 = vadd.f32 %v12154, %v12155
    %v12157 = vrot.slane %v12156, 1
    %v12158 = vadd.f32 %v12156, %v12157
    %v12159 = vadd.f32 %v12089, %v12105
    %v12160 = vrot.slane %v12159, 4
    %v12161 = vadd.f32 %v12159, %v12160
    %v12162 = vrot.slane %v12161, 2
    %v12163 = vadd.f32 %v12161, %v12162
    %v12164 = vrot.slane %v12163, 1
    %v12165 = vadd.f32 %v12163, %v12164
    %v12166 = vadd.f32 %v12090, %v12106
    %v12167 = vrot.slane %v12166, 4
    %v12168 = vadd.f32 %v12166, %v12167
    %v12169 = vrot.slane %v12168, 2
    %v12170 = vadd.f32 %v12168, %v12169
    %v12171 = vrot.slane %v12170, 1
    %v12172 = vadd.f32 %v12170, %v12171
    %v12173 = vadd.f32 %v12091, %v12107
    %v12174 = vrot.slane %v12173, 4
    %v12175 = vadd.f32 %v12173, %v12174
    %v12176 = vrot.slane %v12175, 2
    %v12177 = vadd.f32 %v12175, %v12176
    %v12178 = vrot.slane %v12177, 1
    %v12179 = vadd.f32 %v12177, %v12178
    %v12180 = vadd.f32 %v12092, %v12108
    %v12181 = vrot.slane %v12180, 4
    %v12182 = vadd.f32 %v12180, %v12181
    %v12183 = vrot.slane %v12182, 2
    %v12184 = vadd.f32 %v12182, %v12183
    %v12185 = vrot.slane %v12184, 1
    %v12186 = vadd.f32 %v12184, %v12185
    %v12187 = vadd.f32 %v12093, %v12109
    %v12188 = vrot.slane %v12187, 4
    %v12189 = vadd.f32 %v12187, %v12188
    %v12190 = vrot.slane %v12189, 2
    %v12191 = vadd.f32 %v12189, %v12190
    %v12192 = vrot.slane %v12191, 1
    %v12193 = vadd.f32 %v12191, %v12192
    %v12194 = vadd.f32 %v12094, %v12110
    %v12195 = vrot.slane %v12194, 4
    %v12196 = vadd.f32 %v12194, %v12195
    %v12197 = vrot.slane %v12196, 2
    %v12198 = vadd.f32 %v12196, %v12197
    %v12199 = vrot.slane %v12198, 1
    %v12200 = vadd.f32 %v12198, %v12199
    %v12201 = vadd.f32 %v12095, %v12111
    %v12202 = vrot.slane %v12201, 4
    %v12203 = vadd.f32 %v12201, %v12202
    %v12204 = vrot.slane %v12203, 2
    %v12205 = vadd.f32 %v12203, %v12204
    %v12206 = vrot.slane %v12205, 1
    %v12207 = vadd.f32 %v12205, %v12206
    %v12208 = vadd.f32 %v12096, %v12112
    %v12209 = vrot.slane %v12208, 4
    %v12210 = vadd.f32 %v12208, %v12209
    %v12211 = vrot.slane %v12210, 2
    %v12212 = vadd.f32 %v12210, %v12211
    %v12213 = vrot.slane %v12212, 1
    %v12214 = vadd.f32 %v12212, %v12213
    %v12215 = vadd.f32 %v12097, %v12113
    %v12216 = vrot.slane %v12215, 4
    %v12217 = vadd.f32 %v12215, %v12216
    %v12218 = vrot.slane %v12217, 2
    %v12219 = vadd.f32 %v12217, %v12218
    %v12220 = vrot.slane %v12219, 1
    %v12221 = vadd.f32 %v12219, %v12220
    %v12222 = vadd.f32 %v12098, %v12114
    %v12223 = vrot.slane %v12222, 4
    %v12224 = vadd.f32 %v12222, %v12223
    %v12225 = vrot.slane %v12224, 2
    %v12226 = vadd.f32 %v12224, %v12225
    %v12227 = vrot.slane %v12226, 1
    %v12228 = vadd.f32 %v12226, %v12227
    %v12229 = vadd.f32 %v12099, %v12115
    %v12230 = vrot.slane %v12229, 4
    %v12231 = vadd.f32 %v12229, %v12230
    %v12232 = vrot.slane %v12231, 2
    %v12233 = vadd.f32 %v12231, %v12232
    %v12234 = vrot.slane %v12233, 1
    %v12235 = vadd.f32 %v12233, %v12234
    %v12236 = vadd.f32 %v12100, %v12116
    %v12237 = vrot.slane %v12236, 4
    %v12238 = vadd.f32 %v12236, %v12237
    %v12239 = vrot.slane %v12238, 2
    %v12240 = vadd.f32 %v12238, %v12239
    %v12241 = vrot.slane %v12240, 1
    %v12242 = vadd.f32 %v12240, %v12241
    %v12243 = vadd.f32 %v12101, %v12117
    %v12244 = vrot.slane %v12243, 4
    %v12245 = vadd.f32 %v12243, %v12244
    %v12246 = vrot.slane %v12245, 2
    %v12247 = vadd.f32 %v12245, %v12246
    %v12248 = vrot.slane %v12247, 1
    %v12249 = vadd.f32 %v12247, %v12248
    %v12250 = vadd.f32 %v12102, %v12118
    %v12251 = vrot.slane %v12250, 4
    %v12252 = vadd.f32 %v12250, %v12251
    %v12253 = vrot.slane %v12252, 2
    %v12254 = vadd.f32 %v12252, %v12253
    %v12255 = vrot.slane %v12254, 1
    %v12256 = vadd.f32 %v12254, %v12255
    %v12257 = vadd.f32 %v12103, %v12119
    %v12258 = vrot.slane %v12257, 4
    %v12259 = vadd.f32 %v12257, %v12258
    %v12260 = vrot.slane %v12259, 2
    %v12261 = vadd.f32 %v12259, %v12260
    %v12262 = vrot.slane %v12261, 1
    %v12263 = vadd.f32 %v12261, %v12262
    %v12264 = vadd.f32 %v12120, %v12136
    %v12265 = vrot.slane %v12264, 4
    %v12266 = vadd.f32 %v12264, %v12265
    %v12267 = vrot.slane %v12266, 2
    %v12268 = vadd.f32 %v12266, %v12267
    %v12269 = vrot.slane %v12268, 1
    %v12270 = vadd.f32 %v12268, %v12269
    %v12271 = vadd.f32 %v12121, %v12137
    %v12272 = vrot.slane %v12271, 4
    %v12273 = vadd.f32 %v12271, %v12272
    %v12274 = vrot.slane %v12273, 2
    %v12275 = vadd.f32 %v12273, %v12274
    %v12276 = vrot.slane %v12275, 1
    %v12277 = vadd.f32 %v12275, %v12276
    %v12278 = vadd.f32 %v12122, %v12138
    %v12279 = vrot.slane %v12278, 4
    %v12280 = vadd.f32 %v12278, %v12279
    %v12281 = vrot.slane %v12280, 2
    %v12282 = vadd.f32 %v12280, %v12281
    %v12283 = vrot.slane %v12282, 1
    %v12284 = vadd.f32 %v12282, %v12283
    %v12285 = vadd.f32 %v12123, %v12139
    %v12286 = vrot.slane %v12285, 4
    %v12287 = vadd.f32 %v12285, %v12286
    %v12288 = vrot.slane %v12287, 2
    %v12289 = vadd.f32 %v12287, %v12288
    %v12290 = vrot.slane %v12289, 1
    %v12291 = vadd.f32 %v12289, %v12290
    %v12292 = vadd.f32 %v12124, %v12140
    %v12293 = vrot.slane %v12292, 4
    %v12294 = vadd.f32 %v12292, %v12293
    %v12295 = vrot.slane %v12294, 2
    %v12296 = vadd.f32 %v12294, %v12295
    %v12297 = vrot.slane %v12296, 1
    %v12298 = vadd.f32 %v12296, %v12297
    %v12299 = vadd.f32 %v12125, %v12141
    %v12300 = vrot.slane %v12299, 4
    %v12301 = vadd.f32 %v12299, %v12300
    %v12302 = vrot.slane %v12301, 2
    %v12303 = vadd.f32 %v12301, %v12302
    %v12304 = vrot.slane %v12303, 1
    %v12305 = vadd.f32 %v12303, %v12304
    %v12306 = vadd.f32 %v12126, %v12142
    %v12307 = vrot.slane %v12306, 4
    %v12308 = vadd.f32 %v12306, %v12307
    %v12309 = vrot.slane %v12308, 2
    %v12310 = vadd.f32 %v12308, %v12309
    %v12311 = vrot.slane %v12310, 1
    %v12312 = vadd.f32 %v12310, %v12311
    %v12313 = vadd.f32 %v12127, %v12143
    %v12314 = vrot.slane %v12313, 4
    %v12315 = vadd.f32 %v12313, %v12314
    %v12316 = vrot.slane %v12315, 2
    %v12317 = vadd.f32 %v12315, %v12316
    %v12318 = vrot.slane %v12317, 1
    %v12319 = vadd.f32 %v12317, %v12318
    %v12320 = vadd.f32 %v12128, %v12144
    %v12321 = vrot.slane %v12320, 4
    %v12322 = vadd.f32 %v12320, %v12321
    %v12323 = vrot.slane %v12322, 2
    %v12324 = vadd.f32 %v12322, %v12323
    %v12325 = vrot.slane %v12324, 1
    %v12326 = vadd.f32 %v12324, %v12325
    %v12327 = vadd.f32 %v12129, %v12145
    %v12328 = vrot.slane %v12327, 4
    %v12329 = vadd.f32 %v12327, %v12328
    %v12330 = vrot.slane %v12329, 2
    %v12331 = vadd.f32 %v12329, %v12330
    %v12332 = vrot.slane %v12331, 1
    %v12333 = vadd.f32 %v12331, %v12332
    %v12334 = vadd.f32 %v12130, %v12146
    %v12335 = vrot.slane %v12334, 4
    %v12336 = vadd.f32 %v12334, %v12335
    %v12337 = vrot.slane %v12336, 2
    %v12338 = vadd.f32 %v12336, %v12337
    %v12339 = vrot.slane %v12338, 1
    %v12340 = vadd.f32 %v12338, %v12339
    %v12341 = vadd.f32 %v12131, %v12147
    %v12342 = vrot.slane %v12341, 4
    %v12343 = vadd.f32 %v12341, %v12342
    %v12344 = vrot.slane %v12343, 2
    %v12345 = vadd.f32 %v12343, %v12344
    %v12346 = vrot.slane %v12345, 1
    %v12347 = vadd.f32 %v12345, %v12346
    %v12348 = vadd.f32 %v12132, %v12148
    %v12349 = vrot.slane %v12348, 4
    %v12350 = vadd.f32 %v12348, %v12349
    %v12351 = vrot.slane %v12350, 2
    %v12352 = vadd.f32 %v12350, %v12351
    %v12353 = vrot.slane %v12352, 1
    %v12354 = vadd.f32 %v12352, %v12353
    %v12355 = vadd.f32 %v12133, %v12149
    %v12356 = vrot.slane %v12355, 4
    %v12357 = vadd.f32 %v12355, %v12356
    %v12358 = vrot.slane %v12357, 2
    %v12359 = vadd.f32 %v12357, %v12358
    %v12360 = vrot.slane %v12359, 1
    %v12361 = vadd.f32 %v12359, %v12360
    %v12362 = vadd.f32 %v12134, %v12150
    %v12363 = vrot.slane %v12362, 4
    %v12364 = vadd.f32 %v12362, %v12363
    %v12365 = vrot.slane %v12364, 2
    %v12366 = vadd.f32 %v12364, %v12365
    %v12367 = vrot.slane %v12366, 1
    %v12368 = vadd.f32 %v12366, %v12367
    %v12369 = vadd.f32 %v12135, %v12151
    %v12370 = vrot.slane %v12369, 4
    %v12371 = vadd.f32 %v12369, %v12370
    %v12372 = vrot.slane %v12371, 2
    %v12373 = vadd.f32 %v12371, %v12372
    %v12374 = vrot.slane %v12373, 1
    %v12375 = vadd.f32 %v12373, %v12374
    %v12376 = vmul.f32 %v12158, 0.0625
    %v12377 = vmul.f32 %v12165, 0.0625
    %v12378 = vmul.f32 %v12172, 0.0625
    %v12379 = vmul.f32 %v12179, 0.0625
    %v12380 = vmul.f32 %v12186, 0.0625
    %v12381 = vmul.f32 %v12193, 0.0625
    %v12382 = vmul.f32 %v12200, 0.0625
    %v12383 = vmul.f32 %v12207, 0.0625
    %v12384 = vmul.f32 %v12214, 0.0625
    %v12385 = vmul.f32 %v12221, 0.0625
    %v12386 = vmul.f32 %v12228, 0.0625
    %v12387 = vmul.f32 %v12235, 0.0625
    %v12388 = vmul.f32 %v12242, 0.0625
    %v12389 = vmul.f32 %v12249, 0.0625
    %v12390 = vmul.f32 %v12256, 0.0625
    %v12391 = vmul.f32 %v12263, 0.0625
    %v12392 = vmul.f32 %v12270, 0.0625
    %v12393 = vmul.f32 %v12277, 0.0625
    %v12394 = vmul.f32 %v12284, 0.0625
    %v12395 = vmul.f32 %v12291, 0.0625
    %v12396 = vmul.f32 %v12298, 0.0625
    %v12397 = vmul.f32 %v12305, 0.0625
    %v12398 = vmul.f32 %v12312, 0.0625
    %v12399 = vmul.f32 %v12319, 0.0625
    %v12400 = vmul.f32 %v12326, 0.0625
    %v12401 = vmul.f32 %v12333, 0.0625
    %v12402 = vmul.f32 %v12340, 0.0625
    %v12403 = vmul.f32 %v12347, 0.0625
    %v12404 = vmul.f32 %v12354, 0.0625
    %v12405 = vmul.f32 %v12361, 0.0625
    %v12406 = vmul.f32 %v12368, 0.0625
    %v12407 = vmul.f32 %v12375, 0.0625
    %v12408 = vpack.c.bf16 %v12376, %v12376
    %v12409 = vpack.c.bf16 %v12377, %v12377
    %v12410 = vpack.c.bf16 %v12378, %v12378
    %v12411 = vpack.c.bf16 %v12379, %v12379
    %v12412 = vpack.c.bf16 %v12380, %v12380
    %v12413 = vpack.c.bf16 %v12381, %v12381
    %v12414 = vpack.c.bf16 %v12382, %v12382
    %v12415 = vpack.c.bf16 %v12383, %v12383
    %v12416 = vpack.c.bf16 %v12384, %v12384
    %v12417 = vpack.c.bf16 %v12385, %v12385
    %v12418 = vpack.c.bf16 %v12386, %v12386
    %v12419 = vpack.c.bf16 %v12387, %v12387
    %v12420 = vpack.c.bf16 %v12388, %v12388
    %v12421 = vpack.c.bf16 %v12389, %v12389
    %v12422 = vpack.c.bf16 %v12390, %v12390
    %v12423 = vpack.c.bf16 %v12391, %v12391
    %v12424 = vpack.c.bf16 %v12392, %v12392
    %v12425 = vpack.c.bf16 %v12393, %v12393
    %v12426 = vpack.c.bf16 %v12394, %v12394
    %v12427 = vpack.c.bf16 %v12395, %v12395
    %v12428 = vpack.c.bf16 %v12396, %v12396
    %v12429 = vpack.c.bf16 %v12397, %v12397
    %v12430 = vpack.c.bf16 %v12398, %v12398
    %v12431 = vpack.c.bf16 %v12399, %v12399
    %v12432 = vpack.c.bf16 %v12400, %v12400
    %v12433 = vpack.c.bf16 %v12401, %v12401
    %v12434 = vpack.c.bf16 %v12402, %v12402
    %v12435 = vpack.c.bf16 %v12403, %v12403
    %v12436 = vpack.c.bf16 %v12404, %v12404
    %v12437 = vpack.c.bf16 %v12405, %v12405
    %v12438 = vpack.c.bf16 %v12406, %v12406
    %v12439 = vpack.c.bf16 %v12407, %v12407
    %s12440 = scalar_lea.vmem [#allocation5], 10240
    %v12441 = vld [vmem:[%s12440] sm:$0xff]
    %v12442 = vld [vmem:[%s12440 + $0x8] sm:$0xff]
    %v12443 = vld [vmem:[%s12440 + $0x10] sm:$0xff]
    %v12444 = vld [vmem:[%s12440 + $0x18] sm:$0xff]
    %v12445 = vld [vmem:[%s12440 + $0x20] sm:$0xff]
    %v12446 = vld [vmem:[%s12440 + $0x28] sm:$0xff]
    %v12447 = vld [vmem:[%s12440 + $0x30] sm:$0xff]
    %v12448 = vld [vmem:[%s12440 + $0x38] sm:$0xff]
    %v12449 = vld [vmem:[%s12440 + $0x40] sm:$0xff]
    %v12450 = vld [vmem:[%s12440 + $0x48] sm:$0xff]
    %v12451 = vld [vmem:[%s12440 + $0x50] sm:$0xff]
    %v12452 = vld [vmem:[%s12440 + $0x58] sm:$0xff]
    %v12453 = vld [vmem:[%s12440 + $0x60] sm:$0xff]
    %v12454 = vld [vmem:[%s12440 + $0x68] sm:$0xff]
    %v12455 = vld [vmem:[%s12440 + $0x70] sm:$0xff]
    %v12456 = vld [vmem:[%s12440 + $0x78] sm:$0xff]
    %v12457 = vld [vmem:[%s12440 + $0x80] sm:$0xff]
    %v12458 = vld [vmem:[%s12440 + $0x88] sm:$0xff]
    %v12459 = vld [vmem:[%s12440 + $0x90] sm:$0xff]
    %v12460 = vld [vmem:[%s12440 + $0x98] sm:$0xff]
    %v12461 = vld [vmem:[%s12440 + $0xa0] sm:$0xff]
    %v12462 = vld [vmem:[%s12440 + $0xa8] sm:$0xff]
    %v12463 = vld [vmem:[%s12440 + $0xb0] sm:$0xff]
    %v12464 = vld [vmem:[%s12440 + $0xb8] sm:$0xff]
    %v12465 = vld [vmem:[%s12440 + $0xc0] sm:$0xff]
    %v12466 = vld [vmem:[%s12440 + $0xc8] sm:$0xff]
    %v12467 = vld [vmem:[%s12440 + $0xd0] sm:$0xff]
    %v12468 = vld [vmem:[%s12440 + $0xd8] sm:$0xff]
    %v12469 = vld [vmem:[%s12440 + $0xe0] sm:$0xff]
    %v12470 = vld [vmem:[%s12440 + $0xe8] sm:$0xff]
    %v12471 = vld [vmem:[%s12440 + $0xf0] sm:$0xff]
    %v12472 = vld [vmem:[%s12440 + $0xf8] sm:$0xff]
    %v12473 = vld [vmem:[%s12440 + $0x100] sm:$0xff]
    %v12474 = vld [vmem:[%s12440 + $0x108] sm:$0xff]
    %v12475 = vld [vmem:[%s12440 + $0x110] sm:$0xff]
    %v12476 = vld [vmem:[%s12440 + $0x118] sm:$0xff]
    %v12477 = vld [vmem:[%s12440 + $0x120] sm:$0xff]
    %v12478 = vld [vmem:[%s12440 + $0x128] sm:$0xff]
    %v12479 = vld [vmem:[%s12440 + $0x130] sm:$0xff]
    %v12480 = vld [vmem:[%s12440 + $0x138] sm:$0xff]
    %v12481 = vld [vmem:[%s12440 + $0x140] sm:$0xff]
    %v12482 = vld [vmem:[%s12440 + $0x148] sm:$0xff]
    %v12483 = vld [vmem:[%s12440 + $0x150] sm:$0xff]
    %v12484 = vld [vmem:[%s12440 + $0x158] sm:$0xff]
    %v12485 = vld [vmem:[%s12440 + $0x160] sm:$0xff]
    %v12486 = vld [vmem:[%s12440 + $0x168] sm:$0xff]
    %v12487 = vld [vmem:[%s12440 + $0x170] sm:$0xff]
    %v12488 = vld [vmem:[%s12440 + $0x178] sm:$0xff]
    %v12489 = vld [vmem:[%s12440 + $0x180] sm:$0xff]
    %v12490 = vld [vmem:[%s12440 + $0x188] sm:$0xff]
    %v12491 = vld [vmem:[%s12440 + $0x190] sm:$0xff]
    %v12492 = vld [vmem:[%s12440 + $0x198] sm:$0xff]
    %v12493 = vld [vmem:[%s12440 + $0x1a0] sm:$0xff]
    %v12494 = vld [vmem:[%s12440 + $0x1a8] sm:$0xff]
    %v12495 = vld [vmem:[%s12440 + $0x1b0] sm:$0xff]
    %v12496 = vld [vmem:[%s12440 + $0x1b8] sm:$0xff]
    %v12497 = vld [vmem:[%s12440 + $0x1c0] sm:$0xff]
    %v12498 = vld [vmem:[%s12440 + $0x1c8] sm:$0xff]
    %v12499 = vld [vmem:[%s12440 + $0x1d0] sm:$0xff]
    %v12500 = vld [vmem:[%s12440 + $0x1d8] sm:$0xff]
    %v12501 = vld [vmem:[%s12440 + $0x1e0] sm:$0xff]
    %v12502 = vld [vmem:[%s12440 + $0x1e8] sm:$0xff]
    %v12503 = vld [vmem:[%s12440 + $0x1f0] sm:$0xff]
    %v12504 = vld [vmem:[%s12440 + $0x1f8] sm:$0xff]
    %v12505 = vld [vmem:[%s12440 + $0x200] sm:$0xff]
    %v12506 = vld [vmem:[%s12440 + $0x208] sm:$0xff]
    %v12507 = vld [vmem:[%s12440 + $0x210] sm:$0xff]
    %v12508 = vld [vmem:[%s12440 + $0x218] sm:$0xff]
    %v12509 = vld [vmem:[%s12440 + $0x220] sm:$0xff]
    %v12510 = vld [vmem:[%s12440 + $0x228] sm:$0xff]
    %v12511 = vld [vmem:[%s12440 + $0x230] sm:$0xff]
    %v12512 = vld [vmem:[%s12440 + $0x238] sm:$0xff]
    %v12513 = vld [vmem:[%s12440 + $0x240] sm:$0xff]
    %v12514 = vld [vmem:[%s12440 + $0x248] sm:$0xff]
    %v12515 = vld [vmem:[%s12440 + $0x250] sm:$0xff]
    %v12516 = vld [vmem:[%s12440 + $0x258] sm:$0xff]
    %v12517 = vld [vmem:[%s12440 + $0x260] sm:$0xff]
    %v12518 = vld [vmem:[%s12440 + $0x268] sm:$0xff]
    %v12519 = vld [vmem:[%s12440 + $0x270] sm:$0xff]
    %v12520 = vld [vmem:[%s12440 + $0x278] sm:$0xff]
    %v12521 = vld [vmem:[%s12440 + $0x280] sm:$0xff]
    %v12522 = vld [vmem:[%s12440 + $0x288] sm:$0xff]
    %v12523 = vld [vmem:[%s12440 + $0x290] sm:$0xff]
    %v12524 = vld [vmem:[%s12440 + $0x298] sm:$0xff]
    %v12525 = vld [vmem:[%s12440 + $0x2a0] sm:$0xff]
    %v12526 = vld [vmem:[%s12440 + $0x2a8] sm:$0xff]
    %v12527 = vld [vmem:[%s12440 + $0x2b0] sm:$0xff]
    %v12528 = vld [vmem:[%s12440 + $0x2b8] sm:$0xff]
    %v12529 = vld [vmem:[%s12440 + $0x2c0] sm:$0xff]
    %v12530 = vld [vmem:[%s12440 + $0x2c8] sm:$0xff]
    %v12531 = vld [vmem:[%s12440 + $0x2d0] sm:$0xff]
    %v12532 = vld [vmem:[%s12440 + $0x2d8] sm:$0xff]
    %v12533 = vld [vmem:[%s12440 + $0x2e0] sm:$0xff]
    %v12534 = vld [vmem:[%s12440 + $0x2e8] sm:$0xff]
    %v12535 = vld [vmem:[%s12440 + $0x2f0] sm:$0xff]
    %v12536 = vld [vmem:[%s12440 + $0x2f8] sm:$0xff]
    %v12537 = vld [vmem:[%s12440 + $0x300] sm:$0xff]
    %v12538 = vld [vmem:[%s12440 + $0x308] sm:$0xff]
    %v12539 = vld [vmem:[%s12440 + $0x310] sm:$0xff]
    %v12540 = vld [vmem:[%s12440 + $0x318] sm:$0xff]
    %v12541 = vld [vmem:[%s12440 + $0x320] sm:$0xff]
    %v12542 = vld [vmem:[%s12440 + $0x328] sm:$0xff]
    %v12543 = vld [vmem:[%s12440 + $0x330] sm:$0xff]
    %v12544 = vld [vmem:[%s12440 + $0x338] sm:$0xff]
    %v12545 = vld [vmem:[%s12440 + $0x340] sm:$0xff]
    %v12546 = vld [vmem:[%s12440 + $0x348] sm:$0xff]
    %v12547 = vld [vmem:[%s12440 + $0x350] sm:$0xff]
    %v12548 = vld [vmem:[%s12440 + $0x358] sm:$0xff]
    %v12549 = vld [vmem:[%s12440 + $0x360] sm:$0xff]
    %v12550 = vld [vmem:[%s12440 + $0x368] sm:$0xff]
    %v12551 = vld [vmem:[%s12440 + $0x370] sm:$0xff]
    %v12552 = vld [vmem:[%s12440 + $0x378] sm:$0xff]
    %v12553 = vld [vmem:[%s12440 + $0x380] sm:$0xff]
    %v12554 = vld [vmem:[%s12440 + $0x388] sm:$0xff]
    %v12555 = vld [vmem:[%s12440 + $0x390] sm:$0xff]
    %v12556 = vld [vmem:[%s12440 + $0x398] sm:$0xff]
    %v12557 = vld [vmem:[%s12440 + $0x3a0] sm:$0xff]
    %v12558 = vld [vmem:[%s12440 + $0x3a8] sm:$0xff]
    %v12559 = vld [vmem:[%s12440 + $0x3b0] sm:$0xff]
    %v12560 = vld [vmem:[%s12440 + $0x3b8] sm:$0xff]
    %v12561 = vld [vmem:[%s12440 + $0x3c0] sm:$0xff]
    %v12562 = vld [vmem:[%s12440 + $0x3c8] sm:$0xff]
    %v12563 = vld [vmem:[%s12440 + $0x3d0] sm:$0xff]
    %v12564 = vld [vmem:[%s12440 + $0x3d8] sm:$0xff]
    %v12565 = vld [vmem:[%s12440 + $0x3e0] sm:$0xff]
    %v12566 = vld [vmem:[%s12440 + $0x3e8] sm:$0xff]
    %v12567 = vld [vmem:[%s12440 + $0x3f0] sm:$0xff]
    %v12568 = vld [vmem:[%s12440 + $0x3f8] sm:$0xff]
    %v12569 = vld [vmem:[%s12440 + $0x400] sm:$0xff]
    %v12570 = vld [vmem:[%s12440 + $0x408] sm:$0xff]
    %v12571 = vld [vmem:[%s12440 + $0x410] sm:$0xff]
    %v12572 = vld [vmem:[%s12440 + $0x418] sm:$0xff]
    %v12573 = vld [vmem:[%s12440 + $0x420] sm:$0xff]
    %v12574 = vld [vmem:[%s12440 + $0x428] sm:$0xff]
    %v12575 = vld [vmem:[%s12440 + $0x430] sm:$0xff]
    %v12576 = vld [vmem:[%s12440 + $0x438] sm:$0xff]
    %v12577 = vld [vmem:[%s12440 + $0x440] sm:$0xff]
    %v12578 = vld [vmem:[%s12440 + $0x448] sm:$0xff]
    %v12579 = vld [vmem:[%s12440 + $0x450] sm:$0xff]
    %v12580 = vld [vmem:[%s12440 + $0x458] sm:$0xff]
    %v12581 = vld [vmem:[%s12440 + $0x460] sm:$0xff]
    %v12582 = vld [vmem:[%s12440 + $0x468] sm:$0xff]
    %v12583 = vld [vmem:[%s12440 + $0x470] sm:$0xff]
    %v12584 = vld [vmem:[%s12440 + $0x478] sm:$0xff]
    %v12585 = vld [vmem:[%s12440 + $0x480] sm:$0xff]
    %v12586 = vld [vmem:[%s12440 + $0x488] sm:$0xff]
    %v12587 = vld [vmem:[%s12440 + $0x490] sm:$0xff]
    %v12588 = vld [vmem:[%s12440 + $0x498] sm:$0xff]
    %v12589 = vld [vmem:[%s12440 + $0x4a0] sm:$0xff]
    %v12590 = vld [vmem:[%s12440 + $0x4a8] sm:$0xff]
    %v12591 = vld [vmem:[%s12440 + $0x4b0] sm:$0xff]
    %v12592 = vld [vmem:[%s12440 + $0x4b8] sm:$0xff]
    %v12593 = vld [vmem:[%s12440 + $0x4c0] sm:$0xff]
    %v12594 = vld [vmem:[%s12440 + $0x4c8] sm:$0xff]
    %v12595 = vld [vmem:[%s12440 + $0x4d0] sm:$0xff]
    %v12596 = vld [vmem:[%s12440 + $0x4d8] sm:$0xff]
    %v12597 = vld [vmem:[%s12440 + $0x4e0] sm:$0xff]
    %v12598 = vld [vmem:[%s12440 + $0x4e8] sm:$0xff]
    %v12599 = vld [vmem:[%s12440 + $0x4f0] sm:$0xff]
    %v12600 = vld [vmem:[%s12440 + $0x4f8] sm:$0xff]
    %v12601 = vld [vmem:[%s12440 + $0x500] sm:$0xff]
    %v12602 = vld [vmem:[%s12440 + $0x508] sm:$0xff]
    %v12603 = vld [vmem:[%s12440 + $0x510] sm:$0xff]
    %v12604 = vld [vmem:[%s12440 + $0x518] sm:$0xff]
    %v12605 = vld [vmem:[%s12440 + $0x520] sm:$0xff]
    %v12606 = vld [vmem:[%s12440 + $0x528] sm:$0xff]
    %v12607 = vld [vmem:[%s12440 + $0x530] sm:$0xff]
    %v12608 = vld [vmem:[%s12440 + $0x538] sm:$0xff]
    %v12609 = vld [vmem:[%s12440 + $0x540] sm:$0xff]
    %v12610 = vld [vmem:[%s12440 + $0x548] sm:$0xff]
    %v12611 = vld [vmem:[%s12440 + $0x550] sm:$0xff]
    %v12612 = vld [vmem:[%s12440 + $0x558] sm:$0xff]
    %v12613 = vld [vmem:[%s12440 + $0x560] sm:$0xff]
    %v12614 = vld [vmem:[%s12440 + $0x568] sm:$0xff]
    %v12615 = vld [vmem:[%s12440 + $0x570] sm:$0xff]
    %v12616 = vld [vmem:[%s12440 + $0x578] sm:$0xff]
    %v12617 = vld [vmem:[%s12440 + $0x580] sm:$0xff]
    %v12618 = vld [vmem:[%s12440 + $0x588] sm:$0xff]
    %v12619 = vld [vmem:[%s12440 + $0x590] sm:$0xff]
    %v12620 = vld [vmem:[%s12440 + $0x598] sm:$0xff]
    %v12621 = vld [vmem:[%s12440 + $0x5a0] sm:$0xff]
    %v12622 = vld [vmem:[%s12440 + $0x5a8] sm:$0xff]
    %v12623 = vld [vmem:[%s12440 + $0x5b0] sm:$0xff]
    %v12624 = vld [vmem:[%s12440 + $0x5b8] sm:$0xff]
    %v12625 = vld [vmem:[%s12440 + $0x5c0] sm:$0xff]
    %v12626 = vld [vmem:[%s12440 + $0x5c8] sm:$0xff]
    %v12627 = vld [vmem:[%s12440 + $0x5d0] sm:$0xff]
    %v12628 = vld [vmem:[%s12440 + $0x5d8] sm:$0xff]
    %v12629 = vld [vmem:[%s12440 + $0x5e0] sm:$0xff]
    %v12630 = vld [vmem:[%s12440 + $0x5e8] sm:$0xff]
    %v12631 = vld [vmem:[%s12440 + $0x5f0] sm:$0xff]
    %v12632 = vld [vmem:[%s12440 + $0x5f8] sm:$0xff]
    %v12633 = vld [vmem:[%s12440 + $0x600] sm:$0xff]
    %v12634 = vld [vmem:[%s12440 + $0x608] sm:$0xff]
    %v12635 = vld [vmem:[%s12440 + $0x610] sm:$0xff]
    %v12636 = vld [vmem:[%s12440 + $0x618] sm:$0xff]
    %v12637 = vld [vmem:[%s12440 + $0x620] sm:$0xff]
    %v12638 = vld [vmem:[%s12440 + $0x628] sm:$0xff]
    %v12639 = vld [vmem:[%s12440 + $0x630] sm:$0xff]
    %v12640 = vld [vmem:[%s12440 + $0x638] sm:$0xff]
    %v12641 = vld [vmem:[%s12440 + $0x640] sm:$0xff]
    %v12642 = vld [vmem:[%s12440 + $0x648] sm:$0xff]
    %v12643 = vld [vmem:[%s12440 + $0x650] sm:$0xff]
    %v12644 = vld [vmem:[%s12440 + $0x658] sm:$0xff]
    %v12645 = vld [vmem:[%s12440 + $0x660] sm:$0xff]
    %v12646 = vld [vmem:[%s12440 + $0x668] sm:$0xff]
    %v12647 = vld [vmem:[%s12440 + $0x670] sm:$0xff]
    %v12648 = vld [vmem:[%s12440 + $0x678] sm:$0xff]
    %v12649 = vld [vmem:[%s12440 + $0x680] sm:$0xff]
    %v12650 = vld [vmem:[%s12440 + $0x688] sm:$0xff]
    %v12651 = vld [vmem:[%s12440 + $0x690] sm:$0xff]
    %v12652 = vld [vmem:[%s12440 + $0x698] sm:$0xff]
    %v12653 = vld [vmem:[%s12440 + $0x6a0] sm:$0xff]
    %v12654 = vld [vmem:[%s12440 + $0x6a8] sm:$0xff]
    %v12655 = vld [vmem:[%s12440 + $0x6b0] sm:$0xff]
    %v12656 = vld [vmem:[%s12440 + $0x6b8] sm:$0xff]
    %v12657 = vld [vmem:[%s12440 + $0x6c0] sm:$0xff]
    %v12658 = vld [vmem:[%s12440 + $0x6c8] sm:$0xff]
    %v12659 = vld [vmem:[%s12440 + $0x6d0] sm:$0xff]
    %v12660 = vld [vmem:[%s12440 + $0x6d8] sm:$0xff]
    %v12661 = vld [vmem:[%s12440 + $0x6e0] sm:$0xff]
    %v12662 = vld [vmem:[%s12440 + $0x6e8] sm:$0xff]
    %v12663 = vld [vmem:[%s12440 + $0x6f0] sm:$0xff]
    %v12664 = vld [vmem:[%s12440 + $0x6f8] sm:$0xff]
    %v12665 = vld [vmem:[%s12440 + $0x700] sm:$0xff]
    %v12666 = vld [vmem:[%s12440 + $0x708] sm:$0xff]
    %v12667 = vld [vmem:[%s12440 + $0x710] sm:$0xff]
    %v12668 = vld [vmem:[%s12440 + $0x718] sm:$0xff]
    %v12669 = vld [vmem:[%s12440 + $0x720] sm:$0xff]
    %v12670 = vld [vmem:[%s12440 + $0x728] sm:$0xff]
    %v12671 = vld [vmem:[%s12440 + $0x730] sm:$0xff]
    %v12672 = vld [vmem:[%s12440 + $0x738] sm:$0xff]
    %v12673 = vld [vmem:[%s12440 + $0x740] sm:$0xff]
    %v12674 = vld [vmem:[%s12440 + $0x748] sm:$0xff]
    %v12675 = vld [vmem:[%s12440 + $0x750] sm:$0xff]
    %v12676 = vld [vmem:[%s12440 + $0x758] sm:$0xff]
    %v12677 = vld [vmem:[%s12440 + $0x760] sm:$0xff]
    %v12678 = vld [vmem:[%s12440 + $0x768] sm:$0xff]
    %v12679 = vld [vmem:[%s12440 + $0x770] sm:$0xff]
    %v12680 = vld [vmem:[%s12440 + $0x778] sm:$0xff]
    %v12681 = vld [vmem:[%s12440 + $0x780] sm:$0xff]
    %v12682 = vld [vmem:[%s12440 + $0x788] sm:$0xff]
    %v12683 = vld [vmem:[%s12440 + $0x790] sm:$0xff]
    %v12684 = vld [vmem:[%s12440 + $0x798] sm:$0xff]
    %v12685 = vld [vmem:[%s12440 + $0x7a0] sm:$0xff]
    %v12686 = vld [vmem:[%s12440 + $0x7a8] sm:$0xff]
    %v12687 = vld [vmem:[%s12440 + $0x7b0] sm:$0xff]
    %v12688 = vld [vmem:[%s12440 + $0x7b8] sm:$0xff]
    %v12689 = vld [vmem:[%s12440 + $0x7c0] sm:$0xff]
    %v12690 = vld [vmem:[%s12440 + $0x7c8] sm:$0xff]
    %v12691 = vld [vmem:[%s12440 + $0x7d0] sm:$0xff]
    %v12692 = vld [vmem:[%s12440 + $0x7d8] sm:$0xff]
    %v12693 = vld [vmem:[%s12440 + $0x7e0] sm:$0xff]
    %v12694 = vld [vmem:[%s12440 + $0x7e8] sm:$0xff]
    %v12695 = vld [vmem:[%s12440 + $0x7f0] sm:$0xff]
    %v12696 = vld [vmem:[%s12440 + $0x7f8] sm:$0xff]
    %s12697 = scalar_lea.vmem [#allocation7], 10
    %v12698 = vld [vmem:[%s12697] sm:$0x3]
    %v12700 = vlaneseq
    %v12701 = vshrl.u32 %v12700, 7
    %v12702 = vsub.s32 0, %v12701
    %v12703 = vrot.slane %v12698, %v12702
    %v12704 = vlaneseq
    %v12705 = vshrl.u32 %v12704, 7
    %v12706 = vsub.s32 1, %v12705
    %v12707 = vrot.slane %v12698, %v12706
    %v12742 = vunpack.c.l.b16 %v12408
    %v12743 = vunpack.c.l.b16 %v12409
    %v12744 = vunpack.c.l.b16 %v12410
    %v12745 = vunpack.c.l.b16 %v12411
    %v12746 = vunpack.c.l.b16 %v12412
    %v12747 = vunpack.c.l.b16 %v12413
    %v12748 = vunpack.c.l.b16 %v12414
    %v12749 = vunpack.c.l.b16 %v12415
    %v12750 = vunpack.c.l.b16 %v12416
    %v12751 = vunpack.c.l.b16 %v12417
    %v12752 = vunpack.c.l.b16 %v12418
    %v12753 = vunpack.c.l.b16 %v12419
    %v12754 = vunpack.c.l.b16 %v12420
    %v12755 = vunpack.c.l.b16 %v12421
    %v12756 = vunpack.c.l.b16 %v12422
    %v12757 = vunpack.c.l.b16 %v12423
    %v12758 = vunpack.c.l.b16 %v12424
    %v12759 = vunpack.c.l.b16 %v12425
    %v12760 = vunpack.c.l.b16 %v12426
    %v12761 = vunpack.c.l.b16 %v12427
    %v12762 = vunpack.c.l.b16 %v12428
    %v12763 = vunpack.c.l.b16 %v12429
    %v12764 = vunpack.c.l.b16 %v12430
    %v12765 = vunpack.c.l.b16 %v12431
    %v12766 = vunpack.c.l.b16 %v12432
    %v12767 = vunpack.c.l.b16 %v12433
    %v12768 = vunpack.c.l.b16 %v12434
    %v12769 = vunpack.c.l.b16 %v12435
    %v12770 = vunpack.c.l.b16 %v12436
    %v12771 = vunpack.c.l.b16 %v12437
    %v12772 = vunpack.c.l.b16 %v12438
    %v12773 = vunpack.c.l.b16 %v12439
    %v12774 = vsel %vm772, %v12758, %v12742
    %v12775 = vsel %vm772, %v12759, %v12743
    %v12776 = vsel %vm772, %v12760, %v12744
    %v12777 = vsel %vm772, %v12761, %v12745
    %v12778 = vsel %vm772, %v12762, %v12746
    %v12779 = vsel %vm772, %v12763, %v12747
    %v12780 = vsel %vm772, %v12764, %v12748
    %v12781 = vsel %vm772, %v12765, %v12749
    %v12782 = vsel %vm772, %v12766, %v12750
    %v12783 = vsel %vm772, %v12767, %v12751
    %v12784 = vsel %vm772, %v12768, %v12752
    %v12785 = vsel %vm772, %v12769, %v12753
    %v12786 = vsel %vm772, %v12770, %v12754
    %v12787 = vsel %vm772, %v12771, %v12755
    %v12788 = vsel %vm772, %v12772, %v12756
    %v12789 = vsel %vm772, %v12773, %v12757
    %v12790 = vpack.c.b16 %v12774, %v12774
    %v12791 = vpack.c.b16 %v12775, %v12775
    %v12792 = vpack.c.b16 %v12776, %v12776
    %v12793 = vpack.c.b16 %v12777, %v12777
    %v12794 = vpack.c.b16 %v12778, %v12778
    %v12795 = vpack.c.b16 %v12779, %v12779
    %v12796 = vpack.c.b16 %v12780, %v12780
    %v12797 = vpack.c.b16 %v12781, %v12781
    %v12798 = vpack.c.b16 %v12782, %v12782
    %v12799 = vpack.c.b16 %v12783, %v12783
    %v12800 = vpack.c.b16 %v12784, %v12784
    %v12801 = vpack.c.b16 %v12785, %v12785
    %v12802 = vpack.c.b16 %v12786, %v12786
    %v12803 = vpack.c.b16 %v12787, %v12787
    %v12804 = vpack.c.b16 %v12788, %v12788
    %v12805 = vpack.c.b16 %v12789, %v12789
    %v13078 = vunpack.c.l.b16 %v12441
    %v13079 = vunpack.c.h.b16 %v12441
    %v13080 = vunpack.c.l.b16 %v12442
    %v13081 = vunpack.c.h.b16 %v12442
    %v13082 = vunpack.c.l.b16 %v12443
    %v13083 = vunpack.c.h.b16 %v12443
    %v13084 = vunpack.c.l.b16 %v12444
    %v13085 = vunpack.c.h.b16 %v12444
    %v13086 = vunpack.c.l.b16 %v12445
    %v13087 = vunpack.c.h.b16 %v12445
    %v13088 = vunpack.c.l.b16 %v12446
    %v13089 = vunpack.c.h.b16 %v12446
    %v13090 = vunpack.c.l.b16 %v12447
    %v13091 = vunpack.c.h.b16 %v12447
    %v13092 = vunpack.c.l.b16 %v12448
    %v13093 = vunpack.c.h.b16 %v12448
    %v13094 = vunpack.c.l.b16 %v12449
    %v13095 = vunpack.c.h.b16 %v12449
    %v13096 = vunpack.c.l.b16 %v12450
    %v13097 = vunpack.c.h.b16 %v12450
    %v13098 = vunpack.c.l.b16 %v12451
    %v13099 = vunpack.c.h.b16 %v12451
    %v13100 = vunpack.c.l.b16 %v12452
    %v13101 = vunpack.c.h.b16 %v12452
    %v13102 = vunpack.c.l.b16 %v12453
    %v13103 = vunpack.c.h.b16 %v12453
    %v13104 = vunpack.c.l.b16 %v12454
    %v13105 = vunpack.c.h.b16 %v12454
    %v13106 = vunpack.c.l.b16 %v12455
    %v13107 = vunpack.c.h.b16 %v12455
    %v13108 = vunpack.c.l.b16 %v12456
    %v13109 = vunpack.c.h.b16 %v12456
    %v13110 = vunpack.c.l.b16 %v12457
    %v13111 = vunpack.c.h.b16 %v12457
    %v13112 = vunpack.c.l.b16 %v12458
    %v13113 = vunpack.c.h.b16 %v12458
    %v13114 = vunpack.c.l.b16 %v12459
    %v13115 = vunpack.c.h.b16 %v12459
    %v13116 = vunpack.c.l.b16 %v12460
    %v13117 = vunpack.c.h.b16 %v12460
    %v13118 = vunpack.c.l.b16 %v12461
    %v13119 = vunpack.c.h.b16 %v12461
    %v13120 = vunpack.c.l.b16 %v12462
    %v13121 = vunpack.c.h.b16 %v12462
    %v13122 = vunpack.c.l.b16 %v12463
    %v13123 = vunpack.c.h.b16 %v12463
    %v13124 = vunpack.c.l.b16 %v12464
    %v13125 = vunpack.c.h.b16 %v12464
    %v13126 = vunpack.c.l.b16 %v12465
    %v13127 = vunpack.c.h.b16 %v12465
    %v13128 = vunpack.c.l.b16 %v12466
    %v13129 = vunpack.c.h.b16 %v12466
    %v13130 = vunpack.c.l.b16 %v12467
    %v13131 = vunpack.c.h.b16 %v12467
    %v13132 = vunpack.c.l.b16 %v12468
    %v13133 = vunpack.c.h.b16 %v12468
    %v13134 = vunpack.c.l.b16 %v12469
    %v13135 = vunpack.c.h.b16 %v12469
    %v13136 = vunpack.c.l.b16 %v12470
    %v13137 = vunpack.c.h.b16 %v12470
    %v13138 = vunpack.c.l.b16 %v12471
    %v13139 = vunpack.c.h.b16 %v12471
    %v13140 = vunpack.c.l.b16 %v12472
    %v13141 = vunpack.c.h.b16 %v12472
    %v13142 = vunpack.c.l.b16 %v12473
    %v13143 = vunpack.c.h.b16 %v12473
    %v13144 = vunpack.c.l.b16 %v12474
    %v13145 = vunpack.c.h.b16 %v12474
    %v13146 = vunpack.c.l.b16 %v12475
    %v13147 = vunpack.c.h.b16 %v12475
    %v13148 = vunpack.c.l.b16 %v12476
    %v13149 = vunpack.c.h.b16 %v12476
    %v13150 = vunpack.c.l.b16 %v12477
    %v13151 = vunpack.c.h.b16 %v12477
    %v13152 = vunpack.c.l.b16 %v12478
    %v13153 = vunpack.c.h.b16 %v12478
    %v13154 = vunpack.c.l.b16 %v12479
    %v13155 = vunpack.c.h.b16 %v12479
    %v13156 = vunpack.c.l.b16 %v12480
    %v13157 = vunpack.c.h.b16 %v12480
    %v13158 = vunpack.c.l.b16 %v12481
    %v13159 = vunpack.c.h.b16 %v12481
    %v13160 = vunpack.c.l.b16 %v12482
    %v13161 = vunpack.c.h.b16 %v12482
    %v13162 = vunpack.c.l.b16 %v12483
    %v13163 = vunpack.c.h.b16 %v12483
    %v13164 = vunpack.c.l.b16 %v12484
    %v13165 = vunpack.c.h.b16 %v12484
    %v13166 = vunpack.c.l.b16 %v12485
    %v13167 = vunpack.c.h.b16 %v12485
    %v13168 = vunpack.c.l.b16 %v12486
    %v13169 = vunpack.c.h.b16 %v12486
    %v13170 = vunpack.c.l.b16 %v12487
    %v13171 = vunpack.c.h.b16 %v12487
    %v13172 = vunpack.c.l.b16 %v12488
    %v13173 = vunpack.c.h.b16 %v12488
    %v13174 = vunpack.c.l.b16 %v12489
    %v13175 = vunpack.c.h.b16 %v12489
    %v13176 = vunpack.c.l.b16 %v12490
    %v13177 = vunpack.c.h.b16 %v12490
    %v13178 = vunpack.c.l.b16 %v12491
    %v13179 = vunpack.c.h.b16 %v12491
    %v13180 = vunpack.c.l.b16 %v12492
    %v13181 = vunpack.c.h.b16 %v12492
    %v13182 = vunpack.c.l.b16 %v12493
    %v13183 = vunpack.c.h.b16 %v12493
    %v13184 = vunpack.c.l.b16 %v12494
    %v13185 = vunpack.c.h.b16 %v12494
    %v13186 = vunpack.c.l.b16 %v12495
    %v13187 = vunpack.c.h.b16 %v12495
    %v13188 = vunpack.c.l.b16 %v12496
    %v13189 = vunpack.c.h.b16 %v12496
    %v13190 = vunpack.c.l.b16 %v12497
    %v13191 = vunpack.c.h.b16 %v12497
    %v13192 = vunpack.c.l.b16 %v12498
    %v13193 = vunpack.c.h.b16 %v12498
    %v13194 = vunpack.c.l.b16 %v12499
    %v13195 = vunpack.c.h.b16 %v12499
    %v13196 = vunpack.c.l.b16 %v12500
    %v13197 = vunpack.c.h.b16 %v12500
    %v13198 = vunpack.c.l.b16 %v12501
    %v13199 = vunpack.c.h.b16 %v12501
    %v13200 = vunpack.c.l.b16 %v12502
    %v13201 = vunpack.c.h.b16 %v12502
    %v13202 = vunpack.c.l.b16 %v12503
    %v13203 = vunpack.c.h.b16 %v12503
    %v13204 = vunpack.c.l.b16 %v12504
    %v13205 = vunpack.c.h.b16 %v12504
    %v13206 = vunpack.c.l.b16 %v12505
    %v13207 = vunpack.c.h.b16 %v12505
    %v13208 = vunpack.c.l.b16 %v12506
    %v13209 = vunpack.c.h.b16 %v12506
    %v13210 = vunpack.c.l.b16 %v12507
    %v13211 = vunpack.c.h.b16 %v12507
    %v13212 = vunpack.c.l.b16 %v12508
    %v13213 = vunpack.c.h.b16 %v12508
    %v13214 = vunpack.c.l.b16 %v12509
    %v13215 = vunpack.c.h.b16 %v12509
    %v13216 = vunpack.c.l.b16 %v12510
    %v13217 = vunpack.c.h.b16 %v12510
    %v13218 = vunpack.c.l.b16 %v12511
    %v13219 = vunpack.c.h.b16 %v12511
    %v13220 = vunpack.c.l.b16 %v12512
    %v13221 = vunpack.c.h.b16 %v12512
    %v13222 = vunpack.c.l.b16 %v12513
    %v13223 = vunpack.c.h.b16 %v12513
    %v13224 = vunpack.c.l.b16 %v12514
    %v13225 = vunpack.c.h.b16 %v12514
    %v13226 = vunpack.c.l.b16 %v12515
    %v13227 = vunpack.c.h.b16 %v12515
    %v13228 = vunpack.c.l.b16 %v12516
    %v13229 = vunpack.c.h.b16 %v12516
    %v13230 = vunpack.c.l.b16 %v12517
    %v13231 = vunpack.c.h.b16 %v12517
    %v13232 = vunpack.c.l.b16 %v12518
    %v13233 = vunpack.c.h.b16 %v12518
    %v13234 = vunpack.c.l.b16 %v12519
    %v13235 = vunpack.c.h.b16 %v12519
    %v13236 = vunpack.c.l.b16 %v12520
    %v13237 = vunpack.c.h.b16 %v12520
    %v13238 = vunpack.c.l.b16 %v12521
    %v13239 = vunpack.c.h.b16 %v12521
    %v13240 = vunpack.c.l.b16 %v12522
    %v13241 = vunpack.c.h.b16 %v12522
    %v13242 = vunpack.c.l.b16 %v12523
    %v13243 = vunpack.c.h.b16 %v12523
    %v13244 = vunpack.c.l.b16 %v12524
    %v13245 = vunpack.c.h.b16 %v12524
    %v13246 = vunpack.c.l.b16 %v12525
    %v13247 = vunpack.c.h.b16 %v12525
    %v13248 = vunpack.c.l.b16 %v12526
    %v13249 = vunpack.c.h.b16 %v12526
    %v13250 = vunpack.c.l.b16 %v12527
    %v13251 = vunpack.c.h.b16 %v12527
    %v13252 = vunpack.c.l.b16 %v12528
    %v13253 = vunpack.c.h.b16 %v12528
    %v13254 = vunpack.c.l.b16 %v12529
    %v13255 = vunpack.c.h.b16 %v12529
    %v13256 = vunpack.c.l.b16 %v12530
    %v13257 = vunpack.c.h.b16 %v12530
    %v13258 = vunpack.c.l.b16 %v12531
    %v13259 = vunpack.c.h.b16 %v12531
    %v13260 = vunpack.c.l.b16 %v12532
    %v13261 = vunpack.c.h.b16 %v12532
    %v13262 = vunpack.c.l.b16 %v12533
    %v13263 = vunpack.c.h.b16 %v12533
    %v13264 = vunpack.c.l.b16 %v12534
    %v13265 = vunpack.c.h.b16 %v12534
    %v13266 = vunpack.c.l.b16 %v12535
    %v13267 = vunpack.c.h.b16 %v12535
    %v13268 = vunpack.c.l.b16 %v12536
    %v13269 = vunpack.c.h.b16 %v12536
    %v13270 = vunpack.c.l.b16 %v12537
    %v13271 = vunpack.c.h.b16 %v12537
    %v13272 = vunpack.c.l.b16 %v12538
    %v13273 = vunpack.c.h.b16 %v12538
    %v13274 = vunpack.c.l.b16 %v12539
    %v13275 = vunpack.c.h.b16 %v12539
    %v13276 = vunpack.c.l.b16 %v12540
    %v13277 = vunpack.c.h.b16 %v12540
    %v13278 = vunpack.c.l.b16 %v12541
    %v13279 = vunpack.c.h.b16 %v12541
    %v13280 = vunpack.c.l.b16 %v12542
    %v13281 = vunpack.c.h.b16 %v12542
    %v13282 = vunpack.c.l.b16 %v12543
    %v13283 = vunpack.c.h.b16 %v12543
    %v13284 = vunpack.c.l.b16 %v12544
    %v13285 = vunpack.c.h.b16 %v12544
    %v13286 = vunpack.c.l.b16 %v12545
    %v13287 = vunpack.c.h.b16 %v12545
    %v13288 = vunpack.c.l.b16 %v12546
    %v13289 = vunpack.c.h.b16 %v12546
    %v13290 = vunpack.c.l.b16 %v12547
    %v13291 = vunpack.c.h.b16 %v12547
    %v13292 = vunpack.c.l.b16 %v12548
    %v13293 = vunpack.c.h.b16 %v12548
    %v13294 = vunpack.c.l.b16 %v12549
    %v13295 = vunpack.c.h.b16 %v12549
    %v13296 = vunpack.c.l.b16 %v12550
    %v13297 = vunpack.c.h.b16 %v12550
    %v13298 = vunpack.c.l.b16 %v12551
    %v13299 = vunpack.c.h.b16 %v12551
    %v13300 = vunpack.c.l.b16 %v12552
    %v13301 = vunpack.c.h.b16 %v12552
    %v13302 = vunpack.c.l.b16 %v12553
    %v13303 = vunpack.c.h.b16 %v12553
    %v13304 = vunpack.c.l.b16 %v12554
    %v13305 = vunpack.c.h.b16 %v12554
    %v13306 = vunpack.c.l.b16 %v12555
    %v13307 = vunpack.c.h.b16 %v12555
    %v13308 = vunpack.c.l.b16 %v12556
    %v13309 = vunpack.c.h.b16 %v12556
    %v13310 = vunpack.c.l.b16 %v12557
    %v13311 = vunpack.c.h.b16 %v12557
    %v13312 = vunpack.c.l.b16 %v12558
    %v13313 = vunpack.c.h.b16 %v12558
    %v13314 = vunpack.c.l.b16 %v12559
    %v13315 = vunpack.c.h.b16 %v12559
    %v13316 = vunpack.c.l.b16 %v12560
    %v13317 = vunpack.c.h.b16 %v12560
    %v13318 = vunpack.c.l.b16 %v12561
    %v13319 = vunpack.c.h.b16 %v12561
    %v13320 = vunpack.c.l.b16 %v12562
    %v13321 = vunpack.c.h.b16 %v12562
    %v13322 = vunpack.c.l.b16 %v12563
    %v13323 = vunpack.c.h.b16 %v12563
    %v13324 = vunpack.c.l.b16 %v12564
    %v13325 = vunpack.c.h.b16 %v12564
    %v13326 = vunpack.c.l.b16 %v12565
    %v13327 = vunpack.c.h.b16 %v12565
    %v13328 = vunpack.c.l.b16 %v12566
    %v13329 = vunpack.c.h.b16 %v12566
    %v13330 = vunpack.c.l.b16 %v12567
    %v13331 = vunpack.c.h.b16 %v12567
    %v13332 = vunpack.c.l.b16 %v12568
    %v13333 = vunpack.c.h.b16 %v12568
    %v13334 = vunpack.c.l.b16 %v12569
    %v13335 = vunpack.c.h.b16 %v12569
    %v13336 = vunpack.c.l.b16 %v12570
    %v13337 = vunpack.c.h.b16 %v12570
    %v13338 = vunpack.c.l.b16 %v12571
    %v13339 = vunpack.c.h.b16 %v12571
    %v13340 = vunpack.c.l.b16 %v12572
    %v13341 = vunpack.c.h.b16 %v12572
    %v13342 = vunpack.c.l.b16 %v12573
    %v13343 = vunpack.c.h.b16 %v12573
    %v13344 = vunpack.c.l.b16 %v12574
    %v13345 = vunpack.c.h.b16 %v12574
    %v13346 = vunpack.c.l.b16 %v12575
    %v13347 = vunpack.c.h.b16 %v12575
    %v13348 = vunpack.c.l.b16 %v12576
    %v13349 = vunpack.c.h.b16 %v12576
    %v13350 = vunpack.c.l.b16 %v12577
    %v13351 = vunpack.c.h.b16 %v12577
    %v13352 = vunpack.c.l.b16 %v12578
    %v13353 = vunpack.c.h.b16 %v12578
    %v13354 = vunpack.c.l.b16 %v12579
    %v13355 = vunpack.c.h.b16 %v12579
    %v13356 = vunpack.c.l.b16 %v12580
    %v13357 = vunpack.c.h.b16 %v12580
    %v13358 = vunpack.c.l.b16 %v12581
    %v13359 = vunpack.c.h.b16 %v12581
    %v13360 = vunpack.c.l.b16 %v12582
    %v13361 = vunpack.c.h.b16 %v12582
    %v13362 = vunpack.c.l.b16 %v12583
    %v13363 = vunpack.c.h.b16 %v12583
    %v13364 = vunpack.c.l.b16 %v12584
    %v13365 = vunpack.c.h.b16 %v12584
    %v13366 = vunpack.c.l.b16 %v12585
    %v13367 = vunpack.c.h.b16 %v12585
    %v13368 = vunpack.c.l.b16 %v12586
    %v13369 = vunpack.c.h.b16 %v12586
    %v13370 = vunpack.c.l.b16 %v12587
    %v13371 = vunpack.c.h.b16 %v12587
    %v13372 = vunpack.c.l.b16 %v12588
    %v13373 = vunpack.c.h.b16 %v12588
    %v13374 = vunpack.c.l.b16 %v12589
    %v13375 = vunpack.c.h.b16 %v12589
    %v13376 = vunpack.c.l.b16 %v12590
    %v13377 = vunpack.c.h.b16 %v12590
    %v13378 = vunpack.c.l.b16 %v12591
    %v13379 = vunpack.c.h.b16 %v12591
    %v13380 = vunpack.c.l.b16 %v12592
    %v13381 = vunpack.c.h.b16 %v12592
    %v13382 = vunpack.c.l.b16 %v12593
    %v13383 = vunpack.c.h.b16 %v12593
    %v13384 = vunpack.c.l.b16 %v12594
    %v13385 = vunpack.c.h.b16 %v12594
    %v13386 = vunpack.c.l.b16 %v12595
    %v13387 = vunpack.c.h.b16 %v12595
    %v13388 = vunpack.c.l.b16 %v12596
    %v13389 = vunpack.c.h.b16 %v12596
    %v13390 = vunpack.c.l.b16 %v12597
    %v13391 = vunpack.c.h.b16 %v12597
    %v13392 = vunpack.c.l.b16 %v12598
    %v13393 = vunpack.c.h.b16 %v12598
    %v13394 = vunpack.c.l.b16 %v12599
    %v13395 = vunpack.c.h.b16 %v12599
    %v13396 = vunpack.c.l.b16 %v12600
    %v13397 = vunpack.c.h.b16 %v12600
    %v13398 = vunpack.c.l.b16 %v12601
    %v13399 = vunpack.c.h.b16 %v12601
    %v13400 = vunpack.c.l.b16 %v12602
    %v13401 = vunpack.c.h.b16 %v12602
    %v13402 = vunpack.c.l.b16 %v12603
    %v13403 = vunpack.c.h.b16 %v12603
    %v13404 = vunpack.c.l.b16 %v12604
    %v13405 = vunpack.c.h.b16 %v12604
    %v13406 = vunpack.c.l.b16 %v12605
    %v13407 = vunpack.c.h.b16 %v12605
    %v13408 = vunpack.c.l.b16 %v12606
    %v13409 = vunpack.c.h.b16 %v12606
    %v13410 = vunpack.c.l.b16 %v12607
    %v13411 = vunpack.c.h.b16 %v12607
    %v13412 = vunpack.c.l.b16 %v12608
    %v13413 = vunpack.c.h.b16 %v12608
    %v13414 = vunpack.c.l.b16 %v12609
    %v13415 = vunpack.c.h.b16 %v12609
    %v13416 = vunpack.c.l.b16 %v12610
    %v13417 = vunpack.c.h.b16 %v12610
    %v13418 = vunpack.c.l.b16 %v12611
    %v13419 = vunpack.c.h.b16 %v12611
    %v13420 = vunpack.c.l.b16 %v12612
    %v13421 = vunpack.c.h.b16 %v12612
    %v13422 = vunpack.c.l.b16 %v12613
    %v13423 = vunpack.c.h.b16 %v12613
    %v13424 = vunpack.c.l.b16 %v12614
    %v13425 = vunpack.c.h.b16 %v12614
    %v13426 = vunpack.c.l.b16 %v12615
    %v13427 = vunpack.c.h.b16 %v12615
    %v13428 = vunpack.c.l.b16 %v12616
    %v13429 = vunpack.c.h.b16 %v12616
    %v13430 = vunpack.c.l.b16 %v12617
    %v13431 = vunpack.c.h.b16 %v12617
    %v13432 = vunpack.c.l.b16 %v12618
    %v13433 = vunpack.c.h.b16 %v12618
    %v13434 = vunpack.c.l.b16 %v12619
    %v13435 = vunpack.c.h.b16 %v12619
    %v13436 = vunpack.c.l.b16 %v12620
    %v13437 = vunpack.c.h.b16 %v12620
    %v13438 = vunpack.c.l.b16 %v12621
    %v13439 = vunpack.c.h.b16 %v12621
    %v13440 = vunpack.c.l.b16 %v12622
    %v13441 = vunpack.c.h.b16 %v12622
    %v13442 = vunpack.c.l.b16 %v12623
    %v13443 = vunpack.c.h.b16 %v12623
    %v13444 = vunpack.c.l.b16 %v12624
    %v13445 = vunpack.c.h.b16 %v12624
    %v13446 = vunpack.c.l.b16 %v12625
    %v13447 = vunpack.c.h.b16 %v12625
    %v13448 = vunpack.c.l.b16 %v12626
    %v13449 = vunpack.c.h.b16 %v12626
    %v13450 = vunpack.c.l.b16 %v12627
    %v13451 = vunpack.c.h.b16 %v12627
    %v13452 = vunpack.c.l.b16 %v12628
    %v13453 = vunpack.c.h.b16 %v12628
    %v13454 = vunpack.c.l.b16 %v12629
    %v13455 = vunpack.c.h.b16 %v12629
    %v13456 = vunpack.c.l.b16 %v12630
    %v13457 = vunpack.c.h.b16 %v12630
    %v13458 = vunpack.c.l.b16 %v12631
    %v13459 = vunpack.c.h.b16 %v12631
    %v13460 = vunpack.c.l.b16 %v12632
    %v13461 = vunpack.c.h.b16 %v12632
    %v13462 = vunpack.c.l.b16 %v12633
    %v13463 = vunpack.c.h.b16 %v12633
    %v13464 = vunpack.c.l.b16 %v12634
    %v13465 = vunpack.c.h.b16 %v12634
    %v13466 = vunpack.c.l.b16 %v12635
    %v13467 = vunpack.c.h.b16 %v12635
    %v13468 = vunpack.c.l.b16 %v12636
    %v13469 = vunpack.c.h.b16 %v12636
    %v13470 = vunpack.c.l.b16 %v12637
    %v13471 = vunpack.c.h.b16 %v12637
    %v13472 = vunpack.c.l.b16 %v12638
    %v13473 = vunpack.c.h.b16 %v12638
    %v13474 = vunpack.c.l.b16 %v12639
    %v13475 = vunpack.c.h.b16 %v12639
    %v13476 = vunpack.c.l.b16 %v12640
    %v13477 = vunpack.c.h.b16 %v12640
    %v13478 = vunpack.c.l.b16 %v12641
    %v13479 = vunpack.c.h.b16 %v12641
    %v13480 = vunpack.c.l.b16 %v12642
    %v13481 = vunpack.c.h.b16 %v12642
    %v13482 = vunpack.c.l.b16 %v12643
    %v13483 = vunpack.c.h.b16 %v12643
    %v13484 = vunpack.c.l.b16 %v12644
    %v13485 = vunpack.c.h.b16 %v12644
    %v13486 = vunpack.c.l.b16 %v12645
    %v13487 = vunpack.c.h.b16 %v12645
    %v13488 = vunpack.c.l.b16 %v12646
    %v13489 = vunpack.c.h.b16 %v12646
    %v13490 = vunpack.c.l.b16 %v12647
    %v13491 = vunpack.c.h.b16 %v12647
    %v13492 = vunpack.c.l.b16 %v12648
    %v13493 = vunpack.c.h.b16 %v12648
    %v13494 = vunpack.c.l.b16 %v12649
    %v13495 = vunpack.c.h.b16 %v12649
    %v13496 = vunpack.c.l.b16 %v12650
    %v13497 = vunpack.c.h.b16 %v12650
    %v13498 = vunpack.c.l.b16 %v12651
    %v13499 = vunpack.c.h.b16 %v12651
    %v13500 = vunpack.c.l.b16 %v12652
    %v13501 = vunpack.c.h.b16 %v12652
    %v13502 = vunpack.c.l.b16 %v12653
    %v13503 = vunpack.c.h.b16 %v12653
    %v13504 = vunpack.c.l.b16 %v12654
    %v13505 = vunpack.c.h.b16 %v12654
    %v13506 = vunpack.c.l.b16 %v12655
    %v13507 = vunpack.c.h.b16 %v12655
    %v13508 = vunpack.c.l.b16 %v12656
    %v13509 = vunpack.c.h.b16 %v12656
    %v13510 = vunpack.c.l.b16 %v12657
    %v13511 = vunpack.c.h.b16 %v12657
    %v13512 = vunpack.c.l.b16 %v12658
    %v13513 = vunpack.c.h.b16 %v12658
    %v13514 = vunpack.c.l.b16 %v12659
    %v13515 = vunpack.c.h.b16 %v12659
    %v13516 = vunpack.c.l.b16 %v12660
    %v13517 = vunpack.c.h.b16 %v12660
    %v13518 = vunpack.c.l.b16 %v12661
    %v13519 = vunpack.c.h.b16 %v12661
    %v13520 = vunpack.c.l.b16 %v12662
    %v13521 = vunpack.c.h.b16 %v12662
    %v13522 = vunpack.c.l.b16 %v12663
    %v13523 = vunpack.c.h.b16 %v12663
    %v13524 = vunpack.c.l.b16 %v12664
    %v13525 = vunpack.c.h.b16 %v12664
    %v13526 = vunpack.c.l.b16 %v12665
    %v13527 = vunpack.c.h.b16 %v12665
    %v13528 = vunpack.c.l.b16 %v12666
    %v13529 = vunpack.c.h.b16 %v12666
    %v13530 = vunpack.c.l.b16 %v12667
    %v13531 = vunpack.c.h.b16 %v12667
    %v13532 = vunpack.c.l.b16 %v12668
    %v13533 = vunpack.c.h.b16 %v12668
    %v13534 = vunpack.c.l.b16 %v12669
    %v13535 = vunpack.c.h.b16 %v12669
    %v13536 = vunpack.c.l.b16 %v12670
    %v13537 = vunpack.c.h.b16 %v12670
    %v13538 = vunpack.c.l.b16 %v12671
    %v13539 = vunpack.c.h.b16 %v12671
    %v13540 = vunpack.c.l.b16 %v12672
    %v13541 = vunpack.c.h.b16 %v12672
    %v13542 = vunpack.c.l.b16 %v12673
    %v13543 = vunpack.c.h.b16 %v12673
    %v13544 = vunpack.c.l.b16 %v12674
    %v13545 = vunpack.c.h.b16 %v12674
    %v13546 = vunpack.c.l.b16 %v12675
    %v13547 = vunpack.c.h.b16 %v12675
    %v13548 = vunpack.c.l.b16 %v12676
    %v13549 = vunpack.c.h.b16 %v12676
    %v13550 = vunpack.c.l.b16 %v12677
    %v13551 = vunpack.c.h.b16 %v12677
    %v13552 = vunpack.c.l.b16 %v12678
    %v13553 = vunpack.c.h.b16 %v12678
    %v13554 = vunpack.c.l.b16 %v12679
    %v13555 = vunpack.c.h.b16 %v12679
    %v13556 = vunpack.c.l.b16 %v12680
    %v13557 = vunpack.c.h.b16 %v12680
    %v13558 = vunpack.c.l.b16 %v12681
    %v13559 = vunpack.c.h.b16 %v12681
    %v13560 = vunpack.c.l.b16 %v12682
    %v13561 = vunpack.c.h.b16 %v12682
    %v13562 = vunpack.c.l.b16 %v12683
    %v13563 = vunpack.c.h.b16 %v12683
    %v13564 = vunpack.c.l.b16 %v12684
    %v13565 = vunpack.c.h.b16 %v12684
    %v13566 = vunpack.c.l.b16 %v12685
    %v13567 = vunpack.c.h.b16 %v12685
    %v13568 = vunpack.c.l.b16 %v12686
    %v13569 = vunpack.c.h.b16 %v12686
    %v13570 = vunpack.c.l.b16 %v12687
    %v13571 = vunpack.c.h.b16 %v12687
    %v13572 = vunpack.c.l.b16 %v12688
    %v13573 = vunpack.c.h.b16 %v12688
    %v13574 = vunpack.c.l.b16 %v12689
    %v13575 = vunpack.c.h.b16 %v12689
    %v13576 = vunpack.c.l.b16 %v12690
    %v13577 = vunpack.c.h.b16 %v12690
    %v13578 = vunpack.c.l.b16 %v12691
    %v13579 = vunpack.c.h.b16 %v12691
    %v13580 = vunpack.c.l.b16 %v12692
    %v13581 = vunpack.c.h.b16 %v12692
    %v13582 = vunpack.c.l.b16 %v12693
    %v13583 = vunpack.c.h.b16 %v12693
    %v13584 = vunpack.c.l.b16 %v12694
    %v13585 = vunpack.c.h.b16 %v12694
    %v13586 = vunpack.c.l.b16 %v12695
    %v13587 = vunpack.c.h.b16 %v12695
    %v13588 = vunpack.c.l.b16 %v12696
    %v13589 = vunpack.c.h.b16 %v12696
    %v13590 = vpack.c.b16 %v13080, %v13078
    %v13591 = vpack.c.b16 %v13081, %v13079
    %v13592 = vpack.c.b16 %v13084, %v13082
    %v13593 = vpack.c.b16 %v13085, %v13083
    %v13594 = vpack.c.b16 %v13088, %v13086
    %v13595 = vpack.c.b16 %v13089, %v13087
    %v13596 = vpack.c.b16 %v13092, %v13090
    %v13597 = vpack.c.b16 %v13093, %v13091
    %v13598 = vpack.c.b16 %v13096, %v13094
    %v13599 = vpack.c.b16 %v13097, %v13095
    %v13600 = vpack.c.b16 %v13100, %v13098
    %v13601 = vpack.c.b16 %v13101, %v13099
    %v13602 = vpack.c.b16 %v13104, %v13102
    %v13603 = vpack.c.b16 %v13105, %v13103
    %v13604 = vpack.c.b16 %v13108, %v13106
    %v13605 = vpack.c.b16 %v13109, %v13107
    %v13606 = vpack.c.b16 %v13112, %v13110
    %v13607 = vpack.c.b16 %v13113, %v13111
    %v13608 = vpack.c.b16 %v13116, %v13114
    %v13609 = vpack.c.b16 %v13117, %v13115
    %v13610 = vpack.c.b16 %v13120, %v13118
    %v13611 = vpack.c.b16 %v13121, %v13119
    %v13612 = vpack.c.b16 %v13124, %v13122
    %v13613 = vpack.c.b16 %v13125, %v13123
    %v13614 = vpack.c.b16 %v13128, %v13126
    %v13615 = vpack.c.b16 %v13129, %v13127
    %v13616 = vpack.c.b16 %v13132, %v13130
    %v13617 = vpack.c.b16 %v13133, %v13131
    %v13618 = vpack.c.b16 %v13136, %v13134
    %v13619 = vpack.c.b16 %v13137, %v13135
    %v13620 = vpack.c.b16 %v13140, %v13138
    %v13621 = vpack.c.b16 %v13141, %v13139
    %v13622 = vpack.c.b16 %v13144, %v13142
    %v13623 = vpack.c.b16 %v13145, %v13143
    %v13624 = vpack.c.b16 %v13148, %v13146
    %v13625 = vpack.c.b16 %v13149, %v13147
    %v13626 = vpack.c.b16 %v13152, %v13150
    %v13627 = vpack.c.b16 %v13153, %v13151
    %v13628 = vpack.c.b16 %v13156, %v13154
    %v13629 = vpack.c.b16 %v13157, %v13155
    %v13630 = vpack.c.b16 %v13160, %v13158
    %v13631 = vpack.c.b16 %v13161, %v13159
    %v13632 = vpack.c.b16 %v13164, %v13162
    %v13633 = vpack.c.b16 %v13165, %v13163
    %v13634 = vpack.c.b16 %v13168, %v13166
    %v13635 = vpack.c.b16 %v13169, %v13167
    %v13636 = vpack.c.b16 %v13172, %v13170
    %v13637 = vpack.c.b16 %v13173, %v13171
    %v13638 = vpack.c.b16 %v13176, %v13174
    %v13639 = vpack.c.b16 %v13177, %v13175
    %v13640 = vpack.c.b16 %v13180, %v13178
    %v13641 = vpack.c.b16 %v13181, %v13179
    %v13642 = vpack.c.b16 %v13184, %v13182
    %v13643 = vpack.c.b16 %v13185, %v13183
    %v13644 = vpack.c.b16 %v13188, %v13186
    %v13645 = vpack.c.b16 %v13189, %v13187
    %v13646 = vpack.c.b16 %v13192, %v13190
    %v13647 = vpack.c.b16 %v13193, %v13191
    %v13648 = vpack.c.b16 %v13196, %v13194
    %v13649 = vpack.c.b16 %v13197, %v13195
    %v13650 = vpack.c.b16 %v13200, %v13198
    %v13651 = vpack.c.b16 %v13201, %v13199
    %v13652 = vpack.c.b16 %v13204, %v13202
    %v13653 = vpack.c.b16 %v13205, %v13203
    %v13654 = vpack.c.b16 %v13208, %v13206
    %v13655 = vpack.c.b16 %v13209, %v13207
    %v13656 = vpack.c.b16 %v13212, %v13210
    %v13657 = vpack.c.b16 %v13213, %v13211
    %v13658 = vpack.c.b16 %v13216, %v13214
    %v13659 = vpack.c.b16 %v13217, %v13215
    %v13660 = vpack.c.b16 %v13220, %v13218
    %v13661 = vpack.c.b16 %v13221, %v13219
    %v13662 = vpack.c.b16 %v13224, %v13222
    %v13663 = vpack.c.b16 %v13225, %v13223
    %v13664 = vpack.c.b16 %v13228, %v13226
    %v13665 = vpack.c.b16 %v13229, %v13227
    %v13666 = vpack.c.b16 %v13232, %v13230
    %v13667 = vpack.c.b16 %v13233, %v13231
    %v13668 = vpack.c.b16 %v13236, %v13234
    %v13669 = vpack.c.b16 %v13237, %v13235
    %v13670 = vpack.c.b16 %v13240, %v13238
    %v13671 = vpack.c.b16 %v13241, %v13239
    %v13672 = vpack.c.b16 %v13244, %v13242
    %v13673 = vpack.c.b16 %v13245, %v13243
    %v13674 = vpack.c.b16 %v13248, %v13246
    %v13675 = vpack.c.b16 %v13249, %v13247
    %v13676 = vpack.c.b16 %v13252, %v13250
    %v13677 = vpack.c.b16 %v13253, %v13251
    %v13678 = vpack.c.b16 %v13256, %v13254
    %v13679 = vpack.c.b16 %v13257, %v13255
    %v13680 = vpack.c.b16 %v13260, %v13258
    %v13681 = vpack.c.b16 %v13261, %v13259
    %v13682 = vpack.c.b16 %v13264, %v13262
    %v13683 = vpack.c.b16 %v13265, %v13263
    %v13684 = vpack.c.b16 %v13268, %v13266
    %v13685 = vpack.c.b16 %v13269, %v13267
    %v13686 = vpack.c.b16 %v13272, %v13270
    %v13687 = vpack.c.b16 %v13273, %v13271
    %v13688 = vpack.c.b16 %v13276, %v13274
    %v13689 = vpack.c.b16 %v13277, %v13275
    %v13690 = vpack.c.b16 %v13280, %v13278
    %v13691 = vpack.c.b16 %v13281, %v13279
    %v13692 = vpack.c.b16 %v13284, %v13282
    %v13693 = vpack.c.b16 %v13285, %v13283
    %v13694 = vpack.c.b16 %v13288, %v13286
    %v13695 = vpack.c.b16 %v13289, %v13287
    %v13696 = vpack.c.b16 %v13292, %v13290
    %v13697 = vpack.c.b16 %v13293, %v13291
    %v13698 = vpack.c.b16 %v13296, %v13294
    %v13699 = vpack.c.b16 %v13297, %v13295
    %v13700 = vpack.c.b16 %v13300, %v13298
    %v13701 = vpack.c.b16 %v13301, %v13299
    %v13702 = vpack.c.b16 %v13304, %v13302
    %v13703 = vpack.c.b16 %v13305, %v13303
    %v13704 = vpack.c.b16 %v13308, %v13306
    %v13705 = vpack.c.b16 %v13309, %v13307
    %v13706 = vpack.c.b16 %v13312, %v13310
    %v13707 = vpack.c.b16 %v13313, %v13311
    %v13708 = vpack.c.b16 %v13316, %v13314
    %v13709 = vpack.c.b16 %v13317, %v13315
    %v13710 = vpack.c.b16 %v13320, %v13318
    %v13711 = vpack.c.b16 %v13321, %v13319
    %v13712 = vpack.c.b16 %v13324, %v13322
    %v13713 = vpack.c.b16 %v13325, %v13323
    %v13714 = vpack.c.b16 %v13328, %v13326
    %v13715 = vpack.c.b16 %v13329, %v13327
    %v13716 = vpack.c.b16 %v13332, %v13330
    %v13717 = vpack.c.b16 %v13333, %v13331
    %v13718 = vpack.c.b16 %v13336, %v13334
    %v13719 = vpack.c.b16 %v13337, %v13335
    %v13720 = vpack.c.b16 %v13340, %v13338
    %v13721 = vpack.c.b16 %v13341, %v13339
    %v13722 = vpack.c.b16 %v13344, %v13342
    %v13723 = vpack.c.b16 %v13345, %v13343
    %v13724 = vpack.c.b16 %v13348, %v13346
    %v13725 = vpack.c.b16 %v13349, %v13347
    %v13726 = vpack.c.b16 %v13352, %v13350
    %v13727 = vpack.c.b16 %v13353, %v13351
    %v13728 = vpack.c.b16 %v13356, %v13354
    %v13729 = vpack.c.b16 %v13357, %v13355
    %v13730 = vpack.c.b16 %v13360, %v13358
    %v13731 = vpack.c.b16 %v13361, %v13359
    %v13732 = vpack.c.b16 %v13364, %v13362
    %v13733 = vpack.c.b16 %v13365, %v13363
    %v13734 = vpack.c.b16 %v13368, %v13366
    %v13735 = vpack.c.b16 %v13369, %v13367
    %v13736 = vpack.c.b16 %v13372, %v13370
    %v13737 = vpack.c.b16 %v13373, %v13371
    %v13738 = vpack.c.b16 %v13376, %v13374
    %v13739 = vpack.c.b16 %v13377, %v13375
    %v13740 = vpack.c.b16 %v13380, %v13378
    %v13741 = vpack.c.b16 %v13381, %v13379
    %v13742 = vpack.c.b16 %v13384, %v13382
    %v13743 = vpack.c.b16 %v13385, %v13383
    %v13744 = vpack.c.b16 %v13388, %v13386
    %v13745 = vpack.c.b16 %v13389, %v13387
    %v13746 = vpack.c.b16 %v13392, %v13390
    %v13747 = vpack.c.b16 %v13393, %v13391
    %v13748 = vpack.c.b16 %v13396, %v13394
    %v13749 = vpack.c.b16 %v13397, %v13395
    %v13750 = vpack.c.b16 %v13400, %v13398
    %v13751 = vpack.c.b16 %v13401, %v13399
    %v13752 = vpack.c.b16 %v13404, %v13402
    %v13753 = vpack.c.b16 %v13405, %v13403
    %v13754 = vpack.c.b16 %v13408, %v13406
    %v13755 = vpack.c.b16 %v13409, %v13407
    %v13756 = vpack.c.b16 %v13412, %v13410
    %v13757 = vpack.c.b16 %v13413, %v13411
    %v13758 = vpack.c.b16 %v13416, %v13414
    %v13759 = vpack.c.b16 %v13417, %v13415
    %v13760 = vpack.c.b16 %v13420, %v13418
    %v13761 = vpack.c.b16 %v13421, %v13419
    %v13762 = vpack.c.b16 %v13424, %v13422
    %v13763 = vpack.c.b16 %v13425, %v13423
    %v13764 = vpack.c.b16 %v13428, %v13426
    %v13765 = vpack.c.b16 %v13429, %v13427
    %v13766 = vpack.c.b16 %v13432, %v13430
    %v13767 = vpack.c.b16 %v13433, %v13431
    %v13768 = vpack.c.b16 %v13436, %v13434
    %v13769 = vpack.c.b16 %v13437, %v13435
    %v13770 = vpack.c.b16 %v13440, %v13438
    %v13771 = vpack.c.b16 %v13441, %v13439
    %v13772 = vpack.c.b16 %v13444, %v13442
    %v13773 = vpack.c.b16 %v13445, %v13443
    %v13774 = vpack.c.b16 %v13448, %v13446
    %v13775 = vpack.c.b16 %v13449, %v13447
    %v13776 = vpack.c.b16 %v13452, %v13450
    %v13777 = vpack.c.b16 %v13453, %v13451
    %v13778 = vpack.c.b16 %v13456, %v13454
    %v13779 = vpack.c.b16 %v13457, %v13455
    %v13780 = vpack.c.b16 %v13460, %v13458
    %v13781 = vpack.c.b16 %v13461, %v13459
    %v13782 = vpack.c.b16 %v13464, %v13462
    %v13783 = vpack.c.b16 %v13465, %v13463
    %v13784 = vpack.c.b16 %v13468, %v13466
    %v13785 = vpack.c.b16 %v13469, %v13467
    %v13786 = vpack.c.b16 %v13472, %v13470
    %v13787 = vpack.c.b16 %v13473, %v13471
    %v13788 = vpack.c.b16 %v13476, %v13474
    %v13789 = vpack.c.b16 %v13477, %v13475
    %v13790 = vpack.c.b16 %v13480, %v13478
    %v13791 = vpack.c.b16 %v13481, %v13479
    %v13792 = vpack.c.b16 %v13484, %v13482
    %v13793 = vpack.c.b16 %v13485, %v13483
    %v13794 = vpack.c.b16 %v13488, %v13486
    %v13795 = vpack.c.b16 %v13489, %v13487
    %v13796 = vpack.c.b16 %v13492, %v13490
    %v13797 = vpack.c.b16 %v13493, %v13491
    %v13798 = vpack.c.b16 %v13496, %v13494
    %v13799 = vpack.c.b16 %v13497, %v13495
    %v13800 = vpack.c.b16 %v13500, %v13498
    %v13801 = vpack.c.b16 %v13501, %v13499
    %v13802 = vpack.c.b16 %v13504, %v13502
    %v13803 = vpack.c.b16 %v13505, %v13503
    %v13804 = vpack.c.b16 %v13508, %v13506
    %v13805 = vpack.c.b16 %v13509, %v13507
    %v13806 = vpack.c.b16 %v13512, %v13510
    %v13807 = vpack.c.b16 %v13513, %v13511
    %v13808 = vpack.c.b16 %v13516, %v13514
    %v13809 = vpack.c.b16 %v13517, %v13515
    %v13810 = vpack.c.b16 %v13520, %v13518
    %v13811 = vpack.c.b16 %v13521, %v13519
    %v13812 = vpack.c.b16 %v13524, %v13522
    %v13813 = vpack.c.b16 %v13525, %v13523
    %v13814 = vpack.c.b16 %v13528, %v13526
    %v13815 = vpack.c.b16 %v13529, %v13527
    %v13816 = vpack.c.b16 %v13532, %v13530
    %v13817 = vpack.c.b16 %v13533, %v13531
    %v13818 = vpack.c.b16 %v13536, %v13534
    %v13819 = vpack.c.b16 %v13537, %v13535
    %v13820 = vpack.c.b16 %v13540, %v13538
    %v13821 = vpack.c.b16 %v13541, %v13539
    %v13822 = vpack.c.b16 %v13544, %v13542
    %v13823 = vpack.c.b16 %v13545, %v13543
    %v13824 = vpack.c.b16 %v13548, %v13546
    %v13825 = vpack.c.b16 %v13549, %v13547
    %v13826 = vpack.c.b16 %v13552, %v13550
    %v13827 = vpack.c.b16 %v13553, %v13551
    %v13828 = vpack.c.b16 %v13556, %v13554
    %v13829 = vpack.c.b16 %v13557, %v13555
    %v13830 = vpack.c.b16 %v13560, %v13558
    %v13831 = vpack.c.b16 %v13561, %v13559
    %v13832 = vpack.c.b16 %v13564, %v13562
    %v13833 = vpack.c.b16 %v13565, %v13563
    %v13834 = vpack.c.b16 %v13568, %v13566
    %v13835 = vpack.c.b16 %v13569, %v13567
    %v13836 = vpack.c.b16 %v13572, %v13570
    %v13837 = vpack.c.b16 %v13573, %v13571
    %v13838 = vpack.c.b16 %v13576, %v13574
    %v13839 = vpack.c.b16 %v13577, %v13575
    %v13840 = vpack.c.b16 %v13580, %v13578
    %v13841 = vpack.c.b16 %v13581, %v13579
    %v13842 = vpack.c.b16 %v13584, %v13582
    %v13843 = vpack.c.b16 %v13585, %v13583
    %v13844 = vpack.c.b16 %v13588, %v13586
    %v13845 = vpack.c.b16 %v13589, %v13587
    %14102 = vmatprep.subr.bf16.mxu0 %v13591
    %14103 = vmatpush1.bf16.msra.mxu0 %v13590
    %14104 = vmatprep.subr.bf16.mxu0 %v13593
    %14105 = vmatpush1.bf16.msra.mxu0 %v13592
    %14106 = vmatprep.subr.bf16.mxu0 %v13595
    %14107 = vmatpush1.bf16.msra.mxu0 %v13594
    %14108 = vmatprep.subr.bf16.mxu0 %v13597
    %14109 = vmatpush1.bf16.msra.mxu0 %v13596
    %14110 = vmatprep.subr.bf16.mxu0 %v13599
    %14111 = vmatpush1.bf16.msra.mxu0 %v13598
    %14112 = vmatprep.subr.bf16.mxu0 %v13601
    %14113 = vmatpush1.bf16.msra.mxu0 %v13600
    %14114 = vmatprep.subr.bf16.mxu0 %v13603
    %14115 = vmatpush1.bf16.msra.mxu0 %v13602
    %14116 = vmatprep.subr.bf16.mxu0 %v13605
    %14117 = vmatpush1.bf16.msra.mxu0 %v13604
    %14118 = vmatprep.subr.bf16.mxu0 %v13607
    %14119 = vmatpush1.bf16.msra.mxu0 %v13606
    %14120 = vmatprep.subr.bf16.mxu0 %v13609
    %14121 = vmatpush1.bf16.msra.mxu0 %v13608
    %14122 = vmatprep.subr.bf16.mxu0 %v13611
    %14123 = vmatpush1.bf16.msra.mxu0 %v13610
    %14124 = vmatprep.subr.bf16.mxu0 %v13613
    %14125 = vmatpush1.bf16.msra.mxu0 %v13612
    %14126 = vmatprep.subr.bf16.mxu0 %v13615
    %14127 = vmatpush1.bf16.msra.mxu0 %v13614
    %14128 = vmatprep.subr.bf16.mxu0 %v13617
    %14129 = vmatpush1.bf16.msra.mxu0 %v13616
    %14130 = vmatprep.subr.bf16.mxu0 %v13619
    %14131 = vmatpush1.bf16.msra.mxu0 %v13618
    %14132 = vmatprep.subr.bf16.mxu0 %v13621
    %14133 = vmatpush1.bf16.msra.mxu0 %v13620
    %14134 = vmatprep.mubr.bf16.mxu0 %v12791
    %14135 = vmatmul.mubr.bf16.gmra.mrb[0].mxu0 %v12790
    %v14136 = vpop.f32.mrb[0].mxu0
    %v14137 = vadd.f32 %v12703, %v14136
    %v14138 = vpop.f32.mrb[0].mxu0
    %v14139 = vadd.f32 %v12707, %v14138
    %v14140 = vpop.f32.mrb[0].mxu0
    %v14141 = vpop.f32.mrb[0].mxu0
    %14142 = vdwg.mxu0
    %14143 = vmatprep.subr.bf16.mxu0 %v13623
    %14144 = vmatpush1.bf16.msra.mxu0 %v13622
    %14145 = vmatprep.subr.bf16.mxu0 %v13625
    %14146 = vmatpush1.bf16.msra.mxu0 %v13624
    %14147 = vmatprep.subr.bf16.mxu0 %v13627
    %14148 = vmatpush1.bf16.msra.mxu0 %v13626
    %14149 = vmatprep.subr.bf16.mxu0 %v13629
    %14150 = vmatpush1.bf16.msra.mxu0 %v13628
    %14151 = vmatprep.subr.bf16.mxu0 %v13631
    %14152 = vmatpush1.bf16.msra.mxu0 %v13630
    %14153 = vmatprep.subr.bf16.mxu0 %v13633
    %14154 = vmatpush1.bf16.msra.mxu0 %v13632
    %14155 = vmatprep.subr.bf16.mxu0 %v13635
    %14156 = vmatpush1.bf16.msra.mxu0 %v13634
    %14157 = vmatprep.subr.bf16.mxu0 %v13637
    %14158 = vmatpush1.bf16.msra.mxu0 %v13636
    %14159 = vmatprep.subr.bf16.mxu0 %v13639
    %14160 = vmatpush1.bf16.msra.mxu0 %v13638
    %14161 = vmatprep.subr.bf16.mxu0 %v13641
    %14162 = vmatpush1.bf16.msra.mxu0 %v13640
    %14163 = vmatprep.subr.bf16.mxu0 %v13643
    %14164 = vmatpush1.bf16.msra.mxu0 %v13642
    %14165 = vmatprep.subr.bf16.mxu0 %v13645
    %14166 = vmatpush1.bf16.msra.mxu0 %v13644
    %14167 = vmatprep.subr.bf16.mxu0 %v13647
    %14168 = vmatpush1.bf16.msra.mxu0 %v13646
    %14169 = vmatprep.subr.bf16.mxu0 %v13649
    %14170 = vmatpush1.bf16.msra.mxu0 %v13648
    %14171 = vmatprep.subr.bf16.mxu0 %v13651
    %14172 = vmatpush1.bf16.msra.mxu0 %v13650
    %14173 = vmatprep.subr.bf16.mxu0 %v13653
    %14174 = vmatpush1.bf16.msra.mxu0 %v13652
    %14175 = vmatprep.mubr.bf16.mxu0 %v12793
    %14176 = vmatmul.mubr.bf16.gmra.mrb[0].mxu0 %v12792
    %v14177 = vpop.f32.mrb[0].mxu0
    %v14178 = vadd.f32 %v14137, %v14177
    %v14179 = vpop.f32.mrb[0].mxu0
    %v14180 = vadd.f32 %v14139, %v14179
    %v14181 = vpop.f32.mrb[0].mxu0
    %v14182 = vpop.f32.mrb[0].mxu0
    %14183 = vdwg.mxu0
    %14184 = vmatprep.subr.bf16.mxu0 %v13655
    %14185 = vmatpush1.bf16.msra.mxu0 %v13654
    %14186 = vmatprep.subr.bf16.mxu0 %v13657
    %14187 = vmatpush1.bf16.msra.mxu0 %v13656
    %14188 = vmatprep.subr.bf16.mxu0 %v13659
    %14189 = vmatpush1.bf16.msra.mxu0 %v13658
    %14190 = vmatprep.subr.bf16.mxu0 %v13661
    %14191 = vmatpush1.bf16.msra.mxu0 %v13660
    %14192 = vmatprep.subr.bf16.mxu0 %v13663
    %14193 = vmatpush1.bf16.msra.mxu0 %v13662
    %14194 = vmatprep.subr.bf16.mxu0 %v13665
    %14195 = vmatpush1.bf16.msra.mxu0 %v13664
    %14196 = vmatprep.subr.bf16.mxu0 %v13667
    %14197 = vmatpush1.bf16.msra.mxu0 %v13666
    %14198 = vmatprep.subr.bf16.mxu0 %v13669
    %14199 = vmatpush1.bf16.msra.mxu0 %v13668
    %14200 = vmatprep.subr.bf16.mxu0 %v13671
    %14201 = vmatpush1.bf16.msra.mxu0 %v13670
    %14202 = vmatprep.subr.bf16.mxu0 %v13673
    %14203 = vmatpush1.bf16.msra.mxu0 %v13672
    %14204 = vmatprep.subr.bf16.mxu0 %v13675
    %14205 = vmatpush1.bf16.msra.mxu0 %v13674
    %14206 = vmatprep.subr.bf16.mxu0 %v13677
    %14207 = vmatpush1.bf16.msra.mxu0 %v13676
    %14208 = vmatprep.subr.bf16.mxu0 %v13679
    %14209 = vmatpush1.bf16.msra.mxu0 %v13678
    %14210 = vmatprep.subr.bf16.mxu0 %v13681
    %14211 = vmatpush1.bf16.msra.mxu0 %v13680
    %14212 = vmatprep.subr.bf16.mxu0 %v13683
    %14213 = vmatpush1.bf16.msra.mxu0 %v13682
    %14214 = vmatprep.subr.bf16.mxu0 %v13685
    %14215 = vmatpush1.bf16.msra.mxu0 %v13684
    %14216 = vmatprep.mubr.bf16.mxu0 %v12795
    %14217 = vmatmul.mubr.bf16.gmra.mrb[0].mxu0 %v12794
    %v14218 = vpop.f32.mrb[0].mxu0
    %v14219 = vadd.f32 %v14178, %v14218
    %v14220 = vpop.f32.mrb[0].mxu0
    %v14221 = vadd.f32 %v14180, %v14220
    %v14222 = vpop.f32.mrb[0].mxu0
    %v14223 = vpop.f32.mrb[0].mxu0
    %14224 = vdwg.mxu0
    %14225 = vmatprep.subr.bf16.mxu0 %v13687
    %14226 = vmatpush1.bf16.msra.mxu0 %v13686
    %14227 = vmatprep.subr.bf16.mxu0 %v13689
    %14228 = vmatpush1.bf16.msra.mxu0 %v13688
    %14229 = vmatprep.subr.bf16.mxu0 %v13691
    %14230 = vmatpush1.bf16.msra.mxu0 %v13690
    %14231 = vmatprep.subr.bf16.mxu0 %v13693
    %14232 = vmatpush1.bf16.msra.mxu0 %v13692
    %14233 = vmatprep.subr.bf16.mxu0 %v13695
    %14234 = vmatpush1.bf16.msra.mxu0 %v13694
    %14235 = vmatprep.subr.bf16.mxu0 %v13697
    %14236 = vmatpush1.bf16.msra.mxu0 %v13696
    %14237 = vmatprep.subr.bf16.mxu0 %v13699
    %14238 = vmatpush1.bf16.msra.mxu0 %v13698
    %14239 = vmatprep.subr.bf16.mxu0 %v13701
    %14240 = vmatpush1.bf16.msra.mxu0 %v13700
    %14241 = vmatprep.subr.bf16.mxu0 %v13703
    %14242 = vmatpush1.bf16.msra.mxu0 %v13702
    %14243 = vmatprep.subr.bf16.mxu0 %v13705
    %14244 = vmatpush1.bf16.msra.mxu0 %v13704
    %14245 = vmatprep.subr.bf16.mxu0 %v13707
    %14246 = vmatpush1.bf16.msra.mxu0 %v13706
    %14247 = vmatprep.subr.bf16.mxu0 %v13709
    %14248 = vmatpush1.bf16.msra.mxu0 %v13708
    %14249 = vmatprep.subr.bf16.mxu0 %v13711
    %14250 = vmatpush1.bf16.msra.mxu0 %v13710
    %14251 = vmatprep.subr.bf16.mxu0 %v13713
    %14252 = vmatpush1.bf16.msra.mxu0 %v13712
    %14253 = vmatprep.subr.bf16.mxu0 %v13715
    %14254 = vmatpush1.bf16.msra.mxu0 %v13714
    %14255 = vmatprep.subr.bf16.mxu0 %v13717
    %14256 = vmatpush1.bf16.msra.mxu0 %v13716
    %14257 = vmatprep.mubr.bf16.mxu0 %v12797
    %14258 = vmatmul.mubr.bf16.gmra.mrb[0].mxu0 %v12796
    %v14259 = vpop.f32.mrb[0].mxu0
    %v14260 = vadd.f32 %v14219, %v14259
    %v14261 = vpop.f32.mrb[0].mxu0
    %v14262 = vadd.f32 %v14221, %v14261
    %v14263 = vpop.f32.mrb[0].mxu0
    %v14264 = vpop.f32.mrb[0].mxu0
    %14265 = vdwg.mxu0
    %14266 = vmatprep.subr.bf16.mxu0 %v13719
    %14267 = vmatpush1.bf16.msra.mxu0 %v13718
    %14268 = vmatprep.subr.bf16.mxu0 %v13721
    %14269 = vmatpush1.bf16.msra.mxu0 %v13720
    %14270 = vmatprep.subr.bf16.mxu0 %v13723
    %14271 = vmatpush1.bf16.msra.mxu0 %v13722
    %14272 = vmatprep.subr.bf16.mxu0 %v13725
    %14273 = vmatpush1.bf16.msra.mxu0 %v13724
    %14274 = vmatprep.subr.bf16.mxu0 %v13727
    %14275 = vmatpush1.bf16.msra.mxu0 %v13726
    %14276 = vmatprep.subr.bf16.mxu0 %v13729
    %14277 = vmatpush1.bf16.msra.mxu0 %v13728
    %14278 = vmatprep.subr.bf16.mxu0 %v13731
    %14279 = vmatpush1.bf16.msra.mxu0 %v13730
    %14280 = vmatprep.subr.bf16.mxu0 %v13733
    %14281 = vmatpush1.bf16.msra.mxu0 %v13732
    %14282 = vmatprep.subr.bf16.mxu0 %v13735
    %14283 = vmatpush1.bf16.msra.mxu0 %v13734
    %14284 = vmatprep.subr.bf16.mxu0 %v13737
    %14285 = vmatpush1.bf16.msra.mxu0 %v13736
    %14286 = vmatprep.subr.bf16.mxu0 %v13739
    %14287 = vmatpush1.bf16.msra.mxu0 %v13738
    %14288 = vmatprep.subr.bf16.mxu0 %v13741
    %14289 = vmatpush1.bf16.msra.mxu0 %v13740
    %14290 = vmatprep.subr.bf16.mxu0 %v13743
    %14291 = vmatpush1.bf16.msra.mxu0 %v13742
    %14292 = vmatprep.subr.bf16.mxu0 %v13745
    %14293 = vmatpush1.bf16.msra.mxu0 %v13744
    %14294 = vmatprep.subr.bf16.mxu0 %v13747
    %14295 = vmatpush1.bf16.msra.mxu0 %v13746
    %14296 = vmatprep.subr.bf16.mxu0 %v13749
    %14297 = vmatpush1.bf16.msra.mxu0 %v13748
    %14298 = vmatprep.mubr.bf16.mxu0 %v12799
    %14299 = vmatmul.mubr.bf16.gmra.mrb[0].mxu0 %v12798
    %v14300 = vpop.f32.mrb[0].mxu0
    %v14301 = vadd.f32 %v14260, %v14300
    %v14302 = vpop.f32.mrb[0].mxu0
    %v14303 = vadd.f32 %v14262, %v14302
    %v14304 = vpop.f32.mrb[0].mxu0
    %v14305 = vpop.f32.mrb[0].mxu0
    %14306 = vdwg.mxu0
    %14307 = vmatprep.subr.bf16.mxu0 %v13751
    %14308 = vmatpush1.bf16.msra.mxu0 %v13750
    %14309 = vmatprep.subr.bf16.mxu0 %v13753
    %14310 = vmatpush1.bf16.msra.mxu0 %v13752
    %14311 = vmatprep.subr.bf16.mxu0 %v13755
    %14312 = vmatpush1.bf16.msra.mxu0 %v13754
    %14313 = vmatprep.subr.bf16.mxu0 %v13757
    %14314 = vmatpush1.bf16.msra.mxu0 %v13756
    %14315 = vmatprep.subr.bf16.mxu0 %v13759
    %14316 = vmatpush1.bf16.msra.mxu0 %v13758
    %14317 = vmatprep.subr.bf16.mxu0 %v13761
    %14318 = vmatpush1.bf16.msra.mxu0 %v13760
    %14319 = vmatprep.subr.bf16.mxu0 %v13763
    %14320 = vmatpush1.bf16.msra.mxu0 %v13762
    %14321 = vmatprep.subr.bf16.mxu0 %v13765
    %14322 = vmatpush1.bf16.msra.mxu0 %v13764
    %14323 = vmatprep.subr.bf16.mxu0 %v13767
    %14324 = vmatpush1.bf16.msra.mxu0 %v13766
    %14325 = vmatprep.subr.bf16.mxu0 %v13769
    %14326 = vmatpush1.bf16.msra.mxu0 %v13768
    %14327 = vmatprep.subr.bf16.mxu0 %v13771
    %14328 = vmatpush1.bf16.msra.mxu0 %v13770
    %14329 = vmatprep.subr.bf16.mxu0 %v13773
    %14330 = vmatpush1.bf16.msra.mxu0 %v13772
    %14331 = vmatprep.subr.bf16.mxu0 %v13775
    %14332 = vmatpush1.bf16.msra.mxu0 %v13774
    %14333 = vmatprep.subr.bf16.mxu0 %v13777
    %14334 = vmatpush1.bf16.msra.mxu0 %v13776
    %14335 = vmatprep.subr.bf16.mxu0 %v13779
    %14336 = vmatpush1.bf16.msra.mxu0 %v13778
    %14337 = vmatprep.subr.bf16.mxu0 %v13781
    %14338 = vmatpush1.bf16.msra.mxu0 %v13780
    %14339 = vmatprep.mubr.bf16.mxu0 %v12801
    %14340 = vmatmul.mubr.bf16.gmra.mrb[0].mxu0 %v12800
    %v14341 = vpop.f32.mrb[0].mxu0
    %v14342 = vadd.f32 %v14301, %v14341
    %v14343 = vpop.f32.mrb[0].mxu0
    %v14344 = vadd.f32 %v14303, %v14343
    %v14345 = vpop.f32.mrb[0].mxu0
    %v14346 = vpop.f32.mrb[0].mxu0
    %14347 = vdwg.mxu0
    %14348 = vmatprep.subr.bf16.mxu0 %v13783
    %14349 = vmatpush1.bf16.msra.mxu0 %v13782
    %14350 = vmatprep.subr.bf16.mxu0 %v13785
    %14351 = vmatpush1.bf16.msra.mxu0 %v13784
    %14352 = vmatprep.subr.bf16.mxu0 %v13787
    %14353 = vmatpush1.bf16.msra.mxu0 %v13786
    %14354 = vmatprep.subr.bf16.mxu0 %v13789
    %14355 = vmatpush1.bf16.msra.mxu0 %v13788
    %14356 = vmatprep.subr.bf16.mxu0 %v13791
    %14357 = vmatpush1.bf16.msra.mxu0 %v13790
    %14358 = vmatprep.subr.bf16.mxu0 %v13793
    %14359 = vmatpush1.bf16.msra.mxu0 %v13792
    %14360 = vmatprep.subr.bf16.mxu0 %v13795
    %14361 = vmatpush1.bf16.msra.mxu0 %v13794
    %14362 = vmatprep.subr.bf16.mxu0 %v13797
    %14363 = vmatpush1.bf16.msra.mxu0 %v13796
    %14364 = vmatprep.subr.bf16.mxu0 %v13799
    %14365 = vmatpush1.bf16.msra.mxu0 %v13798
    %14366 = vmatprep.subr.bf16.mxu0 %v13801
    %14367 = vmatpush1.bf16.msra.mxu0 %v13800
    %14368 = vmatprep.subr.bf16.mxu0 %v13803
    %14369 = vmatpush1.bf16.msra.mxu0 %v13802
    %14370 = vmatprep.subr.bf16.mxu0 %v13805
    %14371 = vmatpush1.bf16.msra.mxu0 %v13804
    %14372 = vmatprep.subr.bf16.mxu0 %v13807
    %14373 = vmatpush1.bf16.msra.mxu0 %v13806
    %14374 = vmatprep.subr.bf16.mxu0 %v13809
    %14375 = vmatpush1.bf16.msra.mxu0 %v13808
    %14376 = vmatprep.subr.bf16.mxu0 %v13811
    %14377 = vmatpush1.bf16.msra.mxu0 %v13810
    %14378 = vmatprep.subr.bf16.mxu0 %v13813
    %14379 = vmatpush1.bf16.msra.mxu0 %v13812
    %14380 = vmatprep.mubr.bf16.mxu0 %v12803
    %14381 = vmatmul.mubr.bf16.gmra.mrb[0].mxu0 %v12802
    %v14382 = vpop.f32.mrb[0].mxu0
    %v14383 = vadd.f32 %v14342, %v14382
    %v14384 = vpop.f32.mrb[0].mxu0
    %v14385 = vadd.f32 %v14344, %v14384
    %v14386 = vpop.f32.mrb[0].mxu0
    %v14387 = vpop.f32.mrb[0].mxu0
    %14388 = vdwg.mxu0
    %14389 = vmatprep.subr.bf16.mxu0 %v13815
    %14390 = vmatpush1.bf16.msra.mxu0 %v13814
    %14391 = vmatprep.subr.bf16.mxu0 %v13817
    %14392 = vmatpush1.bf16.msra.mxu0 %v13816
    %14393 = vmatprep.subr.bf16.mxu0 %v13819
    %14394 = vmatpush1.bf16.msra.mxu0 %v13818
    %14395 = vmatprep.subr.bf16.mxu0 %v13821
    %14396 = vmatpush1.bf16.msra.mxu0 %v13820
    %14397 = vmatprep.subr.bf16.mxu0 %v13823
    %14398 = vmatpush1.bf16.msra.mxu0 %v13822
    %14399 = vmatprep.subr.bf16.mxu0 %v13825
    %14400 = vmatpush1.bf16.msra.mxu0 %v13824
    %14401 = vmatprep.subr.bf16.mxu0 %v13827
    %14402 = vmatpush1.bf16.msra.mxu0 %v13826
    %14403 = vmatprep.subr.bf16.mxu0 %v13829
    %14404 = vmatpush1.bf16.msra.mxu0 %v13828
    %14405 = vmatprep.subr.bf16.mxu0 %v13831
    %14406 = vmatpush1.bf16.msra.mxu0 %v13830
    %14407 = vmatprep.subr.bf16.mxu0 %v13833
    %14408 = vmatpush1.bf16.msra.mxu0 %v13832
    %14409 = vmatprep.subr.bf16.mxu0 %v13835
    %14410 = vmatpush1.bf16.msra.mxu0 %v13834
    %14411 = vmatprep.subr.bf16.mxu0 %v13837
    %14412 = vmatpush1.bf16.msra.mxu0 %v13836
    %14413 = vmatprep.subr.bf16.mxu0 %v13839
    %14414 = vmatpush1.bf16.msra.mxu0 %v13838
    %14415 = vmatprep.subr.bf16.mxu0 %v13841
    %14416 = vmatpush1.bf16.msra.mxu0 %v13840
    %14417 = vmatprep.subr.bf16.mxu0 %v13843
    %14418 = vmatpush1.bf16.msra.mxu0 %v13842
    %14419 = vmatprep.subr.bf16.mxu0 %v13845
    %14420 = vmatpush1.bf16.msra.mxu0 %v13844
    %14421 = vmatprep.mubr.bf16.mxu0 %v12805
    %14422 = vmatmul.mubr.bf16.gmra.mrb[0].mxu0 %v12804
    %v14423 = vpop.f32.mrb[0].mxu0
    %v14424 = vadd.f32 %v14383, %v14423
    %v14425 = vpop.f32.mrb[0].mxu0
    %v14426 = vadd.f32 %v14385, %v14425
    %v14427 = vpop.f32.mrb[0].mxu0
    %v14428 = vpop.f32.mrb[0].mxu0
    %14429 = vdwg.mxu0
    %v14430 = vmax.f32 %v14424, 0.0
    %v14431 = vmax.f32 %v14426, 0.0
    %v14432 = vmul.f32 %v14430, %v14430
    %v14433 = vmul.f32 %v14431, %v14431
    %v14434 = vsel %vm2433, %v14432, 0.0
    %v14435 = vsel %vm2433, %v14433, 0.0
    %v14436 = vadd.f32 %v14434, %v14435
    %14437 = vadd.xlane.f32.xlu0 %v14436
    %v14438 = vpop.xlane.xlu0 %14437
    %v14439 = vmax.f32 %v14438, 1e-24
    %v14440 = vrsqrt.pop %v14439
    %v14441 = vmul.f32 %v14440, 10.0
    %v14442 = vmul.f32 %v14430, %v14441
    %v14443 = vmul.f32 %v14431, %v14441
    %v14446 = vcombine.low %v14442, %v14443
    %v14448 = vunpack.c.l.s4 1983009808
    %v14449 = vunpack.c.0.s8 %v14448
    %v14450 = vlaneseq
    %v14451 = vshrl.u32 %v14450, 7
    %v14452 = vsub.s32 %v14449, %v14451
    %v14453 = vrot.slane %v14446, %v14452
    %14455 = vst [vmem:[#allocation8 + $0x14] sm:$0xf] %v14453
    // Predicated region
    $region26: #{tpu_custom_call.1} parent=1 // pred_check
      _
    $region27: #{tpu_custom_call.1} parent=1 // pred_check_branch
      %14457 = sbr.rel (0) target = $region29
    $region28: #{tpu_custom_call.1} parent=1 // pred_region
      %s14459 = ssub.s32 384, 384
      %14460 = vsyncadd [#allocation4], %s14459
      %s14462 = sshll.u32 [#allocation8], 4
      %s14463 = int_to_ptr.vmem [resolvable:$true] %s14462
      %14465 = dma.vmem_to_hbm [thread:$0]  %s14463, 384, %s3, [#allocation4]
    $region29: #{tpu_custom_call.1} parent=1 // pred_fallthru
      _
    // Predicated region
    $region30: #{tpu_custom_call.1} parent=1 // pred_check
      _
    $region31: #{tpu_custom_call.1} parent=1 // pred_check_branch
      %14467 = sbr.rel (0) target = $region33
    $region32: #{tpu_custom_call.1} parent=1 // pred_region
      %14468 = dma.done [#allocation4], 384
    $region33: #{tpu_custom_call.1} parent=1 // pred_fallthru
      _
    %14469 = vsyncpa [#allocation3], 1
    %14470 = vsyncpa [#allocation6], 1
    %14471 = vsyncpa [#allocation4], 1

</llo_original>
